<compile_context>
chip_gen: v7x
topology: tpu7x:2x2x1
jax: 0.10.0
libtpu: 0.0.40
codegen_flags: <defaults>
</compile_context>

<pallas_src>
import functools
import math

import jax
import jax.numpy as jnp
from jax import lax
from jax.experimental import pallas as pl
from jax.experimental.pallas import tpu as pltpu


def _round_up(x, m):
    return (x + m - 1) // m * m


# --------------------------------------------------------------------------
# Pallas kernel 1: fused (im2col) matmul + per-channel affine + ReLU
#   out = act((a @ b) * scale + shift)     (conv bias pre-folded into shift)
# --------------------------------------------------------------------------
def _fused_matmul_kernel(a_ref, b_ref, scale_ref, shift_ref, o_ref, acc_ref,
                         *, relu):
    k = pl.program_id(2)

    @pl.when(k == 0)
    def _():
        acc_ref[...] = jnp.zeros_like(acc_ref)

    acc_ref[...] += jnp.dot(a_ref[...], b_ref[...],
                            preferred_element_type=jnp.float32)

    @pl.when(k == pl.num_programs(2) - 1)
    def _():
        y = acc_ref[...] * scale_ref[...] + shift_ref[...]
        if relu:
            y = jnp.maximum(y, 0.0)
        o_ref[...] = y.astype(o_ref.dtype)


def fused_matmul(a, b, scale, shift, relu=True, out_dtype=jnp.bfloat16):
    """act((a @ b) * scale + shift); a:(M,K) b:(K,N) scale/shift:(N,)."""
    M, K = a.shape
    _, N = b.shape

    tm = 256 if M > 256 else _round_up(M, 8)
    tn = 256 if N > 256 else _round_up(N, 128)
    tk = 256 if K > 256 else _round_up(K, 128)
    Mp = _round_up(M, tm)
    Np = _round_up(N, tn)
    Kp = _round_up(K, tk)

    a_p = jnp.pad(a.astype(jnp.bfloat16), ((0, Mp - M), (0, Kp - K)))
    b_p = jnp.pad(b.astype(jnp.bfloat16), ((0, Kp - K), (0, Np - N)))
    scale_p = jnp.pad(scale.astype(jnp.float32), (0, Np - N)).reshape(1, Np)
    shift_p = jnp.pad(shift.astype(jnp.float32), (0, Np - N)).reshape(1, Np)

    grid = (Mp // tm, Np // tn, Kp // tk)

    out = pl.pallas_call(
        functools.partial(_fused_matmul_kernel, relu=relu),
        out_shape=jax.ShapeDtypeStruct((Mp, Np), out_dtype),
        grid_spec=pltpu.PrefetchScalarGridSpec(
            num_scalar_prefetch=0,
            grid=grid,
            in_specs=[
                pl.BlockSpec((tm, tk), lambda i, j, k: (i, k)),
                pl.BlockSpec((tk, tn), lambda i, j, k: (k, j)),
                pl.BlockSpec((1, tn), lambda i, j, k: (0, j)),
                pl.BlockSpec((1, tn), lambda i, j, k: (0, j)),
            ],
            out_specs=pl.BlockSpec((tm, tn), lambda i, j, k: (i, j)),
            scratch_shapes=[pltpu.VMEM((tm, tn), jnp.float32)],
        ),
        # Tiles (<=256x256) keep double-buffered VMEM use far below the 32 MiB
        # scoped default on v5e/v6e/v7x, so no vmem_limit bump is required.
        compiler_params=pltpu.CompilerParams(
            dimension_semantics=("parallel", "parallel", "arbitrary")),
    )(a_p, b_p, scale_p, shift_p)
    return out[:M, :N]


# --------------------------------------------------------------------------
# Pallas kernel 2: fused 1x1 MLP head (128 -> 1024 ReLU -> out_chan ReLU)
# The 1024-wide intermediate lives entirely in VMEM/vregs per M-tile.
# --------------------------------------------------------------------------
def _mlp_head_kernel(x_ref, w1_ref, b1_ref, w2_ref, b2_ref, o_ref):
    h = jnp.dot(x_ref[...], w1_ref[...], preferred_element_type=jnp.float32)
    h = jnp.maximum(h + b1_ref[...], 0.0)
    y = jnp.dot(h.astype(w2_ref.dtype), w2_ref[...],
                preferred_element_type=jnp.float32)
    o_ref[...] = jnp.maximum(y + b2_ref[...], 0.0).astype(o_ref.dtype)


def mlp_head_1x1(x, p1, p2):
    """Two 1x1 ConvBlocks (no BN, ReLU each) fused; x: (N,H,W,C) -> (N,H,W,cout)."""
    N, H, W, C = x.shape
    M = N * H * W
    hid = p1['w'].shape[-1]
    cout = p2['w'].shape[-1]

    tm = 256 if M > 256 else _round_up(M, 8)
    Mp = _round_up(M, tm)
    Cp = _round_up(C, 128)
    Hp = _round_up(hid, 128)
    Np = _round_up(cout, 128)

    x2 = jnp.pad(x.reshape(M, C).astype(jnp.bfloat16),
                 ((0, Mp - M), (0, Cp - C)))
    w1 = jnp.pad(p1['w'].reshape(C, hid).astype(jnp.bfloat16),
                 ((0, Cp - C), (0, Hp - hid)))
    b1 = jnp.pad(p1['b'].astype(jnp.float32), (0, Hp - hid)).reshape(1, Hp)
    w2 = jnp.pad(p2['w'].reshape(hid, cout).astype(jnp.bfloat16),
                 ((0, Hp - hid), (0, Np - cout)))
    b2 = jnp.pad(p2['b'].astype(jnp.float32), (0, Np - cout)).reshape(1, Np)

    out = pl.pallas_call(
        _mlp_head_kernel,
        out_shape=jax.ShapeDtypeStruct((Mp, Np), jnp.float32),
        grid_spec=pltpu.PrefetchScalarGridSpec(
            num_scalar_prefetch=0,
            grid=(Mp // tm,),
            in_specs=[
                pl.BlockSpec((tm, Cp), lambda i: (i, 0)),
                pl.BlockSpec((Cp, Hp), lambda i: (0, 0)),
                pl.BlockSpec((1, Hp), lambda i: (0, 0)),
                pl.BlockSpec((Hp, Np), lambda i: (0, 0)),
                pl.BlockSpec((1, Np), lambda i: (0, 0)),
            ],
            out_specs=pl.BlockSpec((tm, Np), lambda i: (i, 0)),
        ),
        compiler_params=pltpu.CompilerParams(
            dimension_semantics=("parallel",)),
    )(x2, w1, b1, w2, b2)
    return out[:M, :cout].reshape(N, H, W, cout)


# --------------------------------------------------------------------------
# Pallas kernel 3: 2x2 / stride-2 max-pool, gridded, single input.
# Input is viewed (free, contiguous reshape) as (N, H/2, 2, W/2, 2*C) so the
# 2x2 window becomes: max over the "2" row dim, then max of lane halves.
# --------------------------------------------------------------------------
def _maxpool_kernel(x_ref, o_ref):
    c = o_ref.shape[-1]
    rm = jnp.maximum(x_ref[:, :, 0, :, :], x_ref[:, :, 1, :, :])  # (1,th,W2,2C)
    o_ref[...] = jnp.maximum(rm[..., :c], rm[..., c:])


def maxpool2x2(x):
    N, H, W, C = x.shape
    H2, W2 = H // 2, W // 2
    x = x[:, :2 * H2, :2 * W2, :]            # floor-truncate odd sizes (PyTorch)
    xr = x.reshape(N, H2, 2, W2, 2 * C)       # contiguous view, no data shuffle

    # Largest divisor of H2 whose input block stays ~<=2 MiB (pipelining).
    row_bytes = max(1, 2 * W2 * 2 * C * x.dtype.itemsize)
    limit = max(1, (2 * 1024 * 1024) // row_bytes)
    th = 1
    for d in range(1, H2 + 1):
        if H2 % d == 0 and d <= limit:
            th = d

    return pl.pallas_call(
        _maxpool_kernel,
        out_shape=jax.ShapeDtypeStruct((N, H2, W2, C), x.dtype),
        grid_spec=pltpu.PrefetchScalarGridSpec(
            num_scalar_prefetch=0,
            grid=(N, H2 // th),
            in_specs=[pl.BlockSpec((1, th, 2, W2, 2 * C),
                                   lambda n, h: (n, h, 0, 0, 0))],
            out_specs=pl.BlockSpec((1, th, W2, C),
                                   lambda n, h: (n, h, 0, 0)),
        ),
        compiler_params=pltpu.CompilerParams(
            dimension_semantics=("parallel", "parallel")),
    )(xr)


# --------------------------------------------------------------------------
# JAX glue: bilinear 2x upsample (align_corners=False) via STATIC slices.
# scale=2 weights are fixed: even out = 0.25*prev + 0.75*cur (edge-clamped),
# odd out = 0.75*cur + 0.25*next (edge-clamped).  No gathers.
# --------------------------------------------------------------------------
def upsample_bilinear_2x(x):
    def up_axis(v, axis):
        size = v.shape[axis]

        def take(lo, hi):
            idx = [slice(None)] * v.ndim
            idx[axis] = slice(lo, hi)
            return v[tuple(idx)]

        prev = jnp.concatenate([take(0, 1), take(0, size - 1)], axis=axis)
        nxt = jnp.concatenate([take(1, size), take(size - 1, size)], axis=axis)
        even = 0.25 * prev + 0.75 * v
        odd = 0.75 * v + 0.25 * nxt
        out = jnp.stack([even, odd], axis=axis + 1)
        new_shape = list(v.shape)
        new_shape[axis] = 2 * size
        return out.reshape(new_shape)

    x = up_axis(x, 1)   # H
    x = up_axis(x, 2)   # W
    return x


# --------------------------------------------------------------------------
# ConvBlock = Conv2d + [BatchNorm2d (inference)] + ReLU, via the fused matmul.
# --------------------------------------------------------------------------
_BN_EPS = 1e-5


def conv_block(x, p, *, stride, pad, use_bn, relu=True):
    w, b = p['w'], p['b']                       # w: (kh, kw, Cin, Cout)
    kh, kw, cin, cout = w.shape
    N, H, W, C = x.shape
    Ho = (H + 2 * pad - kh) // stride + 1
    Wo = (W + 2 * pad - kw) // stride + 1

    if kh == 1 and kw == 1 and stride == 1 and pad == 0:
        patches = x.reshape(N * H * W, C)
    else:
        xp = jnp.pad(x, ((0, 0), (pad, pad), (pad, pad), (0, 0)))
        # im2col: patch column ordering (ki, kj, cin) matches w.reshape below.
        cols = []
        for i in range(kh):
            for j in range(kw):
                cols.append(
                    lax.slice(xp, (0, i, j, 0),
                              (N, i + (Ho - 1) * stride + 1,
                               j + (Wo - 1) * stride + 1, C),
                              (1, stride, stride, 1)))
        patches = jnp.concatenate(cols, axis=-1).reshape(
            N * Ho * Wo, kh * kw * C)
    wmat = w.reshape(kh * kw * cin, cout)

    # BN in inference form with the module's deterministic init
    # (gamma=1, beta=0, running_mean=0, running_var=1).  Conv bias folded in:
    #   (acc + b) * s + (beta - mean*s)  ==  acc*s + (b - mean)*s + beta
    if use_bn:
        running_mean = jnp.zeros((cout,), jnp.float32)
        running_var = jnp.ones((cout,), jnp.float32)
        scale = p['gamma'] / jnp.sqrt(running_var + _BN_EPS)
        shift = (b - running_mean) * scale + p['beta']
    else:
        scale = jnp.ones((cout,), jnp.float32)
        shift = b

    y = fused_matmul(patches, wmat, scale, shift, relu=relu)
    return y.reshape(N, Ho, Wo, cout)


# --------------------------------------------------------------------------
# Decoder / Scene_Embed2 forward
# --------------------------------------------------------------------------
def decoder_fwd(f1, f2, f3, p):
    x = upsample_bilinear_2x(f3)
    x = jnp.concatenate([f2, x], axis=-1)            # cat along channels
    x = conv_block(x, p['dec1'][0], stride=1, pad=1, use_bn=True)
    x = conv_block(x, p['dec1'][1], stride=1, pad=1, use_bn=True)
    x = upsample_bilinear_2x(x)
    x = jnp.concatenate([f1, x], axis=-1)
    x = conv_block(x, p['dec2'][0], stride=1, pad=1, use_bn=True)
    x = conv_block(x, p['dec2'][1], stride=1, pad=1, use_bn=True)
    out = mlp_head_1x1(x, p['last'][0], p['last'][1])   # fused 1x1 pair
    return out, x


def scene_embed2_fwd(img_nchw, params):
    # NCHW (PyTorch) -> NHWC (kernel layout)
    x = jnp.transpose(img_nchw, (0, 2, 3, 1))

    # conv1 (9x9 s2 goes through the same M-tiled bf16 matmul path)
    x = conv_block(x, params['conv1'][0], stride=2, pad=4, use_bn=True)
    x = conv_block(x, params['conv1'][1], stride=1, pad=1, use_bn=True)
    x = conv_block(x, params['conv1'][2], stride=1, pad=1, use_bn=True)

    # conv2 = MaxPool + BasicBlock(3 ConvBlocks)
    x = maxpool2x2(x)
    for p in params['conv2']:
        x = conv_block(x, p, stride=1, pad=1, use_bn=True)

    # conv3
    y = maxpool2x2(x)
    for p in params['conv3']:
        y = conv_block(y, p, stride=1, pad=1, use_bn=True)

    # conv4
    z = maxpool2x2(y)
    for p in params['conv4']:
        z = conv_block(z, p, stride=1, pad=1, use_bn=True)

    context, _f1 = decoder_fwd(x, y, z, params['context'])
    perspect, _f2 = decoder_fwd(x, y, z, params['perspect'])

    # back to NCHW to match the PyTorch module outputs (pretrained=False path)
    context = jnp.transpose(context, (0, 3, 1, 2))
    perspect = jnp.transpose(perspect, (0, 3, 1, 2))
    return context, perspect


# --------------------------------------------------------------------------
# Deterministic parameter init (kaiming_normal fan_in, bias=0, BN gamma=1/beta=0)
# --------------------------------------------------------------------------
def _init_conv(key, cin, cout, k, use_bn):
    fan_in = cin * k * k
    std = math.sqrt(2.0 / fan_in)
    w = std * jax.random.normal(key, (k, k, cin, cout), jnp.float32)
    p = {'w': w, 'b': jnp.zeros((cout,), jnp.float32)}
    if use_bn:
        p['gamma'] = jnp.ones((cout,), jnp.float32)
        p['beta'] = jnp.zeros((cout,), jnp.float32)
    return p


def init_params(key, n_class=5):
    keys = iter(jax.random.split(key, 64))

    def cb(cin, cout, k, bn=True):
        return _init_conv(next(keys), cin, cout, k, bn)

    def decoder(out_chan):
        return {
            'dec1': [cb(256, 128, 3), cb(128, 128, 3)],
            'dec2': [cb(192, 128, 3), cb(128, 128, 3)],
            'last': [cb(128, 1024, 1, bn=False), cb(1024, out_chan, 1, bn=False)],
        }

    return {
        'conv1': [cb(3, 32, 9), cb(32, 64, 3), cb(64, 64, 3)],
        'conv2': [cb(64, 64, 3), cb(64, 64, 3), cb(64, 64, 3)],
        'conv3': [cb(64, 128, 3), cb(128, 128, 3), cb(128, 128, 3)],
        'conv4': [cb(128, 128, 3), cb(128, 128, 3), cb(128, 128, 3)],
        'context': decoder(n_class),
        'perspect': decoder(1),
    }


if __name__ == "__main__":
    key = jax.random.PRNGKey(0)
    pkey, xkey = jax.random.split(key)
    params = init_params(pkey, n_class=5)

    # Small input consistent with the module: NCHW, in_dim=3.
    img = jax.random.normal(xkey, (2, 3, 16, 16), jnp.float32)

    fwd = jax.jit(scene_embed2_fwd)
    context, perspect = fwd(img, params)
    jax.block_until_ready((context, perspect))

    assert context.shape == (2, 5, 4, 4), context.shape    # n_class=5, H/4
    assert perspect.shape == (2, 1, 4, 4), perspect.shape  # 1 channel, H/4
    assert context.dtype == jnp.float32 and perspect.dtype == jnp.float32
    print("KERNEL_OK")
</pallas_src>

<mosaic_0001>
module attributes {stable_mosaic.version = 11 : i64} {
  func.func @_fused_matmul_kernel(%arg0: i32, %arg1: i32, %arg2: i32, %arg3: memref<128x256xbf16, #tpu.memory_space<vmem>>, %arg4: memref<256x128xbf16, #tpu.memory_space<vmem>>, %arg5: memref<1x128xf32, #tpu.memory_space<vmem>>, %arg6: memref<1x128xf32, #tpu.memory_space<vmem>>, %arg7: memref<128x128xbf16, #tpu.memory_space<vmem>>, %arg8: memref<128x128xf32, #tpu.memory_space<vmem>>) attributes {dimension_semantics = [#tpu.dimension_semantics<parallel>, #tpu.dimension_semantics<parallel>, #tpu.dimension_semantics<arbitrary>], iteration_bounds = array<i64: 1, 1, 1>, scalar_prefetch = 0 : i64, scratch_operands = 1 : i64, tpu.core_type = #tpu.core_type<tc>, window_params = [{transform_indices = @transform_0, window_bounds = array<i64: 128, 256>}, {transform_indices = @transform_1, window_bounds = array<i64: 256, 128>}, {transform_indices = @transform_2, window_bounds = array<i64: 1, 128>}, {transform_indices = @transform_3, window_bounds = array<i64: 1, 128>}, {transform_indices = @transform_4, window_bounds = array<i64: 128, 128>}]} {
    %c0_i32 = arith.constant 0 : i32
    %0 = arith.cmpi eq, %arg2, %c0_i32 : i32
    %1 = arith.extui %0 : i1 to i32
    %c0_i32_0 = arith.constant 0 : i32
    %2 = arith.cmpi ne, %1, %c0_i32_0 : i32
    scf.if %2 {
      %cst_10 = arith.constant 0.000000e+00 : f32
      %12 = vector.broadcast %cst_10 : f32 to vector<128x128xf32>
      %c0_11 = arith.constant 0 : index
      %c0_12 = arith.constant 0 : index
      %13 = vector.load %arg8[%c0_11, %c0_12] : memref<128x128xf32, #tpu.memory_space<vmem>>, vector<128x128xf32>
      tpu.vector_store %arg8[%c0_11, %c0_12], %12 {strides = array<i32>} : memref<128x128xf32, #tpu.memory_space<vmem>>, vector<128x128xf32>,
    } else {
    }
    %c0 = arith.constant 0 : index
    %c0_1 = arith.constant 0 : index
    %3 = vector.load %arg8[%c0, %c0_1] : memref<128x128xf32, #tpu.memory_space<vmem>>, vector<128x128xf32>
    %c0_2 = arith.constant 0 : index
    %c0_3 = arith.constant 0 : index
    %4 = vector.load %arg3[%c0_2, %c0_3] : memref<128x256xbf16, #tpu.memory_space<vmem>>, vector<128x256xbf16>
    %c0_4 = arith.constant 0 : index
    %c0_5 = arith.constant 0 : index
    %5 = vector.load %arg4[%c0_4, %c0_5] : memref<256x128xbf16, #tpu.memory_space<vmem>>, vector<256x128xbf16>
    %cst = arith.constant dense<0.000000e+00> : vector<128x128xf32>
    %6 = tpu.matmul %4, %5, %cst {dimension_numbers = #tpu.dot_dimension_numbers<[1], [0], [0], [1], [0, 0, 1, 1], [], []>} : vector<128x256xbf16>, vector<256x128xbf16>, vector<128x128xf32> -> vector<128x128xf32>
    %7 = arith.addf %3, %6 : vector<128x128xf32>
    %c0_6 = arith.constant 0 : index
    %c0_7 = arith.constant 0 : index
    %8 = vector.load %arg8[%c0_6, %c0_7] : memref<128x128xf32, #tpu.memory_space<vmem>>, vector<128x128xf32>
    tpu.vector_store %arg8[%c0_6, %c0_7], %7 {strides = array<i32>} : memref<128x128xf32, #tpu.memory_space<vmem>>, vector<128x128xf32>,
    %c0_i32_8 = arith.constant 0 : i32
    %9 = arith.cmpi eq, %arg2, %c0_i32_8 : i32
    %10 = arith.extui %9 : i1 to i32
    %c0_i32_9 = arith.constant 0 : i32
    %11 = arith.cmpi ne, %10, %c0_i32_9 : i32
    scf.if %11 {
      %c0_10 = arith.constant 0 : index
      %c0_11 = arith.constant 0 : index
      %12 = vector.load %arg8[%c0_10, %c0_11] : memref<128x128xf32, #tpu.memory_space<vmem>>, vector<128x128xf32>
      %c0_12 = arith.constant 0 : index
      %c0_13 = arith.constant 0 : index
      %13 = vector.load %arg5[%c0_12, %c0_13] : memref<1x128xf32, #tpu.memory_space<vmem>>, vector<1x128xf32>
      %14 = vector.broadcast %13 : vector<1x128xf32> to vector<128x128xf32>
      %15 = arith.mulf %12, %14 : vector<128x128xf32>
      %c0_14 = arith.constant 0 : index
      %c0_15 = arith.constant 0 : index
      %16 = vector.load %arg6[%c0_14, %c0_15] : memref<1x128xf32, #tpu.memory_space<vmem>>, vector<1x128xf32>
      %17 = vector.broadcast %16 : vector<1x128xf32> to vector<128x128xf32>
      %18 = arith.addf %15, %17 : vector<128x128xf32>
      %cst_16 = arith.constant 0.000000e+00 : f32
      %19 = vector.broadcast %cst_16 : f32 to vector<128x128xf32>
      %20 = arith.maximumf %18, %19 : vector<128x128xf32>
      %21 = arith.truncf %20 : vector<128x128xf32> to vector<128x128xbf16>
      %c0_17 = arith.constant 0 : index
      %c0_18 = arith.constant 0 : index
      %22 = vector.load %arg7[%c0_17, %c0_18] : memref<128x128xbf16, #tpu.memory_space<vmem>>, vector<128x128xbf16>
      tpu.vector_store %arg7[%c0_17, %c0_18], %21 {strides = array<i32>} : memref<128x128xbf16, #tpu.memory_space<vmem>>, vector<128x128xbf16>,
    } else {
    }
    return
  }
  func.func @transform_0(%arg0: i32, %arg1: i32, %arg2: i32) -> (i32, i32) {
    %c0_i32 = arith.constant 0 : i32
    return %arg0, %arg2 : i32, i32
  }
  func.func @transform_1(%arg0: i32, %arg1: i32, %arg2: i32) -> (i32, i32) {
    %c0_i32 = arith.constant 0 : i32
    return %arg2, %arg1 : i32, i32
  }
  func.func @transform_2(%arg0: i32, %arg1: i32, %arg2: i32) -> (i32, i32) {
    %c0_i32 = arith.constant 0 : i32
    %c0_i32_0 = arith.constant 0 : i32
    return %c0_i32, %arg1 : i32, i32
  }
  func.func @transform_3(%arg0: i32, %arg1: i32, %arg2: i32) -> (i32, i32) {
    %c0_i32 = arith.constant 0 : i32
    %c0_i32_0 = arith.constant 0 : i32
    return %c0_i32, %arg1 : i32, i32
  }
  func.func @transform_4(%arg0: i32, %arg1: i32, %arg2: i32) -> (i32, i32) {
    %c0_i32 = arith.constant 0 : i32
    return %arg0, %arg1 : i32, i32
  }
}

module attributes {stable_mosaic.version = 11 : i64} {
  func.func @_fused_matmul_kernel(%arg0: i32, %arg1: i32, %arg2: i32, %arg3: memref<128x256xbf16, #tpu.memory_space<vmem>>, %arg4: memref<256x128xbf16, #tpu.memory_space<vmem>>, %arg5: memref<1x128xf32, #tpu.memory_space<vmem>>, %arg6: memref<1x128xf32, #tpu.memory_space<vmem>>, %arg7: memref<128x128xbf16, #tpu.memory_space<vmem>>, %arg8: memref<128x128xf32, #tpu.memory_space<vmem>>) attributes {dimension_semantics = [#tpu.dimension_semantics<parallel>, #tpu.dimension_semantics<parallel>, #tpu.dimension_semantics<arbitrary>], iteration_bounds = array<i64: 1, 1, 2>, scalar_prefetch = 0 : i64, scratch_operands = 1 : i64, tpu.core_type = #tpu.core_type<tc>, window_params = [{transform_indices = @transform_0, window_bounds = array<i64: 128, 256>}, {transform_indices = @transform_1, window_bounds = array<i64: 256, 128>}, {transform_indices = @transform_2, window_bounds = array<i64: 1, 128>}, {transform_indices = @transform_3, window_bounds = array<i64: 1, 128>}, {transform_indices = @transform_4, window_bounds = array<i64: 128, 128>}]} {
    %c0_i32 = arith.constant 0 : i32
    %0 = arith.cmpi eq, %arg2, %c0_i32 : i32
    %1 = arith.extui %0 : i1 to i32
    %c0_i32_0 = arith.constant 0 : i32
    %2 = arith.cmpi ne, %1, %c0_i32_0 : i32
    scf.if %2 {
      %cst_9 = arith.constant 0.000000e+00 : f32
      %12 = vector.broadcast %cst_9 : f32 to vector<128x128xf32>
      %c0_10 = arith.constant 0 : index
      %c0_11 = arith.constant 0 : index
      %13 = vector.load %arg8[%c0_10, %c0_11] : memref<128x128xf32, #tpu.memory_space<vmem>>, vector<128x128xf32>
      tpu.vector_store %arg8[%c0_10, %c0_11], %12 {strides = array<i32>} : memref<128x128xf32, #tpu.memory_space<vmem>>, vector<128x128xf32>,
    } else {
    }
    %c0 = arith.constant 0 : index
    %c0_1 = arith.constant 0 : index
    %3 = vector.load %arg8[%c0, %c0_1] : memref<128x128xf32, #tpu.memory_space<vmem>>, vector<128x128xf32>
    %c0_2 = arith.constant 0 : index
    %c0_3 = arith.constant 0 : index
    %4 = vector.load %arg3[%c0_2, %c0_3] : memref<128x256xbf16, #tpu.memory_space<vmem>>, vector<128x256xbf16>
    %c0_4 = arith.constant 0 : index
    %c0_5 = arith.constant 0 : index
    %5 = vector.load %arg4[%c0_4, %c0_5] : memref<256x128xbf16, #tpu.memory_space<vmem>>, vector<256x128xbf16>
    %cst = arith.constant dense<0.000000e+00> : vector<128x128xf32>
    %6 = tpu.matmul %4, %5, %cst {dimension_numbers = #tpu.dot_dimension_numbers<[1], [0], [0], [1], [0, 0, 1, 1], [], []>} : vector<128x256xbf16>, vector<256x128xbf16>, vector<128x128xf32> -> vector<128x128xf32>
    %7 = arith.addf %3, %6 : vector<128x128xf32>
    %c0_6 = arith.constant 0 : index
    %c0_7 = arith.constant 0 : index
    %8 = vector.load %arg8[%c0_6, %c0_7] : memref<128x128xf32, #tpu.memory_space<vmem>>, vector<128x128xf32>
    tpu.vector_store %arg8[%c0_6, %c0_7], %7 {strides = array<i32>} : memref<128x128xf32, #tpu.memory_space<vmem>>, vector<128x128xf32>,
    %c1_i32 = arith.constant 1 : i32
    %9 = arith.cmpi eq, %arg2, %c1_i32 : i32
    %10 = arith.extui %9 : i1 to i32
    %c0_i32_8 = arith.constant 0 : i32
    %11 = arith.cmpi ne, %10, %c0_i32_8 : i32
    scf.if %11 {
      %c0_9 = arith.constant 0 : index
      %c0_10 = arith.constant 0 : index
      %12 = vector.load %arg8[%c0_9, %c0_10] : memref<128x128xf32, #tpu.memory_space<vmem>>, vector<128x128xf32>
      %c0_11 = arith.constant 0 : index
      %c0_12 = arith.constant 0 : index
      %13 = vector.load %arg5[%c0_11, %c0_12] : memref<1x128xf32, #tpu.memory_space<vmem>>, vector<1x128xf32>
      %14 = vector.broadcast %13 : vector<1x128xf32> to vector<128x128xf32>
      %15 = arith.mulf %12, %14 : vector<128x128xf32>
      %c0_13 = arith.constant 0 : index
      %c0_14 = arith.constant 0 : index
      %16 = vector.load %arg6[%c0_13, %c0_14] : memref<1x128xf32, #tpu.memory_space<vmem>>, vector<1x128xf32>
      %17 = vector.broadcast %16 : vector<1x128xf32> to vector<128x128xf32>
      %18 = arith.addf %15, %17 : vector<128x128xf32>
      %cst_15 = arith.constant 0.000000e+00 : f32
      %19 = vector.broadcast %cst_15 : f32 to vector<128x128xf32>
      %20 = arith.maximumf %18, %19 : vector<128x128xf32>
      %21 = arith.truncf %20 : vector<128x128xf32> to vector<128x128xbf16>
      %c0_16 = arith.constant 0 : index
      %c0_17 = arith.constant 0 : index
      %22 = vector.load %arg7[%c0_16, %c0_17] : memref<128x128xbf16, #tpu.memory_space<vmem>>, vector<128x128xbf16>
      tpu.vector_store %arg7[%c0_16, %c0_17], %21 {strides = array<i32>} : memref<128x128xbf16, #tpu.memory_space<vmem>>, vector<128x128xbf16>,
    } else {
    }
    return
  }
  func.func @transform_0(%arg0: i32, %arg1: i32, %arg2: i32) -> (i32, i32) {
    %c0_i32 = arith.constant 0 : i32
    return %arg0, %arg2 : i32, i32
  }
  func.func @transform_1(%arg0: i32, %arg1: i32, %arg2: i32) -> (i32, i32) {
    %c0_i32 = arith.constant 0 : i32
    return %arg2, %arg1 : i32, i32
  }
  func.func @transform_2(%arg0: i32, %arg1: i32, %arg2: i32) -> (i32, i32) {
    %c0_i32 = arith.constant 0 : i32
    %c0_i32_0 = arith.constant 0 : i32
    return %c0_i32, %arg1 : i32, i32
  }
  func.func @transform_3(%arg0: i32, %arg1: i32, %arg2: i32) -> (i32, i32) {
    %c0_i32 = arith.constant 0 : i32
    %c0_i32_0 = arith.constant 0 : i32
    return %c0_i32, %arg1 : i32, i32
  }
  func.func @transform_4(%arg0: i32, %arg1: i32, %arg2: i32) -> (i32, i32) {
    %c0_i32 = arith.constant 0 : i32
    return %arg0, %arg1 : i32, i32
  }
}

module attributes {stable_mosaic.version = 11 : i64} {
  func.func @_maxpool_kernel(%arg0: i32, %arg1: i32, %arg2: memref<1x4x2x4x128xbf16, #tpu.memory_space<vmem>>, %arg3: memref<1x4x4x64xbf16, #tpu.memory_space<vmem>>) attributes {dimension_semantics = [#tpu.dimension_semantics<parallel>, #tpu.dimension_semantics<parallel>], iteration_bounds = array<i64: 2, 1>, scalar_prefetch = 0 : i64, scratch_operands = 0 : i64, tpu.core_type = #tpu.core_type<tc>, window_params = [{transform_indices = @transform_0, window_bounds = array<i64: 1, 4, 2, 4, 128>}, {transform_indices = @transform_1, window_bounds = array<i64: 1, 4, 4, 64>}]} {
    %c0 = arith.constant 0 : index
    %c0_0 = arith.constant 0 : index
    %c0_1 = arith.constant 0 : index
    %c0_2 = arith.constant 0 : index
    %c0_3 = arith.constant 0 : index
    %0 = vector.load %arg2[%c0, %c0_0, %c0_1, %c0_2, %c0_3] : memref<1x4x2x4x128xbf16, #tpu.memory_space<vmem>>, vector<1x4x1x4x128xbf16>
    %1 = vector.shape_cast %0 : vector<1x4x1x4x128xbf16> to vector<1x4x4x128xbf16>
    %c0_4 = arith.constant 0 : index
    %c0_5 = arith.constant 0 : index
    %c1 = arith.constant 1 : index
    %c0_6 = arith.constant 0 : index
    %c0_7 = arith.constant 0 : index
    %2 = vector.load %arg2[%c0_4, %c0_5, %c1, %c0_6, %c0_7] : memref<1x4x2x4x128xbf16, #tpu.memory_space<vmem>>, vector<1x4x1x4x128xbf16>
    %3 = vector.shape_cast %2 : vector<1x4x1x4x128xbf16> to vector<1x4x4x128xbf16>
    %4 = arith.maximumf %1, %3 : vector<1x4x4x128xbf16>
    %5 = vector.extract_strided_slice %4 {offsets = [0, 0, 0, 0], sizes = [1, 4, 4, 64], strides = [1, 1, 1, 1]} : vector<1x4x4x128xbf16> to vector<1x4x4x64xbf16>
    %6 = vector.extract_strided_slice %4 {offsets = [0, 0, 0, 64], sizes = [1, 4, 4, 64], strides = [1, 1, 1, 1]} : vector<1x4x4x128xbf16> to vector<1x4x4x64xbf16>
    %7 = arith.maximumf %5, %6 : vector<1x4x4x64xbf16>
    %c0_8 = arith.constant 0 : index
    %c0_9 = arith.constant 0 : index
    %c0_10 = arith.constant 0 : index
    %c0_11 = arith.constant 0 : index
    %8 = vector.load %arg3[%c0_8, %c0_9, %c0_10, %c0_11] : memref<1x4x4x64xbf16, #tpu.memory_space<vmem>>, vector<1x4x4x64xbf16>
    tpu.vector_store %arg3[%c0_8, %c0_9, %c0_10, %c0_11], %7 {strides = array<i32>} : memref<1x4x4x64xbf16, #tpu.memory_space<vmem>>, vector<1x4x4x64xbf16>,
    return
  }
  func.func @transform_0(%arg0: i32, %arg1: i32) -> (i32, i32, i32, i32, i32) {
    %c0_i32 = arith.constant 0 : i32
    %c0_i32_0 = arith.constant 0 : i32
    %c0_i32_1 = arith.constant 0 : i32
    %c0_i32_2 = arith.constant 0 : i32
    return %arg0, %arg1, %c0_i32, %c0_i32_0, %c0_i32_1 : i32, i32, i32, i32, i32
  }
  func.func @transform_1(%arg0: i32, %arg1: i32) -> (i32, i32, i32, i32) {
    %c0_i32 = arith.constant 0 : i32
    %c0_i32_0 = arith.constant 0 : i32
    %c0_i32_1 = arith.constant 0 : i32
    return %arg0, %arg1, %c0_i32, %c0_i32_0 : i32, i32, i32, i32
  }
}

module attributes {stable_mosaic.version = 11 : i64} {
  func.func @_fused_matmul_kernel(%arg0: i32, %arg1: i32, %arg2: i32, %arg3: memref<128x256xbf16, #tpu.memory_space<vmem>>, %arg4: memref<256x128xbf16, #tpu.memory_space<vmem>>, %arg5: memref<1x128xf32, #tpu.memory_space<vmem>>, %arg6: memref<1x128xf32, #tpu.memory_space<vmem>>, %arg7: memref<128x128xbf16, #tpu.memory_space<vmem>>, %arg8: memref<128x128xf32, #tpu.memory_space<vmem>>) attributes {dimension_semantics = [#tpu.dimension_semantics<parallel>, #tpu.dimension_semantics<parallel>, #tpu.dimension_semantics<arbitrary>], iteration_bounds = array<i64: 1, 1, 3>, scalar_prefetch = 0 : i64, scratch_operands = 1 : i64, tpu.core_type = #tpu.core_type<tc>, window_params = [{transform_indices = @transform_0, window_bounds = array<i64: 128, 256>}, {transform_indices = @transform_1, window_bounds = array<i64: 256, 128>}, {transform_indices = @transform_2, window_bounds = array<i64: 1, 128>}, {transform_indices = @transform_3, window_bounds = array<i64: 1, 128>}, {transform_indices = @transform_4, window_bounds = array<i64: 128, 128>}]} {
    %c0_i32 = arith.constant 0 : i32
    %0 = arith.cmpi eq, %arg2, %c0_i32 : i32
    %1 = arith.extui %0 : i1 to i32
    %c0_i32_0 = arith.constant 0 : i32
    %2 = arith.cmpi ne, %1, %c0_i32_0 : i32
    scf.if %2 {
      %cst_9 = arith.constant 0.000000e+00 : f32
      %12 = vector.broadcast %cst_9 : f32 to vector<128x128xf32>
      %c0_10 = arith.constant 0 : index
      %c0_11 = arith.constant 0 : index
      %13 = vector.load %arg8[%c0_10, %c0_11] : memref<128x128xf32, #tpu.memory_space<vmem>>, vector<128x128xf32>
      tpu.vector_store %arg8[%c0_10, %c0_11], %12 {strides = array<i32>} : memref<128x128xf32, #tpu.memory_space<vmem>>, vector<128x128xf32>,
    } else {
    }
    %c0 = arith.constant 0 : index
    %c0_1 = arith.constant 0 : index
    %3 = vector.load %arg8[%c0, %c0_1] : memref<128x128xf32, #tpu.memory_space<vmem>>, vector<128x128xf32>
    %c0_2 = arith.constant 0 : index
    %c0_3 = arith.constant 0 : index
    %4 = vector.load %arg3[%c0_2, %c0_3] : memref<128x256xbf16, #tpu.memory_space<vmem>>, vector<128x256xbf16>
    %c0_4 = arith.constant 0 : index
    %c0_5 = arith.constant 0 : index
    %5 = vector.load %arg4[%c0_4, %c0_5] : memref<256x128xbf16, #tpu.memory_space<vmem>>, vector<256x128xbf16>
    %cst = arith.constant dense<0.000000e+00> : vector<128x128xf32>
    %6 = tpu.matmul %4, %5, %cst {dimension_numbers = #tpu.dot_dimension_numbers<[1], [0], [0], [1], [0, 0, 1, 1], [], []>} : vector<128x256xbf16>, vector<256x128xbf16>, vector<128x128xf32> -> vector<128x128xf32>
    %7 = arith.addf %3, %6 : vector<128x128xf32>
    %c0_6 = arith.constant 0 : index
    %c0_7 = arith.constant 0 : index
    %8 = vector.load %arg8[%c0_6, %c0_7] : memref<128x128xf32, #tpu.memory_space<vmem>>, vector<128x128xf32>
    tpu.vector_store %arg8[%c0_6, %c0_7], %7 {strides = array<i32>} : memref<128x128xf32, #tpu.memory_space<vmem>>, vector<128x128xf32>,
    %c2_i32 = arith.constant 2 : i32
    %9 = arith.cmpi eq, %arg2, %c2_i32 : i32
    %10 = arith.extui %9 : i1 to i32
    %c0_i32_8 = arith.constant 0 : i32
    %11 = arith.cmpi ne, %10, %c0_i32_8 : i32
    scf.if %11 {
      %c0_9 = arith.constant 0 : index
      %c0_10 = arith.constant 0 : index
      %12 = vector.load %arg8[%c0_9, %c0_10] : memref<128x128xf32, #tpu.memory_space<vmem>>, vector<128x128xf32>
      %c0_11 = arith.constant 0 : index
      %c0_12 = arith.constant 0 : index
      %13 = vector.load %arg5[%c0_11, %c0_12] : memref<1x128xf32, #tpu.memory_space<vmem>>, vector<1x128xf32>
      %14 = vector.broadcast %13 : vector<1x128xf32> to vector<128x128xf32>
      %15 = arith.mulf %12, %14 : vector<128x128xf32>
      %c0_13 = arith.constant 0 : index
      %c0_14 = arith.constant 0 : index
      %16 = vector.load %arg6[%c0_13, %c0_14] : memref<1x128xf32, #tpu.memory_space<vmem>>, vector<1x128xf32>
      %17 = vector.broadcast %16 : vector<1x128xf32> to vector<128x128xf32>
      %18 = arith.addf %15, %17 : vector<128x128xf32>
      %cst_15 = arith.constant 0.000000e+00 : f32
      %19 = vector.broadcast %cst_15 : f32 to vector<128x128xf32>
      %20 = arith.maximumf %18, %19 : vector<128x128xf32>
      %21 = arith.truncf %20 : vector<128x128xf32> to vector<128x128xbf16>
      %c0_16 = arith.constant 0 : index
      %c0_17 = arith.constant 0 : index
      %22 = vector.load %arg7[%c0_16, %c0_17] : memref<128x128xbf16, #tpu.memory_space<vmem>>, vector<128x128xbf16>
      tpu.vector_store %arg7[%c0_16, %c0_17], %21 {strides = array<i32>} : memref<128x128xbf16, #tpu.memory_space<vmem>>, vector<128x128xbf16>,
    } else {
    }
    return
  }
  func.func @transform_0(%arg0: i32, %arg1: i32, %arg2: i32) -> (i32, i32) {
    %c0_i32 = arith.constant 0 : i32
    return %arg0, %arg2 : i32, i32
  }
  func.func @transform_1(%arg0: i32, %arg1: i32, %arg2: i32) -> (i32, i32) {
    %c0_i32 = arith.constant 0 : i32
    return %arg2, %arg1 : i32, i32
  }
  func.func @transform_2(%arg0: i32, %arg1: i32, %arg2: i32) -> (i32, i32) {
    %c0_i32 = arith.constant 0 : i32
    %c0_i32_0 = arith.constant 0 : i32
    return %c0_i32, %arg1 : i32, i32
  }
  func.func @transform_3(%arg0: i32, %arg1: i32, %arg2: i32) -> (i32, i32) {
    %c0_i32 = arith.constant 0 : i32
    %c0_i32_0 = arith.constant 0 : i32
    return %c0_i32, %arg1 : i32, i32
  }
  func.func @transform_4(%arg0: i32, %arg1: i32, %arg2: i32) -> (i32, i32) {
    %c0_i32 = arith.constant 0 : i32
    return %arg0, %arg1 : i32, i32
  }
}

module attributes {stable_mosaic.version = 11 : i64} {
  func.func @_fused_matmul_kernel(%arg0: i32, %arg1: i32, %arg2: i32, %arg3: memref<32x256xbf16, #tpu.memory_space<vmem>>, %arg4: memref<256x128xbf16, #tpu.memory_space<vmem>>, %arg5: memref<1x128xf32, #tpu.memory_space<vmem>>, %arg6: memref<1x128xf32, #tpu.memory_space<vmem>>, %arg7: memref<32x128xbf16, #tpu.memory_space<vmem>>, %arg8: memref<32x128xf32, #tpu.memory_space<vmem>>) attributes {dimension_semantics = [#tpu.dimension_semantics<parallel>, #tpu.dimension_semantics<parallel>, #tpu.dimension_semantics<arbitrary>], iteration_bounds = array<i64: 1, 1, 3>, scalar_prefetch = 0 : i64, scratch_operands = 1 : i64, tpu.core_type = #tpu.core_type<tc>, window_params = [{transform_indices = @transform_0, window_bounds = array<i64: 32, 256>}, {transform_indices = @transform_1, window_bounds = array<i64: 256, 128>}, {transform_indices = @transform_2, window_bounds = array<i64: 1, 128>}, {transform_indices = @transform_3, window_bounds = array<i64: 1, 128>}, {transform_indices = @transform_4, window_bounds = array<i64: 32, 128>}]} {
    %c0_i32 = arith.constant 0 : i32
    %0 = arith.cmpi eq, %arg2, %c0_i32 : i32
    %1 = arith.extui %0 : i1 to i32
    %c0_i32_0 = arith.constant 0 : i32
    %2 = arith.cmpi ne, %1, %c0_i32_0 : i32
    scf.if %2 {
      %cst_9 = arith.constant 0.000000e+00 : f32
      %12 = vector.broadcast %cst_9 : f32 to vector<32x128xf32>
      %c0_10 = arith.constant 0 : index
      %c0_11 = arith.constant 0 : index
      %13 = vector.load %arg8[%c0_10, %c0_11] : memref<32x128xf32, #tpu.memory_space<vmem>>, vector<32x128xf32>
      tpu.vector_store %arg8[%c0_10, %c0_11], %12 {strides = array<i32>} : memref<32x128xf32, #tpu.memory_space<vmem>>, vector<32x128xf32>,
    } else {
    }
    %c0 = arith.constant 0 : index
    %c0_1 = arith.constant 0 : index
    %3 = vector.load %arg8[%c0, %c0_1] : memref<32x128xf32, #tpu.memory_space<vmem>>, vector<32x128xf32>
    %c0_2 = arith.constant 0 : index
    %c0_3 = arith.constant 0 : index
    %4 = vector.load %arg3[%c0_2, %c0_3] : memref<32x256xbf16, #tpu.memory_space<vmem>>, vector<32x256xbf16>
    %c0_4 = arith.constant 0 : index
    %c0_5 = arith.constant 0 : index
    %5 = vector.load %arg4[%c0_4, %c0_5] : memref<256x128xbf16, #tpu.memory_space<vmem>>, vector<256x128xbf16>
    %cst = arith.constant dense<0.000000e+00> : vector<32x128xf32>
    %6 = tpu.matmul %4, %5, %cst {dimension_numbers = #tpu.dot_dimension_numbers<[1], [0], [0], [1], [0, 0, 1, 1], [], []>} : vector<32x256xbf16>, vector<256x128xbf16>, vector<32x128xf32> -> vector<32x128xf32>
    %7 = arith.addf %3, %6 : vector<32x128xf32>
    %c0_6 = arith.constant 0 : index
    %c0_7 = arith.constant 0 : index
    %8 = vector.load %arg8[%c0_6, %c0_7] : memref<32x128xf32, #tpu.memory_space<vmem>>, vector<32x128xf32>
    tpu.vector_store %arg8[%c0_6, %c0_7], %7 {strides = array<i32>} : memref<32x128xf32, #tpu.memory_space<vmem>>, vector<32x128xf32>,
    %c2_i32 = arith.constant 2 : i32
    %9 = arith.cmpi eq, %arg2, %c2_i32 : i32
    %10 = arith.extui %9 : i1 to i32
    %c0_i32_8 = arith.constant 0 : i32
    %11 = arith.cmpi ne, %10, %c0_i32_8 : i32
    scf.if %11 {
      %c0_9 = arith.constant 0 : index
      %c0_10 = arith.constant 0 : index
      %12 = vector.load %arg8[%c0_9, %c0_10] : memref<32x128xf32, #tpu.memory_space<vmem>>, vector<32x128xf32>
      %c0_11 = arith.constant 0 : index
      %c0_12 = arith.constant 0 : index
      %13 = vector.load %arg5[%c0_11, %c0_12] : memref<1x128xf32, #tpu.memory_space<vmem>>, vector<1x128xf32>
      %14 = vector.broadcast %13 : vector<1x128xf32> to vector<32x128xf32>
      %15 = arith.mulf %12, %14 : vector<32x128xf32>
      %c0_13 = arith.constant 0 : index
      %c0_14 = arith.constant 0 : index
      %16 = vector.load %arg6[%c0_13, %c0_14] : memref<1x128xf32, #tpu.memory_space<vmem>>, vector<1x128xf32>
      %17 = vector.broadcast %16 : vector<1x128xf32> to vector<32x128xf32>
      %18 = arith.addf %15, %17 : vector<32x128xf32>
      %cst_15 = arith.constant 0.000000e+00 : f32
      %19 = vector.broadcast %cst_15 : f32 to vector<32x128xf32>
      %20 = arith.maximumf %18, %19 : vector<32x128xf32>
      %21 = arith.truncf %20 : vector<32x128xf32> to vector<32x128xbf16>
      %c0_16 = arith.constant 0 : index
      %c0_17 = arith.constant 0 : index
      %22 = vector.load %arg7[%c0_16, %c0_17] : memref<32x128xbf16, #tpu.memory_space<vmem>>, vector<32x128xbf16>
      tpu.vector_store %arg7[%c0_16, %c0_17], %21 {strides = array<i32>} : memref<32x128xbf16, #tpu.memory_space<vmem>>, vector<32x128xbf16>,
    } else {
    }
    return
  }
  func.func @transform_0(%arg0: i32, %arg1: i32, %arg2: i32) -> (i32, i32) {
    %c0_i32 = arith.constant 0 : i32
    return %arg0, %arg2 : i32, i32
  }
  func.func @transform_1(%arg0: i32, %arg1: i32, %arg2: i32) -> (i32, i32) {
    %c0_i32 = arith.constant 0 : i32
    return %arg2, %arg1 : i32, i32
  }
  func.func @transform_2(%arg0: i32, %arg1: i32, %arg2: i32) -> (i32, i32) {
    %c0_i32 = arith.constant 0 : i32
    %c0_i32_0 = arith.constant 0 : i32
    return %c0_i32, %arg1 : i32, i32
  }
  func.func @transform_3(%arg0: i32, %arg1: i32, %arg2: i32) -> (i32, i32) {
    %c0_i32 = arith.constant 0 : i32
    %c0_i32_0 = arith.constant 0 : i32
    return %c0_i32, %arg1 : i32, i32
  }
  func.func @transform_4(%arg0: i32, %arg1: i32, %arg2: i32) -> (i32, i32) {
    %c0_i32 = arith.constant 0 : i32
    return %arg0, %arg1 : i32, i32
  }
}

module attributes {stable_mosaic.version = 11 : i64} {
  func.func @_maxpool_kernel(%arg0: i32, %arg1: i32, %arg2: memref<1x2x2x2x128xbf16, #tpu.memory_space<vmem>>, %arg3: memref<1x2x2x64xbf16, #tpu.memory_space<vmem>>) attributes {dimension_semantics = [#tpu.dimension_semantics<parallel>, #tpu.dimension_semantics<parallel>], iteration_bounds = array<i64: 2, 1>, scalar_prefetch = 0 : i64, scratch_operands = 0 : i64, tpu.core_type = #tpu.core_type<tc>, window_params = [{transform_indices = @transform_0, window_bounds = array<i64: 1, 2, 2, 2, 128>}, {transform_indices = @transform_1, window_bounds = array<i64: 1, 2, 2, 64>}]} {
    %c0 = arith.constant 0 : index
    %c0_0 = arith.constant 0 : index
    %c0_1 = arith.constant 0 : index
    %c0_2 = arith.constant 0 : index
    %c0_3 = arith.constant 0 : index
    %0 = vector.load %arg2[%c0, %c0_0, %c0_1, %c0_2, %c0_3] : memref<1x2x2x2x128xbf16, #tpu.memory_space<vmem>>, vector<1x2x1x2x128xbf16>
    %1 = vector.shape_cast %0 : vector<1x2x1x2x128xbf16> to vector<1x2x2x128xbf16>
    %c0_4 = arith.constant 0 : index
    %c0_5 = arith.constant 0 : index
    %c1 = arith.constant 1 : index
    %c0_6 = arith.constant 0 : index
    %c0_7 = arith.constant 0 : index
    %2 = vector.load %arg2[%c0_4, %c0_5, %c1, %c0_6, %c0_7] : memref<1x2x2x2x128xbf16, #tpu.memory_space<vmem>>, vector<1x2x1x2x128xbf16>
    %3 = vector.shape_cast %2 : vector<1x2x1x2x128xbf16> to vector<1x2x2x128xbf16>
    %4 = arith.maximumf %1, %3 : vector<1x2x2x128xbf16>
    %5 = vector.extract_strided_slice %4 {offsets = [0, 0, 0, 0], sizes = [1, 2, 2, 64], strides = [1, 1, 1, 1]} : vector<1x2x2x128xbf16> to vector<1x2x2x64xbf16>
    %6 = vector.extract_strided_slice %4 {offsets = [0, 0, 0, 64], sizes = [1, 2, 2, 64], strides = [1, 1, 1, 1]} : vector<1x2x2x128xbf16> to vector<1x2x2x64xbf16>
    %7 = arith.maximumf %5, %6 : vector<1x2x2x64xbf16>
    %c0_8 = arith.constant 0 : index
    %c0_9 = arith.constant 0 : index
    %c0_10 = arith.constant 0 : index
    %c0_11 = arith.constant 0 : index
    %8 = vector.load %arg3[%c0_8, %c0_9, %c0_10, %c0_11] : memref<1x2x2x64xbf16, #tpu.memory_space<vmem>>, vector<1x2x2x64xbf16>
    tpu.vector_store %arg3[%c0_8, %c0_9, %c0_10, %c0_11], %7 {strides = array<i32>} : memref<1x2x2x64xbf16, #tpu.memory_space<vmem>>, vector<1x2x2x64xbf16>,
    return
  }
  func.func @transform_0(%arg0: i32, %arg1: i32) -> (i32, i32, i32, i32, i32) {
    %c0_i32 = arith.constant 0 : i32
    %c0_i32_0 = arith.constant 0 : i32
    %c0_i32_1 = arith.constant 0 : i32
    %c0_i32_2 = arith.constant 0 : i32
    return %arg0, %arg1, %c0_i32, %c0_i32_0, %c0_i32_1 : i32, i32, i32, i32, i32
  }
  func.func @transform_1(%arg0: i32, %arg1: i32) -> (i32, i32, i32, i32) {
    %c0_i32 = arith.constant 0 : i32
    %c0_i32_0 = arith.constant 0 : i32
    %c0_i32_1 = arith.constant 0 : i32
    return %arg0, %arg1, %c0_i32, %c0_i32_0 : i32, i32, i32, i32
  }
}

module attributes {stable_mosaic.version = 11 : i64} {
  func.func @_fused_matmul_kernel(%arg0: i32, %arg1: i32, %arg2: i32, %arg3: memref<8x256xbf16, #tpu.memory_space<vmem>>, %arg4: memref<256x128xbf16, #tpu.memory_space<vmem>>, %arg5: memref<1x128xf32, #tpu.memory_space<vmem>>, %arg6: memref<1x128xf32, #tpu.memory_space<vmem>>, %arg7: memref<8x128xbf16, #tpu.memory_space<vmem>>, %arg8: memref<8x128xf32, #tpu.memory_space<vmem>>) attributes {dimension_semantics = [#tpu.dimension_semantics<parallel>, #tpu.dimension_semantics<parallel>, #tpu.dimension_semantics<arbitrary>], iteration_bounds = array<i64: 1, 1, 3>, scalar_prefetch = 0 : i64, scratch_operands = 1 : i64, tpu.core_type = #tpu.core_type<tc>, window_params = [{transform_indices = @transform_0, window_bounds = array<i64: 8, 256>}, {transform_indices = @transform_1, window_bounds = array<i64: 256, 128>}, {transform_indices = @transform_2, window_bounds = array<i64: 1, 128>}, {transform_indices = @transform_3, window_bounds = array<i64: 1, 128>}, {transform_indices = @transform_4, window_bounds = array<i64: 8, 128>}]} {
    %c0_i32 = arith.constant 0 : i32
    %0 = arith.cmpi eq, %arg2, %c0_i32 : i32
    %1 = arith.extui %0 : i1 to i32
    %c0_i32_0 = arith.constant 0 : i32
    %2 = arith.cmpi ne, %1, %c0_i32_0 : i32
    scf.if %2 {
      %cst_9 = arith.constant 0.000000e+00 : f32
      %12 = vector.broadcast %cst_9 : f32 to vector<8x128xf32>
      %c0_10 = arith.constant 0 : index
      %c0_11 = arith.constant 0 : index
      %13 = vector.load %arg8[%c0_10, %c0_11] : memref<8x128xf32, #tpu.memory_space<vmem>>, vector<8x128xf32>
      tpu.vector_store %arg8[%c0_10, %c0_11], %12 {strides = array<i32>} : memref<8x128xf32, #tpu.memory_space<vmem>>, vector<8x128xf32>,
    } else {
    }
    %c0 = arith.constant 0 : index
    %c0_1 = arith.constant 0 : index
    %3 = vector.load %arg8[%c0, %c0_1] : memref<8x128xf32, #tpu.memory_space<vmem>>, vector<8x128xf32>
    %c0_2 = arith.constant 0 : index
    %c0_3 = arith.constant 0 : index
    %4 = vector.load %arg3[%c0_2, %c0_3] : memref<8x256xbf16, #tpu.memory_space<vmem>>, vector<8x256xbf16>
    %c0_4 = arith.constant 0 : index
    %c0_5 = arith.constant 0 : index
    %5 = vector.load %arg4[%c0_4, %c0_5] : memref<256x128xbf16, #tpu.memory_space<vmem>>, vector<256x128xbf16>
    %cst = arith.constant dense<0.000000e+00> : vector<8x128xf32>
    %6 = tpu.matmul %4, %5, %cst {dimension_numbers = #tpu.dot_dimension_numbers<[1], [0], [0], [1], [0, 0, 1, 1], [], []>} : vector<8x256xbf16>, vector<256x128xbf16>, vector<8x128xf32> -> vector<8x128xf32>
    %7 = arith.addf %3, %6 : vector<8x128xf32>
    %c0_6 = arith.constant 0 : index
    %c0_7 = arith.constant 0 : index
    %8 = vector.load %arg8[%c0_6, %c0_7] : memref<8x128xf32, #tpu.memory_space<vmem>>, vector<8x128xf32>
    tpu.vector_store %arg8[%c0_6, %c0_7], %7 {strides = array<i32>} : memref<8x128xf32, #tpu.memory_space<vmem>>, vector<8x128xf32>,
    %c2_i32 = arith.constant 2 : i32
    %9 = arith.cmpi eq, %arg2, %c2_i32 : i32
    %10 = arith.extui %9 : i1 to i32
    %c0_i32_8 = arith.constant 0 : i32
    %11 = arith.cmpi ne, %10, %c0_i32_8 : i32
    scf.if %11 {
      %c0_9 = arith.constant 0 : index
      %c0_10 = arith.constant 0 : index
      %12 = vector.load %arg8[%c0_9, %c0_10] : memref<8x128xf32, #tpu.memory_space<vmem>>, vector<8x128xf32>
      %c0_11 = arith.constant 0 : index
      %c0_12 = arith.constant 0 : index
      %13 = vector.load %arg5[%c0_11, %c0_12] : memref<1x128xf32, #tpu.memory_space<vmem>>, vector<1x128xf32>
      %14 = vector.broadcast %13 : vector<1x128xf32> to vector<8x128xf32>
      %15 = arith.mulf %12, %14 : vector<8x128xf32>
      %c0_13 = arith.constant 0 : index
      %c0_14 = arith.constant 0 : index
      %16 = vector.load %arg6[%c0_13, %c0_14] : memref<1x128xf32, #tpu.memory_space<vmem>>, vector<1x128xf32>
      %17 = vector.broadcast %16 : vector<1x128xf32> to vector<8x128xf32>
      %18 = arith.addf %15, %17 : vector<8x128xf32>
      %cst_15 = arith.constant 0.000000e+00 : f32
      %19 = vector.broadcast %cst_15 : f32 to vector<8x128xf32>
      %20 = arith.maximumf %18, %19 : vector<8x128xf32>
      %21 = arith.truncf %20 : vector<8x128xf32> to vector<8x128xbf16>
      %c0_16 = arith.constant 0 : index
      %c0_17 = arith.constant 0 : index
      %22 = vector.load %arg7[%c0_16, %c0_17] : memref<8x128xbf16, #tpu.memory_space<vmem>>, vector<8x128xbf16>
      tpu.vector_store %arg7[%c0_16, %c0_17], %21 {strides = array<i32>} : memref<8x128xbf16, #tpu.memory_space<vmem>>, vector<8x128xbf16>,
    } else {
    }
    return
  }
  func.func @transform_0(%arg0: i32, %arg1: i32, %arg2: i32) -> (i32, i32) {
    %c0_i32 = arith.constant 0 : i32
    return %arg0, %arg2 : i32, i32
  }
  func.func @transform_1(%arg0: i32, %arg1: i32, %arg2: i32) -> (i32, i32) {
    %c0_i32 = arith.constant 0 : i32
    return %arg2, %arg1 : i32, i32
  }
  func.func @transform_2(%arg0: i32, %arg1: i32, %arg2: i32) -> (i32, i32) {
    %c0_i32 = arith.constant 0 : i32
    %c0_i32_0 = arith.constant 0 : i32
    return %c0_i32, %arg1 : i32, i32
  }
  func.func @transform_3(%arg0: i32, %arg1: i32, %arg2: i32) -> (i32, i32) {
    %c0_i32 = arith.constant 0 : i32
    %c0_i32_0 = arith.constant 0 : i32
    return %c0_i32, %arg1 : i32, i32
  }
  func.func @transform_4(%arg0: i32, %arg1: i32, %arg2: i32) -> (i32, i32) {
    %c0_i32 = arith.constant 0 : i32
    return %arg0, %arg1 : i32, i32
  }
}

module attributes {stable_mosaic.version = 11 : i64} {
  func.func @_fused_matmul_kernel(%arg0: i32, %arg1: i32, %arg2: i32, %arg3: memref<8x256xbf16, #tpu.memory_space<vmem>>, %arg4: memref<256x128xbf16, #tpu.memory_space<vmem>>, %arg5: memref<1x128xf32, #tpu.memory_space<vmem>>, %arg6: memref<1x128xf32, #tpu.memory_space<vmem>>, %arg7: memref<8x128xbf16, #tpu.memory_space<vmem>>, %arg8: memref<8x128xf32, #tpu.memory_space<vmem>>) attributes {dimension_semantics = [#tpu.dimension_semantics<parallel>, #tpu.dimension_semantics<parallel>, #tpu.dimension_semantics<arbitrary>], iteration_bounds = array<i64: 1, 1, 5>, scalar_prefetch = 0 : i64, scratch_operands = 1 : i64, tpu.core_type = #tpu.core_type<tc>, window_params = [{transform_indices = @transform_0, window_bounds = array<i64: 8, 256>}, {transform_indices = @transform_1, window_bounds = array<i64: 256, 128>}, {transform_indices = @transform_2, window_bounds = array<i64: 1, 128>}, {transform_indices = @transform_3, window_bounds = array<i64: 1, 128>}, {transform_indices = @transform_4, window_bounds = array<i64: 8, 128>}]} {
    %c0_i32 = arith.constant 0 : i32
    %0 = arith.cmpi eq, %arg2, %c0_i32 : i32
    %1 = arith.extui %0 : i1 to i32
    %c0_i32_0 = arith.constant 0 : i32
    %2 = arith.cmpi ne, %1, %c0_i32_0 : i32
    scf.if %2 {
      %cst_9 = arith.constant 0.000000e+00 : f32
      %12 = vector.broadcast %cst_9 : f32 to vector<8x128xf32>
      %c0_10 = arith.constant 0 : index
      %c0_11 = arith.constant 0 : index
      %13 = vector.load %arg8[%c0_10, %c0_11] : memref<8x128xf32, #tpu.memory_space<vmem>>, vector<8x128xf32>
      tpu.vector_store %arg8[%c0_10, %c0_11], %12 {strides = array<i32>} : memref<8x128xf32, #tpu.memory_space<vmem>>, vector<8x128xf32>,
    } else {
    }
    %c0 = arith.constant 0 : index
    %c0_1 = arith.constant 0 : index
    %3 = vector.load %arg8[%c0, %c0_1] : memref<8x128xf32, #tpu.memory_space<vmem>>, vector<8x128xf32>
    %c0_2 = arith.constant 0 : index
    %c0_3 = arith.constant 0 : index
    %4 = vector.load %arg3[%c0_2, %c0_3] : memref<8x256xbf16, #tpu.memory_space<vmem>>, vector<8x256xbf16>
    %c0_4 = arith.constant 0 : index
    %c0_5 = arith.constant 0 : index
    %5 = vector.load %arg4[%c0_4, %c0_5] : memref<256x128xbf16, #tpu.memory_space<vmem>>, vector<256x128xbf16>
    %cst = arith.constant dense<0.000000e+00> : vector<8x128xf32>
    %6 = tpu.matmul %4, %5, %cst {dimension_numbers = #tpu.dot_dimension_numbers<[1], [0], [0], [1], [0, 0, 1, 1], [], []>} : vector<8x256xbf16>, vector<256x128xbf16>, vector<8x128xf32> -> vector<8x128xf32>
    %7 = arith.addf %3, %6 : vector<8x128xf32>
    %c0_6 = arith.constant 0 : index
    %c0_7 = arith.constant 0 : index
    %8 = vector.load %arg8[%c0_6, %c0_7] : memref<8x128xf32, #tpu.memory_space<vmem>>, vector<8x128xf32>
    tpu.vector_store %arg8[%c0_6, %c0_7], %7 {strides = array<i32>} : memref<8x128xf32, #tpu.memory_space<vmem>>, vector<8x128xf32>,
    %c4_i32 = arith.constant 4 : i32
    %9 = arith.cmpi eq, %arg2, %c4_i32 : i32
    %10 = arith.extui %9 : i1 to i32
    %c0_i32_8 = arith.constant 0 : i32
    %11 = arith.cmpi ne, %10, %c0_i32_8 : i32
    scf.if %11 {
      %c0_9 = arith.constant 0 : index
      %c0_10 = arith.constant 0 : index
      %12 = vector.load %arg8[%c0_9, %c0_10] : memref<8x128xf32, #tpu.memory_space<vmem>>, vector<8x128xf32>
      %c0_11 = arith.constant 0 : index
      %c0_12 = arith.constant 0 : index
      %13 = vector.load %arg5[%c0_11, %c0_12] : memref<1x128xf32, #tpu.memory_space<vmem>>, vector<1x128xf32>
      %14 = vector.broadcast %13 : vector<1x128xf32> to vector<8x128xf32>
      %15 = arith.mulf %12, %14 : vector<8x128xf32>
      %c0_13 = arith.constant 0 : index
      %c0_14 = arith.constant 0 : index
      %16 = vector.load %arg6[%c0_13, %c0_14] : memref<1x128xf32, #tpu.memory_space<vmem>>, vector<1x128xf32>
      %17 = vector.broadcast %16 : vector<1x128xf32> to vector<8x128xf32>
      %18 = arith.addf %15, %17 : vector<8x128xf32>
      %cst_15 = arith.constant 0.000000e+00 : f32
      %19 = vector.broadcast %cst_15 : f32 to vector<8x128xf32>
      %20 = arith.maximumf %18, %19 : vector<8x128xf32>
      %21 = arith.truncf %20 : vector<8x128xf32> to vector<8x128xbf16>
      %c0_16 = arith.constant 0 : index
      %c0_17 = arith.constant 0 : index
      %22 = vector.load %arg7[%c0_16, %c0_17] : memref<8x128xbf16, #tpu.memory_space<vmem>>, vector<8x128xbf16>
      tpu.vector_store %arg7[%c0_16, %c0_17], %21 {strides = array<i32>} : memref<8x128xbf16, #tpu.memory_space<vmem>>, vector<8x128xbf16>,
    } else {
    }
    return
  }
  func.func @transform_0(%arg0: i32, %arg1: i32, %arg2: i32) -> (i32, i32) {
    %c0_i32 = arith.constant 0 : i32
    return %arg0, %arg2 : i32, i32
  }
  func.func @transform_1(%arg0: i32, %arg1: i32, %arg2: i32) -> (i32, i32) {
    %c0_i32 = arith.constant 0 : i32
    return %arg2, %arg1 : i32, i32
  }
  func.func @transform_2(%arg0: i32, %arg1: i32, %arg2: i32) -> (i32, i32) {
    %c0_i32 = arith.constant 0 : i32
    %c0_i32_0 = arith.constant 0 : i32
    return %c0_i32, %arg1 : i32, i32
  }
  func.func @transform_3(%arg0: i32, %arg1: i32, %arg2: i32) -> (i32, i32) {
    %c0_i32 = arith.constant 0 : i32
    %c0_i32_0 = arith.constant 0 : i32
    return %c0_i32, %arg1 : i32, i32
  }
  func.func @transform_4(%arg0: i32, %arg1: i32, %arg2: i32) -> (i32, i32) {
    %c0_i32 = arith.constant 0 : i32
    return %arg0, %arg1 : i32, i32
  }
}

module attributes {stable_mosaic.version = 11 : i64} {
  func.func @_maxpool_kernel(%arg0: i32, %arg1: i32, %arg2: memref<1x1x2x1x256xbf16, #tpu.memory_space<vmem>>, %arg3: memref<1x1x1x128xbf16, #tpu.memory_space<vmem>>) attributes {dimension_semantics = [#tpu.dimension_semantics<parallel>, #tpu.dimension_semantics<parallel>], iteration_bounds = array<i64: 2, 1>, scalar_prefetch = 0 : i64, scratch_operands = 0 : i64, tpu.core_type = #tpu.core_type<tc>, window_params = [{transform_indices = @transform_0, window_bounds = array<i64: 1, 1, 2, 1, 256>}, {transform_indices = @transform_1, window_bounds = array<i64: 1, 1, 1, 128>}]} {
    %c0 = arith.constant 0 : index
    %c0_0 = arith.constant 0 : index
    %c0_1 = arith.constant 0 : index
    %c0_2 = arith.constant 0 : index
    %c0_3 = arith.constant 0 : index
    %0 = vector.load %arg2[%c0, %c0_0, %c0_1, %c0_2, %c0_3] : memref<1x1x2x1x256xbf16, #tpu.memory_space<vmem>>, vector<1x1x1x1x256xbf16>
    %1 = vector.shape_cast %0 : vector<1x1x1x1x256xbf16> to vector<1x1x1x256xbf16>
    %c0_4 = arith.constant 0 : index
    %c0_5 = arith.constant 0 : index
    %c1 = arith.constant 1 : index
    %c0_6 = arith.constant 0 : index
    %c0_7 = arith.constant 0 : index
    %2 = vector.load %arg2[%c0_4, %c0_5, %c1, %c0_6, %c0_7] : memref<1x1x2x1x256xbf16, #tpu.memory_space<vmem>>, vector<1x1x1x1x256xbf16>
    %3 = vector.shape_cast %2 : vector<1x1x1x1x256xbf16> to vector<1x1x1x256xbf16>
    %4 = arith.maximumf %1, %3 : vector<1x1x1x256xbf16>
    %5 = vector.extract_strided_slice %4 {offsets = [0, 0, 0, 0], sizes = [1, 1, 1, 128], strides = [1, 1, 1, 1]} : vector<1x1x1x256xbf16> to vector<1x1x1x128xbf16>
    %6 = vector.extract_strided_slice %4 {offsets = [0, 0, 0, 128], sizes = [1, 1, 1, 128], strides = [1, 1, 1, 1]} : vector<1x1x1x256xbf16> to vector<1x1x1x128xbf16>
    %7 = arith.maximumf %5, %6 : vector<1x1x1x128xbf16>
    %c0_8 = arith.constant 0 : index
    %c0_9 = arith.constant 0 : index
    %c0_10 = arith.constant 0 : index
    %c0_11 = arith.constant 0 : index
    %8 = vector.load %arg3[%c0_8, %c0_9, %c0_10, %c0_11] : memref<1x1x1x128xbf16, #tpu.memory_space<vmem>>, vector<1x1x1x128xbf16>
    tpu.vector_store %arg3[%c0_8, %c0_9, %c0_10, %c0_11], %7 {strides = array<i32>} : memref<1x1x1x128xbf16, #tpu.memory_space<vmem>>, vector<1x1x1x128xbf16>,
    return
  }
  func.func @transform_0(%arg0: i32, %arg1: i32) -> (i32, i32, i32, i32, i32) {
    %c0_i32 = arith.constant 0 : i32
    %c0_i32_0 = arith.constant 0 : i32
    %c0_i32_1 = arith.constant 0 : i32
    %c0_i32_2 = arith.constant 0 : i32
    return %arg0, %arg1, %c0_i32, %c0_i32_0, %c0_i32_1 : i32, i32, i32, i32, i32
  }
  func.func @transform_1(%arg0: i32, %arg1: i32) -> (i32, i32, i32, i32) {
    %c0_i32 = arith.constant 0 : i32
    %c0_i32_0 = arith.constant 0 : i32
    %c0_i32_1 = arith.constant 0 : i32
    return %arg0, %arg1, %c0_i32, %c0_i32_0 : i32, i32, i32, i32
  }
}

module attributes {stable_mosaic.version = 11 : i64} {
  func.func @_fused_matmul_kernel(%arg0: i32, %arg1: i32, %arg2: i32, %arg3: memref<8x256xbf16, #tpu.memory_space<vmem>>, %arg4: memref<256x128xbf16, #tpu.memory_space<vmem>>, %arg5: memref<1x128xf32, #tpu.memory_space<vmem>>, %arg6: memref<1x128xf32, #tpu.memory_space<vmem>>, %arg7: memref<8x128xbf16, #tpu.memory_space<vmem>>, %arg8: memref<8x128xf32, #tpu.memory_space<vmem>>) attributes {dimension_semantics = [#tpu.dimension_semantics<parallel>, #tpu.dimension_semantics<parallel>, #tpu.dimension_semantics<arbitrary>], iteration_bounds = array<i64: 1, 1, 9>, scalar_prefetch = 0 : i64, scratch_operands = 1 : i64, tpu.core_type = #tpu.core_type<tc>, window_params = [{transform_indices = @transform_0, window_bounds = array<i64: 8, 256>}, {transform_indices = @transform_1, window_bounds = array<i64: 256, 128>}, {transform_indices = @transform_2, window_bounds = array<i64: 1, 128>}, {transform_indices = @transform_3, window_bounds = array<i64: 1, 128>}, {transform_indices = @transform_4, window_bounds = array<i64: 8, 128>}]} {
    %c0_i32 = arith.constant 0 : i32
    %0 = arith.cmpi eq, %arg2, %c0_i32 : i32
    %1 = arith.extui %0 : i1 to i32
    %c0_i32_0 = arith.constant 0 : i32
    %2 = arith.cmpi ne, %1, %c0_i32_0 : i32
    scf.if %2 {
      %cst_9 = arith.constant 0.000000e+00 : f32
      %12 = vector.broadcast %cst_9 : f32 to vector<8x128xf32>
      %c0_10 = arith.constant 0 : index
      %c0_11 = arith.constant 0 : index
      %13 = vector.load %arg8[%c0_10, %c0_11] : memref<8x128xf32, #tpu.memory_space<vmem>>, vector<8x128xf32>
      tpu.vector_store %arg8[%c0_10, %c0_11], %12 {strides = array<i32>} : memref<8x128xf32, #tpu.memory_space<vmem>>, vector<8x128xf32>,
    } else {
    }
    %c0 = arith.constant 0 : index
    %c0_1 = arith.constant 0 : index
    %3 = vector.load %arg8[%c0, %c0_1] : memref<8x128xf32, #tpu.memory_space<vmem>>, vector<8x128xf32>
    %c0_2 = arith.constant 0 : index
    %c0_3 = arith.constant 0 : index
    %4 = vector.load %arg3[%c0_2, %c0_3] : memref<8x256xbf16, #tpu.memory_space<vmem>>, vector<8x256xbf16>
    %c0_4 = arith.constant 0 : index
    %c0_5 = arith.constant 0 : index
    %5 = vector.load %arg4[%c0_4, %c0_5] : memref<256x128xbf16, #tpu.memory_space<vmem>>, vector<256x128xbf16>
    %cst = arith.constant dense<0.000000e+00> : vector<8x128xf32>
    %6 = tpu.matmul %4, %5, %cst {dimension_numbers = #tpu.dot_dimension_numbers<[1], [0], [0], [1], [0, 0, 1, 1], [], []>} : vector<8x256xbf16>, vector<256x128xbf16>, vector<8x128xf32> -> vector<8x128xf32>
    %7 = arith.addf %3, %6 : vector<8x128xf32>
    %c0_6 = arith.constant 0 : index
    %c0_7 = arith.constant 0 : index
    %8 = vector.load %arg8[%c0_6, %c0_7] : memref<8x128xf32, #tpu.memory_space<vmem>>, vector<8x128xf32>
    tpu.vector_store %arg8[%c0_6, %c0_7], %7 {strides = array<i32>} : memref<8x128xf32, #tpu.memory_space<vmem>>, vector<8x128xf32>,
    %c8_i32 = arith.constant 8 : i32
    %9 = arith.cmpi eq, %arg2, %c8_i32 : i32
    %10 = arith.extui %9 : i1 to i32
    %c0_i32_8 = arith.constant 0 : i32
    %11 = arith.cmpi ne, %10, %c0_i32_8 : i32
    scf.if %11 {
      %c0_9 = arith.constant 0 : index
      %c0_10 = arith.constant 0 : index
      %12 = vector.load %arg8[%c0_9, %c0_10] : memref<8x128xf32, #tpu.memory_space<vmem>>, vector<8x128xf32>
      %c0_11 = arith.constant 0 : index
      %c0_12 = arith.constant 0 : index
      %13 = vector.load %arg5[%c0_11, %c0_12] : memref<1x128xf32, #tpu.memory_space<vmem>>, vector<1x128xf32>
      %14 = vector.broadcast %13 : vector<1x128xf32> to vector<8x128xf32>
      %15 = arith.mulf %12, %14 : vector<8x128xf32>
      %c0_13 = arith.constant 0 : index
      %c0_14 = arith.constant 0 : index
      %16 = vector.load %arg6[%c0_13, %c0_14] : memref<1x128xf32, #tpu.memory_space<vmem>>, vector<1x128xf32>
      %17 = vector.broadcast %16 : vector<1x128xf32> to vector<8x128xf32>
      %18 = arith.addf %15, %17 : vector<8x128xf32>
      %cst_15 = arith.constant 0.000000e+00 : f32
      %19 = vector.broadcast %cst_15 : f32 to vector<8x128xf32>
      %20 = arith.maximumf %18, %19 : vector<8x128xf32>
      %21 = arith.truncf %20 : vector<8x128xf32> to vector<8x128xbf16>
      %c0_16 = arith.constant 0 : index
      %c0_17 = arith.constant 0 : index
      %22 = vector.load %arg7[%c0_16, %c0_17] : memref<8x128xbf16, #tpu.memory_space<vmem>>, vector<8x128xbf16>
      tpu.vector_store %arg7[%c0_16, %c0_17], %21 {strides = array<i32>} : memref<8x128xbf16, #tpu.memory_space<vmem>>, vector<8x128xbf16>,
    } else {
    }
    return
  }
  func.func @transform_0(%arg0: i32, %arg1: i32, %arg2: i32) -> (i32, i32) {
    %c0_i32 = arith.constant 0 : i32
    return %arg0, %arg2 : i32, i32
  }
  func.func @transform_1(%arg0: i32, %arg1: i32, %arg2: i32) -> (i32, i32) {
    %c0_i32 = arith.constant 0 : i32
    return %arg2, %arg1 : i32, i32
  }
  func.func @transform_2(%arg0: i32, %arg1: i32, %arg2: i32) -> (i32, i32) {
    %c0_i32 = arith.constant 0 : i32
    %c0_i32_0 = arith.constant 0 : i32
    return %c0_i32, %arg1 : i32, i32
  }
  func.func @transform_3(%arg0: i32, %arg1: i32, %arg2: i32) -> (i32, i32) {
    %c0_i32 = arith.constant 0 : i32
    %c0_i32_0 = arith.constant 0 : i32
    return %c0_i32, %arg1 : i32, i32
  }
  func.func @transform_4(%arg0: i32, %arg1: i32, %arg2: i32) -> (i32, i32) {
    %c0_i32 = arith.constant 0 : i32
    return %arg0, %arg1 : i32, i32
  }
}

module attributes {stable_mosaic.version = 11 : i64} {
  func.func @_fused_matmul_kernel(%arg0: i32, %arg1: i32, %arg2: i32, %arg3: memref<32x256xbf16, #tpu.memory_space<vmem>>, %arg4: memref<256x128xbf16, #tpu.memory_space<vmem>>, %arg5: memref<1x128xf32, #tpu.memory_space<vmem>>, %arg6: memref<1x128xf32, #tpu.memory_space<vmem>>, %arg7: memref<32x128xbf16, #tpu.memory_space<vmem>>, %arg8: memref<32x128xf32, #tpu.memory_space<vmem>>) attributes {dimension_semantics = [#tpu.dimension_semantics<parallel>, #tpu.dimension_semantics<parallel>, #tpu.dimension_semantics<arbitrary>], iteration_bounds = array<i64: 1, 1, 7>, scalar_prefetch = 0 : i64, scratch_operands = 1 : i64, tpu.core_type = #tpu.core_type<tc>, window_params = [{transform_indices = @transform_0, window_bounds = array<i64: 32, 256>}, {transform_indices = @transform_1, window_bounds = array<i64: 256, 128>}, {transform_indices = @transform_2, window_bounds = array<i64: 1, 128>}, {transform_indices = @transform_3, window_bounds = array<i64: 1, 128>}, {transform_indices = @transform_4, window_bounds = array<i64: 32, 128>}]} {
    %c0_i32 = arith.constant 0 : i32
    %0 = arith.cmpi eq, %arg2, %c0_i32 : i32
    %1 = arith.extui %0 : i1 to i32
    %c0_i32_0 = arith.constant 0 : i32
    %2 = arith.cmpi ne, %1, %c0_i32_0 : i32
    scf.if %2 {
      %cst_9 = arith.constant 0.000000e+00 : f32
      %12 = vector.broadcast %cst_9 : f32 to vector<32x128xf32>
      %c0_10 = arith.constant 0 : index
      %c0_11 = arith.constant 0 : index
      %13 = vector.load %arg8[%c0_10, %c0_11] : memref<32x128xf32, #tpu.memory_space<vmem>>, vector<32x128xf32>
      tpu.vector_store %arg8[%c0_10, %c0_11], %12 {strides = array<i32>} : memref<32x128xf32, #tpu.memory_space<vmem>>, vector<32x128xf32>,
    } else {
    }
    %c0 = arith.constant 0 : index
    %c0_1 = arith.constant 0 : index
    %3 = vector.load %arg8[%c0, %c0_1] : memref<32x128xf32, #tpu.memory_space<vmem>>, vector<32x128xf32>
    %c0_2 = arith.constant 0 : index
    %c0_3 = arith.constant 0 : index
    %4 = vector.load %arg3[%c0_2, %c0_3] : memref<32x256xbf16, #tpu.memory_space<vmem>>, vector<32x256xbf16>
    %c0_4 = arith.constant 0 : index
    %c0_5 = arith.constant 0 : index
    %5 = vector.load %arg4[%c0_4, %c0_5] : memref<256x128xbf16, #tpu.memory_space<vmem>>, vector<256x128xbf16>
    %cst = arith.constant dense<0.000000e+00> : vector<32x128xf32>
    %6 = tpu.matmul %4, %5, %cst {dimension_numbers = #tpu.dot_dimension_numbers<[1], [0], [0], [1], [0, 0, 1, 1], [], []>} : vector<32x256xbf16>, vector<256x128xbf16>, vector<32x128xf32> -> vector<32x128xf32>
    %7 = arith.addf %3, %6 : vector<32x128xf32>
    %c0_6 = arith.constant 0 : index
    %c0_7 = arith.constant 0 : index
    %8 = vector.load %arg8[%c0_6, %c0_7] : memref<32x128xf32, #tpu.memory_space<vmem>>, vector<32x128xf32>
    tpu.vector_store %arg8[%c0_6, %c0_7], %7 {strides = array<i32>} : memref<32x128xf32, #tpu.memory_space<vmem>>, vector<32x128xf32>,
    %c6_i32 = arith.constant 6 : i32
    %9 = arith.cmpi eq, %arg2, %c6_i32 : i32
    %10 = arith.extui %9 : i1 to i32
    %c0_i32_8 = arith.constant 0 : i32
    %11 = arith.cmpi ne, %10, %c0_i32_8 : i32
    scf.if %11 {
      %c0_9 = arith.constant 0 : index
      %c0_10 = arith.constant 0 : index
      %12 = vector.load %arg8[%c0_9, %c0_10] : memref<32x128xf32, #tpu.memory_space<vmem>>, vector<32x128xf32>
      %c0_11 = arith.constant 0 : index
      %c0_12 = arith.constant 0 : index
      %13 = vector.load %arg5[%c0_11, %c0_12] : memref<1x128xf32, #tpu.memory_space<vmem>>, vector<1x128xf32>
      %14 = vector.broadcast %13 : vector<1x128xf32> to vector<32x128xf32>
      %15 = arith.mulf %12, %14 : vector<32x128xf32>
      %c0_13 = arith.constant 0 : index
      %c0_14 = arith.constant 0 : index
      %16 = vector.load %arg6[%c0_13, %c0_14] : memref<1x128xf32, #tpu.memory_space<vmem>>, vector<1x128xf32>
      %17 = vector.broadcast %16 : vector<1x128xf32> to vector<32x128xf32>
      %18 = arith.addf %15, %17 : vector<32x128xf32>
      %cst_15 = arith.constant 0.000000e+00 : f32
      %19 = vector.broadcast %cst_15 : f32 to vector<32x128xf32>
      %20 = arith.maximumf %18, %19 : vector<32x128xf32>
      %21 = arith.truncf %20 : vector<32x128xf32> to vector<32x128xbf16>
      %c0_16 = arith.constant 0 : index
      %c0_17 = arith.constant 0 : index
      %22 = vector.load %arg7[%c0_16, %c0_17] : memref<32x128xbf16, #tpu.memory_space<vmem>>, vector<32x128xbf16>
      tpu.vector_store %arg7[%c0_16, %c0_17], %21 {strides = array<i32>} : memref<32x128xbf16, #tpu.memory_space<vmem>>, vector<32x128xbf16>,
    } else {
    }
    return
  }
  func.func @transform_0(%arg0: i32, %arg1: i32, %arg2: i32) -> (i32, i32) {
    %c0_i32 = arith.constant 0 : i32
    return %arg0, %arg2 : i32, i32
  }
  func.func @transform_1(%arg0: i32, %arg1: i32, %arg2: i32) -> (i32, i32) {
    %c0_i32 = arith.constant 0 : i32
    return %arg2, %arg1 : i32, i32
  }
  func.func @transform_2(%arg0: i32, %arg1: i32, %arg2: i32) -> (i32, i32) {
    %c0_i32 = arith.constant 0 : i32
    %c0_i32_0 = arith.constant 0 : i32
    return %c0_i32, %arg1 : i32, i32
  }
  func.func @transform_3(%arg0: i32, %arg1: i32, %arg2: i32) -> (i32, i32) {
    %c0_i32 = arith.constant 0 : i32
    %c0_i32_0 = arith.constant 0 : i32
    return %c0_i32, %arg1 : i32, i32
  }
  func.func @transform_4(%arg0: i32, %arg1: i32, %arg2: i32) -> (i32, i32) {
    %c0_i32 = arith.constant 0 : i32
    return %arg0, %arg1 : i32, i32
  }
}

module attributes {stable_mosaic.version = 11 : i64} {
  func.func @_fused_matmul_kernel(%arg0: i32, %arg1: i32, %arg2: i32, %arg3: memref<32x256xbf16, #tpu.memory_space<vmem>>, %arg4: memref<256x128xbf16, #tpu.memory_space<vmem>>, %arg5: memref<1x128xf32, #tpu.memory_space<vmem>>, %arg6: memref<1x128xf32, #tpu.memory_space<vmem>>, %arg7: memref<32x128xbf16, #tpu.memory_space<vmem>>, %arg8: memref<32x128xf32, #tpu.memory_space<vmem>>) attributes {dimension_semantics = [#tpu.dimension_semantics<parallel>, #tpu.dimension_semantics<parallel>, #tpu.dimension_semantics<arbitrary>], iteration_bounds = array<i64: 1, 1, 5>, scalar_prefetch = 0 : i64, scratch_operands = 1 : i64, tpu.core_type = #tpu.core_type<tc>, window_params = [{transform_indices = @transform_0, window_bounds = array<i64: 32, 256>}, {transform_indices = @transform_1, window_bounds = array<i64: 256, 128>}, {transform_indices = @transform_2, window_bounds = array<i64: 1, 128>}, {transform_indices = @transform_3, window_bounds = array<i64: 1, 128>}, {transform_indices = @transform_4, window_bounds = array<i64: 32, 128>}]} {
    %c0_i32 = arith.constant 0 : i32
    %0 = arith.cmpi eq, %arg2, %c0_i32 : i32
    %1 = arith.extui %0 : i1 to i32
    %c0_i32_0 = arith.constant 0 : i32
    %2 = arith.cmpi ne, %1, %c0_i32_0 : i32
    scf.if %2 {
      %cst_9 = arith.constant 0.000000e+00 : f32
      %12 = vector.broadcast %cst_9 : f32 to vector<32x128xf32>
      %c0_10 = arith.constant 0 : index
      %c0_11 = arith.constant 0 : index
      %13 = vector.load %arg8[%c0_10, %c0_11] : memref<32x128xf32, #tpu.memory_space<vmem>>, vector<32x128xf32>
      tpu.vector_store %arg8[%c0_10, %c0_11], %12 {strides = array<i32>} : memref<32x128xf32, #tpu.memory_space<vmem>>, vector<32x128xf32>,
    } else {
    }
    %c0 = arith.constant 0 : index
    %c0_1 = arith.constant 0 : index
    %3 = vector.load %arg8[%c0, %c0_1] : memref<32x128xf32, #tpu.memory_space<vmem>>, vector<32x128xf32>
    %c0_2 = arith.constant 0 : index
    %c0_3 = arith.constant 0 : index
    %4 = vector.load %arg3[%c0_2, %c0_3] : memref<32x256xbf16, #tpu.memory_space<vmem>>, vector<32x256xbf16>
    %c0_4 = arith.constant 0 : index
    %c0_5 = arith.constant 0 : index
    %5 = vector.load %arg4[%c0_4, %c0_5] : memref<256x128xbf16, #tpu.memory_space<vmem>>, vector<256x128xbf16>
    %cst = arith.constant dense<0.000000e+00> : vector<32x128xf32>
    %6 = tpu.matmul %4, %5, %cst {dimension_numbers = #tpu.dot_dimension_numbers<[1], [0], [0], [1], [0, 0, 1, 1], [], []>} : vector<32x256xbf16>, vector<256x128xbf16>, vector<32x128xf32> -> vector<32x128xf32>
    %7 = arith.addf %3, %6 : vector<32x128xf32>
    %c0_6 = arith.constant 0 : index
    %c0_7 = arith.constant 0 : index
    %8 = vector.load %arg8[%c0_6, %c0_7] : memref<32x128xf32, #tpu.memory_space<vmem>>, vector<32x128xf32>
    tpu.vector_store %arg8[%c0_6, %c0_7], %7 {strides = array<i32>} : memref<32x128xf32, #tpu.memory_space<vmem>>, vector<32x128xf32>,
    %c4_i32 = arith.constant 4 : i32
    %9 = arith.cmpi eq, %arg2, %c4_i32 : i32
    %10 = arith.extui %9 : i1 to i32
    %c0_i32_8 = arith.constant 0 : i32
    %11 = arith.cmpi ne, %10, %c0_i32_8 : i32
    scf.if %11 {
      %c0_9 = arith.constant 0 : index
      %c0_10 = arith.constant 0 : index
      %12 = vector.load %arg8[%c0_9, %c0_10] : memref<32x128xf32, #tpu.memory_space<vmem>>, vector<32x128xf32>
      %c0_11 = arith.constant 0 : index
      %c0_12 = arith.constant 0 : index
      %13 = vector.load %arg5[%c0_11, %c0_12] : memref<1x128xf32, #tpu.memory_space<vmem>>, vector<1x128xf32>
      %14 = vector.broadcast %13 : vector<1x128xf32> to vector<32x128xf32>
      %15 = arith.mulf %12, %14 : vector<32x128xf32>
      %c0_13 = arith.constant 0 : index
      %c0_14 = arith.constant 0 : index
      %16 = vector.load %arg6[%c0_13, %c0_14] : memref<1x128xf32, #tpu.memory_space<vmem>>, vector<1x128xf32>
      %17 = vector.broadcast %16 : vector<1x128xf32> to vector<32x128xf32>
      %18 = arith.addf %15, %17 : vector<32x128xf32>
      %cst_15 = arith.constant 0.000000e+00 : f32
      %19 = vector.broadcast %cst_15 : f32 to vector<32x128xf32>
      %20 = arith.maximumf %18, %19 : vector<32x128xf32>
      %21 = arith.truncf %20 : vector<32x128xf32> to vector<32x128xbf16>
      %c0_16 = arith.constant 0 : index
      %c0_17 = arith.constant 0 : index
      %22 = vector.load %arg7[%c0_16, %c0_17] : memref<32x128xbf16, #tpu.memory_space<vmem>>, vector<32x128xbf16>
      tpu.vector_store %arg7[%c0_16, %c0_17], %21 {strides = array<i32>} : memref<32x128xbf16, #tpu.memory_space<vmem>>, vector<32x128xbf16>,
    } else {
    }
    return
  }
  func.func @transform_0(%arg0: i32, %arg1: i32, %arg2: i32) -> (i32, i32) {
    %c0_i32 = arith.constant 0 : i32
    return %arg0, %arg2 : i32, i32
  }
  func.func @transform_1(%arg0: i32, %arg1: i32, %arg2: i32) -> (i32, i32) {
    %c0_i32 = arith.constant 0 : i32
    return %arg2, %arg1 : i32, i32
  }
  func.func @transform_2(%arg0: i32, %arg1: i32, %arg2: i32) -> (i32, i32) {
    %c0_i32 = arith.constant 0 : i32
    %c0_i32_0 = arith.constant 0 : i32
    return %c0_i32, %arg1 : i32, i32
  }
  func.func @transform_3(%arg0: i32, %arg1: i32, %arg2: i32) -> (i32, i32) {
    %c0_i32 = arith.constant 0 : i32
    %c0_i32_0 = arith.constant 0 : i32
    return %c0_i32, %arg1 : i32, i32
  }
  func.func @transform_4(%arg0: i32, %arg1: i32, %arg2: i32) -> (i32, i32) {
    %c0_i32 = arith.constant 0 : i32
    return %arg0, %arg1 : i32, i32
  }
}

module attributes {stable_mosaic.version = 11 : i64} {
  func.func @_mlp_head_kernel(%arg0: i32, %arg1: memref<32x128xbf16, #tpu.memory_space<vmem>>, %arg2: memref<128x1024xbf16, #tpu.memory_space<vmem>>, %arg3: memref<1x1024xf32, #tpu.memory_space<vmem>>, %arg4: memref<1024x128xbf16, #tpu.memory_space<vmem>>, %arg5: memref<1x128xf32, #tpu.memory_space<vmem>>, %arg6: memref<32x128xf32, #tpu.memory_space<vmem>>) attributes {dimension_semantics = [#tpu.dimension_semantics<parallel>], iteration_bounds = array<i64: 1>, scalar_prefetch = 0 : i64, scratch_operands = 0 : i64, tpu.core_type = #tpu.core_type<tc>, window_params = [{transform_indices = @transform_0, window_bounds = array<i64: 32, 128>}, {pipeline_mode = #tpu.pipeline_mode<synchronous>, transform_indices = @transform_1, window_bounds = array<i64: 128, 1024>}, {pipeline_mode = #tpu.pipeline_mode<synchronous>, transform_indices = @transform_2, window_bounds = array<i64: 1, 1024>}, {pipeline_mode = #tpu.pipeline_mode<synchronous>, transform_indices = @transform_3, window_bounds = array<i64: 1024, 128>}, {pipeline_mode = #tpu.pipeline_mode<synchronous>, transform_indices = @transform_4, window_bounds = array<i64: 1, 128>}, {transform_indices = @transform_5, window_bounds = array<i64: 32, 128>}]} {
    %c0 = arith.constant 0 : index
    %c0_0 = arith.constant 0 : index
    %0 = vector.load %arg1[%c0, %c0_0] : memref<32x128xbf16, #tpu.memory_space<vmem>>, vector<32x128xbf16>
    %c0_1 = arith.constant 0 : index
    %c0_2 = arith.constant 0 : index
    %1 = vector.load %arg2[%c0_1, %c0_2] : memref<128x1024xbf16, #tpu.memory_space<vmem>>, vector<128x1024xbf16>
    %cst = arith.constant dense<0.000000e+00> : vector<32x1024xf32>
    %2 = tpu.matmul %0, %1, %cst {dimension_numbers = #tpu.dot_dimension_numbers<[1], [0], [0], [1], [0, 0, 1, 1], [], []>} : vector<32x128xbf16>, vector<128x1024xbf16>, vector<32x1024xf32> -> vector<32x1024xf32>
    %c0_3 = arith.constant 0 : index
    %c0_4 = arith.constant 0 : index
    %3 = vector.load %arg3[%c0_3, %c0_4] : memref<1x1024xf32, #tpu.memory_space<vmem>>, vector<1x1024xf32>
    %4 = vector.broadcast %3 : vector<1x1024xf32> to vector<32x1024xf32>
    %5 = arith.addf %2, %4 : vector<32x1024xf32>
    %cst_5 = arith.constant 0.000000e+00 : f32
    %6 = vector.broadcast %cst_5 : f32 to vector<32x1024xf32>
    %7 = arith.maximumf %5, %6 : vector<32x1024xf32>
    %8 = arith.truncf %7 : vector<32x1024xf32> to vector<32x1024xbf16>
    %c0_6 = arith.constant 0 : index
    %c0_7 = arith.constant 0 : index
    %9 = vector.load %arg4[%c0_6, %c0_7] : memref<1024x128xbf16, #tpu.memory_space<vmem>>, vector<1024x128xbf16>
    %cst_8 = arith.constant dense<0.000000e+00> : vector<32x128xf32>
    %10 = tpu.matmul %8, %9, %cst_8 {dimension_numbers = #tpu.dot_dimension_numbers<[1], [0], [0], [1], [0, 0, 1, 1], [], []>} : vector<32x1024xbf16>, vector<1024x128xbf16>, vector<32x128xf32> -> vector<32x128xf32>
    %c0_9 = arith.constant 0 : index
    %c0_10 = arith.constant 0 : index
    %11 = vector.load %arg5[%c0_9, %c0_10] : memref<1x128xf32, #tpu.memory_space<vmem>>, vector<1x128xf32>
    %12 = vector.broadcast %11 : vector<1x128xf32> to vector<32x128xf32>
    %13 = arith.addf %10, %12 : vector<32x128xf32>
    %cst_11 = arith.constant 0.000000e+00 : f32
    %14 = vector.broadcast %cst_11 : f32 to vector<32x128xf32>
    %15 = arith.maximumf %13, %14 : vector<32x128xf32>
    %c0_12 = arith.constant 0 : index
    %c0_13 = arith.constant 0 : index
    %16 = vector.load %arg6[%c0_12, %c0_13] : memref<32x128xf32, #tpu.memory_space<vmem>>, vector<32x128xf32>
    tpu.vector_store %arg6[%c0_12, %c0_13], %15 {strides = array<i32>} : memref<32x128xf32, #tpu.memory_space<vmem>>, vector<32x128xf32>,
    return
  }
  func.func @transform_0(%arg0: i32) -> (i32, i32) {
    %c0_i32 = arith.constant 0 : i32
    %c0_i32_0 = arith.constant 0 : i32
    return %arg0, %c0_i32 : i32, i32
  }
  func.func @transform_1(%arg0: i32) -> (i32, i32) {
    %c0_i32 = arith.constant 0 : i32
    %c0_i32_0 = arith.constant 0 : i32
    %c0_i32_1 = arith.constant 0 : i32
    return %c0_i32, %c0_i32_0 : i32, i32
  }
  func.func @transform_2(%arg0: i32) -> (i32, i32) {
    %c0_i32 = arith.constant 0 : i32
    %c0_i32_0 = arith.constant 0 : i32
    %c0_i32_1 = arith.constant 0 : i32
    return %c0_i32, %c0_i32_0 : i32, i32
  }
  func.func @transform_3(%arg0: i32) -> (i32, i32) {
    %c0_i32 = arith.constant 0 : i32
    %c0_i32_0 = arith.constant 0 : i32
    %c0_i32_1 = arith.constant 0 : i32
    return %c0_i32, %c0_i32_0 : i32, i32
  }
  func.func @transform_4(%arg0: i32) -> (i32, i32) {
    %c0_i32 = arith.constant 0 : i32
    %c0_i32_0 = arith.constant 0 : i32
    %c0_i32_1 = arith.constant 0 : i32
    return %c0_i32, %c0_i32_0 : i32, i32
  }
  func.func @transform_5(%arg0: i32) -> (i32, i32) {
    %c0_i32 = arith.constant 0 : i32
    %c0_i32_0 = arith.constant 0 : i32
    return %arg0, %c0_i32 : i32, i32
  }
}

module attributes {stable_mosaic.version = 11 : i64} {
  func.func @_mlp_head_kernel(%arg0: i32, %arg1: memref<32x128xbf16, #tpu.memory_space<vmem>>, %arg2: memref<128x1024xbf16, #tpu.memory_space<vmem>>, %arg3: memref<1x1024xf32, #tpu.memory_space<vmem>>, %arg4: memref<1024x128xbf16, #tpu.memory_space<vmem>>, %arg5: memref<1x128xf32, #tpu.memory_space<vmem>>, %arg6: memref<32x128xf32, #tpu.memory_space<vmem>>) attributes {dimension_semantics = [#tpu.dimension_semantics<parallel>], iteration_bounds = array<i64: 1>, scalar_prefetch = 0 : i64, scratch_operands = 0 : i64, tpu.core_type = #tpu.core_type<tc>, window_params = [{transform_indices = @transform_0, window_bounds = array<i64: 32, 128>}, {pipeline_mode = #tpu.pipeline_mode<synchronous>, transform_indices = @transform_1, window_bounds = array<i64: 128, 1024>}, {pipeline_mode = #tpu.pipeline_mode<synchronous>, transform_indices = @transform_2, window_bounds = array<i64: 1, 1024>}, {pipeline_mode = #tpu.pipeline_mode<synchronous>, transform_indices = @transform_3, window_bounds = array<i64: 1024, 128>}, {pipeline_mode = #tpu.pipeline_mode<synchronous>, transform_indices = @transform_4, window_bounds = array<i64: 1, 128>}, {transform_indices = @transform_5, window_bounds = array<i64: 32, 128>}]} {
    %c0 = arith.constant 0 : index
    %c0_0 = arith.constant 0 : index
    %0 = vector.load %arg1[%c0, %c0_0] : memref<32x128xbf16, #tpu.memory_space<vmem>>, vector<32x128xbf16>
    %c0_1 = arith.constant 0 : index
    %c0_2 = arith.constant 0 : index
    %1 = vector.load %arg2[%c0_1, %c0_2] : memref<128x1024xbf16, #tpu.memory_space<vmem>>, vector<128x1024xbf16>
    %cst = arith.constant dense<0.000000e+00> : vector<32x1024xf32>
    %2 = tpu.matmul %0, %1, %cst {dimension_numbers = #tpu.dot_dimension_numbers<[1], [0], [0], [1], [0, 0, 1, 1], [], []>} : vector<32x128xbf16>, vector<128x1024xbf16>, vector<32x1024xf32> -> vector<32x1024xf32>
    %c0_3 = arith.constant 0 : index
    %c0_4 = arith.constant 0 : index
    %3 = vector.load %arg3[%c0_3, %c0_4] : memref<1x1024xf32, #tpu.memory_space<vmem>>, vector<1x1024xf32>
    %4 = vector.broadcast %3 : vector<1x1024xf32> to vector<32x1024xf32>
    %5 = arith.addf %2, %4 : vector<32x1024xf32>
    %cst_5 = arith.constant 0.000000e+00 : f32
    %6 = vector.broadcast %cst_5 : f32 to vector<32x1024xf32>
    %7 = arith.maximumf %5, %6 : vector<32x1024xf32>
    %8 = arith.truncf %7 : vector<32x1024xf32> to vector<32x1024xbf16>
    %c0_6 = arith.constant 0 : index
    %c0_7 = arith.constant 0 : index
    %9 = vector.load %arg4[%c0_6, %c0_7] : memref<1024x128xbf16, #tpu.memory_space<vmem>>, vector<1024x128xbf16>
    %cst_8 = arith.constant dense<0.000000e+00> : vector<32x128xf32>
    %10 = tpu.matmul %8, %9, %cst_8 {dimension_numbers = #tpu.dot_dimension_numbers<[1], [0], [0], [1], [0, 0, 1, 1], [], []>} : vector<32x1024xbf16>, vector<1024x128xbf16>, vector<32x128xf32> -> vector<32x128xf32>
    %c0_9 = arith.constant 0 : index
    %c0_10 = arith.constant 0 : index
    %11 = vector.load %arg5[%c0_9, %c0_10] : memref<1x128xf32, #tpu.memory_space<vmem>>, vector<1x128xf32>
    %12 = vector.broadcast %11 : vector<1x128xf32> to vector<32x128xf32>
    %13 = arith.addf %10, %12 : vector<32x128xf32>
    %cst_11 = arith.constant 0.000000e+00 : f32
    %14 = vector.broadcast %cst_11 : f32 to vector<32x128xf32>
    %15 = arith.maximumf %13, %14 : vector<32x128xf32>
    %c0_12 = arith.constant 0 : index
    %c0_13 = arith.constant 0 : index
    %16 = vector.load %arg6[%c0_12, %c0_13] : memref<32x128xf32, #tpu.memory_space<vmem>>, vector<32x128xf32>
    tpu.vector_store %arg6[%c0_12, %c0_13], %15 {strides = array<i32>} : memref<32x128xf32, #tpu.memory_space<vmem>>, vector<32x128xf32>,
    return
  }
  func.func @transform_0(%arg0: i32) -> (i32, i32) {
    %c0_i32 = arith.constant 0 : i32
    %c0_i32_0 = arith.constant 0 : i32
    return %arg0, %c0_i32 : i32, i32
  }
  func.func @transform_1(%arg0: i32) -> (i32, i32) {
    %c0_i32 = arith.constant 0 : i32
    %c0_i32_0 = arith.constant 0 : i32
    %c0_i32_1 = arith.constant 0 : i32
    return %c0_i32, %c0_i32_0 : i32, i32
  }
  func.func @transform_2(%arg0: i32) -> (i32, i32) {
    %c0_i32 = arith.constant 0 : i32
    %c0_i32_0 = arith.constant 0 : i32
    %c0_i32_1 = arith.constant 0 : i32
    return %c0_i32, %c0_i32_0 : i32, i32
  }
  func.func @transform_3(%arg0: i32) -> (i32, i32) {
    %c0_i32 = arith.constant 0 : i32
    %c0_i32_0 = arith.constant 0 : i32
    %c0_i32_1 = arith.constant 0 : i32
    return %c0_i32, %c0_i32_0 : i32, i32
  }
  func.func @transform_4(%arg0: i32) -> (i32, i32) {
    %c0_i32 = arith.constant 0 : i32
    %c0_i32_0 = arith.constant 0 : i32
    %c0_i32_1 = arith.constant 0 : i32
    return %c0_i32, %c0_i32_0 : i32, i32
  }
  func.func @transform_5(%arg0: i32) -> (i32, i32) {
    %c0_i32 = arith.constant 0 : i32
    %c0_i32_0 = arith.constant 0 : i32
    return %arg0, %c0_i32 : i32, i32
  }
}

</mosaic_0001>

<llo_original>
// kernel: scene_embed2_fwd.25
$region0: #{scene_embed2_fwd.25}
  #allocation0 [shape = 'u32[]', space=smem, size = 0x4, offset = 0x4, fixed_abs, tag = 'smem constant byte address 0x4 - core index']
  #allocation1 [shape = 'u32[144,128]{1,0:T(1,128)}', space=vmem, size = 0x12000, scoped, tag = 'internal scratch']
  #allocation2 [shape = 'f32[128,128]{1,0:T(8,128)}', space=vmem, size = 0x10000, scoped, tag = 'scratch operand']
  %s0 = inlined_call_operand.vmem [shape: bf16[128,256], index: 0, kind: input, shape index: {}]
  %s1 = inlined_call_operand.vmem [shape: bf16[256,128], index: 1, kind: input, shape index: {}]
  %s2 = inlined_call_operand.vmem [shape: f32[1,128], index: 2, kind: input, shape index: {}]
  %s3 = inlined_call_operand.vmem [shape: f32[1,128], index: 3, kind: input, shape index: {}]
  %s4 = inlined_call_operand.vmem [shape: bf16[128,128], index: 4, kind: output, shape index: {}]
  %s5 = sld [smem:[#allocation0]]
  $region34: #{scene_embed2_fwd.25} parent=0
    _
  %s7 = ssub.s32 1, %s5
  %s8 = scalar_select 0, %s7, %s5
  // Predicated region
  $region2: #{scene_embed2_fwd.25} parent=0 // pred_check
    _
  $region3: #{scene_embed2_fwd.25} parent=0 // pred_check_branch
    %10 = sbr.rel (0) target = $region5
  $region4: #{scene_embed2_fwd.25} parent=0 // pred_region
    _
  $region5: #{scene_embed2_fwd.25} parent=0 // pred_fallthru
    _
  // Predicated region
  $region6: #{scene_embed2_fwd.25} parent=0 // pred_check
    _
  $region7: #{scene_embed2_fwd.25} parent=0 // pred_check_branch
    %12 = sbr.rel (0) target = $region9
  $region8: #{scene_embed2_fwd.25} parent=0 // pred_region
    _
  $region9: #{scene_embed2_fwd.25} parent=0 // pred_fallthru
    _
  // Predicated region
  $region10: #{scene_embed2_fwd.25} parent=0 // pred_check
    _
  $region11: #{scene_embed2_fwd.25} parent=0 // pred_check_branch
    %14 = sbr.rel (0) target = $region13
  $region12: #{scene_embed2_fwd.25} parent=0 // pred_region
    _
  $region13: #{scene_embed2_fwd.25} parent=0 // pred_fallthru
    _
  // Predicated region
  $region14: #{scene_embed2_fwd.25} parent=0 // pred_check
    _
  $region15: #{scene_embed2_fwd.25} parent=0 // pred_check_branch
    %16 = sbr.rel (0) target = $region17
  $region16: #{scene_embed2_fwd.25} parent=0 // pred_region
    _
  $region17: #{scene_embed2_fwd.25} parent=0 // pred_fallthru
    _
  %p18 = scmp.eq.s32.totalorder 0, 0
  // Predicated region
  $region18: #{scene_embed2_fwd.25} parent=0 // pred_check
    %p19 = pneg %p18
  $region19: #{scene_embed2_fwd.25} parent=0 // pred_check_branch
    %21 = sbr.rel (%p19) target = $region21
  $region20: #{scene_embed2_fwd.25} parent=0 // pred_region
    %22 = vst [vmem:[#allocation2] sm:$0xff] 0.0
    %23 = vst [vmem:[#allocation2 + $0x8] sm:$0xff] 0.0
    %24 = vst [vmem:[#allocation2 + $0x10] sm:$0xff] 0.0
    %25 = vst [vmem:[#allocation2 + $0x18] sm:$0xff] 0.0
    %26 = vst [vmem:[#allocation2 + $0x20] sm:$0xff] 0.0
    %27 = vst [vmem:[#allocation2 + $0x28] sm:$0xff] 0.0
    %28 = vst [vmem:[#allocation2 + $0x30] sm:$0xff] 0.0
    %29 = vst [vmem:[#allocation2 + $0x38] sm:$0xff] 0.0
    %30 = vst [vmem:[#allocation2 + $0x40] sm:$0xff] 0.0
    %31 = vst [vmem:[#allocation2 + $0x48] sm:$0xff] 0.0
    %32 = vst [vmem:[#allocation2 + $0x50] sm:$0xff] 0.0
    %33 = vst [vmem:[#allocation2 + $0x58] sm:$0xff] 0.0
    %34 = vst [vmem:[#allocation2 + $0x60] sm:$0xff] 0.0
    %35 = vst [vmem:[#allocation2 + $0x68] sm:$0xff] 0.0
    %36 = vst [vmem:[#allocation2 + $0x70] sm:$0xff] 0.0
    %37 = vst [vmem:[#allocation2 + $0x78] sm:$0xff] 0.0
  $region21: #{scene_embed2_fwd.25} parent=0 // pred_fallthru
    _
  %v38 = vld [vmem:[#allocation2] sm:$0xff]
  %v39 = vld [vmem:[#allocation2 + $0x8] sm:$0xff]
  %v40 = vld [vmem:[#allocation2 + $0x10] sm:$0xff]
  %v41 = vld [vmem:[#allocation2 + $0x18] sm:$0xff]
  %v42 = vld [vmem:[#allocation2 + $0x20] sm:$0xff]
  %v43 = vld [vmem:[#allocation2 + $0x28] sm:$0xff]
  %v44 = vld [vmem:[#allocation2 + $0x30] sm:$0xff]
  %v45 = vld [vmem:[#allocation2 + $0x38] sm:$0xff]
  %v46 = vld [vmem:[#allocation2 + $0x40] sm:$0xff]
  %v47 = vld [vmem:[#allocation2 + $0x48] sm:$0xff]
  %v48 = vld [vmem:[#allocation2 + $0x50] sm:$0xff]
  %v49 = vld [vmem:[#allocation2 + $0x58] sm:$0xff]
  %v50 = vld [vmem:[#allocation2 + $0x60] sm:$0xff]
  %v51 = vld [vmem:[#allocation2 + $0x68] sm:$0xff]
  %v52 = vld [vmem:[#allocation2 + $0x70] sm:$0xff]
  %v53 = vld [vmem:[#allocation2 + $0x78] sm:$0xff]
  %v54 = vld [vmem:[%s0] sm:$0xff]
  %v55 = vld [vmem:[%s0 + $0x8] sm:$0xff]
  %v56 = vld [vmem:[%s0 + $0x10] sm:$0xff]
  %v57 = vld [vmem:[%s0 + $0x18] sm:$0xff]
  %v58 = vld [vmem:[%s0 + $0x20] sm:$0xff]
  %v59 = vld [vmem:[%s0 + $0x28] sm:$0xff]
  %v60 = vld [vmem:[%s0 + $0x30] sm:$0xff]
  %v61 = vld [vmem:[%s0 + $0x38] sm:$0xff]
  %v62 = vld [vmem:[%s0 + $0x40] sm:$0xff]
  %v63 = vld [vmem:[%s0 + $0x48] sm:$0xff]
  %v64 = vld [vmem:[%s0 + $0x50] sm:$0xff]
  %v65 = vld [vmem:[%s0 + $0x58] sm:$0xff]
  %v66 = vld [vmem:[%s0 + $0x60] sm:$0xff]
  %v67 = vld [vmem:[%s0 + $0x68] sm:$0xff]
  %v68 = vld [vmem:[%s0 + $0x70] sm:$0xff]
  %v69 = vld [vmem:[%s0 + $0x78] sm:$0xff]
  %v70 = vld [vmem:[%s1] sm:$0xf]
  %v71 = vld [vmem:[%s1 + $0x4] sm:$0xf]
  %v72 = vld [vmem:[%s1 + $0x8] sm:$0xf]
  %v73 = vld [vmem:[%s1 + $0xc] sm:$0xf]
  %v74 = vld [vmem:[%s1 + $0x10] sm:$0xf]
  %v75 = vld [vmem:[%s1 + $0x14] sm:$0xf]
  %v76 = vld [vmem:[%s1 + $0x18] sm:$0xf]
  %v77 = vld [vmem:[%s1 + $0x1c] sm:$0xf]
  %v78 = vld [vmem:[%s1 + $0x20] sm:$0xf]
  %v79 = vld [vmem:[%s1 + $0x24] sm:$0xf]
  %v80 = vld [vmem:[%s1 + $0x28] sm:$0xf]
  %v81 = vld [vmem:[%s1 + $0x2c] sm:$0xf]
  %v82 = vld [vmem:[%s1 + $0x30] sm:$0xf]
  %v83 = vld [vmem:[%s1 + $0x34] sm:$0xf]
  %v84 = vld [vmem:[%s1 + $0x38] sm:$0xf]
  %v85 = vld [vmem:[%s1 + $0x3c] sm:$0xf]
  %v86 = vld [vmem:[%s1 + $0x40] sm:$0xf]
  %v87 = vld [vmem:[%s1 + $0x44] sm:$0xf]
  %v88 = vld [vmem:[%s1 + $0x48] sm:$0xf]
  %v89 = vld [vmem:[%s1 + $0x4c] sm:$0xf]
  %v90 = vld [vmem:[%s1 + $0x50] sm:$0xf]
  %v91 = vld [vmem:[%s1 + $0x54] sm:$0xf]
  %v92 = vld [vmem:[%s1 + $0x58] sm:$0xf]
  %v93 = vld [vmem:[%s1 + $0x5c] sm:$0xf]
  %v94 = vld [vmem:[%s1 + $0x60] sm:$0xf]
  %v95 = vld [vmem:[%s1 + $0x64] sm:$0xf]
  %v96 = vld [vmem:[%s1 + $0x68] sm:$0xf]
  %v97 = vld [vmem:[%s1 + $0x6c] sm:$0xf]
  %v98 = vld [vmem:[%s1 + $0x70] sm:$0xf]
  %v99 = vld [vmem:[%s1 + $0x74] sm:$0xf]
  %v100 = vld [vmem:[%s1 + $0x78] sm:$0xf]
  %v101 = vld [vmem:[%s1 + $0x7c] sm:$0xf]
  %v118 = vunpack.c.l.b16 %v54
  %v119 = vunpack.c.h.b16 %v54
  %v120 = vunpack.c.l.b16 %v55
  %v121 = vunpack.c.h.b16 %v55
  %v122 = vunpack.c.l.b16 %v56
  %v123 = vunpack.c.h.b16 %v56
  %v124 = vunpack.c.l.b16 %v57
  %v125 = vunpack.c.h.b16 %v57
  %v126 = vunpack.c.l.b16 %v58
  %v127 = vunpack.c.h.b16 %v58
  %v128 = vunpack.c.l.b16 %v59
  %v129 = vunpack.c.h.b16 %v59
  %v130 = vunpack.c.l.b16 %v60
  %v131 = vunpack.c.h.b16 %v60
  %v132 = vunpack.c.l.b16 %v61
  %v133 = vunpack.c.h.b16 %v61
  %v134 = vunpack.c.l.b16 %v62
  %v135 = vunpack.c.h.b16 %v62
  %v136 = vunpack.c.l.b16 %v63
  %v137 = vunpack.c.h.b16 %v63
  %v138 = vunpack.c.l.b16 %v64
  %v139 = vunpack.c.h.b16 %v64
  %v140 = vunpack.c.l.b16 %v65
  %v141 = vunpack.c.h.b16 %v65
  %v142 = vunpack.c.l.b16 %v66
  %v143 = vunpack.c.h.b16 %v66
  %v144 = vunpack.c.l.b16 %v67
  %v145 = vunpack.c.h.b16 %v67
  %v146 = vunpack.c.l.b16 %v68
  %v147 = vunpack.c.h.b16 %v68
  %v148 = vunpack.c.l.b16 %v69
  %v149 = vunpack.c.h.b16 %v69
  %v150 = vpack.c.b16 %v120, %v118
  %v151 = vpack.c.b16 %v121, %v119
  %v152 = vpack.c.b16 %v124, %v122
  %v153 = vpack.c.b16 %v125, %v123
  %v154 = vpack.c.b16 %v128, %v126
  %v155 = vpack.c.b16 %v129, %v127
  %v156 = vpack.c.b16 %v132, %v130
  %v157 = vpack.c.b16 %v133, %v131
  %v158 = vpack.c.b16 %v136, %v134
  %v159 = vpack.c.b16 %v137, %v135
  %v160 = vpack.c.b16 %v140, %v138
  %v161 = vpack.c.b16 %v141, %v139
  %v162 = vpack.c.b16 %v144, %v142
  %v163 = vpack.c.b16 %v145, %v143
  %v164 = vpack.c.b16 %v148, %v146
  %v165 = vpack.c.b16 %v149, %v147
  %v214 = vunpack.c.l.b16 %v70
  %v215 = vunpack.c.l.b16 %v71
  %v216 = vunpack.c.l.b16 %v72
  %v217 = vunpack.c.l.b16 %v73
  %v218 = vunpack.c.l.b16 %v74
  %v219 = vunpack.c.l.b16 %v75
  %v220 = vunpack.c.l.b16 %v76
  %v221 = vunpack.c.l.b16 %v77
  %v222 = vunpack.c.l.b16 %v78
  %v223 = vunpack.c.l.b16 %v79
  %v224 = vunpack.c.l.b16 %v80
  %v225 = vunpack.c.l.b16 %v81
  %v226 = vunpack.c.l.b16 %v82
  %v227 = vunpack.c.l.b16 %v83
  %v228 = vunpack.c.l.b16 %v84
  %v229 = vunpack.c.l.b16 %v85
  %v230 = vunpack.c.l.b16 %v86
  %v231 = vunpack.c.l.b16 %v87
  %v232 = vunpack.c.l.b16 %v88
  %v233 = vunpack.c.l.b16 %v89
  %v234 = vunpack.c.l.b16 %v90
  %v235 = vunpack.c.l.b16 %v91
  %v236 = vunpack.c.l.b16 %v92
  %v237 = vunpack.c.l.b16 %v93
  %v238 = vunpack.c.l.b16 %v94
  %v239 = vunpack.c.l.b16 %v95
  %v240 = vunpack.c.l.b16 %v96
  %v241 = vunpack.c.l.b16 %v97
  %v242 = vunpack.c.l.b16 %v98
  %v243 = vunpack.c.l.b16 %v99
  %v244 = vunpack.c.l.b16 %v100
  %v245 = vunpack.c.l.b16 %v101
  %v246 = vpack.c.b16 %v215, %v214
  %v247 = vpack.c.b16 %v217, %v216
  %v248 = vpack.c.b16 %v219, %v218
  %v249 = vpack.c.b16 %v221, %v220
  %v250 = vpack.c.b16 %v223, %v222
  %v251 = vpack.c.b16 %v225, %v224
  %v252 = vpack.c.b16 %v227, %v226
  %v253 = vpack.c.b16 %v229, %v228
  %v254 = vpack.c.b16 %v231, %v230
  %v255 = vpack.c.b16 %v233, %v232
  %v256 = vpack.c.b16 %v235, %v234
  %v257 = vpack.c.b16 %v237, %v236
  %v258 = vpack.c.b16 %v239, %v238
  %v259 = vpack.c.b16 %v241, %v240
  %v260 = vpack.c.b16 %v243, %v242
  %v261 = vpack.c.b16 %v245, %v244
  %278 = vmatprep.subr.bf16.mxu0 0
  %279 = vmatpush1.bf16.msra.mxu0 %v246
  %280 = vmatprep.subr.bf16.mxu0 0
  %281 = vmatpush1.bf16.msra.mxu0 %v247
  %282 = vmatprep.subr.bf16.mxu0 0
  %283 = vmatpush1.bf16.msra.mxu0 %v248
  %284 = vmatprep.subr.bf16.mxu0 0
  %285 = vmatpush1.bf16.msra.mxu0 %v249
  %286 = vmatprep.subr.bf16.mxu0 0
  %287 = vmatpush1.bf16.msra.mxu0 %v250
  %288 = vmatprep.subr.bf16.mxu0 0
  %289 = vmatpush1.bf16.msra.mxu0 %v251
  %290 = vmatprep.subr.bf16.mxu0 0
  %291 = vmatpush1.bf16.msra.mxu0 %v252
  %292 = vmatprep.subr.bf16.mxu0 0
  %293 = vmatpush1.bf16.msra.mxu0 %v253
  %294 = vmatprep.subr.bf16.mxu0 0
  %295 = vmatpush1.bf16.msra.mxu0 %v254
  %296 = vmatprep.subr.bf16.mxu0 0
  %297 = vmatpush1.bf16.msra.mxu0 %v255
  %298 = vmatprep.subr.bf16.mxu0 0
  %299 = vmatpush1.bf16.msra.mxu0 %v256
  %300 = vmatprep.subr.bf16.mxu0 0
  %301 = vmatpush1.bf16.msra.mxu0 %v257
  %302 = vmatprep.subr.bf16.mxu0 0
  %303 = vmatpush1.bf16.msra.mxu0 %v258
  %304 = vmatprep.subr.bf16.mxu0 0
  %305 = vmatpush1.bf16.msra.mxu0 %v259
  %306 = vmatprep.subr.bf16.mxu0 0
  %307 = vmatpush1.bf16.msra.mxu0 %v260
  %308 = vmatprep.subr.bf16.mxu0 0
  %309 = vmatpush1.bf16.msra.mxu0 %v261
  %310 = vmatprep.mubr.bf16.mxu0 %v151
  %311 = vmatmul.mubr.bf16.gmra.mrb[0].mxu0 %v150
  %v312 = vpop.f32.mrb[0].mxu0
  %v313 = vadd.f32 0.0, %v312
  %v314 = vpop.f32.mrb[0].mxu0
  %v315 = vpop.f32.mrb[0].mxu0
  %v316 = vadd.f32 0.0, %v315
  %v317 = vpop.f32.mrb[0].mxu0
  %318 = vmatprep.mubr.bf16.mxu0 %v153
  %319 = vmatmul.mubr.bf16.gmra.mrb[0].mxu0 %v152
  %v320 = vpop.f32.mrb[0].mxu0
  %v321 = vadd.f32 0.0, %v320
  %v322 = vpop.f32.mrb[0].mxu0
  %v323 = vpop.f32.mrb[0].mxu0
  %v324 = vadd.f32 0.0, %v323
  %v325 = vpop.f32.mrb[0].mxu0
  %326 = vmatprep.mubr.bf16.mxu0 %v155
  %327 = vmatmul.mubr.bf16.gmra.mrb[0].mxu0 %v154
  %v328 = vpop.f32.mrb[0].mxu0
  %v329 = vadd.f32 0.0, %v328
  %v330 = vpop.f32.mrb[0].mxu0
  %v331 = vpop.f32.mrb[0].mxu0
  %v332 = vadd.f32 0.0, %v331
  %v333 = vpop.f32.mrb[0].mxu0
  %334 = vmatprep.mubr.bf16.mxu0 %v157
  %335 = vmatmul.mubr.bf16.gmra.mrb[0].mxu0 %v156
  %v336 = vpop.f32.mrb[0].mxu0
  %v337 = vadd.f32 0.0, %v336
  %v338 = vpop.f32.mrb[0].mxu0
  %v339 = vpop.f32.mrb[0].mxu0
  %v340 = vadd.f32 0.0, %v339
  %v341 = vpop.f32.mrb[0].mxu0
  %342 = vmatprep.mubr.bf16.mxu0 %v159
  %343 = vmatmul.mubr.bf16.gmra.mrb[0].mxu0 %v158
  %v344 = vpop.f32.mrb[0].mxu0
  %v345 = vadd.f32 0.0, %v344
  %v346 = vpop.f32.mrb[0].mxu0
  %v347 = vpop.f32.mrb[0].mxu0
  %v348 = vadd.f32 0.0, %v347
  %v349 = vpop.f32.mrb[0].mxu0
  %350 = vmatprep.mubr.bf16.mxu0 %v161
  %351 = vmatmul.mubr.bf16.gmra.mrb[0].mxu0 %v160
  %v352 = vpop.f32.mrb[0].mxu0
  %v353 = vadd.f32 0.0, %v352
  %v354 = vpop.f32.mrb[0].mxu0
  %v355 = vpop.f32.mrb[0].mxu0
  %v356 = vadd.f32 0.0, %v355
  %v357 = vpop.f32.mrb[0].mxu0
  %358 = vmatprep.mubr.bf16.mxu0 %v163
  %359 = vmatmul.mubr.bf16.gmra.mrb[0].mxu0 %v162
  %v360 = vpop.f32.mrb[0].mxu0
  %v361 = vadd.f32 0.0, %v360
  %v362 = vpop.f32.mrb[0].mxu0
  %v363 = vpop.f32.mrb[0].mxu0
  %v364 = vadd.f32 0.0, %v363
  %v365 = vpop.f32.mrb[0].mxu0
  %366 = vmatprep.mubr.bf16.mxu0 %v165
  %367 = vmatmul.mubr.bf16.gmra.mrb[0].mxu0 %v164
  %v368 = vpop.f32.mrb[0].mxu0
  %v369 = vadd.f32 0.0, %v368
  %v370 = vpop.f32.mrb[0].mxu0
  %v371 = vpop.f32.mrb[0].mxu0
  %v372 = vadd.f32 0.0, %v371
  %v373 = vpop.f32.mrb[0].mxu0
  %374 = vdwg.mxu0
  %v375 = vadd.f32 %v38, %v313
  %v376 = vadd.f32 %v39, %v316
  %v377 = vadd.f32 %v40, %v321
  %v378 = vadd.f32 %v41, %v324
  %v379 = vadd.f32 %v42, %v329
  %v380 = vadd.f32 %v43, %v332
  %v381 = vadd.f32 %v44, %v337
  %v382 = vadd.f32 %v45, %v340
  %v383 = vadd.f32 %v46, %v345
  %v384 = vadd.f32 %v47, %v348
  %v385 = vadd.f32 %v48, %v353
  %v386 = vadd.f32 %v49, %v356
  %v387 = vadd.f32 %v50, %v361
  %v388 = vadd.f32 %v51, %v364
  %v389 = vadd.f32 %v52, %v369
  %v390 = vadd.f32 %v53, %v372
  %391 = vst [vmem:[#allocation2] sm:$0xff] %v375
  %392 = vst [vmem:[#allocation2 + $0x8] sm:$0xff] %v376
  %393 = vst [vmem:[#allocation2 + $0x10] sm:$0xff] %v377
  %394 = vst [vmem:[#allocation2 + $0x18] sm:$0xff] %v378
  %395 = vst [vmem:[#allocation2 + $0x20] sm:$0xff] %v379
  %396 = vst [vmem:[#allocation2 + $0x28] sm:$0xff] %v380
  %397 = vst [vmem:[#allocation2 + $0x30] sm:$0xff] %v381
  %398 = vst [vmem:[#allocation2 + $0x38] sm:$0xff] %v382
  %399 = vst [vmem:[#allocation2 + $0x40] sm:$0xff] %v383
  %400 = vst [vmem:[#allocation2 + $0x48] sm:$0xff] %v384
  %401 = vst [vmem:[#allocation2 + $0x50] sm:$0xff] %v385
  %402 = vst [vmem:[#allocation2 + $0x58] sm:$0xff] %v386
  %403 = vst [vmem:[#allocation2 + $0x60] sm:$0xff] %v387
  %404 = vst [vmem:[#allocation2 + $0x68] sm:$0xff] %v388
  %405 = vst [vmem:[#allocation2 + $0x70] sm:$0xff] %v389
  %406 = vst [vmem:[#allocation2 + $0x78] sm:$0xff] %v390
  // Predicated region
  $region22: #{scene_embed2_fwd.25} parent=0 // pred_check
    %p407 = pneg %p18
  $region23: #{scene_embed2_fwd.25} parent=0 // pred_check_branch
    %409 = sbr.rel (%p407) target = $region25
  $region24: #{scene_embed2_fwd.25} parent=0 // pred_region
    %v410 = vld [vmem:[#allocation2] sm:$0xff]
    %v411 = vld [vmem:[#allocation2 + $0x8] sm:$0xff]
    %v412 = vld [vmem:[#allocation2 + $0x10] sm:$0xff]
    %v413 = vld [vmem:[#allocation2 + $0x18] sm:$0xff]
    %v414 = vld [vmem:[#allocation2 + $0x20] sm:$0xff]
    %v415 = vld [vmem:[#allocation2 + $0x28] sm:$0xff]
    %v416 = vld [vmem:[#allocation2 + $0x30] sm:$0xff]
    %v417 = vld [vmem:[#allocation2 + $0x38] sm:$0xff]
    %v418 = vld [vmem:[#allocation2 + $0x40] sm:$0xff]
    %v419 = vld [vmem:[#allocation2 + $0x48] sm:$0xff]
    %v420 = vld [vmem:[#allocation2 + $0x50] sm:$0xff]
    %v421 = vld [vmem:[#allocation2 + $0x58] sm:$0xff]
    %v422 = vld [vmem:[#allocation2 + $0x60] sm:$0xff]
    %v423 = vld [vmem:[#allocation2 + $0x68] sm:$0xff]
    %v424 = vld [vmem:[#allocation2 + $0x70] sm:$0xff]
    %v425 = vld [vmem:[#allocation2 + $0x78] sm:$0xff]
    %v426 = vld [vmem:[%s2] sm:$0x1]
    %v428 = vlaneseq
    %v429 = vshrl.u32 %v428, 7
    %v430 = vsub.s32 0, %v429
    %v431 = vrot.slane %v426, %v430
    %v433 = vmul.f32 %v410, %v431
    %v434 = vmul.f32 %v411, %v431
    %v435 = vmul.f32 %v412, %v431
    %v436 = vmul.f32 %v413, %v431
    %v437 = vmul.f32 %v414, %v431
    %v438 = vmul.f32 %v415, %v431
    %v439 = vmul.f32 %v416, %v431
    %v440 = vmul.f32 %v417, %v431
    %v441 = vmul.f32 %v418, %v431
    %v442 = vmul.f32 %v419, %v431
    %v443 = vmul.f32 %v420, %v431
    %v444 = vmul.f32 %v421, %v431
    %v445 = vmul.f32 %v422, %v431
    %v446 = vmul.f32 %v423, %v431
    %v447 = vmul.f32 %v424, %v431
    %v448 = vmul.f32 %v425, %v431
    %v449 = vld [vmem:[%s3] sm:$0x1]
    %v451 = vlaneseq
    %v452 = vshrl.u32 %v451, 7
    %v453 = vsub.s32 0, %v452
    %v454 = vrot.slane %v449, %v453
    %v456 = vadd.f32 %v433, %v454
    %v457 = vadd.f32 %v434, %v454
    %v458 = vadd.f32 %v435, %v454
    %v459 = vadd.f32 %v436, %v454
    %v460 = vadd.f32 %v437, %v454
    %v461 = vadd.f32 %v438, %v454
    %v462 = vadd.f32 %v439, %v454
    %v463 = vadd.f32 %v440, %v454
    %v464 = vadd.f32 %v441, %v454
    %v465 = vadd.f32 %v442, %v454
    %v466 = vadd.f32 %v443, %v454
    %v467 = vadd.f32 %v444, %v454
    %v468 = vadd.f32 %v445, %v454
    %v469 = vadd.f32 %v446, %v454
    %v470 = vadd.f32 %v447, %v454
    %v471 = vadd.f32 %v448, %v454
    %v472 = vmax.f32 %v456, 0.0
    %v473 = vmax.f32 %v457, 0.0
    %v474 = vmax.f32 %v458, 0.0
    %v475 = vmax.f32 %v459, 0.0
    %v476 = vmax.f32 %v460, 0.0
    %v477 = vmax.f32 %v461, 0.0
    %v478 = vmax.f32 %v462, 0.0
    %v479 = vmax.f32 %v463, 0.0
    %v480 = vmax.f32 %v464, 0.0
    %v481 = vmax.f32 %v465, 0.0
    %v482 = vmax.f32 %v466, 0.0
    %v483 = vmax.f32 %v467, 0.0
    %v484 = vmax.f32 %v468, 0.0
    %v485 = vmax.f32 %v469, 0.0
    %v486 = vmax.f32 %v470, 0.0
    %v487 = vmax.f32 %v471, 0.0
    %v488 = vpack.c.bf16 %v473, %v472
    %v489 = vpack.c.bf16 %v475, %v474
    %v490 = vpack.c.bf16 %v477, %v476
    %v491 = vpack.c.bf16 %v479, %v478
    %v492 = vpack.c.bf16 %v481, %v480
    %v493 = vpack.c.bf16 %v483, %v482
    %v494 = vpack.c.bf16 %v485, %v484
    %v495 = vpack.c.bf16 %v487, %v486
    %v504 = vunpack.c.l.b16 %v488
    %v505 = vunpack.c.h.b16 %v488
    %v506 = vunpack.c.l.b16 %v489
    %v507 = vunpack.c.h.b16 %v489
    %v508 = vunpack.c.l.b16 %v490
    %v509 = vunpack.c.h.b16 %v490
    %v510 = vunpack.c.l.b16 %v491
    %v511 = vunpack.c.h.b16 %v491
    %v512 = vunpack.c.l.b16 %v492
    %v513 = vunpack.c.h.b16 %v492
    %v514 = vunpack.c.l.b16 %v493
    %v515 = vunpack.c.h.b16 %v493
    %v516 = vunpack.c.l.b16 %v494
    %v517 = vunpack.c.h.b16 %v494
    %v518 = vunpack.c.l.b16 %v495
    %v519 = vunpack.c.h.b16 %v495
    %v520 = vpack.c.b16 %v504, %v504
    %v521 = vpack.c.b16 %v505, %v505
    %v522 = vpack.c.b16 %v506, %v506
    %v523 = vpack.c.b16 %v507, %v507
    %v524 = vpack.c.b16 %v508, %v508
    %v525 = vpack.c.b16 %v509, %v509
    %v526 = vpack.c.b16 %v510, %v510
    %v527 = vpack.c.b16 %v511, %v511
    %v528 = vpack.c.b16 %v512, %v512
    %v529 = vpack.c.b16 %v513, %v513
    %v530 = vpack.c.b16 %v514, %v514
    %v531 = vpack.c.b16 %v515, %v515
    %v532 = vpack.c.b16 %v516, %v516
    %v533 = vpack.c.b16 %v517, %v517
    %v534 = vpack.c.b16 %v518, %v518
    %v535 = vpack.c.b16 %v519, %v519
    %552 = vst [vmem:[%s4] sm:$0xf] %v520
    %553 = vst [vmem:[%s4 + $0x4] sm:$0xf] %v521
    %554 = vst [vmem:[%s4 + $0x8] sm:$0xf] %v522
    %555 = vst [vmem:[%s4 + $0xc] sm:$0xf] %v523
    %556 = vst [vmem:[%s4 + $0x10] sm:$0xf] %v524
    %557 = vst [vmem:[%s4 + $0x14] sm:$0xf] %v525
    %558 = vst [vmem:[%s4 + $0x18] sm:$0xf] %v526
    %559 = vst [vmem:[%s4 + $0x1c] sm:$0xf] %v527
    %560 = vst [vmem:[%s4 + $0x20] sm:$0xf] %v528
    %561 = vst [vmem:[%s4 + $0x24] sm:$0xf] %v529
    %562 = vst [vmem:[%s4 + $0x28] sm:$0xf] %v530
    %563 = vst [vmem:[%s4 + $0x2c] sm:$0xf] %v531
    %564 = vst [vmem:[%s4 + $0x30] sm:$0xf] %v532
    %565 = vst [vmem:[%s4 + $0x34] sm:$0xf] %v533
    %566 = vst [vmem:[%s4 + $0x38] sm:$0xf] %v534
    %567 = vst [vmem:[%s4 + $0x3c] sm:$0xf] %v535
  $region25: #{scene_embed2_fwd.25} parent=0 // pred_fallthru
    _
  // Predicated region
  $region26: #{scene_embed2_fwd.25} parent=0 // pred_check
    _
  $region27: #{scene_embed2_fwd.25} parent=0 // pred_check_branch
    %569 = sbr.rel (0) target = $region29
  $region28: #{scene_embed2_fwd.25} parent=0 // pred_region
    _
  $region29: #{scene_embed2_fwd.25} parent=0 // pred_fallthru
    _
  // Predicated region
  $region30: #{scene_embed2_fwd.25} parent=0 // pred_check
    _
  $region31: #{scene_embed2_fwd.25} parent=0 // pred_check_branch
    %571 = sbr.rel (0) target = $region33
  $region32: #{scene_embed2_fwd.25} parent=0 // pred_region
    _
  $region33: #{scene_embed2_fwd.25} parent=0 // pred_fallthru
    _

// kernel: scene_embed2_fwd.26
$region0: #{scene_embed2_fwd.26}
  #allocation0 [shape = 'u32[]', space=smem, size = 0x4, offset = 0x4, fixed_abs, tag = 'smem constant byte address 0x4 - core index']
  #allocation1 [shape = 'u32[144,128]{1,0:T(1,128)}', space=vmem, size = 0x12000, scoped, tag = 'internal scratch']
  #allocation2 [shape = 'f32[128,128]{1,0:T(8,128)}', space=vmem, size = 0x10000, scoped, tag = 'scratch operand']
  %s0 = inlined_call_operand.vmem [shape: bf16[128,512], index: 0, kind: input, shape index: {}]
  %s1 = inlined_call_operand.vmem [shape: bf16[512,128], index: 1, kind: input, shape index: {}]
  %s2 = inlined_call_operand.vmem [shape: f32[1,128], index: 2, kind: input, shape index: {}]
  %s3 = inlined_call_operand.vmem [shape: f32[1,128], index: 3, kind: input, shape index: {}]
  %s4 = inlined_call_operand.vmem [shape: bf16[128,128], index: 4, kind: output, shape index: {}]
  %s5 = sld [smem:[#allocation0]]
  $region95: #{scene_embed2_fwd.26} parent=0
    _
  %s7 = ssub.s32 1, %s5
  %s8 = scalar_select 0, %s7, %s5
  $region1: #{scene_embed2_fwd.26} parent=0
    #allocation3 [shape = 'u8[131072]{0}', space=vmem, size = 0x20000, scoped, tag = 'input window, operand 0']
    loop: start=0, step=1, limit=4
    $region2: #{scene_embed2_fwd.26} parent=1 // loop_pre_header
      _
    $region3: #{scene_embed2_fwd.26} parent=1 // loop_header
      %s10 = sphi 0, %s14
      %p11 = scmp.ge.s32.totalorder %s10, 4
      %s17 = sphi 0, %s36
      %s18 = sphi 0, %s32
      %s19 = sphi 0, %s28
      %s20 = sphi 0, %s17
      %s21 = sphi 0, %s18
      %s22 = sphi 0, %s19
      %s23 = sphi 0, %s20
      %s24 = sphi 0, %s21
      %s25 = sphi 0, %s22
      %s41 = sphi 0, %s43
      %s44 = sphi 0, %s41
      %s45 = sphi 0, %s44
      %s61 = sphi 0, %s45
      %s69 = sphi 0, %s71
      %s72 = sphi 0, %s69
      %s73 = sphi 0, %s72
      %s89 = sphi 0, %s73
      %s95 = sphi 0, %s97
      %s98 = sphi 0, %s95
      %s99 = sphi 0, %s98
      %s115 = sphi 0, %s99
      %s121 = sphi 0, %s123
      %s124 = sphi 0, %s121
      %s125 = sphi 0, %s124
      %s141 = sphi 0, %s125
      %s149 = sphi 0, %s151
      %s152 = sphi 0, %s149
      %s153 = sphi 0, %s152
      %s169 = sphi 0, %s153
    $region4: #{scene_embed2_fwd.26} parent=1 // loop_header_branch
      %13 = sbr.rel (%p11) target = $region8
    $region5: #{scene_embed2_fwd.26} parent=1 // loop_body
      %s15 = ssub.s32 %s10, 1
      %s16 = ssub.s32 %s10, 2
      %s26 = sadd.s32 1, %s19
      %p27 = scmp.ge.s32.totalorder %s26, 2
      %s28 = scalar_select %p27, 0, %s26
      %s29 = sadd.s32 1, %s18
      %s30 = scalar_select %p27, %s29, %s18
      %p31 = scmp.ge.s32.totalorder %s30, 1
      %s32 = scalar_select %p31, 0, %s30
      %s33 = sadd.s32 1, %s17
      %s34 = scalar_select %p31, %s33, %s17
      %p35 = scmp.ge.s32.totalorder %s34, 1
      %s36 = scalar_select %p35, 0, %s34
      %s37 = ssub.s32 %s17, %s36
      %s38 = ssub.s32 %s19, %s28
      %s39 = sor.u32 %s37, %s38
      %p40 = scmp.eq.s32.totalorder %s39, 0
      %s42 = sadd.s32 %s41, 1
      %s43 = scalar_select %p40, %s41, %s42
      %p46 = pneg %p40
      %p47 = scmp.eq.s32.totalorder %s10, 1
      %p48 = por %p46, %p47
      %p49 = scmp.ne.s32.totalorder %s41, %s44
      %p50 = scmp.eq.s32.totalorder %s10, 0
      %p51 = por %p49, %p50
      %p52 = scmp.ne.s32.totalorder %s41, %s44
      %p53 = scmp.eq.s32.totalorder %s15, 1
      %p54 = por %p52, %p53
      %p55 = scmp.ne.s32.totalorder %s44, %s45
      %p56 = scmp.eq.s32.totalorder %s15, 0
      %p57 = por %p55, %p56
      %p58 = scmp.ne.s32.totalorder %s44, %s45
      %p59 = scmp.eq.s32.totalorder %s16, 1
      %p60 = por %p58, %p59
      %p62 = scmp.ne.s32.totalorder %s45, %s61
      %p63 = scmp.eq.s32.totalorder %s16, 0
      %p64 = por %p62, %p63
      %s65 = ssub.s32 %s19, %s28
      %s66 = ssub.s32 %s18, %s32
      %s67 = sor.u32 %s65, %s66
      %p68 = scmp.eq.s32.totalorder %s67, 0
      %s70 = sadd.s32 %s69, 1
      %s71 = scalar_select %p68, %s69, %s70
      %p74 = pneg %p68
      %p75 = scmp.eq.s32.totalorder %s10, 1
      %p76 = por %p74, %p75
      %p77 = scmp.ne.s32.totalorder %s69, %s72
      %p78 = scmp.eq.s32.totalorder %s10, 0
      %p79 = por %p77, %p78
      %p80 = scmp.ne.s32.totalorder %s69, %s72
      %p81 = scmp.eq.s32.totalorder %s15, 1
      %p82 = por %p80, %p81
      %p83 = scmp.ne.s32.totalorder %s72, %s73
      %p84 = scmp.eq.s32.totalorder %s15, 0
      %p85 = por %p83, %p84
      %p86 = scmp.ne.s32.totalorder %s72, %s73
      %p87 = scmp.eq.s32.totalorder %s16, 1
      %p88 = por %p86, %p87
      %p90 = scmp.ne.s32.totalorder %s73, %s89
      %p91 = scmp.eq.s32.totalorder %s16, 0
      %p92 = por %p90, %p91
      %s93 = ssub.s32 %s18, %s32
      %p94 = scmp.eq.s32.totalorder %s93, 0
      %s96 = sadd.s32 %s95, 1
      %s97 = scalar_select %p94, %s95, %s96
      %p100 = pneg %p94
      %p101 = scmp.eq.s32.totalorder %s10, 1
      %p102 = por %p100, %p101
      %p103 = scmp.ne.s32.totalorder %s95, %s98
      %p104 = scmp.eq.s32.totalorder %s10, 0
      %p105 = por %p103, %p104
      %p106 = scmp.ne.s32.totalorder %s95, %s98
      %p107 = scmp.eq.s32.totalorder %s15, 1
      %p108 = por %p106, %p107
      %p109 = scmp.ne.s32.totalorder %s98, %s99
      %p110 = scmp.eq.s32.totalorder %s15, 0
      %p111 = por %p109, %p110
      %p112 = scmp.ne.s32.totalorder %s98, %s99
      %p113 = scmp.eq.s32.totalorder %s16, 1
      %p114 = por %p112, %p113
      %p116 = scmp.ne.s32.totalorder %s99, %s115
      %p117 = scmp.eq.s32.totalorder %s16, 0
      %p118 = por %p116, %p117
      %s119 = ssub.s32 %s18, %s32
      %p120 = scmp.eq.s32.totalorder %s119, 0
      %s122 = sadd.s32 %s121, 1
      %s123 = scalar_select %p120, %s121, %s122
      %p126 = pneg %p120
      %p127 = scmp.eq.s32.totalorder %s10, 1
      %p128 = por %p126, %p127
      %p129 = scmp.ne.s32.totalorder %s121, %s124
      %p130 = scmp.eq.s32.totalorder %s10, 0
      %p131 = por %p129, %p130
      %p132 = scmp.ne.s32.totalorder %s121, %s124
      %p133 = scmp.eq.s32.totalorder %s15, 1
      %p134 = por %p132, %p133
      %p135 = scmp.ne.s32.totalorder %s124, %s125
      %p136 = scmp.eq.s32.totalorder %s15, 0
      %p137 = por %p135, %p136
      %p138 = scmp.ne.s32.totalorder %s124, %s125
      %p139 = scmp.eq.s32.totalorder %s16, 1
      %p140 = por %p138, %p139
      %p142 = scmp.ne.s32.totalorder %s125, %s141
      %p143 = scmp.eq.s32.totalorder %s16, 0
      %p144 = por %p142, %p143
      %s145 = ssub.s32 %s17, %s36
      %s146 = ssub.s32 %s18, %s32
      %s147 = sor.u32 %s145, %s146
      %p148 = scmp.eq.s32.totalorder %s147, 0
      %s150 = sadd.s32 %s149, 1
      %s151 = scalar_select %p148, %s149, %s150
      %p154 = pneg %p148
      %p155 = scmp.eq.s32.totalorder %s10, 1
      %p156 = por %p154, %p155
      %p157 = scmp.ne.s32.totalorder %s149, %s152
      %p158 = scmp.eq.s32.totalorder %s10, 0
      %p159 = por %p157, %p158
      %p160 = scmp.ne.s32.totalorder %s149, %s152
      %p161 = scmp.eq.s32.totalorder %s15, 1
      %p162 = por %p160, %p161
      %p163 = scmp.ne.s32.totalorder %s152, %s153
      %p164 = scmp.eq.s32.totalorder %s15, 0
      %p165 = por %p163, %p164
      %p166 = scmp.ne.s32.totalorder %s152, %s153
      %p167 = scmp.eq.s32.totalorder %s16, 1
      %p168 = por %p166, %p167
      %p170 = scmp.ne.s32.totalorder %s153, %s169
      %p171 = scmp.eq.s32.totalorder %s16, 0
      %p172 = por %p170, %p171
      %p173 = scmp.le.s32.totalorder 1, %s10
      %p174 = scmp.lt.s32.totalorder %s10, 3
      %p175 = pnand %p173, %p174
      %p176 = pneg %p175
      // Predicated region
      $region9: #{scene_embed2_fwd.26} parent=5 // pred_check
        _
      $region10: #{scene_embed2_fwd.26} parent=5 // pred_check_branch
        %178 = sbr.rel (%p175) target = $region12
      $region11: #{scene_embed2_fwd.26} parent=5 // pred_region
        %s179 = ssub.s32 %s10, 1
        // Predicated region
        $region13: #{scene_embed2_fwd.26} parent=11 // pred_check
          %p180 = pneg %p111
        $region14: #{scene_embed2_fwd.26} parent=11 // pred_check_branch
          %182 = sbr.rel (%p180) target = $region16
        $region15: #{scene_embed2_fwd.26} parent=11 // pred_region
          %p183 = scmp.lt.s32.totalorder %s21, 0
          %s184 = scalar_select %p183, %s21, 0
          %s185 = scalar_lea.vmem %s2, %s184
        $region16: #{scene_embed2_fwd.26} parent=11 // pred_fallthru
          _
        // Predicated region
        $region17: #{scene_embed2_fwd.26} parent=11 // pred_check
          %p186 = pneg %p137
        $region18: #{scene_embed2_fwd.26} parent=11 // pred_check_branch
          %188 = sbr.rel (%p186) target = $region20
        $region19: #{scene_embed2_fwd.26} parent=11 // pred_region
          %p189 = scmp.lt.s32.totalorder %s21, 0
          %s190 = scalar_select %p189, %s21, 0
          %s191 = scalar_lea.vmem %s3, %s190
        $region20: #{scene_embed2_fwd.26} parent=11 // pred_fallthru
          _
      $region12: #{scene_embed2_fwd.26} parent=5 // pred_fallthru
        _
      %p192 = scmp.lt.s32.totalorder %s10, 2
      // Predicated region
      $region21: #{scene_embed2_fwd.26} parent=5 // pred_check
        %p193 = pneg %p192
      $region22: #{scene_embed2_fwd.26} parent=5 // pred_check_branch
        %195 = sbr.rel (%p193) target = $region24
      $region23: #{scene_embed2_fwd.26} parent=5 // pred_region
        // Predicated region
        $region25: #{scene_embed2_fwd.26} parent=23 // pred_check
          %p196 = pneg %p51
        $region26: #{scene_embed2_fwd.26} parent=23 // pred_check_branch
          %198 = sbr.rel (%p196) target = $region28
        $region27: #{scene_embed2_fwd.26} parent=23 // pred_region
          %s199 = sand.u32 %s41, 1
          %s200 = sand.u32 %s41, 1
          %s201 = smul.addr %s200, 128
          %s202 = scalar_lea.vmem [#allocation3], %s201
          %s203 = smul.u32 16, %s17
          %s204 = smul.u32 2, %s19
          %s205 = smul.addr %s203, 4
          %s206 = sadd.s32 %s204, %s205
          %s207 = smul.addr %s206, 4
          %s208 = scalar_lea.vmem %s0, %s207
          // Predicated region
          $region29: #{scene_embed2_fwd.26} parent=27 // pred_check
            _
          $region30: #{scene_embed2_fwd.26} parent=27 // pred_check_branch
            %210 = sbr.rel (0) target = $region32
          $region31: #{scene_embed2_fwd.26} parent=27 // pred_region
            // Predicated region
            $region33: #{scene_embed2_fwd.26} parent=31 // pred_check
              _
            $region34: #{scene_embed2_fwd.26} parent=31 // pred_check_branch
              %212 = sbr.rel (0) target = $region36
            $region35: #{scene_embed2_fwd.26} parent=31 // pred_region
              // Predicated region
              $region48: #{scene_embed2_fwd.26} parent=35 // pred_check
                _
              $region49: #{scene_embed2_fwd.26} parent=35 // pred_check_branch
                %257 = sbr.rel (0) target = $region51
              $region50: #{scene_embed2_fwd.26} parent=35 // pred_region
                loop: start=0, step=1, limit=1
                $region52: #{scene_embed2_fwd.26} parent=50 // loop_pre_header
                  _
                $region53: #{scene_embed2_fwd.26} parent=50 // loop_header
                  %s259 = sphi 0, %s263
                  %p260 = scmp.ge.s32.totalorder %s259, 1
                  %s264 = sphi %s208, %s208
                  %s265 = sphi %s202, %s202
                $region54: #{scene_embed2_fwd.26} parent=50 // loop_header_branch
                  %262 = sbr.rel (%p260) target = $region58
                $region55: #{scene_embed2_fwd.26} parent=50 // loop_body
                  %v266 = vld [vmem:[%s264] sm:$0xff]
                  %267 = vst [vmem:[%s265] sm:$0xff] %v266
                  %v268 = vld [vmem:[%s264 + $0x10] sm:$0xff]
                  %269 = vst [vmem:[%s265 + $0x8] sm:$0xff] %v268
                  %v270 = vld [vmem:[%s264 + $0x20] sm:$0xff]
                  %271 = vst [vmem:[%s265 + $0x10] sm:$0xff] %v270
                  %v272 = vld [vmem:[%s264 + $0x30] sm:$0xff]
                  %273 = vst [vmem:[%s265 + $0x18] sm:$0xff] %v272
                  %v274 = vld [vmem:[%s264 + $0x40] sm:$0xff]
                  %275 = vst [vmem:[%s265 + $0x20] sm:$0xff] %v274
                  %v276 = vld [vmem:[%s264 + $0x50] sm:$0xff]
                  %277 = vst [vmem:[%s265 + $0x28] sm:$0xff] %v276
                  %v278 = vld [vmem:[%s264 + $0x60] sm:$0xff]
                  %279 = vst [vmem:[%s265 + $0x30] sm:$0xff] %v278
                  %v280 = vld [vmem:[%s264 + $0x70] sm:$0xff]
                  %281 = vst [vmem:[%s265 + $0x38] sm:$0xff] %v280
                  %v282 = vld [vmem:[%s264 + $0x80] sm:$0xff]
                  %283 = vst [vmem:[%s265 + $0x40] sm:$0xff] %v282
                  %v284 = vld [vmem:[%s264 + $0x90] sm:$0xff]
                  %285 = vst [vmem:[%s265 + $0x48] sm:$0xff] %v284
                  %v286 = vld [vmem:[%s264 + $0xa0] sm:$0xff]
                  %287 = vst [vmem:[%s265 + $0x50] sm:$0xff] %v286
                  %v288 = vld [vmem:[%s264 + $0xb0] sm:$0xff]
                  %289 = vst [vmem:[%s265 + $0x58] sm:$0xff] %v288
                  %v290 = vld [vmem:[%s264 + $0xc0] sm:$0xff]
                  %291 = vst [vmem:[%s265 + $0x60] sm:$0xff] %v290
                  %v292 = vld [vmem:[%s264 + $0xd0] sm:$0xff]
                  %293 = vst [vmem:[%s265 + $0x68] sm:$0xff] %v292
                  %v294 = vld [vmem:[%s264 + $0xe0] sm:$0xff]
                  %295 = vst [vmem:[%s265 + $0x70] sm:$0xff] %v294
                  %v296 = vld [vmem:[%s264 + $0xf0] sm:$0xff]
                  %297 = vst [vmem:[%s265 + $0x78] sm:$0xff] %v296
                $region56: #{scene_embed2_fwd.26} parent=50 // loop_footer
                  %s263 = sadd.s32 1, %s259
                $region57: #{scene_embed2_fwd.26} parent=50 // loop_footer_branch
                  %258 = sbr.rel target = $region53
                $region58: #{scene_embed2_fwd.26} parent=50 // loop_exit
                  _
              $region51: #{scene_embed2_fwd.26} parent=35 // pred_fallthru
                _
              // Predicated region
              $region59: #{scene_embed2_fwd.26} parent=35 // pred_check
                _
              $region60: #{scene_embed2_fwd.26} parent=35 // pred_check_branch
                %299 = sbr.rel target = $region62
              $region61: #{scene_embed2_fwd.26} parent=35 // pred_region
                _
              $region62: #{scene_embed2_fwd.26} parent=35 // pred_fallthru
                _
            $region36: #{scene_embed2_fwd.26} parent=31 // pred_fallthru
              _
            // Predicated region
            $region37: #{scene_embed2_fwd.26} parent=31 // pred_check
              _
            $region38: #{scene_embed2_fwd.26} parent=31 // pred_check_branch
              %214 = sbr.rel target = $region40
            $region39: #{scene_embed2_fwd.26} parent=31 // pred_region
              loop: start=0, step=1, limit=1
              $region41: #{scene_embed2_fwd.26} parent=39 // loop_pre_header
                _
              $region42: #{scene_embed2_fwd.26} parent=39 // loop_header
                %s217 = sphi 0, %s221
                %p218 = scmp.ge.s32.totalorder %s217, 1
                %s222 = sphi %s208, %s208
                %s223 = sphi %s202, %s202
              $region43: #{scene_embed2_fwd.26} parent=39 // loop_header_branch
                %220 = sbr.rel (%p218) target = $region47
              $region44: #{scene_embed2_fwd.26} parent=39 // loop_body
                %v224 = vld [vmem:[%s222] sm:$0xff]
                %225 = vst [vmem:[%s223] sm:$0xff] %v224
                %v226 = vld [vmem:[%s222 + $0x10] sm:$0xff]
                %227 = vst [vmem:[%s223 + $0x8] sm:$0xff] %v226
                %v228 = vld [vmem:[%s222 + $0x20] sm:$0xff]
                %229 = vst [vmem:[%s223 + $0x10] sm:$0xff] %v228
                %v230 = vld [vmem:[%s222 + $0x30] sm:$0xff]
                %231 = vst [vmem:[%s223 + $0x18] sm:$0xff] %v230
                %v232 = vld [vmem:[%s222 + $0x40] sm:$0xff]
                %233 = vst [vmem:[%s223 + $0x20] sm:$0xff] %v232
                %v234 = vld [vmem:[%s222 + $0x50] sm:$0xff]
                %235 = vst [vmem:[%s223 + $0x28] sm:$0xff] %v234
                %v236 = vld [vmem:[%s222 + $0x60] sm:$0xff]
                %237 = vst [vmem:[%s223 + $0x30] sm:$0xff] %v236
                %v238 = vld [vmem:[%s222 + $0x70] sm:$0xff]
                %239 = vst [vmem:[%s223 + $0x38] sm:$0xff] %v238
                %v240 = vld [vmem:[%s222 + $0x80] sm:$0xff]
                %241 = vst [vmem:[%s223 + $0x40] sm:$0xff] %v240
                %v242 = vld [vmem:[%s222 + $0x90] sm:$0xff]
                %243 = vst [vmem:[%s223 + $0x48] sm:$0xff] %v242
                %v244 = vld [vmem:[%s222 + $0xa0] sm:$0xff]
                %245 = vst [vmem:[%s223 + $0x50] sm:$0xff] %v244
                %v246 = vld [vmem:[%s222 + $0xb0] sm:$0xff]
                %247 = vst [vmem:[%s223 + $0x58] sm:$0xff] %v246
                %v248 = vld [vmem:[%s222 + $0xc0] sm:$0xff]
                %249 = vst [vmem:[%s223 + $0x60] sm:$0xff] %v248
                %v250 = vld [vmem:[%s222 + $0xd0] sm:$0xff]
                %251 = vst [vmem:[%s223 + $0x68] sm:$0xff] %v250
                %v252 = vld [vmem:[%s222 + $0xe0] sm:$0xff]
                %253 = vst [vmem:[%s223 + $0x70] sm:$0xff] %v252
                %v254 = vld [vmem:[%s222 + $0xf0] sm:$0xff]
                %255 = vst [vmem:[%s223 + $0x78] sm:$0xff] %v254
              $region45: #{scene_embed2_fwd.26} parent=39 // loop_footer
                %s221 = sadd.s32 1, %s217
              $region46: #{scene_embed2_fwd.26} parent=39 // loop_footer_branch
                %216 = sbr.rel target = $region42
              $region47: #{scene_embed2_fwd.26} parent=39 // loop_exit
                _
            $region40: #{scene_embed2_fwd.26} parent=31 // pred_fallthru
              _
          $region32: #{scene_embed2_fwd.26} parent=27 // pred_fallthru
            _
          %300 = vnop
        $region28: #{scene_embed2_fwd.26} parent=23 // pred_fallthru
          _
        // Predicated region
        $region63: #{scene_embed2_fwd.26} parent=23 // pred_check
          %p301 = pneg %p79
        $region64: #{scene_embed2_fwd.26} parent=23 // pred_check_branch
          %303 = sbr.rel (%p301) target = $region66
        $region65: #{scene_embed2_fwd.26} parent=23 // pred_region
          %s304 = smul.u32 32, %s19
          %p305 = scmp.lt.s32.totalorder %s304, 63
          %s306 = scalar_select %p305, %s304, 63
          %p307 = scmp.lt.s32.totalorder %s18, 0
          %s308 = scalar_select %p307, %s18, 0
          %s309 = sadd.s32 %s308, %s306
          %s310 = smul.addr %s309, 4
          %s311 = scalar_lea.vmem %s1, %s310
          %s312 = smul.u32 32, %s19
        $region66: #{scene_embed2_fwd.26} parent=23 // pred_fallthru
          _
      $region24: #{scene_embed2_fwd.26} parent=5 // pred_fallthru
        _
      %p313 = scmp.le.s32.totalorder 1, %s10
      %p314 = scmp.lt.s32.totalorder %s10, 3
      %p315 = pnand %p313, %p314
      %p316 = pneg %p315
      // Predicated region
      $region67: #{scene_embed2_fwd.26} parent=5 // pred_check
        _
      $region68: #{scene_embed2_fwd.26} parent=5 // pred_check_branch
        %318 = sbr.rel (%p315) target = $region70
      $region69: #{scene_embed2_fwd.26} parent=5 // pred_region
        %s319 = ssub.s32 %s10, 1
        %s320 = sand.u32 %s44, 1
        %s321 = sand.u32 %s44, 1
        %s322 = smul.addr %s321, 128
        %s323 = scalar_lea.vmem [#allocation3], %s322
        // Predicated region
        $region71: #{scene_embed2_fwd.26} parent=69 // pred_check
          %p324 = pneg %p57
        $region72: #{scene_embed2_fwd.26} parent=69 // pred_check_branch
          %326 = sbr.rel (%p324) target = $region74
        $region73: #{scene_embed2_fwd.26} parent=69 // pred_region
          _
        $region74: #{scene_embed2_fwd.26} parent=69 // pred_fallthru
          _
        %s327 = sand.u32 %s44, 1
        %s328 = sand.u32 %s44, 1
        %s329 = smul.addr %s328, 128
        %s330 = scalar_lea.vmem [#allocation3], %s329
        %p331 = pneg %p57
        %p332 = pneg %p54
        %s333 = smul.u32 32, %s22
        %p334 = scmp.lt.s32.totalorder %s333, 63
        %s335 = scalar_select %p334, %s333, 63
        %p336 = scmp.lt.s32.totalorder %s21, 0
        %s337 = scalar_select %p336, %s21, 0
        %s338 = sadd.s32 %s337, %s335
        %s339 = smul.addr %s338, 4
        %s340 = scalar_lea.vmem %s1, %s339
        %p341 = pneg %p85
        %p342 = pneg %p82
        %p343 = scmp.lt.s32.totalorder %s21, 0
        %s344 = scalar_select %p343, %s21, 0
        %s345 = scalar_lea.vmem %s2, %s344
        %p346 = pneg %p111
        %p347 = pneg %p108
        %p348 = scmp.lt.s32.totalorder %s21, 0
        %s349 = scalar_select %p348, %s21, 0
        %s350 = scalar_lea.vmem %s3, %s349
        %p351 = pneg %p137
        %p352 = pneg %p134
        %p353 = pneg %p165
        %p354 = pneg %p162
        %s355 = smul.u32 16, %s20
        %p356 = scmp.lt.s32.totalorder %s355, 15
        %s357 = scalar_select %p356, %s355, 15
        %p358 = scmp.lt.s32.totalorder %s21, 0
        %s359 = scalar_select %p358, %s21, 0
        %s360 = sadd.s32 %s359, %s357
        %s361 = smul.addr %s360, 4
        %s362 = scalar_lea.vmem %s4, %s361
        %s363 = smul.u32 16, %s20
        %s364 = smul.u32 2, %s22
        %s365 = smul.u32 32, %s22
        %p366 = scmp.lt.s32.totalorder %s365, 63
        %s367 = scalar_select %p366, %s365, 63
        %p368 = scmp.lt.s32.totalorder %s21, 0
        %s369 = scalar_select %p368, %s21, 0
        %s370 = sadd.s32 %s369, %s367
        %s371 = smul.addr %s370, 4
        %s372 = scalar_lea.vmem %s1, %s371
        %s373 = smul.u32 32, %s22
        %p374 = scmp.lt.s32.totalorder %s21, 0
        %s375 = scalar_select %p374, %s21, 0
        %s376 = scalar_lea.vmem %s2, %s375
        %p377 = scmp.lt.s32.totalorder %s21, 0
        %s378 = scalar_select %p377, %s21, 0
        %s379 = scalar_lea.vmem %s3, %s378
        %s380 = smul.u32 16, %s20
        %p381 = scmp.lt.s32.totalorder %s380, 15
        %s382 = scalar_select %p381, %s380, 15
        %p383 = scmp.lt.s32.totalorder %s21, 0
        %s384 = scalar_select %p383, %s21, 0
        %s385 = sadd.s32 %s384, %s382
        %s386 = smul.addr %s385, 4
        %s387 = scalar_lea.vmem %s4, %s386
        %s388 = smul.u32 16, %s20
        %p390 = scmp.eq.s32.totalorder %s22, 0
        // Predicated region
        $region75: #{scene_embed2_fwd.26} parent=69 // pred_check
          %p391 = pneg %p390
        $region76: #{scene_embed2_fwd.26} parent=69 // pred_check_branch
          %393 = sbr.rel (%p391) target = $region78
        $region77: #{scene_embed2_fwd.26} parent=69 // pred_region
          %394 = vst [vmem:[#allocation2] sm:$0xff] 0.0
          %395 = vst [vmem:[#allocation2 + $0x8] sm:$0xff] 0.0
          %396 = vst [vmem:[#allocation2 + $0x10] sm:$0xff] 0.0
          %397 = vst [vmem:[#allocation2 + $0x18] sm:$0xff] 0.0
          %398 = vst [vmem:[#allocation2 + $0x20] sm:$0xff] 0.0
          %399 = vst [vmem:[#allocation2 + $0x28] sm:$0xff] 0.0
          %400 = vst [vmem:[#allocation2 + $0x30] sm:$0xff] 0.0
          %401 = vst [vmem:[#allocation2 + $0x38] sm:$0xff] 0.0
          %402 = vst [vmem:[#allocation2 + $0x40] sm:$0xff] 0.0
          %403 = vst [vmem:[#allocation2 + $0x48] sm:$0xff] 0.0
          %404 = vst [vmem:[#allocation2 + $0x50] sm:$0xff] 0.0
          %405 = vst [vmem:[#allocation2 + $0x58] sm:$0xff] 0.0
          %406 = vst [vmem:[#allocation2 + $0x60] sm:$0xff] 0.0
          %407 = vst [vmem:[#allocation2 + $0x68] sm:$0xff] 0.0
          %408 = vst [vmem:[#allocation2 + $0x70] sm:$0xff] 0.0
          %409 = vst [vmem:[#allocation2 + $0x78] sm:$0xff] 0.0
        $region78: #{scene_embed2_fwd.26} parent=69 // pred_fallthru
          _
        %v410 = vld [vmem:[#allocation2] sm:$0xff]
        %v411 = vld [vmem:[#allocation2 + $0x8] sm:$0xff]
        %v412 = vld [vmem:[#allocation2 + $0x10] sm:$0xff]
        %v413 = vld [vmem:[#allocation2 + $0x18] sm:$0xff]
        %v414 = vld [vmem:[#allocation2 + $0x20] sm:$0xff]
        %v415 = vld [vmem:[#allocation2 + $0x28] sm:$0xff]
        %v416 = vld [vmem:[#allocation2 + $0x30] sm:$0xff]
        %v417 = vld [vmem:[#allocation2 + $0x38] sm:$0xff]
        %v418 = vld [vmem:[#allocation2 + $0x40] sm:$0xff]
        %v419 = vld [vmem:[#allocation2 + $0x48] sm:$0xff]
        %v420 = vld [vmem:[#allocation2 + $0x50] sm:$0xff]
        %v421 = vld [vmem:[#allocation2 + $0x58] sm:$0xff]
        %v422 = vld [vmem:[#allocation2 + $0x60] sm:$0xff]
        %v423 = vld [vmem:[#allocation2 + $0x68] sm:$0xff]
        %v424 = vld [vmem:[#allocation2 + $0x70] sm:$0xff]
        %v425 = vld [vmem:[#allocation2 + $0x78] sm:$0xff]
        %v426 = vld [vmem:[%s323] sm:$0xff]
        %v427 = vld [vmem:[%s323 + $0x8] sm:$0xff]
        %v428 = vld [vmem:[%s323 + $0x10] sm:$0xff]
        %v429 = vld [vmem:[%s323 + $0x18] sm:$0xff]
        %v430 = vld [vmem:[%s323 + $0x20] sm:$0xff]
        %v431 = vld [vmem:[%s323 + $0x28] sm:$0xff]
        %v432 = vld [vmem:[%s323 + $0x30] sm:$0xff]
        %v433 = vld [vmem:[%s323 + $0x38] sm:$0xff]
        %v434 = vld [vmem:[%s323 + $0x40] sm:$0xff]
        %v435 = vld [vmem:[%s323 + $0x48] sm:$0xff]
        %v436 = vld [vmem:[%s323 + $0x50] sm:$0xff]
        %v437 = vld [vmem:[%s323 + $0x58] sm:$0xff]
        %v438 = vld [vmem:[%s323 + $0x60] sm:$0xff]
        %v439 = vld [vmem:[%s323 + $0x68] sm:$0xff]
        %v440 = vld [vmem:[%s323 + $0x70] sm:$0xff]
        %v441 = vld [vmem:[%s323 + $0x78] sm:$0xff]
        %v442 = vld [vmem:[%s372] sm:$0xf]
        %v443 = vld [vmem:[%s372 + $0x4] sm:$0xf]
        %v444 = vld [vmem:[%s372 + $0x8] sm:$0xf]
        %v445 = vld [vmem:[%s372 + $0xc] sm:$0xf]
        %v446 = vld [vmem:[%s372 + $0x10] sm:$0xf]
        %v447 = vld [vmem:[%s372 + $0x14] sm:$0xf]
        %v448 = vld [vmem:[%s372 + $0x18] sm:$0xf]
        %v449 = vld [vmem:[%s372 + $0x1c] sm:$0xf]
        %v450 = vld [vmem:[%s372 + $0x20] sm:$0xf]
        %v451 = vld [vmem:[%s372 + $0x24] sm:$0xf]
        %v452 = vld [vmem:[%s372 + $0x28] sm:$0xf]
        %v453 = vld [vmem:[%s372 + $0x2c] sm:$0xf]
        %v454 = vld [vmem:[%s372 + $0x30] sm:$0xf]
        %v455 = vld [vmem:[%s372 + $0x34] sm:$0xf]
        %v456 = vld [vmem:[%s372 + $0x38] sm:$0xf]
        %v457 = vld [vmem:[%s372 + $0x3c] sm:$0xf]
        %v458 = vld [vmem:[%s372 + $0x40] sm:$0xf]
        %v459 = vld [vmem:[%s372 + $0x44] sm:$0xf]
        %v460 = vld [vmem:[%s372 + $0x48] sm:$0xf]
        %v461 = vld [vmem:[%s372 + $0x4c] sm:$0xf]
        %v462 = vld [vmem:[%s372 + $0x50] sm:$0xf]
        %v463 = vld [vmem:[%s372 + $0x54] sm:$0xf]
        %v464 = vld [vmem:[%s372 + $0x58] sm:$0xf]
        %v465 = vld [vmem:[%s372 + $0x5c] sm:$0xf]
        %v466 = vld [vmem:[%s372 + $0x60] sm:$0xf]
        %v467 = vld [vmem:[%s372 + $0x64] sm:$0xf]
        %v468 = vld [vmem:[%s372 + $0x68] sm:$0xf]
        %v469 = vld [vmem:[%s372 + $0x6c] sm:$0xf]
        %v470 = vld [vmem:[%s372 + $0x70] sm:$0xf]
        %v471 = vld [vmem:[%s372 + $0x74] sm:$0xf]
        %v472 = vld [vmem:[%s372 + $0x78] sm:$0xf]
        %v473 = vld [vmem:[%s372 + $0x7c] sm:$0xf]
        %v490 = vunpack.c.l.b16 %v426
        %v491 = vunpack.c.h.b16 %v426
        %v492 = vunpack.c.l.b16 %v427
        %v493 = vunpack.c.h.b16 %v427
        %v494 = vunpack.c.l.b16 %v428
        %v495 = vunpack.c.h.b16 %v428
        %v496 = vunpack.c.l.b16 %v429
        %v497 = vunpack.c.h.b16 %v429
        %v498 = vunpack.c.l.b16 %v430
        %v499 = vunpack.c.h.b16 %v430
        %v500 = vunpack.c.l.b16 %v431
        %v501 = vunpack.c.h.b16 %v431
        %v502 = vunpack.c.l.b16 %v432
        %v503 = vunpack.c.h.b16 %v432
        %v504 = vunpack.c.l.b16 %v433
        %v505 = vunpack.c.h.b16 %v433
        %v506 = vunpack.c.l.b16 %v434
        %v507 = vunpack.c.h.b16 %v434
        %v508 = vunpack.c.l.b16 %v435
        %v509 = vunpack.c.h.b16 %v435
        %v510 = vunpack.c.l.b16 %v436
        %v511 = vunpack.c.h.b16 %v436
        %v512 = vunpack.c.l.b16 %v437
        %v513 = vunpack.c.h.b16 %v437
        %v514 = vunpack.c.l.b16 %v438
        %v515 = vunpack.c.h.b16 %v438
        %v516 = vunpack.c.l.b16 %v439
        %v517 = vunpack.c.h.b16 %v439
        %v518 = vunpack.c.l.b16 %v440
        %v519 = vunpack.c.h.b16 %v440
        %v520 = vunpack.c.l.b16 %v441
        %v521 = vunpack.c.h.b16 %v441
        %v522 = vpack.c.b16 %v492, %v490
        %v523 = vpack.c.b16 %v493, %v491
        %v524 = vpack.c.b16 %v496, %v494
        %v525 = vpack.c.b16 %v497, %v495
        %v526 = vpack.c.b16 %v500, %v498
        %v527 = vpack.c.b16 %v501, %v499
        %v528 = vpack.c.b16 %v504, %v502
        %v529 = vpack.c.b16 %v505, %v503
        %v530 = vpack.c.b16 %v508, %v506
        %v531 = vpack.c.b16 %v509, %v507
        %v532 = vpack.c.b16 %v512, %v510
        %v533 = vpack.c.b16 %v513, %v511
        %v534 = vpack.c.b16 %v516, %v514
        %v535 = vpack.c.b16 %v517, %v515
        %v536 = vpack.c.b16 %v520, %v518
        %v537 = vpack.c.b16 %v521, %v519
        %v586 = vunpack.c.l.b16 %v442
        %v587 = vunpack.c.l.b16 %v443
        %v588 = vunpack.c.l.b16 %v444
        %v589 = vunpack.c.l.b16 %v445
        %v590 = vunpack.c.l.b16 %v446
        %v591 = vunpack.c.l.b16 %v447
        %v592 = vunpack.c.l.b16 %v448
        %v593 = vunpack.c.l.b16 %v449
        %v594 = vunpack.c.l.b16 %v450
        %v595 = vunpack.c.l.b16 %v451
        %v596 = vunpack.c.l.b16 %v452
        %v597 = vunpack.c.l.b16 %v453
        %v598 = vunpack.c.l.b16 %v454
        %v599 = vunpack.c.l.b16 %v455
        %v600 = vunpack.c.l.b16 %v456
        %v601 = vunpack.c.l.b16 %v457
        %v602 = vunpack.c.l.b16 %v458
        %v603 = vunpack.c.l.b16 %v459
        %v604 = vunpack.c.l.b16 %v460
        %v605 = vunpack.c.l.b16 %v461
        %v606 = vunpack.c.l.b16 %v462
        %v607 = vunpack.c.l.b16 %v463
        %v608 = vunpack.c.l.b16 %v464
        %v609 = vunpack.c.l.b16 %v465
        %v610 = vunpack.c.l.b16 %v466
        %v611 = vunpack.c.l.b16 %v467
        %v612 = vunpack.c.l.b16 %v468
        %v613 = vunpack.c.l.b16 %v469
        %v614 = vunpack.c.l.b16 %v470
        %v615 = vunpack.c.l.b16 %v471
        %v616 = vunpack.c.l.b16 %v472
        %v617 = vunpack.c.l.b16 %v473
        %v618 = vpack.c.b16 %v587, %v586
        %v619 = vpack.c.b16 %v589, %v588
        %v620 = vpack.c.b16 %v591, %v590
        %v621 = vpack.c.b16 %v593, %v592
        %v622 = vpack.c.b16 %v595, %v594
        %v623 = vpack.c.b16 %v597, %v596
        %v624 = vpack.c.b16 %v599, %v598
        %v625 = vpack.c.b16 %v601, %v600
        %v626 = vpack.c.b16 %v603, %v602
        %v627 = vpack.c.b16 %v605, %v604
        %v628 = vpack.c.b16 %v607, %v606
        %v629 = vpack.c.b16 %v609, %v608
        %v630 = vpack.c.b16 %v611, %v610
        %v631 = vpack.c.b16 %v613, %v612
        %v632 = vpack.c.b16 %v615, %v614
        %v633 = vpack.c.b16 %v617, %v616
        %650 = vmatprep.subr.bf16.mxu0 0
        %651 = vmatpush1.bf16.msra.mxu0 %v618
        %652 = vmatprep.subr.bf16.mxu0 0
        %653 = vmatpush1.bf16.msra.mxu0 %v619
        %654 = vmatprep.subr.bf16.mxu0 0
        %655 = vmatpush1.bf16.msra.mxu0 %v620
        %656 = vmatprep.subr.bf16.mxu0 0
        %657 = vmatpush1.bf16.msra.mxu0 %v621
        %658 = vmatprep.subr.bf16.mxu0 0
        %659 = vmatpush1.bf16.msra.mxu0 %v622
        %660 = vmatprep.subr.bf16.mxu0 0
        %661 = vmatpush1.bf16.msra.mxu0 %v623
        %662 = vmatprep.subr.bf16.mxu0 0
        %663 = vmatpush1.bf16.msra.mxu0 %v624
        %664 = vmatprep.subr.bf16.mxu0 0
        %665 = vmatpush1.bf16.msra.mxu0 %v625
        %666 = vmatprep.subr.bf16.mxu0 0
        %667 = vmatpush1.bf16.msra.mxu0 %v626
        %668 = vmatprep.subr.bf16.mxu0 0
        %669 = vmatpush1.bf16.msra.mxu0 %v627
        %670 = vmatprep.subr.bf16.mxu0 0
        %671 = vmatpush1.bf16.msra.mxu0 %v628
        %672 = vmatprep.subr.bf16.mxu0 0
        %673 = vmatpush1.bf16.msra.mxu0 %v629
        %674 = vmatprep.subr.bf16.mxu0 0
        %675 = vmatpush1.bf16.msra.mxu0 %v630
        %676 = vmatprep.subr.bf16.mxu0 0
        %677 = vmatpush1.bf16.msra.mxu0 %v631
        %678 = vmatprep.subr.bf16.mxu0 0
        %679 = vmatpush1.bf16.msra.mxu0 %v632
        %680 = vmatprep.subr.bf16.mxu0 0
        %681 = vmatpush1.bf16.msra.mxu0 %v633
        %682 = vmatprep.mubr.bf16.mxu0 %v523
        %683 = vmatmul.mubr.bf16.gmra.mrb[0].mxu0 %v522
        %v684 = vpop.f32.mrb[0].mxu0
        %v685 = vadd.f32 0.0, %v684
        %v686 = vpop.f32.mrb[0].mxu0
        %v687 = vpop.f32.mrb[0].mxu0
        %v688 = vadd.f32 0.0, %v687
        %v689 = vpop.f32.mrb[0].mxu0
        %690 = vmatprep.mubr.bf16.mxu0 %v525
        %691 = vmatmul.mubr.bf16.gmra.mrb[0].mxu0 %v524
        %v692 = vpop.f32.mrb[0].mxu0
        %v693 = vadd.f32 0.0, %v692
        %v694 = vpop.f32.mrb[0].mxu0
        %v695 = vpop.f32.mrb[0].mxu0
        %v696 = vadd.f32 0.0, %v695
        %v697 = vpop.f32.mrb[0].mxu0
        %698 = vmatprep.mubr.bf16.mxu0 %v527
        %699 = vmatmul.mubr.bf16.gmra.mrb[0].mxu0 %v526
        %v700 = vpop.f32.mrb[0].mxu0
        %v701 = vadd.f32 0.0, %v700
        %v702 = vpop.f32.mrb[0].mxu0
        %v703 = vpop.f32.mrb[0].mxu0
        %v704 = vadd.f32 0.0, %v703
        %v705 = vpop.f32.mrb[0].mxu0
        %706 = vmatprep.mubr.bf16.mxu0 %v529
        %707 = vmatmul.mubr.bf16.gmra.mrb[0].mxu0 %v528
        %v708 = vpop.f32.mrb[0].mxu0
        %v709 = vadd.f32 0.0, %v708
        %v710 = vpop.f32.mrb[0].mxu0
        %v711 = vpop.f32.mrb[0].mxu0
        %v712 = vadd.f32 0.0, %v711
        %v713 = vpop.f32.mrb[0].mxu0
        %714 = vmatprep.mubr.bf16.mxu0 %v531
        %715 = vmatmul.mubr.bf16.gmra.mrb[0].mxu0 %v530
        %v716 = vpop.f32.mrb[0].mxu0
        %v717 = vadd.f32 0.0, %v716
        %v718 = vpop.f32.mrb[0].mxu0
        %v719 = vpop.f32.mrb[0].mxu0
        %v720 = vadd.f32 0.0, %v719
        %v721 = vpop.f32.mrb[0].mxu0
        %722 = vmatprep.mubr.bf16.mxu0 %v533
        %723 = vmatmul.mubr.bf16.gmra.mrb[0].mxu0 %v532
        %v724 = vpop.f32.mrb[0].mxu0
        %v725 = vadd.f32 0.0, %v724
        %v726 = vpop.f32.mrb[0].mxu0
        %v727 = vpop.f32.mrb[0].mxu0
        %v728 = vadd.f32 0.0, %v727
        %v729 = vpop.f32.mrb[0].mxu0
        %730 = vmatprep.mubr.bf16.mxu0 %v535
        %731 = vmatmul.mubr.bf16.gmra.mrb[0].mxu0 %v534
        %v732 = vpop.f32.mrb[0].mxu0
        %v733 = vadd.f32 0.0, %v732
        %v734 = vpop.f32.mrb[0].mxu0
        %v735 = vpop.f32.mrb[0].mxu0
        %v736 = vadd.f32 0.0, %v735
        %v737 = vpop.f32.mrb[0].mxu0
        %738 = vmatprep.mubr.bf16.mxu0 %v537
        %739 = vmatmul.mubr.bf16.gmra.mrb[0].mxu0 %v536
        %v740 = vpop.f32.mrb[0].mxu0
        %v741 = vadd.f32 0.0, %v740
        %v742 = vpop.f32.mrb[0].mxu0
        %v743 = vpop.f32.mrb[0].mxu0
        %v744 = vadd.f32 0.0, %v743
        %v745 = vpop.f32.mrb[0].mxu0
        %746 = vdwg.mxu0
        %v747 = vadd.f32 %v410, %v685
        %v748 = vadd.f32 %v411, %v688
        %v749 = vadd.f32 %v412, %v693
        %v750 = vadd.f32 %v413, %v696
        %v751 = vadd.f32 %v414, %v701
        %v752 = vadd.f32 %v415, %v704
        %v753 = vadd.f32 %v416, %v709
        %v754 = vadd.f32 %v417, %v712
        %v755 = vadd.f32 %v418, %v717
        %v756 = vadd.f32 %v419, %v720
        %v757 = vadd.f32 %v420, %v725
        %v758 = vadd.f32 %v421, %v728
        %v759 = vadd.f32 %v422, %v733
        %v760 = vadd.f32 %v423, %v736
        %v761 = vadd.f32 %v424, %v741
        %v762 = vadd.f32 %v425, %v744
        %763 = vst [vmem:[#allocation2] sm:$0xff] %v747
        %764 = vst [vmem:[#allocation2 + $0x8] sm:$0xff] %v748
        %765 = vst [vmem:[#allocation2 + $0x10] sm:$0xff] %v749
        %766 = vst [vmem:[#allocation2 + $0x18] sm:$0xff] %v750
        %767 = vst [vmem:[#allocation2 + $0x20] sm:$0xff] %v751
        %768 = vst [vmem:[#allocation2 + $0x28] sm:$0xff] %v752
        %769 = vst [vmem:[#allocation2 + $0x30] sm:$0xff] %v753
        %770 = vst [vmem:[#allocation2 + $0x38] sm:$0xff] %v754
        %771 = vst [vmem:[#allocation2 + $0x40] sm:$0xff] %v755
        %772 = vst [vmem:[#allocation2 + $0x48] sm:$0xff] %v756
        %773 = vst [vmem:[#allocation2 + $0x50] sm:$0xff] %v757
        %774 = vst [vmem:[#allocation2 + $0x58] sm:$0xff] %v758
        %775 = vst [vmem:[#allocation2 + $0x60] sm:$0xff] %v759
        %776 = vst [vmem:[#allocation2 + $0x68] sm:$0xff] %v760
        %777 = vst [vmem:[#allocation2 + $0x70] sm:$0xff] %v761
        %778 = vst [vmem:[#allocation2 + $0x78] sm:$0xff] %v762
        %p779 = scmp.eq.s32.totalorder %s22, 1
        // Predicated region
        $region79: #{scene_embed2_fwd.26} parent=69 // pred_check
          %p780 = pneg %p779
        $region80: #{scene_embed2_fwd.26} parent=69 // pred_check_branch
          %782 = sbr.rel (%p780) target = $region82
        $region81: #{scene_embed2_fwd.26} parent=69 // pred_region
          %v783 = vld [vmem:[#allocation2] sm:$0xff]
          %v784 = vld [vmem:[#allocation2 + $0x8] sm:$0xff]
          %v785 = vld [vmem:[#allocation2 + $0x10] sm:$0xff]
          %v786 = vld [vmem:[#allocation2 + $0x18] sm:$0xff]
          %v787 = vld [vmem:[#allocation2 + $0x20] sm:$0xff]
          %v788 = vld [vmem:[#allocation2 + $0x28] sm:$0xff]
          %v789 = vld [vmem:[#allocation2 + $0x30] sm:$0xff]
          %v790 = vld [vmem:[#allocation2 + $0x38] sm:$0xff]
          %v791 = vld [vmem:[#allocation2 + $0x40] sm:$0xff]
          %v792 = vld [vmem:[#allocation2 + $0x48] sm:$0xff]
          %v793 = vld [vmem:[#allocation2 + $0x50] sm:$0xff]
          %v794 = vld [vmem:[#allocation2 + $0x58] sm:$0xff]
          %v795 = vld [vmem:[#allocation2 + $0x60] sm:$0xff]
          %v796 = vld [vmem:[#allocation2 + $0x68] sm:$0xff]
          %v797 = vld [vmem:[#allocation2 + $0x70] sm:$0xff]
          %v798 = vld [vmem:[#allocation2 + $0x78] sm:$0xff]
          %v799 = vld [vmem:[%s376] sm:$0x1]
          %v801 = vlaneseq
          %v802 = vshrl.u32 %v801, 7
          %v803 = vsub.s32 0, %v802
          %v804 = vrot.slane %v799, %v803
          %v806 = vmul.f32 %v783, %v804
          %v807 = vmul.f32 %v784, %v804
          %v808 = vmul.f32 %v785, %v804
          %v809 = vmul.f32 %v786, %v804
          %v810 = vmul.f32 %v787, %v804
          %v811 = vmul.f32 %v788, %v804
          %v812 = vmul.f32 %v789, %v804
          %v813 = vmul.f32 %v790, %v804
          %v814 = vmul.f32 %v791, %v804
          %v815 = vmul.f32 %v792, %v804
          %v816 = vmul.f32 %v793, %v804
          %v817 = vmul.f32 %v794, %v804
          %v818 = vmul.f32 %v795, %v804
          %v819 = vmul.f32 %v796, %v804
          %v820 = vmul.f32 %v797, %v804
          %v821 = vmul.f32 %v798, %v804
          %v822 = vld [vmem:[%s379] sm:$0x1]
          %v824 = vlaneseq
          %v825 = vshrl.u32 %v824, 7
          %v826 = vsub.s32 0, %v825
          %v827 = vrot.slane %v822, %v826
          %v829 = vadd.f32 %v806, %v827
          %v830 = vadd.f32 %v807, %v827
          %v831 = vadd.f32 %v808, %v827
          %v832 = vadd.f32 %v809, %v827
          %v833 = vadd.f32 %v810, %v827
          %v834 = vadd.f32 %v811, %v827
          %v835 = vadd.f32 %v812, %v827
          %v836 = vadd.f32 %v813, %v827
          %v837 = vadd.f32 %v814, %v827
          %v838 = vadd.f32 %v815, %v827
          %v839 = vadd.f32 %v816, %v827
          %v840 = vadd.f32 %v817, %v827
          %v841 = vadd.f32 %v818, %v827
          %v842 = vadd.f32 %v819, %v827
          %v843 = vadd.f32 %v820, %v827
          %v844 = vadd.f32 %v821, %v827
          %v845 = vmax.f32 %v829, 0.0
          %v846 = vmax.f32 %v830, 0.0
          %v847 = vmax.f32 %v831, 0.0
          %v848 = vmax.f32 %v832, 0.0
          %v849 = vmax.f32 %v833, 0.0
          %v850 = vmax.f32 %v834, 0.0
          %v851 = vmax.f32 %v835, 0.0
          %v852 = vmax.f32 %v836, 0.0
          %v853 = vmax.f32 %v837, 0.0
          %v854 = vmax.f32 %v838, 0.0
          %v855 = vmax.f32 %v839, 0.0
          %v856 = vmax.f32 %v840, 0.0
          %v857 = vmax.f32 %v841, 0.0
          %v858 = vmax.f32 %v842, 0.0
          %v859 = vmax.f32 %v843, 0.0
          %v860 = vmax.f32 %v844, 0.0
          %v861 = vpack.c.bf16 %v846, %v845
          %v862 = vpack.c.bf16 %v848, %v847
          %v863 = vpack.c.bf16 %v850, %v849
          %v864 = vpack.c.bf16 %v852, %v851
          %v865 = vpack.c.bf16 %v854, %v853
          %v866 = vpack.c.bf16 %v856, %v855
          %v867 = vpack.c.bf16 %v858, %v857
          %v868 = vpack.c.bf16 %v860, %v859
          %v877 = vunpack.c.l.b16 %v861
          %v878 = vunpack.c.h.b16 %v861
          %v879 = vunpack.c.l.b16 %v862
          %v880 = vunpack.c.h.b16 %v862
          %v881 = vunpack.c.l.b16 %v863
          %v882 = vunpack.c.h.b16 %v863
          %v883 = vunpack.c.l.b16 %v864
          %v884 = vunpack.c.h.b16 %v864
          %v885 = vunpack.c.l.b16 %v865
          %v886 = vunpack.c.h.b16 %v865
          %v887 = vunpack.c.l.b16 %v866
          %v888 = vunpack.c.h.b16 %v866
          %v889 = vunpack.c.l.b16 %v867
          %v890 = vunpack.c.h.b16 %v867
          %v891 = vunpack.c.l.b16 %v868
          %v892 = vunpack.c.h.b16 %v868
          %v893 = vpack.c.b16 %v877, %v877
          %v894 = vpack.c.b16 %v878, %v878
          %v895 = vpack.c.b16 %v879, %v879
          %v896 = vpack.c.b16 %v880, %v880
          %v897 = vpack.c.b16 %v881, %v881
          %v898 = vpack.c.b16 %v882, %v882
          %v899 = vpack.c.b16 %v883, %v883
          %v900 = vpack.c.b16 %v884, %v884
          %v901 = vpack.c.b16 %v885, %v885
          %v902 = vpack.c.b16 %v886, %v886
          %v903 = vpack.c.b16 %v887, %v887
          %v904 = vpack.c.b16 %v888, %v888
          %v905 = vpack.c.b16 %v889, %v889
          %v906 = vpack.c.b16 %v890, %v890
          %v907 = vpack.c.b16 %v891, %v891
          %v908 = vpack.c.b16 %v892, %v892
          %925 = vst [vmem:[%s387] sm:$0xf] %v893
          %926 = vst [vmem:[%s387 + $0x4] sm:$0xf] %v894
          %927 = vst [vmem:[%s387 + $0x8] sm:$0xf] %v895
          %928 = vst [vmem:[%s387 + $0xc] sm:$0xf] %v896
          %929 = vst [vmem:[%s387 + $0x10] sm:$0xf] %v897
          %930 = vst [vmem:[%s387 + $0x14] sm:$0xf] %v898
          %931 = vst [vmem:[%s387 + $0x18] sm:$0xf] %v899
          %932 = vst [vmem:[%s387 + $0x1c] sm:$0xf] %v900
          %933 = vst [vmem:[%s387 + $0x20] sm:$0xf] %v901
          %934 = vst [vmem:[%s387 + $0x24] sm:$0xf] %v902
          %935 = vst [vmem:[%s387 + $0x28] sm:$0xf] %v903
          %936 = vst [vmem:[%s387 + $0x2c] sm:$0xf] %v904
          %937 = vst [vmem:[%s387 + $0x30] sm:$0xf] %v905
          %938 = vst [vmem:[%s387 + $0x34] sm:$0xf] %v906
          %939 = vst [vmem:[%s387 + $0x38] sm:$0xf] %v907
          %940 = vst [vmem:[%s387 + $0x3c] sm:$0xf] %v908
        $region82: #{scene_embed2_fwd.26} parent=69 // pred_fallthru
          _
        %s941 = smul.u32 16, %s20
        %p942 = scmp.lt.s32.totalorder %s941, 15
        %s943 = scalar_select %p942, %s941, 15
        %p944 = scmp.lt.s32.totalorder %s21, 0
        %s945 = scalar_select %p944, %s21, 0
        %s946 = sadd.s32 %s945, %s943
        %s947 = smul.addr %s946, 4
        %s948 = scalar_lea.vmem %s4, %s947
        // Predicated region
        $region83: #{scene_embed2_fwd.26} parent=69 // pred_check
          %p949 = pneg %p162
        $region84: #{scene_embed2_fwd.26} parent=69 // pred_check_branch
          %951 = sbr.rel (%p949) target = $region86
        $region85: #{scene_embed2_fwd.26} parent=69 // pred_region
          %s952 = smul.u32 16, %s20
        $region86: #{scene_embed2_fwd.26} parent=69 // pred_fallthru
          _
        // Predicated region
        $region87: #{scene_embed2_fwd.26} parent=69 // pred_check
          %p953 = pneg %p162
        $region88: #{scene_embed2_fwd.26} parent=69 // pred_check_branch
          %955 = sbr.rel (%p953) target = $region90
        $region89: #{scene_embed2_fwd.26} parent=69 // pred_region
          %s956 = smul.u32 16, %s20
          %p957 = scmp.lt.s32.totalorder %s956, 15
          %s958 = scalar_select %p957, %s956, 15
          %p959 = scmp.lt.s32.totalorder %s21, 0
          %s960 = scalar_select %p959, %s21, 0
          %s961 = sadd.s32 %s960, %s958
          %s962 = smul.addr %s961, 4
          %s963 = scalar_lea.vmem %s4, %s962
        $region90: #{scene_embed2_fwd.26} parent=69 // pred_fallthru
          _
      $region70: #{scene_embed2_fwd.26} parent=5 // pred_fallthru
        _
      %p964 = scmp.le.s32.totalorder 2, %s10
      // Predicated region
      $region91: #{scene_embed2_fwd.26} parent=5 // pred_check
        %p965 = pneg %p964
      $region92: #{scene_embed2_fwd.26} parent=5 // pred_check_branch
        %967 = sbr.rel (%p965) target = $region94
      $region93: #{scene_embed2_fwd.26} parent=5 // pred_region
        %s968 = ssub.s32 %s10, 2
      $region94: #{scene_embed2_fwd.26} parent=5 // pred_fallthru
        _
    $region6: #{scene_embed2_fwd.26} parent=1 // loop_footer
      %s14 = sadd.s32 1, %s10
    $region7: #{scene_embed2_fwd.26} parent=1 // loop_footer_branch
      %9 = sbr.rel target = $region3
    $region8: #{scene_embed2_fwd.26} parent=1 // loop_exit
      _

// kernel: scene_embed2_fwd.28
$region0: #{scene_embed2_fwd.28}
  #allocation0 [shape = 'u32[]', space=smem, size = 0x4, offset = 0x4, fixed_abs, tag = 'smem constant byte address 0x4 - core index']
  #allocation1 [shape = 'u32[144,128]{1,0:T(1,128)}', space=vmem, size = 0x12000, scoped, tag = 'internal scratch']
  %s0 = inlined_call_operand.vmem [shape: bf16[2,4,2,4,128], index: 0, kind: input, shape index: {}]
  %s1 = inlined_call_operand.vmem [shape: bf16[2,4,4,64], index: 1, kind: output, shape index: {}]
  %s2 = sld [smem:[#allocation0]]
  $region37: #{scene_embed2_fwd.28} parent=0
    _
  %s4 = ssub.s32 1, %s2
  %s5 = scalar_select 0, %s4, %s2
  loop: start=0, step=1, limit=4
  $region2: #{scene_embed2_fwd.28} parent=0 // loop_pre_header
    _
  $region3: #{scene_embed2_fwd.28} parent=0 // loop_header
    %s7 = sphi 0, %s11
    %p8 = scmp.ge.s32.totalorder %s7, 4
    %s14 = sphi 0, %s26
    %s15 = sphi 0, %s22
    %s16 = sphi 0, %s14
    %s17 = sphi 0, %s15
    %s18 = sphi 0, %s16
    %s19 = sphi 0, %s17
    %s31 = sphi 0, %s33
    %s34 = sphi 0, %s31
    %s35 = sphi 0, %s34
    %s51 = sphi 0, %s35
    %s59 = sphi 0, %s61
    %s62 = sphi 0, %s59
    %s63 = sphi 0, %s62
    %s79 = sphi 0, %s63
  $region4: #{scene_embed2_fwd.28} parent=0 // loop_header_branch
    %10 = sbr.rel (%p8) target = $region8
  $region5: #{scene_embed2_fwd.28} parent=0 // loop_body
    %s12 = ssub.s32 %s7, 1
    %s13 = ssub.s32 %s7, 2
    %s20 = sadd.s32 1, %s15
    %p21 = scmp.ge.s32.totalorder %s20, 1
    %s22 = scalar_select %p21, 0, %s20
    %s23 = sadd.s32 1, %s14
    %s24 = scalar_select %p21, %s23, %s14
    %p25 = scmp.ge.s32.totalorder %s24, 2
    %s26 = scalar_select %p25, 0, %s24
    %s27 = ssub.s32 %s14, %s26
    %s28 = ssub.s32 %s15, %s22
    %s29 = sor.u32 %s27, %s28
    %p30 = scmp.eq.s32.totalorder %s29, 0
    %s32 = sadd.s32 %s31, 1
    %s33 = scalar_select %p30, %s31, %s32
    %p36 = pneg %p30
    %p37 = scmp.eq.s32.totalorder %s7, 1
    %p38 = por %p36, %p37
    %p39 = scmp.ne.s32.totalorder %s31, %s34
    %p40 = scmp.eq.s32.totalorder %s7, 0
    %p41 = por %p39, %p40
    %p42 = scmp.ne.s32.totalorder %s31, %s34
    %p43 = scmp.eq.s32.totalorder %s12, 1
    %p44 = por %p42, %p43
    %p45 = scmp.ne.s32.totalorder %s34, %s35
    %p46 = scmp.eq.s32.totalorder %s12, 0
    %p47 = por %p45, %p46
    %p48 = scmp.ne.s32.totalorder %s34, %s35
    %p49 = scmp.eq.s32.totalorder %s13, 1
    %p50 = por %p48, %p49
    %p52 = scmp.ne.s32.totalorder %s35, %s51
    %p53 = scmp.eq.s32.totalorder %s13, 0
    %p54 = por %p52, %p53
    %s55 = ssub.s32 %s14, %s26
    %s56 = ssub.s32 %s15, %s22
    %s57 = sor.u32 %s55, %s56
    %p58 = scmp.eq.s32.totalorder %s57, 0
    %s60 = sadd.s32 %s59, 1
    %s61 = scalar_select %p58, %s59, %s60
    %p64 = pneg %p58
    %p65 = scmp.eq.s32.totalorder %s7, 1
    %p66 = por %p64, %p65
    %p67 = scmp.ne.s32.totalorder %s59, %s62
    %p68 = scmp.eq.s32.totalorder %s7, 0
    %p69 = por %p67, %p68
    %p70 = scmp.ne.s32.totalorder %s59, %s62
    %p71 = scmp.eq.s32.totalorder %s12, 1
    %p72 = por %p70, %p71
    %p73 = scmp.ne.s32.totalorder %s62, %s63
    %p74 = scmp.eq.s32.totalorder %s12, 0
    %p75 = por %p73, %p74
    %p76 = scmp.ne.s32.totalorder %s62, %s63
    %p77 = scmp.eq.s32.totalorder %s13, 1
    %p78 = por %p76, %p77
    %p80 = scmp.ne.s32.totalorder %s63, %s79
    %p81 = scmp.eq.s32.totalorder %s13, 0
    %p82 = por %p80, %p81
    %p83 = scmp.le.s32.totalorder 1, %s7
    %p84 = scmp.lt.s32.totalorder %s7, 3
    %p85 = pnand %p83, %p84
    %p86 = pneg %p85
    // Predicated region
    $region9: #{scene_embed2_fwd.28} parent=5 // pred_check
      _
    $region10: #{scene_embed2_fwd.28} parent=5 // pred_check_branch
      %88 = sbr.rel (%p85) target = $region12
    $region11: #{scene_embed2_fwd.28} parent=5 // pred_region
      %s89 = ssub.s32 %s7, 1
    $region12: #{scene_embed2_fwd.28} parent=5 // pred_fallthru
      _
    %p90 = scmp.lt.s32.totalorder %s7, 2
    // Predicated region
    $region13: #{scene_embed2_fwd.28} parent=5 // pred_check
      %p91 = pneg %p90
    $region14: #{scene_embed2_fwd.28} parent=5 // pred_check_branch
      %93 = sbr.rel (%p91) target = $region16
    $region15: #{scene_embed2_fwd.28} parent=5 // pred_region
      // Predicated region
      $region17: #{scene_embed2_fwd.28} parent=15 // pred_check
        %p94 = pneg %p41
      $region18: #{scene_embed2_fwd.28} parent=15 // pred_check_branch
        %96 = sbr.rel (%p94) target = $region20
      $region19: #{scene_embed2_fwd.28} parent=15 // pred_region
        %s97 = smul.u32 4, %s15
        %p98 = scmp.lt.s32.totalorder %s14, 1
        %s99 = scalar_select %p98, %s14, 1
        %p100 = scmp.lt.s32.totalorder %s97, 3
        %s101 = scalar_select %p100, %s97, 3
        %s102 = smul.addr %s101, 2
        %s103 = smul.addr %s99, 8
        %s104 = sadd.s32 %s102, %s103
        %s105 = smul.addr %s104, 2
        %s106 = scalar_lea.vmem %s0, %s105
        %s107 = smul.u32 4, %s15
      $region20: #{scene_embed2_fwd.28} parent=15 // pred_fallthru
        _
    $region16: #{scene_embed2_fwd.28} parent=5 // pred_fallthru
      _
    %p108 = scmp.le.s32.totalorder 1, %s7
    %p109 = scmp.lt.s32.totalorder %s7, 3
    %p110 = pnand %p108, %p109
    %p111 = pneg %p110
    // Predicated region
    $region21: #{scene_embed2_fwd.28} parent=5 // pred_check
      _
    $region22: #{scene_embed2_fwd.28} parent=5 // pred_check_branch
      %113 = sbr.rel (%p110) target = $region24
    $region23: #{scene_embed2_fwd.28} parent=5 // pred_region
      %s114 = ssub.s32 %s7, 1
      %s115 = smul.u32 4, %s17
      %p116 = scmp.lt.s32.totalorder %s16, 1
      %s117 = scalar_select %p116, %s16, 1
      %p118 = scmp.lt.s32.totalorder %s115, 3
      %s119 = scalar_select %p118, %s115, 3
      %s120 = smul.addr %s119, 2
      %s121 = smul.addr %s117, 8
      %s122 = sadd.s32 %s120, %s121
      %s123 = smul.addr %s122, 2
      %s124 = scalar_lea.vmem %s0, %s123
      %p125 = pneg %p47
      %p126 = pneg %p44
      %p127 = pneg %p75
      %p128 = pneg %p72
      %s129 = smul.u32 4, %s17
      %p130 = scmp.lt.s32.totalorder %s16, 1
      %s131 = scalar_select %p130, %s16, 1
      %p132 = scmp.lt.s32.totalorder %s129, 3
      %s133 = scalar_select %p132, %s129, 3
      %s134 = smul.addr %s131, 4
      %s135 = sadd.s32 %s133, %s134
      %s136 = smul.addr %s135, 2
      %s137 = scalar_lea.vmem %s1, %s136
      %s138 = smul.u32 4, %s17
      %p139 = scmp.lt.s32.totalorder %s16, 1
      %s140 = scalar_select %p139, %s16, 1
      %p141 = scmp.lt.s32.totalorder %s138, 3
      %s142 = scalar_select %p141, %s138, 3
      %s143 = smul.addr %s142, 2
      %s144 = smul.addr %s140, 8
      %s145 = sadd.s32 %s143, %s144
      %s146 = smul.addr %s145, 2
      %s147 = scalar_lea.vmem %s0, %s146
      %s148 = smul.u32 4, %s17
      %s149 = smul.u32 4, %s17
      %p150 = scmp.lt.s32.totalorder %s16, 1
      %s151 = scalar_select %p150, %s16, 1
      %p152 = scmp.lt.s32.totalorder %s149, 3
      %s153 = scalar_select %p152, %s149, 3
      %s154 = smul.addr %s151, 4
      %s155 = sadd.s32 %s153, %s154
      %s156 = smul.addr %s155, 2
      %s157 = scalar_lea.vmem %s1, %s156
      %s158 = smul.u32 4, %s17
      %v159 = vld [vmem:[%s147] sm:$0x3]
      %v160 = vld [vmem:[%s147 + $0x4] sm:$0x3]
      %v161 = vld [vmem:[%s147 + $0x8] sm:$0x3]
      %v162 = vld [vmem:[%s147 + $0xc] sm:$0x3]
      %s163 = scalar_lea.vmem %s147, 2
      %v164 = vld [vmem:[%s163] sm:$0x3]
      %v165 = vld [vmem:[%s163 + $0x4] sm:$0x3]
      %v166 = vld [vmem:[%s163 + $0x8] sm:$0x3]
      %v167 = vld [vmem:[%s163 + $0xc] sm:$0x3]
      %v168 = vmax.bf16 %v159, %v164
      %v169 = vmax.bf16 %v160, %v165
      %v170 = vmax.bf16 %v161, %v166
      %v171 = vmax.bf16 %v162, %v167
      %176 = vrot.lane.b32.xlu0 %v168, 64
      %v177 = vpop.permute.xlu0 %176
      %178 = vrot.lane.b32.xlu0 %v169, 64
      %v179 = vpop.permute.xlu0 %178
      %180 = vrot.lane.b32.xlu0 %v170, 64
      %v181 = vpop.permute.xlu0 %180
      %182 = vrot.lane.b32.xlu0 %v171, 64
      %v183 = vpop.permute.xlu0 %182
      %v188 = vmax.bf16 %v168, %v177
      %v189 = vmax.bf16 %v169, %v179
      %v190 = vmax.bf16 %v170, %v181
      %v191 = vmax.bf16 %v171, %v183
      %vm192 = vcmask 517120
      %193 = vst.msk [vmem:[%s157] sm:$0x3] %vm192, %v188
      %194 = vst.msk [vmem:[%s157 + $0x2] sm:$0x3] %vm192, %v189
      %195 = vst.msk [vmem:[%s157 + $0x4] sm:$0x3] %vm192, %v190
      %196 = vst.msk [vmem:[%s157 + $0x6] sm:$0x3] %vm192, %v191
      %s197 = smul.u32 4, %s17
      %p198 = scmp.lt.s32.totalorder %s16, 1
      %s199 = scalar_select %p198, %s16, 1
      %p200 = scmp.lt.s32.totalorder %s197, 3
      %s201 = scalar_select %p200, %s197, 3
      %s202 = smul.addr %s199, 4
      %s203 = sadd.s32 %s201, %s202
      %s204 = smul.addr %s203, 2
      %s205 = scalar_lea.vmem %s1, %s204
      // Predicated region
      $region25: #{scene_embed2_fwd.28} parent=23 // pred_check
        %p206 = pneg %p72
      $region26: #{scene_embed2_fwd.28} parent=23 // pred_check_branch
        %208 = sbr.rel (%p206) target = $region28
      $region27: #{scene_embed2_fwd.28} parent=23 // pred_region
        %s209 = smul.u32 4, %s17
      $region28: #{scene_embed2_fwd.28} parent=23 // pred_fallthru
        _
    $region24: #{scene_embed2_fwd.28} parent=5 // pred_fallthru
      _
    %p210 = scmp.le.s32.totalorder 2, %s7
    // Predicated region
    $region29: #{scene_embed2_fwd.28} parent=5 // pred_check
      %p211 = pneg %p210
    $region30: #{scene_embed2_fwd.28} parent=5 // pred_check_branch
      %213 = sbr.rel (%p211) target = $region32
    $region31: #{scene_embed2_fwd.28} parent=5 // pred_region
      %s214 = ssub.s32 %s7, 2
      // Predicated region
      $region33: #{scene_embed2_fwd.28} parent=31 // pred_check
        %p215 = pneg %p78
      $region34: #{scene_embed2_fwd.28} parent=31 // pred_check_branch
        %217 = sbr.rel (%p215) target = $region36
      $region35: #{scene_embed2_fwd.28} parent=31 // pred_region
        %s218 = smul.u32 4, %s19
        %p219 = scmp.lt.s32.totalorder %s18, 1
        %s220 = scalar_select %p219, %s18, 1
        %p221 = scmp.lt.s32.totalorder %s218, 3
        %s222 = scalar_select %p221, %s218, 3
        %s223 = smul.addr %s220, 4
        %s224 = sadd.s32 %s222, %s223
        %s225 = smul.addr %s224, 2
        %s226 = scalar_lea.vmem %s1, %s225
      $region36: #{scene_embed2_fwd.28} parent=31 // pred_fallthru
        _
    $region32: #{scene_embed2_fwd.28} parent=5 // pred_fallthru
      _
  $region6: #{scene_embed2_fwd.28} parent=0 // loop_footer
    %s11 = sadd.s32 1, %s7
  $region7: #{scene_embed2_fwd.28} parent=0 // loop_footer_branch
    %6 = sbr.rel target = $region3
  $region8: #{scene_embed2_fwd.28} parent=0 // loop_exit
    _

// kernel: scene_embed2_fwd.27
$region0: #{scene_embed2_fwd.27}
  #allocation0 [shape = 'u32[]', space=smem, size = 0x4, offset = 0x4, fixed_abs, tag = 'smem constant byte address 0x4 - core index']
  #allocation1 [shape = 'u32[144,128]{1,0:T(1,128)}', space=vmem, size = 0x12000, scoped, tag = 'internal scratch']
  #allocation2 [shape = 'f32[128,128]{1,0:T(8,128)}', space=vmem, size = 0x10000, scoped, tag = 'scratch operand']
  %s0 = inlined_call_operand.vmem [shape: bf16[128,768], index: 0, kind: input, shape index: {}]
  %s1 = inlined_call_operand.vmem [shape: bf16[768,128], index: 1, kind: input, shape index: {}]
  %s2 = inlined_call_operand.vmem [shape: f32[1,128], index: 2, kind: input, shape index: {}]
  %s3 = inlined_call_operand.vmem [shape: f32[1,128], index: 3, kind: input, shape index: {}]
  %s4 = inlined_call_operand.vmem [shape: bf16[128,128], index: 4, kind: output, shape index: {}]
  %s5 = sld [smem:[#allocation0]]
  $region95: #{scene_embed2_fwd.27} parent=0
    _
  %s7 = ssub.s32 1, %s5
  %s8 = scalar_select 0, %s7, %s5
  $region1: #{scene_embed2_fwd.27} parent=0
    #allocation3 [shape = 'u8[131072]{0}', space=vmem, size = 0x20000, scoped, tag = 'input window, operand 0']
    loop: start=0, step=1, limit=5
    $region2: #{scene_embed2_fwd.27} parent=1 // loop_pre_header
      _
    $region3: #{scene_embed2_fwd.27} parent=1 // loop_header
      %s10 = sphi 0, %s14
      %p11 = scmp.ge.s32.totalorder %s10, 5
      %s17 = sphi 0, %s36
      %s18 = sphi 0, %s32
      %s19 = sphi 0, %s28
      %s20 = sphi 0, %s17
      %s21 = sphi 0, %s18
      %s22 = sphi 0, %s19
      %s23 = sphi 0, %s20
      %s24 = sphi 0, %s21
      %s25 = sphi 0, %s22
      %s41 = sphi 0, %s43
      %s44 = sphi 0, %s41
      %s45 = sphi 0, %s44
      %s61 = sphi 0, %s45
      %s69 = sphi 0, %s71
      %s72 = sphi 0, %s69
      %s73 = sphi 0, %s72
      %s89 = sphi 0, %s73
      %s95 = sphi 0, %s97
      %s98 = sphi 0, %s95
      %s99 = sphi 0, %s98
      %s115 = sphi 0, %s99
      %s121 = sphi 0, %s123
      %s124 = sphi 0, %s121
      %s125 = sphi 0, %s124
      %s141 = sphi 0, %s125
      %s149 = sphi 0, %s151
      %s152 = sphi 0, %s149
      %s153 = sphi 0, %s152
      %s169 = sphi 0, %s153
    $region4: #{scene_embed2_fwd.27} parent=1 // loop_header_branch
      %13 = sbr.rel (%p11) target = $region8
    $region5: #{scene_embed2_fwd.27} parent=1 // loop_body
      %s15 = ssub.s32 %s10, 1
      %s16 = ssub.s32 %s10, 2
      %s26 = sadd.s32 1, %s19
      %p27 = scmp.ge.s32.totalorder %s26, 3
      %s28 = scalar_select %p27, 0, %s26
      %s29 = sadd.s32 1, %s18
      %s30 = scalar_select %p27, %s29, %s18
      %p31 = scmp.ge.s32.totalorder %s30, 1
      %s32 = scalar_select %p31, 0, %s30
      %s33 = sadd.s32 1, %s17
      %s34 = scalar_select %p31, %s33, %s17
      %p35 = scmp.ge.s32.totalorder %s34, 1
      %s36 = scalar_select %p35, 0, %s34
      %s37 = ssub.s32 %s17, %s36
      %s38 = ssub.s32 %s19, %s28
      %s39 = sor.u32 %s37, %s38
      %p40 = scmp.eq.s32.totalorder %s39, 0
      %s42 = sadd.s32 %s41, 1
      %s43 = scalar_select %p40, %s41, %s42
      %p46 = pneg %p40
      %p47 = scmp.eq.s32.totalorder %s10, 2
      %p48 = por %p46, %p47
      %p49 = scmp.ne.s32.totalorder %s41, %s44
      %p50 = scmp.eq.s32.totalorder %s10, 0
      %p51 = por %p49, %p50
      %p52 = scmp.ne.s32.totalorder %s41, %s44
      %p53 = scmp.eq.s32.totalorder %s15, 2
      %p54 = por %p52, %p53
      %p55 = scmp.ne.s32.totalorder %s44, %s45
      %p56 = scmp.eq.s32.totalorder %s15, 0
      %p57 = por %p55, %p56
      %p58 = scmp.ne.s32.totalorder %s44, %s45
      %p59 = scmp.eq.s32.totalorder %s16, 2
      %p60 = por %p58, %p59
      %p62 = scmp.ne.s32.totalorder %s45, %s61
      %p63 = scmp.eq.s32.totalorder %s16, 0
      %p64 = por %p62, %p63
      %s65 = ssub.s32 %s19, %s28
      %s66 = ssub.s32 %s18, %s32
      %s67 = sor.u32 %s65, %s66
      %p68 = scmp.eq.s32.totalorder %s67, 0
      %s70 = sadd.s32 %s69, 1
      %s71 = scalar_select %p68, %s69, %s70
      %p74 = pneg %p68
      %p75 = scmp.eq.s32.totalorder %s10, 2
      %p76 = por %p74, %p75
      %p77 = scmp.ne.s32.totalorder %s69, %s72
      %p78 = scmp.eq.s32.totalorder %s10, 0
      %p79 = por %p77, %p78
      %p80 = scmp.ne.s32.totalorder %s69, %s72
      %p81 = scmp.eq.s32.totalorder %s15, 2
      %p82 = por %p80, %p81
      %p83 = scmp.ne.s32.totalorder %s72, %s73
      %p84 = scmp.eq.s32.totalorder %s15, 0
      %p85 = por %p83, %p84
      %p86 = scmp.ne.s32.totalorder %s72, %s73
      %p87 = scmp.eq.s32.totalorder %s16, 2
      %p88 = por %p86, %p87
      %p90 = scmp.ne.s32.totalorder %s73, %s89
      %p91 = scmp.eq.s32.totalorder %s16, 0
      %p92 = por %p90, %p91
      %s93 = ssub.s32 %s18, %s32
      %p94 = scmp.eq.s32.totalorder %s93, 0
      %s96 = sadd.s32 %s95, 1
      %s97 = scalar_select %p94, %s95, %s96
      %p100 = pneg %p94
      %p101 = scmp.eq.s32.totalorder %s10, 2
      %p102 = por %p100, %p101
      %p103 = scmp.ne.s32.totalorder %s95, %s98
      %p104 = scmp.eq.s32.totalorder %s10, 0
      %p105 = por %p103, %p104
      %p106 = scmp.ne.s32.totalorder %s95, %s98
      %p107 = scmp.eq.s32.totalorder %s15, 2
      %p108 = por %p106, %p107
      %p109 = scmp.ne.s32.totalorder %s98, %s99
      %p110 = scmp.eq.s32.totalorder %s15, 0
      %p111 = por %p109, %p110
      %p112 = scmp.ne.s32.totalorder %s98, %s99
      %p113 = scmp.eq.s32.totalorder %s16, 2
      %p114 = por %p112, %p113
      %p116 = scmp.ne.s32.totalorder %s99, %s115
      %p117 = scmp.eq.s32.totalorder %s16, 0
      %p118 = por %p116, %p117
      %s119 = ssub.s32 %s18, %s32
      %p120 = scmp.eq.s32.totalorder %s119, 0
      %s122 = sadd.s32 %s121, 1
      %s123 = scalar_select %p120, %s121, %s122
      %p126 = pneg %p120
      %p127 = scmp.eq.s32.totalorder %s10, 2
      %p128 = por %p126, %p127
      %p129 = scmp.ne.s32.totalorder %s121, %s124
      %p130 = scmp.eq.s32.totalorder %s10, 0
      %p131 = por %p129, %p130
      %p132 = scmp.ne.s32.totalorder %s121, %s124
      %p133 = scmp.eq.s32.totalorder %s15, 2
      %p134 = por %p132, %p133
      %p135 = scmp.ne.s32.totalorder %s124, %s125
      %p136 = scmp.eq.s32.totalorder %s15, 0
      %p137 = por %p135, %p136
      %p138 = scmp.ne.s32.totalorder %s124, %s125
      %p139 = scmp.eq.s32.totalorder %s16, 2
      %p140 = por %p138, %p139
      %p142 = scmp.ne.s32.totalorder %s125, %s141
      %p143 = scmp.eq.s32.totalorder %s16, 0
      %p144 = por %p142, %p143
      %s145 = ssub.s32 %s17, %s36
      %s146 = ssub.s32 %s18, %s32
      %s147 = sor.u32 %s145, %s146
      %p148 = scmp.eq.s32.totalorder %s147, 0
      %s150 = sadd.s32 %s149, 1
      %s151 = scalar_select %p148, %s149, %s150
      %p154 = pneg %p148
      %p155 = scmp.eq.s32.totalorder %s10, 2
      %p156 = por %p154, %p155
      %p157 = scmp.ne.s32.totalorder %s149, %s152
      %p158 = scmp.eq.s32.totalorder %s10, 0
      %p159 = por %p157, %p158
      %p160 = scmp.ne.s32.totalorder %s149, %s152
      %p161 = scmp.eq.s32.totalorder %s15, 2
      %p162 = por %p160, %p161
      %p163 = scmp.ne.s32.totalorder %s152, %s153
      %p164 = scmp.eq.s32.totalorder %s15, 0
      %p165 = por %p163, %p164
      %p166 = scmp.ne.s32.totalorder %s152, %s153
      %p167 = scmp.eq.s32.totalorder %s16, 2
      %p168 = por %p166, %p167
      %p170 = scmp.ne.s32.totalorder %s153, %s169
      %p171 = scmp.eq.s32.totalorder %s16, 0
      %p172 = por %p170, %p171
      %p173 = scmp.le.s32.totalorder 1, %s10
      %p174 = scmp.lt.s32.totalorder %s10, 4
      %p175 = pnand %p173, %p174
      %p176 = pneg %p175
      // Predicated region
      $region9: #{scene_embed2_fwd.27} parent=5 // pred_check
        _
      $region10: #{scene_embed2_fwd.27} parent=5 // pred_check_branch
        %178 = sbr.rel (%p175) target = $region12
      $region11: #{scene_embed2_fwd.27} parent=5 // pred_region
        %s179 = ssub.s32 %s10, 1
        // Predicated region
        $region13: #{scene_embed2_fwd.27} parent=11 // pred_check
          %p180 = pneg %p111
        $region14: #{scene_embed2_fwd.27} parent=11 // pred_check_branch
          %182 = sbr.rel (%p180) target = $region16
        $region15: #{scene_embed2_fwd.27} parent=11 // pred_region
          %p183 = scmp.lt.s32.totalorder %s21, 0
          %s184 = scalar_select %p183, %s21, 0
          %s185 = scalar_lea.vmem %s2, %s184
        $region16: #{scene_embed2_fwd.27} parent=11 // pred_fallthru
          _
        // Predicated region
        $region17: #{scene_embed2_fwd.27} parent=11 // pred_check
          %p186 = pneg %p137
        $region18: #{scene_embed2_fwd.27} parent=11 // pred_check_branch
          %188 = sbr.rel (%p186) target = $region20
        $region19: #{scene_embed2_fwd.27} parent=11 // pred_region
          %p189 = scmp.lt.s32.totalorder %s21, 0
          %s190 = scalar_select %p189, %s21, 0
          %s191 = scalar_lea.vmem %s3, %s190
        $region20: #{scene_embed2_fwd.27} parent=11 // pred_fallthru
          _
      $region12: #{scene_embed2_fwd.27} parent=5 // pred_fallthru
        _
      %p192 = scmp.lt.s32.totalorder %s10, 3
      // Predicated region
      $region21: #{scene_embed2_fwd.27} parent=5 // pred_check
        %p193 = pneg %p192
      $region22: #{scene_embed2_fwd.27} parent=5 // pred_check_branch
        %195 = sbr.rel (%p193) target = $region24
      $region23: #{scene_embed2_fwd.27} parent=5 // pred_region
        // Predicated region
        $region25: #{scene_embed2_fwd.27} parent=23 // pred_check
          %p196 = pneg %p51
        $region26: #{scene_embed2_fwd.27} parent=23 // pred_check_branch
          %198 = sbr.rel (%p196) target = $region28
        $region27: #{scene_embed2_fwd.27} parent=23 // pred_region
          %s199 = sand.u32 %s41, 1
          %s200 = sand.u32 %s41, 1
          %s201 = smul.addr %s200, 128
          %s202 = scalar_lea.vmem [#allocation3], %s201
          %s203 = smul.u32 16, %s17
          %s204 = smul.u32 2, %s19
          %s205 = smul.addr %s203, 6
          %s206 = sadd.s32 %s204, %s205
          %s207 = smul.addr %s206, 4
          %s208 = scalar_lea.vmem %s0, %s207
          // Predicated region
          $region29: #{scene_embed2_fwd.27} parent=27 // pred_check
            _
          $region30: #{scene_embed2_fwd.27} parent=27 // pred_check_branch
            %210 = sbr.rel (0) target = $region32
          $region31: #{scene_embed2_fwd.27} parent=27 // pred_region
            // Predicated region
            $region33: #{scene_embed2_fwd.27} parent=31 // pred_check
              _
            $region34: #{scene_embed2_fwd.27} parent=31 // pred_check_branch
              %212 = sbr.rel (0) target = $region36
            $region35: #{scene_embed2_fwd.27} parent=31 // pred_region
              // Predicated region
              $region48: #{scene_embed2_fwd.27} parent=35 // pred_check
                _
              $region49: #{scene_embed2_fwd.27} parent=35 // pred_check_branch
                %257 = sbr.rel (0) target = $region51
              $region50: #{scene_embed2_fwd.27} parent=35 // pred_region
                loop: start=0, step=1, limit=1
                $region52: #{scene_embed2_fwd.27} parent=50 // loop_pre_header
                  _
                $region53: #{scene_embed2_fwd.27} parent=50 // loop_header
                  %s259 = sphi 0, %s263
                  %p260 = scmp.ge.s32.totalorder %s259, 1
                  %s264 = sphi %s208, %s208
                  %s265 = sphi %s202, %s202
                $region54: #{scene_embed2_fwd.27} parent=50 // loop_header_branch
                  %262 = sbr.rel (%p260) target = $region58
                $region55: #{scene_embed2_fwd.27} parent=50 // loop_body
                  %v266 = vld [vmem:[%s264] sm:$0xff]
                  %267 = vst [vmem:[%s265] sm:$0xff] %v266
                  %v268 = vld [vmem:[%s264 + $0x18] sm:$0xff]
                  %269 = vst [vmem:[%s265 + $0x8] sm:$0xff] %v268
                  %v270 = vld [vmem:[%s264 + $0x30] sm:$0xff]
                  %271 = vst [vmem:[%s265 + $0x10] sm:$0xff] %v270
                  %v272 = vld [vmem:[%s264 + $0x48] sm:$0xff]
                  %273 = vst [vmem:[%s265 + $0x18] sm:$0xff] %v272
                  %v274 = vld [vmem:[%s264 + $0x60] sm:$0xff]
                  %275 = vst [vmem:[%s265 + $0x20] sm:$0xff] %v274
                  %v276 = vld [vmem:[%s264 + $0x78] sm:$0xff]
                  %277 = vst [vmem:[%s265 + $0x28] sm:$0xff] %v276
                  %v278 = vld [vmem:[%s264 + $0x90] sm:$0xff]
                  %279 = vst [vmem:[%s265 + $0x30] sm:$0xff] %v278
                  %v280 = vld [vmem:[%s264 + $0xa8] sm:$0xff]
                  %281 = vst [vmem:[%s265 + $0x38] sm:$0xff] %v280
                  %v282 = vld [vmem:[%s264 + $0xc0] sm:$0xff]
                  %283 = vst [vmem:[%s265 + $0x40] sm:$0xff] %v282
                  %v284 = vld [vmem:[%s264 + $0xd8] sm:$0xff]
                  %285 = vst [vmem:[%s265 + $0x48] sm:$0xff] %v284
                  %v286 = vld [vmem:[%s264 + $0xf0] sm:$0xff]
                  %287 = vst [vmem:[%s265 + $0x50] sm:$0xff] %v286
                  %v288 = vld [vmem:[%s264 + $0x108] sm:$0xff]
                  %289 = vst [vmem:[%s265 + $0x58] sm:$0xff] %v288
                  %v290 = vld [vmem:[%s264 + $0x120] sm:$0xff]
                  %291 = vst [vmem:[%s265 + $0x60] sm:$0xff] %v290
                  %v292 = vld [vmem:[%s264 + $0x138] sm:$0xff]
                  %293 = vst [vmem:[%s265 + $0x68] sm:$0xff] %v292
                  %v294 = vld [vmem:[%s264 + $0x150] sm:$0xff]
                  %295 = vst [vmem:[%s265 + $0x70] sm:$0xff] %v294
                  %v296 = vld [vmem:[%s264 + $0x168] sm:$0xff]
                  %297 = vst [vmem:[%s265 + $0x78] sm:$0xff] %v296
                $region56: #{scene_embed2_fwd.27} parent=50 // loop_footer
                  %s263 = sadd.s32 1, %s259
                $region57: #{scene_embed2_fwd.27} parent=50 // loop_footer_branch
                  %258 = sbr.rel target = $region53
                $region58: #{scene_embed2_fwd.27} parent=50 // loop_exit
                  _
              $region51: #{scene_embed2_fwd.27} parent=35 // pred_fallthru
                _
              // Predicated region
              $region59: #{scene_embed2_fwd.27} parent=35 // pred_check
                _
              $region60: #{scene_embed2_fwd.27} parent=35 // pred_check_branch
                %299 = sbr.rel target = $region62
              $region61: #{scene_embed2_fwd.27} parent=35 // pred_region
                _
              $region62: #{scene_embed2_fwd.27} parent=35 // pred_fallthru
                _
            $region36: #{scene_embed2_fwd.27} parent=31 // pred_fallthru
              _
            // Predicated region
            $region37: #{scene_embed2_fwd.27} parent=31 // pred_check
              _
            $region38: #{scene_embed2_fwd.27} parent=31 // pred_check_branch
              %214 = sbr.rel target = $region40
            $region39: #{scene_embed2_fwd.27} parent=31 // pred_region
              loop: start=0, step=1, limit=1
              $region41: #{scene_embed2_fwd.27} parent=39 // loop_pre_header
                _
              $region42: #{scene_embed2_fwd.27} parent=39 // loop_header
                %s217 = sphi 0, %s221
                %p218 = scmp.ge.s32.totalorder %s217, 1
                %s222 = sphi %s208, %s208
                %s223 = sphi %s202, %s202
              $region43: #{scene_embed2_fwd.27} parent=39 // loop_header_branch
                %220 = sbr.rel (%p218) target = $region47
              $region44: #{scene_embed2_fwd.27} parent=39 // loop_body
                %v224 = vld [vmem:[%s222] sm:$0xff]
                %225 = vst [vmem:[%s223] sm:$0xff] %v224
                %v226 = vld [vmem:[%s222 + $0x18] sm:$0xff]
                %227 = vst [vmem:[%s223 + $0x8] sm:$0xff] %v226
                %v228 = vld [vmem:[%s222 + $0x30] sm:$0xff]
                %229 = vst [vmem:[%s223 + $0x10] sm:$0xff] %v228
                %v230 = vld [vmem:[%s222 + $0x48] sm:$0xff]
                %231 = vst [vmem:[%s223 + $0x18] sm:$0xff] %v230
                %v232 = vld [vmem:[%s222 + $0x60] sm:$0xff]
                %233 = vst [vmem:[%s223 + $0x20] sm:$0xff] %v232
                %v234 = vld [vmem:[%s222 + $0x78] sm:$0xff]
                %235 = vst [vmem:[%s223 + $0x28] sm:$0xff] %v234
                %v236 = vld [vmem:[%s222 + $0x90] sm:$0xff]
                %237 = vst [vmem:[%s223 + $0x30] sm:$0xff] %v236
                %v238 = vld [vmem:[%s222 + $0xa8] sm:$0xff]
                %239 = vst [vmem:[%s223 + $0x38] sm:$0xff] %v238
                %v240 = vld [vmem:[%s222 + $0xc0] sm:$0xff]
                %241 = vst [vmem:[%s223 + $0x40] sm:$0xff] %v240
                %v242 = vld [vmem:[%s222 + $0xd8] sm:$0xff]
                %243 = vst [vmem:[%s223 + $0x48] sm:$0xff] %v242
                %v244 = vld [vmem:[%s222 + $0xf0] sm:$0xff]
                %245 = vst [vmem:[%s223 + $0x50] sm:$0xff] %v244
                %v246 = vld [vmem:[%s222 + $0x108] sm:$0xff]
                %247 = vst [vmem:[%s223 + $0x58] sm:$0xff] %v246
                %v248 = vld [vmem:[%s222 + $0x120] sm:$0xff]
                %249 = vst [vmem:[%s223 + $0x60] sm:$0xff] %v248
                %v250 = vld [vmem:[%s222 + $0x138] sm:$0xff]
                %251 = vst [vmem:[%s223 + $0x68] sm:$0xff] %v250
                %v252 = vld [vmem:[%s222 + $0x150] sm:$0xff]
                %253 = vst [vmem:[%s223 + $0x70] sm:$0xff] %v252
                %v254 = vld [vmem:[%s222 + $0x168] sm:$0xff]
                %255 = vst [vmem:[%s223 + $0x78] sm:$0xff] %v254
              $region45: #{scene_embed2_fwd.27} parent=39 // loop_footer
                %s221 = sadd.s32 1, %s217
              $region46: #{scene_embed2_fwd.27} parent=39 // loop_footer_branch
                %216 = sbr.rel target = $region42
              $region47: #{scene_embed2_fwd.27} parent=39 // loop_exit
                _
            $region40: #{scene_embed2_fwd.27} parent=31 // pred_fallthru
              _
          $region32: #{scene_embed2_fwd.27} parent=27 // pred_fallthru
            _
          %300 = vnop
        $region28: #{scene_embed2_fwd.27} parent=23 // pred_fallthru
          _
        // Predicated region
        $region63: #{scene_embed2_fwd.27} parent=23 // pred_check
          %p301 = pneg %p79
        $region64: #{scene_embed2_fwd.27} parent=23 // pred_check_branch
          %303 = sbr.rel (%p301) target = $region66
        $region65: #{scene_embed2_fwd.27} parent=23 // pred_region
          %s304 = smul.u32 32, %s19
          %p305 = scmp.lt.s32.totalorder %s304, 95
          %s306 = scalar_select %p305, %s304, 95
          %p307 = scmp.lt.s32.totalorder %s18, 0
          %s308 = scalar_select %p307, %s18, 0
          %s309 = sadd.s32 %s308, %s306
          %s310 = smul.addr %s309, 4
          %s311 = scalar_lea.vmem %s1, %s310
          %s312 = smul.u32 32, %s19
        $region66: #{scene_embed2_fwd.27} parent=23 // pred_fallthru
          _
      $region24: #{scene_embed2_fwd.27} parent=5 // pred_fallthru
        _
      %p313 = scmp.le.s32.totalorder 1, %s10
      %p314 = scmp.lt.s32.totalorder %s10, 4
      %p315 = pnand %p313, %p314
      %p316 = pneg %p315
      // Predicated region
      $region67: #{scene_embed2_fwd.27} parent=5 // pred_check
        _
      $region68: #{scene_embed2_fwd.27} parent=5 // pred_check_branch
        %318 = sbr.rel (%p315) target = $region70
      $region69: #{scene_embed2_fwd.27} parent=5 // pred_region
        %s319 = ssub.s32 %s10, 1
        %s320 = sand.u32 %s44, 1
        %s321 = sand.u32 %s44, 1
        %s322 = smul.addr %s321, 128
        %s323 = scalar_lea.vmem [#allocation3], %s322
        // Predicated region
        $region71: #{scene_embed2_fwd.27} parent=69 // pred_check
          %p324 = pneg %p57
        $region72: #{scene_embed2_fwd.27} parent=69 // pred_check_branch
          %326 = sbr.rel (%p324) target = $region74
        $region73: #{scene_embed2_fwd.27} parent=69 // pred_region
          _
        $region74: #{scene_embed2_fwd.27} parent=69 // pred_fallthru
          _
        %s327 = sand.u32 %s44, 1
        %s328 = sand.u32 %s44, 1
        %s329 = smul.addr %s328, 128
        %s330 = scalar_lea.vmem [#allocation3], %s329
        %p331 = pneg %p57
        %p332 = pneg %p54
        %s333 = smul.u32 32, %s22
        %p334 = scmp.lt.s32.totalorder %s333, 95
        %s335 = scalar_select %p334, %s333, 95
        %p336 = scmp.lt.s32.totalorder %s21, 0
        %s337 = scalar_select %p336, %s21, 0
        %s338 = sadd.s32 %s337, %s335
        %s339 = smul.addr %s338, 4
        %s340 = scalar_lea.vmem %s1, %s339
        %p341 = pneg %p85
        %p342 = pneg %p82
        %p343 = scmp.lt.s32.totalorder %s21, 0
        %s344 = scalar_select %p343, %s21, 0
        %s345 = scalar_lea.vmem %s2, %s344
        %p346 = pneg %p111
        %p347 = pneg %p108
        %p348 = scmp.lt.s32.totalorder %s21, 0
        %s349 = scalar_select %p348, %s21, 0
        %s350 = scalar_lea.vmem %s3, %s349
        %p351 = pneg %p137
        %p352 = pneg %p134
        %p353 = pneg %p165
        %p354 = pneg %p162
        %s355 = smul.u32 16, %s20
        %p356 = scmp.lt.s32.totalorder %s355, 15
        %s357 = scalar_select %p356, %s355, 15
        %p358 = scmp.lt.s32.totalorder %s21, 0
        %s359 = scalar_select %p358, %s21, 0
        %s360 = sadd.s32 %s359, %s357
        %s361 = smul.addr %s360, 4
        %s362 = scalar_lea.vmem %s4, %s361
        %s363 = smul.u32 16, %s20
        %s364 = smul.u32 2, %s22
        %s365 = smul.u32 32, %s22
        %p366 = scmp.lt.s32.totalorder %s365, 95
        %s367 = scalar_select %p366, %s365, 95
        %p368 = scmp.lt.s32.totalorder %s21, 0
        %s369 = scalar_select %p368, %s21, 0
        %s370 = sadd.s32 %s369, %s367
        %s371 = smul.addr %s370, 4
        %s372 = scalar_lea.vmem %s1, %s371
        %s373 = smul.u32 32, %s22
        %p374 = scmp.lt.s32.totalorder %s21, 0
        %s375 = scalar_select %p374, %s21, 0
        %s376 = scalar_lea.vmem %s2, %s375
        %p377 = scmp.lt.s32.totalorder %s21, 0
        %s378 = scalar_select %p377, %s21, 0
        %s379 = scalar_lea.vmem %s3, %s378
        %s380 = smul.u32 16, %s20
        %p381 = scmp.lt.s32.totalorder %s380, 15
        %s382 = scalar_select %p381, %s380, 15
        %p383 = scmp.lt.s32.totalorder %s21, 0
        %s384 = scalar_select %p383, %s21, 0
        %s385 = sadd.s32 %s384, %s382
        %s386 = smul.addr %s385, 4
        %s387 = scalar_lea.vmem %s4, %s386
        %s388 = smul.u32 16, %s20
        %p390 = scmp.eq.s32.totalorder %s22, 0
        // Predicated region
        $region75: #{scene_embed2_fwd.27} parent=69 // pred_check
          %p391 = pneg %p390
        $region76: #{scene_embed2_fwd.27} parent=69 // pred_check_branch
          %393 = sbr.rel (%p391) target = $region78
        $region77: #{scene_embed2_fwd.27} parent=69 // pred_region
          %394 = vst [vmem:[#allocation2] sm:$0xff] 0.0
          %395 = vst [vmem:[#allocation2 + $0x8] sm:$0xff] 0.0
          %396 = vst [vmem:[#allocation2 + $0x10] sm:$0xff] 0.0
          %397 = vst [vmem:[#allocation2 + $0x18] sm:$0xff] 0.0
          %398 = vst [vmem:[#allocation2 + $0x20] sm:$0xff] 0.0
          %399 = vst [vmem:[#allocation2 + $0x28] sm:$0xff] 0.0
          %400 = vst [vmem:[#allocation2 + $0x30] sm:$0xff] 0.0
          %401 = vst [vmem:[#allocation2 + $0x38] sm:$0xff] 0.0
          %402 = vst [vmem:[#allocation2 + $0x40] sm:$0xff] 0.0
          %403 = vst [vmem:[#allocation2 + $0x48] sm:$0xff] 0.0
          %404 = vst [vmem:[#allocation2 + $0x50] sm:$0xff] 0.0
          %405 = vst [vmem:[#allocation2 + $0x58] sm:$0xff] 0.0
          %406 = vst [vmem:[#allocation2 + $0x60] sm:$0xff] 0.0
          %407 = vst [vmem:[#allocation2 + $0x68] sm:$0xff] 0.0
          %408 = vst [vmem:[#allocation2 + $0x70] sm:$0xff] 0.0
          %409 = vst [vmem:[#allocation2 + $0x78] sm:$0xff] 0.0
        $region78: #{scene_embed2_fwd.27} parent=69 // pred_fallthru
          _
        %v410 = vld [vmem:[#allocation2] sm:$0xff]
        %v411 = vld [vmem:[#allocation2 + $0x8] sm:$0xff]
        %v412 = vld [vmem:[#allocation2 + $0x10] sm:$0xff]
        %v413 = vld [vmem:[#allocation2 + $0x18] sm:$0xff]
        %v414 = vld [vmem:[#allocation2 + $0x20] sm:$0xff]
        %v415 = vld [vmem:[#allocation2 + $0x28] sm:$0xff]
        %v416 = vld [vmem:[#allocation2 + $0x30] sm:$0xff]
        %v417 = vld [vmem:[#allocation2 + $0x38] sm:$0xff]
        %v418 = vld [vmem:[#allocation2 + $0x40] sm:$0xff]
        %v419 = vld [vmem:[#allocation2 + $0x48] sm:$0xff]
        %v420 = vld [vmem:[#allocation2 + $0x50] sm:$0xff]
        %v421 = vld [vmem:[#allocation2 + $0x58] sm:$0xff]
        %v422 = vld [vmem:[#allocation2 + $0x60] sm:$0xff]
        %v423 = vld [vmem:[#allocation2 + $0x68] sm:$0xff]
        %v424 = vld [vmem:[#allocation2 + $0x70] sm:$0xff]
        %v425 = vld [vmem:[#allocation2 + $0x78] sm:$0xff]
        %v426 = vld [vmem:[%s323] sm:$0xff]
        %v427 = vld [vmem:[%s323 + $0x8] sm:$0xff]
        %v428 = vld [vmem:[%s323 + $0x10] sm:$0xff]
        %v429 = vld [vmem:[%s323 + $0x18] sm:$0xff]
        %v430 = vld [vmem:[%s323 + $0x20] sm:$0xff]
        %v431 = vld [vmem:[%s323 + $0x28] sm:$0xff]
        %v432 = vld [vmem:[%s323 + $0x30] sm:$0xff]
        %v433 = vld [vmem:[%s323 + $0x38] sm:$0xff]
        %v434 = vld [vmem:[%s323 + $0x40] sm:$0xff]
        %v435 = vld [vmem:[%s323 + $0x48] sm:$0xff]
        %v436 = vld [vmem:[%s323 + $0x50] sm:$0xff]
        %v437 = vld [vmem:[%s323 + $0x58] sm:$0xff]
        %v438 = vld [vmem:[%s323 + $0x60] sm:$0xff]
        %v439 = vld [vmem:[%s323 + $0x68] sm:$0xff]
        %v440 = vld [vmem:[%s323 + $0x70] sm:$0xff]
        %v441 = vld [vmem:[%s323 + $0x78] sm:$0xff]
        %v442 = vld [vmem:[%s372] sm:$0xf]
        %v443 = vld [vmem:[%s372 + $0x4] sm:$0xf]
        %v444 = vld [vmem:[%s372 + $0x8] sm:$0xf]
        %v445 = vld [vmem:[%s372 + $0xc] sm:$0xf]
        %v446 = vld [vmem:[%s372 + $0x10] sm:$0xf]
        %v447 = vld [vmem:[%s372 + $0x14] sm:$0xf]
        %v448 = vld [vmem:[%s372 + $0x18] sm:$0xf]
        %v449 = vld [vmem:[%s372 + $0x1c] sm:$0xf]
        %v450 = vld [vmem:[%s372 + $0x20] sm:$0xf]
        %v451 = vld [vmem:[%s372 + $0x24] sm:$0xf]
        %v452 = vld [vmem:[%s372 + $0x28] sm:$0xf]
        %v453 = vld [vmem:[%s372 + $0x2c] sm:$0xf]
        %v454 = vld [vmem:[%s372 + $0x30] sm:$0xf]
        %v455 = vld [vmem:[%s372 + $0x34] sm:$0xf]
        %v456 = vld [vmem:[%s372 + $0x38] sm:$0xf]
        %v457 = vld [vmem:[%s372 + $0x3c] sm:$0xf]
        %v458 = vld [vmem:[%s372 + $0x40] sm:$0xf]
        %v459 = vld [vmem:[%s372 + $0x44] sm:$0xf]
        %v460 = vld [vmem:[%s372 + $0x48] sm:$0xf]
        %v461 = vld [vmem:[%s372 + $0x4c] sm:$0xf]
        %v462 = vld [vmem:[%s372 + $0x50] sm:$0xf]
        %v463 = vld [vmem:[%s372 + $0x54] sm:$0xf]
        %v464 = vld [vmem:[%s372 + $0x58] sm:$0xf]
        %v465 = vld [vmem:[%s372 + $0x5c] sm:$0xf]
        %v466 = vld [vmem:[%s372 + $0x60] sm:$0xf]
        %v467 = vld [vmem:[%s372 + $0x64] sm:$0xf]
        %v468 = vld [vmem:[%s372 + $0x68] sm:$0xf]
        %v469 = vld [vmem:[%s372 + $0x6c] sm:$0xf]
        %v470 = vld [vmem:[%s372 + $0x70] sm:$0xf]
        %v471 = vld [vmem:[%s372 + $0x74] sm:$0xf]
        %v472 = vld [vmem:[%s372 + $0x78] sm:$0xf]
        %v473 = vld [vmem:[%s372 + $0x7c] sm:$0xf]
        %v490 = vunpack.c.l.b16 %v426
        %v491 = vunpack.c.h.b16 %v426
        %v492 = vunpack.c.l.b16 %v427
        %v493 = vunpack.c.h.b16 %v427
        %v494 = vunpack.c.l.b16 %v428
        %v495 = vunpack.c.h.b16 %v428
        %v496 = vunpack.c.l.b16 %v429
        %v497 = vunpack.c.h.b16 %v429
        %v498 = vunpack.c.l.b16 %v430
        %v499 = vunpack.c.h.b16 %v430
        %v500 = vunpack.c.l.b16 %v431
        %v501 = vunpack.c.h.b16 %v431
        %v502 = vunpack.c.l.b16 %v432
        %v503 = vunpack.c.h.b16 %v432
        %v504 = vunpack.c.l.b16 %v433
        %v505 = vunpack.c.h.b16 %v433
        %v506 = vunpack.c.l.b16 %v434
        %v507 = vunpack.c.h.b16 %v434
        %v508 = vunpack.c.l.b16 %v435
        %v509 = vunpack.c.h.b16 %v435
        %v510 = vunpack.c.l.b16 %v436
        %v511 = vunpack.c.h.b16 %v436
        %v512 = vunpack.c.l.b16 %v437
        %v513 = vunpack.c.h.b16 %v437
        %v514 = vunpack.c.l.b16 %v438
        %v515 = vunpack.c.h.b16 %v438
        %v516 = vunpack.c.l.b16 %v439
        %v517 = vunpack.c.h.b16 %v439
        %v518 = vunpack.c.l.b16 %v440
        %v519 = vunpack.c.h.b16 %v440
        %v520 = vunpack.c.l.b16 %v441
        %v521 = vunpack.c.h.b16 %v441
        %v522 = vpack.c.b16 %v492, %v490
        %v523 = vpack.c.b16 %v493, %v491
        %v524 = vpack.c.b16 %v496, %v494
        %v525 = vpack.c.b16 %v497, %v495
        %v526 = vpack.c.b16 %v500, %v498
        %v527 = vpack.c.b16 %v501, %v499
        %v528 = vpack.c.b16 %v504, %v502
        %v529 = vpack.c.b16 %v505, %v503
        %v530 = vpack.c.b16 %v508, %v506
        %v531 = vpack.c.b16 %v509, %v507
        %v532 = vpack.c.b16 %v512, %v510
        %v533 = vpack.c.b16 %v513, %v511
        %v534 = vpack.c.b16 %v516, %v514
        %v535 = vpack.c.b16 %v517, %v515
        %v536 = vpack.c.b16 %v520, %v518
        %v537 = vpack.c.b16 %v521, %v519
        %v586 = vunpack.c.l.b16 %v442
        %v587 = vunpack.c.l.b16 %v443
        %v588 = vunpack.c.l.b16 %v444
        %v589 = vunpack.c.l.b16 %v445
        %v590 = vunpack.c.l.b16 %v446
        %v591 = vunpack.c.l.b16 %v447
        %v592 = vunpack.c.l.b16 %v448
        %v593 = vunpack.c.l.b16 %v449
        %v594 = vunpack.c.l.b16 %v450
        %v595 = vunpack.c.l.b16 %v451
        %v596 = vunpack.c.l.b16 %v452
        %v597 = vunpack.c.l.b16 %v453
        %v598 = vunpack.c.l.b16 %v454
        %v599 = vunpack.c.l.b16 %v455
        %v600 = vunpack.c.l.b16 %v456
        %v601 = vunpack.c.l.b16 %v457
        %v602 = vunpack.c.l.b16 %v458
        %v603 = vunpack.c.l.b16 %v459
        %v604 = vunpack.c.l.b16 %v460
        %v605 = vunpack.c.l.b16 %v461
        %v606 = vunpack.c.l.b16 %v462
        %v607 = vunpack.c.l.b16 %v463
        %v608 = vunpack.c.l.b16 %v464
        %v609 = vunpack.c.l.b16 %v465
        %v610 = vunpack.c.l.b16 %v466
        %v611 = vunpack.c.l.b16 %v467
        %v612 = vunpack.c.l.b16 %v468
        %v613 = vunpack.c.l.b16 %v469
        %v614 = vunpack.c.l.b16 %v470
        %v615 = vunpack.c.l.b16 %v471
        %v616 = vunpack.c.l.b16 %v472
        %v617 = vunpack.c.l.b16 %v473
        %v618 = vpack.c.b16 %v587, %v586
        %v619 = vpack.c.b16 %v589, %v588
        %v620 = vpack.c.b16 %v591, %v590
        %v621 = vpack.c.b16 %v593, %v592
        %v622 = vpack.c.b16 %v595, %v594
        %v623 = vpack.c.b16 %v597, %v596
        %v624 = vpack.c.b16 %v599, %v598
        %v625 = vpack.c.b16 %v601, %v600
        %v626 = vpack.c.b16 %v603, %v602
        %v627 = vpack.c.b16 %v605, %v604
        %v628 = vpack.c.b16 %v607, %v606
        %v629 = vpack.c.b16 %v609, %v608
        %v630 = vpack.c.b16 %v611, %v610
        %v631 = vpack.c.b16 %v613, %v612
        %v632 = vpack.c.b16 %v615, %v614
        %v633 = vpack.c.b16 %v617, %v616
        %650 = vmatprep.subr.bf16.mxu0 0
        %651 = vmatpush1.bf16.msra.mxu0 %v618
        %652 = vmatprep.subr.bf16.mxu0 0
        %653 = vmatpush1.bf16.msra.mxu0 %v619
        %654 = vmatprep.subr.bf16.mxu0 0
        %655 = vmatpush1.bf16.msra.mxu0 %v620
        %656 = vmatprep.subr.bf16.mxu0 0
        %657 = vmatpush1.bf16.msra.mxu0 %v621
        %658 = vmatprep.subr.bf16.mxu0 0
        %659 = vmatpush1.bf16.msra.mxu0 %v622
        %660 = vmatprep.subr.bf16.mxu0 0
        %661 = vmatpush1.bf16.msra.mxu0 %v623
        %662 = vmatprep.subr.bf16.mxu0 0
        %663 = vmatpush1.bf16.msra.mxu0 %v624
        %664 = vmatprep.subr.bf16.mxu0 0
        %665 = vmatpush1.bf16.msra.mxu0 %v625
        %666 = vmatprep.subr.bf16.mxu0 0
        %667 = vmatpush1.bf16.msra.mxu0 %v626
        %668 = vmatprep.subr.bf16.mxu0 0
        %669 = vmatpush1.bf16.msra.mxu0 %v627
        %670 = vmatprep.subr.bf16.mxu0 0
        %671 = vmatpush1.bf16.msra.mxu0 %v628
        %672 = vmatprep.subr.bf16.mxu0 0
        %673 = vmatpush1.bf16.msra.mxu0 %v629
        %674 = vmatprep.subr.bf16.mxu0 0
        %675 = vmatpush1.bf16.msra.mxu0 %v630
        %676 = vmatprep.subr.bf16.mxu0 0
        %677 = vmatpush1.bf16.msra.mxu0 %v631
        %678 = vmatprep.subr.bf16.mxu0 0
        %679 = vmatpush1.bf16.msra.mxu0 %v632
        %680 = vmatprep.subr.bf16.mxu0 0
        %681 = vmatpush1.bf16.msra.mxu0 %v633
        %682 = vmatprep.mubr.bf16.mxu0 %v523
        %683 = vmatmul.mubr.bf16.gmra.mrb[0].mxu0 %v522
        %v684 = vpop.f32.mrb[0].mxu0
        %v685 = vadd.f32 0.0, %v684
        %v686 = vpop.f32.mrb[0].mxu0
        %v687 = vpop.f32.mrb[0].mxu0
        %v688 = vadd.f32 0.0, %v687
        %v689 = vpop.f32.mrb[0].mxu0
        %690 = vmatprep.mubr.bf16.mxu0 %v525
        %691 = vmatmul.mubr.bf16.gmra.mrb[0].mxu0 %v524
        %v692 = vpop.f32.mrb[0].mxu0
        %v693 = vadd.f32 0.0, %v692
        %v694 = vpop.f32.mrb[0].mxu0
        %v695 = vpop.f32.mrb[0].mxu0
        %v696 = vadd.f32 0.0, %v695
        %v697 = vpop.f32.mrb[0].mxu0
        %698 = vmatprep.mubr.bf16.mxu0 %v527
        %699 = vmatmul.mubr.bf16.gmra.mrb[0].mxu0 %v526
        %v700 = vpop.f32.mrb[0].mxu0
        %v701 = vadd.f32 0.0, %v700
        %v702 = vpop.f32.mrb[0].mxu0
        %v703 = vpop.f32.mrb[0].mxu0
        %v704 = vadd.f32 0.0, %v703
        %v705 = vpop.f32.mrb[0].mxu0
        %706 = vmatprep.mubr.bf16.mxu0 %v529
        %707 = vmatmul.mubr.bf16.gmra.mrb[0].mxu0 %v528
        %v708 = vpop.f32.mrb[0].mxu0
        %v709 = vadd.f32 0.0, %v708
        %v710 = vpop.f32.mrb[0].mxu0
        %v711 = vpop.f32.mrb[0].mxu0
        %v712 = vadd.f32 0.0, %v711
        %v713 = vpop.f32.mrb[0].mxu0
        %714 = vmatprep.mubr.bf16.mxu0 %v531
        %715 = vmatmul.mubr.bf16.gmra.mrb[0].mxu0 %v530
        %v716 = vpop.f32.mrb[0].mxu0
        %v717 = vadd.f32 0.0, %v716
        %v718 = vpop.f32.mrb[0].mxu0
        %v719 = vpop.f32.mrb[0].mxu0
        %v720 = vadd.f32 0.0, %v719
        %v721 = vpop.f32.mrb[0].mxu0
        %722 = vmatprep.mubr.bf16.mxu0 %v533
        %723 = vmatmul.mubr.bf16.gmra.mrb[0].mxu0 %v532
        %v724 = vpop.f32.mrb[0].mxu0
        %v725 = vadd.f32 0.0, %v724
        %v726 = vpop.f32.mrb[0].mxu0
        %v727 = vpop.f32.mrb[0].mxu0
        %v728 = vadd.f32 0.0, %v727
        %v729 = vpop.f32.mrb[0].mxu0
        %730 = vmatprep.mubr.bf16.mxu0 %v535
        %731 = vmatmul.mubr.bf16.gmra.mrb[0].mxu0 %v534
        %v732 = vpop.f32.mrb[0].mxu0
        %v733 = vadd.f32 0.0, %v732
        %v734 = vpop.f32.mrb[0].mxu0
        %v735 = vpop.f32.mrb[0].mxu0
        %v736 = vadd.f32 0.0, %v735
        %v737 = vpop.f32.mrb[0].mxu0
        %738 = vmatprep.mubr.bf16.mxu0 %v537
        %739 = vmatmul.mubr.bf16.gmra.mrb[0].mxu0 %v536
        %v740 = vpop.f32.mrb[0].mxu0
        %v741 = vadd.f32 0.0, %v740
        %v742 = vpop.f32.mrb[0].mxu0
        %v743 = vpop.f32.mrb[0].mxu0
        %v744 = vadd.f32 0.0, %v743
        %v745 = vpop.f32.mrb[0].mxu0
        %746 = vdwg.mxu0
        %v747 = vadd.f32 %v410, %v685
        %v748 = vadd.f32 %v411, %v688
        %v749 = vadd.f32 %v412, %v693
        %v750 = vadd.f32 %v413, %v696
        %v751 = vadd.f32 %v414, %v701
        %v752 = vadd.f32 %v415, %v704
        %v753 = vadd.f32 %v416, %v709
        %v754 = vadd.f32 %v417, %v712
        %v755 = vadd.f32 %v418, %v717
        %v756 = vadd.f32 %v419, %v720
        %v757 = vadd.f32 %v420, %v725
        %v758 = vadd.f32 %v421, %v728
        %v759 = vadd.f32 %v422, %v733
        %v760 = vadd.f32 %v423, %v736
        %v761 = vadd.f32 %v424, %v741
        %v762 = vadd.f32 %v425, %v744
        %763 = vst [vmem:[#allocation2] sm:$0xff] %v747
        %764 = vst [vmem:[#allocation2 + $0x8] sm:$0xff] %v748
        %765 = vst [vmem:[#allocation2 + $0x10] sm:$0xff] %v749
        %766 = vst [vmem:[#allocation2 + $0x18] sm:$0xff] %v750
        %767 = vst [vmem:[#allocation2 + $0x20] sm:$0xff] %v751
        %768 = vst [vmem:[#allocation2 + $0x28] sm:$0xff] %v752
        %769 = vst [vmem:[#allocation2 + $0x30] sm:$0xff] %v753
        %770 = vst [vmem:[#allocation2 + $0x38] sm:$0xff] %v754
        %771 = vst [vmem:[#allocation2 + $0x40] sm:$0xff] %v755
        %772 = vst [vmem:[#allocation2 + $0x48] sm:$0xff] %v756
        %773 = vst [vmem:[#allocation2 + $0x50] sm:$0xff] %v757
        %774 = vst [vmem:[#allocation2 + $0x58] sm:$0xff] %v758
        %775 = vst [vmem:[#allocation2 + $0x60] sm:$0xff] %v759
        %776 = vst [vmem:[#allocation2 + $0x68] sm:$0xff] %v760
        %777 = vst [vmem:[#allocation2 + $0x70] sm:$0xff] %v761
        %778 = vst [vmem:[#allocation2 + $0x78] sm:$0xff] %v762
        %p779 = scmp.eq.s32.totalorder %s22, 2
        // Predicated region
        $region79: #{scene_embed2_fwd.27} parent=69 // pred_check
          %p780 = pneg %p779
        $region80: #{scene_embed2_fwd.27} parent=69 // pred_check_branch
          %782 = sbr.rel (%p780) target = $region82
        $region81: #{scene_embed2_fwd.27} parent=69 // pred_region
          %v783 = vld [vmem:[#allocation2] sm:$0xff]
          %v784 = vld [vmem:[#allocation2 + $0x8] sm:$0xff]
          %v785 = vld [vmem:[#allocation2 + $0x10] sm:$0xff]
          %v786 = vld [vmem:[#allocation2 + $0x18] sm:$0xff]
          %v787 = vld [vmem:[#allocation2 + $0x20] sm:$0xff]
          %v788 = vld [vmem:[#allocation2 + $0x28] sm:$0xff]
          %v789 = vld [vmem:[#allocation2 + $0x30] sm:$0xff]
          %v790 = vld [vmem:[#allocation2 + $0x38] sm:$0xff]
          %v791 = vld [vmem:[#allocation2 + $0x40] sm:$0xff]
          %v792 = vld [vmem:[#allocation2 + $0x48] sm:$0xff]
          %v793 = vld [vmem:[#allocation2 + $0x50] sm:$0xff]
          %v794 = vld [vmem:[#allocation2 + $0x58] sm:$0xff]
          %v795 = vld [vmem:[#allocation2 + $0x60] sm:$0xff]
          %v796 = vld [vmem:[#allocation2 + $0x68] sm:$0xff]
          %v797 = vld [vmem:[#allocation2 + $0x70] sm:$0xff]
          %v798 = vld [vmem:[#allocation2 + $0x78] sm:$0xff]
          %v799 = vld [vmem:[%s376] sm:$0x1]
          %v801 = vlaneseq
          %v802 = vshrl.u32 %v801, 7
          %v803 = vsub.s32 0, %v802
          %v804 = vrot.slane %v799, %v803
          %v806 = vmul.f32 %v783, %v804
          %v807 = vmul.f32 %v784, %v804
          %v808 = vmul.f32 %v785, %v804
          %v809 = vmul.f32 %v786, %v804
          %v810 = vmul.f32 %v787, %v804
          %v811 = vmul.f32 %v788, %v804
          %v812 = vmul.f32 %v789, %v804
          %v813 = vmul.f32 %v790, %v804
          %v814 = vmul.f32 %v791, %v804
          %v815 = vmul.f32 %v792, %v804
          %v816 = vmul.f32 %v793, %v804
          %v817 = vmul.f32 %v794, %v804
          %v818 = vmul.f32 %v795, %v804
          %v819 = vmul.f32 %v796, %v804
          %v820 = vmul.f32 %v797, %v804
          %v821 = vmul.f32 %v798, %v804
          %v822 = vld [vmem:[%s379] sm:$0x1]
          %v824 = vlaneseq
          %v825 = vshrl.u32 %v824, 7
          %v826 = vsub.s32 0, %v825
          %v827 = vrot.slane %v822, %v826
          %v829 = vadd.f32 %v806, %v827
          %v830 = vadd.f32 %v807, %v827
          %v831 = vadd.f32 %v808, %v827
          %v832 = vadd.f32 %v809, %v827
          %v833 = vadd.f32 %v810, %v827
          %v834 = vadd.f32 %v811, %v827
          %v835 = vadd.f32 %v812, %v827
          %v836 = vadd.f32 %v813, %v827
          %v837 = vadd.f32 %v814, %v827
          %v838 = vadd.f32 %v815, %v827
          %v839 = vadd.f32 %v816, %v827
          %v840 = vadd.f32 %v817, %v827
          %v841 = vadd.f32 %v818, %v827
          %v842 = vadd.f32 %v819, %v827
          %v843 = vadd.f32 %v820, %v827
          %v844 = vadd.f32 %v821, %v827
          %v845 = vmax.f32 %v829, 0.0
          %v846 = vmax.f32 %v830, 0.0
          %v847 = vmax.f32 %v831, 0.0
          %v848 = vmax.f32 %v832, 0.0
          %v849 = vmax.f32 %v833, 0.0
          %v850 = vmax.f32 %v834, 0.0
          %v851 = vmax.f32 %v835, 0.0
          %v852 = vmax.f32 %v836, 0.0
          %v853 = vmax.f32 %v837, 0.0
          %v854 = vmax.f32 %v838, 0.0
          %v855 = vmax.f32 %v839, 0.0
          %v856 = vmax.f32 %v840, 0.0
          %v857 = vmax.f32 %v841, 0.0
          %v858 = vmax.f32 %v842, 0.0
          %v859 = vmax.f32 %v843, 0.0
          %v860 = vmax.f32 %v844, 0.0
          %v861 = vpack.c.bf16 %v846, %v845
          %v862 = vpack.c.bf16 %v848, %v847
          %v863 = vpack.c.bf16 %v850, %v849
          %v864 = vpack.c.bf16 %v852, %v851
          %v865 = vpack.c.bf16 %v854, %v853
          %v866 = vpack.c.bf16 %v856, %v855
          %v867 = vpack.c.bf16 %v858, %v857
          %v868 = vpack.c.bf16 %v860, %v859
          %v877 = vunpack.c.l.b16 %v861
          %v878 = vunpack.c.h.b16 %v861
          %v879 = vunpack.c.l.b16 %v862
          %v880 = vunpack.c.h.b16 %v862
          %v881 = vunpack.c.l.b16 %v863
          %v882 = vunpack.c.h.b16 %v863
          %v883 = vunpack.c.l.b16 %v864
          %v884 = vunpack.c.h.b16 %v864
          %v885 = vunpack.c.l.b16 %v865
          %v886 = vunpack.c.h.b16 %v865
          %v887 = vunpack.c.l.b16 %v866
          %v888 = vunpack.c.h.b16 %v866
          %v889 = vunpack.c.l.b16 %v867
          %v890 = vunpack.c.h.b16 %v867
          %v891 = vunpack.c.l.b16 %v868
          %v892 = vunpack.c.h.b16 %v868
          %v893 = vpack.c.b16 %v877, %v877
          %v894 = vpack.c.b16 %v878, %v878
          %v895 = vpack.c.b16 %v879, %v879
          %v896 = vpack.c.b16 %v880, %v880
          %v897 = vpack.c.b16 %v881, %v881
          %v898 = vpack.c.b16 %v882, %v882
          %v899 = vpack.c.b16 %v883, %v883
          %v900 = vpack.c.b16 %v884, %v884
          %v901 = vpack.c.b16 %v885, %v885
          %v902 = vpack.c.b16 %v886, %v886
          %v903 = vpack.c.b16 %v887, %v887
          %v904 = vpack.c.b16 %v888, %v888
          %v905 = vpack.c.b16 %v889, %v889
          %v906 = vpack.c.b16 %v890, %v890
          %v907 = vpack.c.b16 %v891, %v891
          %v908 = vpack.c.b16 %v892, %v892
          %925 = vst [vmem:[%s387] sm:$0xf] %v893
          %926 = vst [vmem:[%s387 + $0x4] sm:$0xf] %v894
          %927 = vst [vmem:[%s387 + $0x8] sm:$0xf] %v895
          %928 = vst [vmem:[%s387 + $0xc] sm:$0xf] %v896
          %929 = vst [vmem:[%s387 + $0x10] sm:$0xf] %v897
          %930 = vst [vmem:[%s387 + $0x14] sm:$0xf] %v898
          %931 = vst [vmem:[%s387 + $0x18] sm:$0xf] %v899
          %932 = vst [vmem:[%s387 + $0x1c] sm:$0xf] %v900
          %933 = vst [vmem:[%s387 + $0x20] sm:$0xf] %v901
          %934 = vst [vmem:[%s387 + $0x24] sm:$0xf] %v902
          %935 = vst [vmem:[%s387 + $0x28] sm:$0xf] %v903
          %936 = vst [vmem:[%s387 + $0x2c] sm:$0xf] %v904
          %937 = vst [vmem:[%s387 + $0x30] sm:$0xf] %v905
          %938 = vst [vmem:[%s387 + $0x34] sm:$0xf] %v906
          %939 = vst [vmem:[%s387 + $0x38] sm:$0xf] %v907
          %940 = vst [vmem:[%s387 + $0x3c] sm:$0xf] %v908
        $region82: #{scene_embed2_fwd.27} parent=69 // pred_fallthru
          _
        %s941 = smul.u32 16, %s20
        %p942 = scmp.lt.s32.totalorder %s941, 15
        %s943 = scalar_select %p942, %s941, 15
        %p944 = scmp.lt.s32.totalorder %s21, 0
        %s945 = scalar_select %p944, %s21, 0
        %s946 = sadd.s32 %s945, %s943
        %s947 = smul.addr %s946, 4
        %s948 = scalar_lea.vmem %s4, %s947
        // Predicated region
        $region83: #{scene_embed2_fwd.27} parent=69 // pred_check
          %p949 = pneg %p162
        $region84: #{scene_embed2_fwd.27} parent=69 // pred_check_branch
          %951 = sbr.rel (%p949) target = $region86
        $region85: #{scene_embed2_fwd.27} parent=69 // pred_region
          %s952 = smul.u32 16, %s20
        $region86: #{scene_embed2_fwd.27} parent=69 // pred_fallthru
          _
        // Predicated region
        $region87: #{scene_embed2_fwd.27} parent=69 // pred_check
          %p953 = pneg %p162
        $region88: #{scene_embed2_fwd.27} parent=69 // pred_check_branch
          %955 = sbr.rel (%p953) target = $region90
        $region89: #{scene_embed2_fwd.27} parent=69 // pred_region
          %s956 = smul.u32 16, %s20
          %p957 = scmp.lt.s32.totalorder %s956, 15
          %s958 = scalar_select %p957, %s956, 15
          %p959 = scmp.lt.s32.totalorder %s21, 0
          %s960 = scalar_select %p959, %s21, 0
          %s961 = sadd.s32 %s960, %s958
          %s962 = smul.addr %s961, 4
          %s963 = scalar_lea.vmem %s4, %s962
        $region90: #{scene_embed2_fwd.27} parent=69 // pred_fallthru
          _
      $region70: #{scene_embed2_fwd.27} parent=5 // pred_fallthru
        _
      %p964 = scmp.le.s32.totalorder 2, %s10
      // Predicated region
      $region91: #{scene_embed2_fwd.27} parent=5 // pred_check
        %p965 = pneg %p964
      $region92: #{scene_embed2_fwd.27} parent=5 // pred_check_branch
        %967 = sbr.rel (%p965) target = $region94
      $region93: #{scene_embed2_fwd.27} parent=5 // pred_region
        %s968 = ssub.s32 %s10, 2
      $region94: #{scene_embed2_fwd.27} parent=5 // pred_fallthru
        _
    $region6: #{scene_embed2_fwd.27} parent=1 // loop_footer
      %s14 = sadd.s32 1, %s10
    $region7: #{scene_embed2_fwd.27} parent=1 // loop_footer_branch
      %9 = sbr.rel target = $region3
    $region8: #{scene_embed2_fwd.27} parent=1 // loop_exit
      _

// kernel: scene_embed2_fwd.29
$region0: #{scene_embed2_fwd.29}
  #allocation0 [shape = 'u32[]', space=smem, size = 0x4, offset = 0x4, fixed_abs, tag = 'smem constant byte address 0x4 - core index']
  #allocation1 [shape = 'u32[144,128]{1,0:T(1,128)}', space=vmem, size = 0x12000, scoped, tag = 'internal scratch']
  #allocation2 [shape = 'f32[32,128]{1,0:T(8,128)}', space=vmem, size = 0x4000, scoped, tag = 'scratch operand']
  %s0 = inlined_call_operand.vmem [shape: bf16[32,768], index: 0, kind: input, shape index: {}]
  %s1 = inlined_call_operand.vmem [shape: bf16[768,128], index: 1, kind: input, shape index: {}]
  %s2 = inlined_call_operand.vmem [shape: f32[1,128], index: 2, kind: input, shape index: {}]
  %s3 = inlined_call_operand.vmem [shape: f32[1,128], index: 3, kind: input, shape index: {}]
  %s4 = inlined_call_operand.vmem [shape: bf16[32,128], index: 4, kind: output, shape index: {}]
  %s5 = sld [smem:[#allocation0]]
  $region95: #{scene_embed2_fwd.29} parent=0
    _
  %s7 = ssub.s32 1, %s5
  %s8 = scalar_select 0, %s7, %s5
  $region1: #{scene_embed2_fwd.29} parent=0
    #allocation3 [shape = 'u8[32768]{0}', space=vmem, size = 0x8000, scoped, tag = 'input window, operand 0']
    loop: start=0, step=1, limit=5
    $region2: #{scene_embed2_fwd.29} parent=1 // loop_pre_header
      _
    $region3: #{scene_embed2_fwd.29} parent=1 // loop_header
      %s10 = sphi 0, %s14
      %p11 = scmp.ge.s32.totalorder %s10, 5
      %s17 = sphi 0, %s36
      %s18 = sphi 0, %s32
      %s19 = sphi 0, %s28
      %s20 = sphi 0, %s17
      %s21 = sphi 0, %s18
      %s22 = sphi 0, %s19
      %s23 = sphi 0, %s20
      %s24 = sphi 0, %s21
      %s25 = sphi 0, %s22
      %s41 = sphi 0, %s43
      %s44 = sphi 0, %s41
      %s45 = sphi 0, %s44
      %s61 = sphi 0, %s45
      %s69 = sphi 0, %s71
      %s72 = sphi 0, %s69
      %s73 = sphi 0, %s72
      %s89 = sphi 0, %s73
      %s95 = sphi 0, %s97
      %s98 = sphi 0, %s95
      %s99 = sphi 0, %s98
      %s115 = sphi 0, %s99
      %s121 = sphi 0, %s123
      %s124 = sphi 0, %s121
      %s125 = sphi 0, %s124
      %s141 = sphi 0, %s125
      %s149 = sphi 0, %s151
      %s152 = sphi 0, %s149
      %s153 = sphi 0, %s152
      %s169 = sphi 0, %s153
    $region4: #{scene_embed2_fwd.29} parent=1 // loop_header_branch
      %13 = sbr.rel (%p11) target = $region8
    $region5: #{scene_embed2_fwd.29} parent=1 // loop_body
      %s15 = ssub.s32 %s10, 1
      %s16 = ssub.s32 %s10, 2
      %s26 = sadd.s32 1, %s19
      %p27 = scmp.ge.s32.totalorder %s26, 3
      %s28 = scalar_select %p27, 0, %s26
      %s29 = sadd.s32 1, %s18
      %s30 = scalar_select %p27, %s29, %s18
      %p31 = scmp.ge.s32.totalorder %s30, 1
      %s32 = scalar_select %p31, 0, %s30
      %s33 = sadd.s32 1, %s17
      %s34 = scalar_select %p31, %s33, %s17
      %p35 = scmp.ge.s32.totalorder %s34, 1
      %s36 = scalar_select %p35, 0, %s34
      %s37 = ssub.s32 %s17, %s36
      %s38 = ssub.s32 %s19, %s28
      %s39 = sor.u32 %s37, %s38
      %p40 = scmp.eq.s32.totalorder %s39, 0
      %s42 = sadd.s32 %s41, 1
      %s43 = scalar_select %p40, %s41, %s42
      %p46 = pneg %p40
      %p47 = scmp.eq.s32.totalorder %s10, 2
      %p48 = por %p46, %p47
      %p49 = scmp.ne.s32.totalorder %s41, %s44
      %p50 = scmp.eq.s32.totalorder %s10, 0
      %p51 = por %p49, %p50
      %p52 = scmp.ne.s32.totalorder %s41, %s44
      %p53 = scmp.eq.s32.totalorder %s15, 2
      %p54 = por %p52, %p53
      %p55 = scmp.ne.s32.totalorder %s44, %s45
      %p56 = scmp.eq.s32.totalorder %s15, 0
      %p57 = por %p55, %p56
      %p58 = scmp.ne.s32.totalorder %s44, %s45
      %p59 = scmp.eq.s32.totalorder %s16, 2
      %p60 = por %p58, %p59
      %p62 = scmp.ne.s32.totalorder %s45, %s61
      %p63 = scmp.eq.s32.totalorder %s16, 0
      %p64 = por %p62, %p63
      %s65 = ssub.s32 %s19, %s28
      %s66 = ssub.s32 %s18, %s32
      %s67 = sor.u32 %s65, %s66
      %p68 = scmp.eq.s32.totalorder %s67, 0
      %s70 = sadd.s32 %s69, 1
      %s71 = scalar_select %p68, %s69, %s70
      %p74 = pneg %p68
      %p75 = scmp.eq.s32.totalorder %s10, 2
      %p76 = por %p74, %p75
      %p77 = scmp.ne.s32.totalorder %s69, %s72
      %p78 = scmp.eq.s32.totalorder %s10, 0
      %p79 = por %p77, %p78
      %p80 = scmp.ne.s32.totalorder %s69, %s72
      %p81 = scmp.eq.s32.totalorder %s15, 2
      %p82 = por %p80, %p81
      %p83 = scmp.ne.s32.totalorder %s72, %s73
      %p84 = scmp.eq.s32.totalorder %s15, 0
      %p85 = por %p83, %p84
      %p86 = scmp.ne.s32.totalorder %s72, %s73
      %p87 = scmp.eq.s32.totalorder %s16, 2
      %p88 = por %p86, %p87
      %p90 = scmp.ne.s32.totalorder %s73, %s89
      %p91 = scmp.eq.s32.totalorder %s16, 0
      %p92 = por %p90, %p91
      %s93 = ssub.s32 %s18, %s32
      %p94 = scmp.eq.s32.totalorder %s93, 0
      %s96 = sadd.s32 %s95, 1
      %s97 = scalar_select %p94, %s95, %s96
      %p100 = pneg %p94
      %p101 = scmp.eq.s32.totalorder %s10, 2
      %p102 = por %p100, %p101
      %p103 = scmp.ne.s32.totalorder %s95, %s98
      %p104 = scmp.eq.s32.totalorder %s10, 0
      %p105 = por %p103, %p104
      %p106 = scmp.ne.s32.totalorder %s95, %s98
      %p107 = scmp.eq.s32.totalorder %s15, 2
      %p108 = por %p106, %p107
      %p109 = scmp.ne.s32.totalorder %s98, %s99
      %p110 = scmp.eq.s32.totalorder %s15, 0
      %p111 = por %p109, %p110
      %p112 = scmp.ne.s32.totalorder %s98, %s99
      %p113 = scmp.eq.s32.totalorder %s16, 2
      %p114 = por %p112, %p113
      %p116 = scmp.ne.s32.totalorder %s99, %s115
      %p117 = scmp.eq.s32.totalorder %s16, 0
      %p118 = por %p116, %p117
      %s119 = ssub.s32 %s18, %s32
      %p120 = scmp.eq.s32.totalorder %s119, 0
      %s122 = sadd.s32 %s121, 1
      %s123 = scalar_select %p120, %s121, %s122
      %p126 = pneg %p120
      %p127 = scmp.eq.s32.totalorder %s10, 2
      %p128 = por %p126, %p127
      %p129 = scmp.ne.s32.totalorder %s121, %s124
      %p130 = scmp.eq.s32.totalorder %s10, 0
      %p131 = por %p129, %p130
      %p132 = scmp.ne.s32.totalorder %s121, %s124
      %p133 = scmp.eq.s32.totalorder %s15, 2
      %p134 = por %p132, %p133
      %p135 = scmp.ne.s32.totalorder %s124, %s125
      %p136 = scmp.eq.s32.totalorder %s15, 0
      %p137 = por %p135, %p136
      %p138 = scmp.ne.s32.totalorder %s124, %s125
      %p139 = scmp.eq.s32.totalorder %s16, 2
      %p140 = por %p138, %p139
      %p142 = scmp.ne.s32.totalorder %s125, %s141
      %p143 = scmp.eq.s32.totalorder %s16, 0
      %p144 = por %p142, %p143
      %s145 = ssub.s32 %s17, %s36
      %s146 = ssub.s32 %s18, %s32
      %s147 = sor.u32 %s145, %s146
      %p148 = scmp.eq.s32.totalorder %s147, 0
      %s150 = sadd.s32 %s149, 1
      %s151 = scalar_select %p148, %s149, %s150
      %p154 = pneg %p148
      %p155 = scmp.eq.s32.totalorder %s10, 2
      %p156 = por %p154, %p155
      %p157 = scmp.ne.s32.totalorder %s149, %s152
      %p158 = scmp.eq.s32.totalorder %s10, 0
      %p159 = por %p157, %p158
      %p160 = scmp.ne.s32.totalorder %s149, %s152
      %p161 = scmp.eq.s32.totalorder %s15, 2
      %p162 = por %p160, %p161
      %p163 = scmp.ne.s32.totalorder %s152, %s153
      %p164 = scmp.eq.s32.totalorder %s15, 0
      %p165 = por %p163, %p164
      %p166 = scmp.ne.s32.totalorder %s152, %s153
      %p167 = scmp.eq.s32.totalorder %s16, 2
      %p168 = por %p166, %p167
      %p170 = scmp.ne.s32.totalorder %s153, %s169
      %p171 = scmp.eq.s32.totalorder %s16, 0
      %p172 = por %p170, %p171
      %p173 = scmp.le.s32.totalorder 1, %s10
      %p174 = scmp.lt.s32.totalorder %s10, 4
      %p175 = pnand %p173, %p174
      %p176 = pneg %p175
      // Predicated region
      $region9: #{scene_embed2_fwd.29} parent=5 // pred_check
        _
      $region10: #{scene_embed2_fwd.29} parent=5 // pred_check_branch
        %178 = sbr.rel (%p175) target = $region12
      $region11: #{scene_embed2_fwd.29} parent=5 // pred_region
        %s179 = ssub.s32 %s10, 1
        // Predicated region
        $region13: #{scene_embed2_fwd.29} parent=11 // pred_check
          %p180 = pneg %p111
        $region14: #{scene_embed2_fwd.29} parent=11 // pred_check_branch
          %182 = sbr.rel (%p180) target = $region16
        $region15: #{scene_embed2_fwd.29} parent=11 // pred_region
          %p183 = scmp.lt.s32.totalorder %s21, 0
          %s184 = scalar_select %p183, %s21, 0
          %s185 = scalar_lea.vmem %s2, %s184
        $region16: #{scene_embed2_fwd.29} parent=11 // pred_fallthru
          _
        // Predicated region
        $region17: #{scene_embed2_fwd.29} parent=11 // pred_check
          %p186 = pneg %p137
        $region18: #{scene_embed2_fwd.29} parent=11 // pred_check_branch
          %188 = sbr.rel (%p186) target = $region20
        $region19: #{scene_embed2_fwd.29} parent=11 // pred_region
          %p189 = scmp.lt.s32.totalorder %s21, 0
          %s190 = scalar_select %p189, %s21, 0
          %s191 = scalar_lea.vmem %s3, %s190
        $region20: #{scene_embed2_fwd.29} parent=11 // pred_fallthru
          _
      $region12: #{scene_embed2_fwd.29} parent=5 // pred_fallthru
        _
      %p192 = scmp.lt.s32.totalorder %s10, 3
      // Predicated region
      $region21: #{scene_embed2_fwd.29} parent=5 // pred_check
        %p193 = pneg %p192
      $region22: #{scene_embed2_fwd.29} parent=5 // pred_check_branch
        %195 = sbr.rel (%p193) target = $region24
      $region23: #{scene_embed2_fwd.29} parent=5 // pred_region
        // Predicated region
        $region25: #{scene_embed2_fwd.29} parent=23 // pred_check
          %p196 = pneg %p51
        $region26: #{scene_embed2_fwd.29} parent=23 // pred_check_branch
          %198 = sbr.rel (%p196) target = $region28
        $region27: #{scene_embed2_fwd.29} parent=23 // pred_region
          %s199 = sand.u32 %s41, 1
          %s200 = sand.u32 %s41, 1
          %s201 = smul.addr %s200, 32
          %s202 = scalar_lea.vmem [#allocation3], %s201
          %s203 = smul.u32 4, %s17
          %s204 = smul.u32 2, %s19
          %s205 = smul.addr %s203, 6
          %s206 = sadd.s32 %s204, %s205
          %s207 = smul.addr %s206, 4
          %s208 = scalar_lea.vmem %s0, %s207
          // Predicated region
          $region29: #{scene_embed2_fwd.29} parent=27 // pred_check
            _
          $region30: #{scene_embed2_fwd.29} parent=27 // pred_check_branch
            %210 = sbr.rel (0) target = $region32
          $region31: #{scene_embed2_fwd.29} parent=27 // pred_region
            // Predicated region
            $region33: #{scene_embed2_fwd.29} parent=31 // pred_check
              _
            $region34: #{scene_embed2_fwd.29} parent=31 // pred_check_branch
              %212 = sbr.rel (0) target = $region36
            $region35: #{scene_embed2_fwd.29} parent=31 // pred_region
              // Predicated region
              $region48: #{scene_embed2_fwd.29} parent=35 // pred_check
                _
              $region49: #{scene_embed2_fwd.29} parent=35 // pred_check_branch
                %233 = sbr.rel (0) target = $region51
              $region50: #{scene_embed2_fwd.29} parent=35 // pred_region
                loop: start=0, step=1, limit=1
                $region52: #{scene_embed2_fwd.29} parent=50 // loop_pre_header
                  _
                $region53: #{scene_embed2_fwd.29} parent=50 // loop_header
                  %s235 = sphi 0, %s239
                  %p236 = scmp.ge.s32.totalorder %s235, 1
                  %s240 = sphi %s208, %s208
                  %s241 = sphi %s202, %s202
                $region54: #{scene_embed2_fwd.29} parent=50 // loop_header_branch
                  %238 = sbr.rel (%p236) target = $region58
                $region55: #{scene_embed2_fwd.29} parent=50 // loop_body
                  %v242 = vld [vmem:[%s240] sm:$0xff]
                  %243 = vst [vmem:[%s241] sm:$0xff] %v242
                  %v244 = vld [vmem:[%s240 + $0x18] sm:$0xff]
                  %245 = vst [vmem:[%s241 + $0x8] sm:$0xff] %v244
                  %v246 = vld [vmem:[%s240 + $0x30] sm:$0xff]
                  %247 = vst [vmem:[%s241 + $0x10] sm:$0xff] %v246
                  %v248 = vld [vmem:[%s240 + $0x48] sm:$0xff]
                  %249 = vst [vmem:[%s241 + $0x18] sm:$0xff] %v248
                $region56: #{scene_embed2_fwd.29} parent=50 // loop_footer
                  %s239 = sadd.s32 1, %s235
                $region57: #{scene_embed2_fwd.29} parent=50 // loop_footer_branch
                  %234 = sbr.rel target = $region53
                $region58: #{scene_embed2_fwd.29} parent=50 // loop_exit
                  _
              $region51: #{scene_embed2_fwd.29} parent=35 // pred_fallthru
                _
              // Predicated region
              $region59: #{scene_embed2_fwd.29} parent=35 // pred_check
                _
              $region60: #{scene_embed2_fwd.29} parent=35 // pred_check_branch
                %251 = sbr.rel target = $region62
              $region61: #{scene_embed2_fwd.29} parent=35 // pred_region
                _
              $region62: #{scene_embed2_fwd.29} parent=35 // pred_fallthru
                _
            $region36: #{scene_embed2_fwd.29} parent=31 // pred_fallthru
              _
            // Predicated region
            $region37: #{scene_embed2_fwd.29} parent=31 // pred_check
              _
            $region38: #{scene_embed2_fwd.29} parent=31 // pred_check_branch
              %214 = sbr.rel target = $region40
            $region39: #{scene_embed2_fwd.29} parent=31 // pred_region
              loop: start=0, step=1, limit=1
              $region41: #{scene_embed2_fwd.29} parent=39 // loop_pre_header
                _
              $region42: #{scene_embed2_fwd.29} parent=39 // loop_header
                %s217 = sphi 0, %s221
                %p218 = scmp.ge.s32.totalorder %s217, 1
                %s222 = sphi %s208, %s208
                %s223 = sphi %s202, %s202
              $region43: #{scene_embed2_fwd.29} parent=39 // loop_header_branch
                %220 = sbr.rel (%p218) target = $region47
              $region44: #{scene_embed2_fwd.29} parent=39 // loop_body
                %v224 = vld [vmem:[%s222] sm:$0xff]
                %225 = vst [vmem:[%s223] sm:$0xff] %v224
                %v226 = vld [vmem:[%s222 + $0x18] sm:$0xff]
                %227 = vst [vmem:[%s223 + $0x8] sm:$0xff] %v226
                %v228 = vld [vmem:[%s222 + $0x30] sm:$0xff]
                %229 = vst [vmem:[%s223 + $0x10] sm:$0xff] %v228
                %v230 = vld [vmem:[%s222 + $0x48] sm:$0xff]
                %231 = vst [vmem:[%s223 + $0x18] sm:$0xff] %v230
              $region45: #{scene_embed2_fwd.29} parent=39 // loop_footer
                %s221 = sadd.s32 1, %s217
              $region46: #{scene_embed2_fwd.29} parent=39 // loop_footer_branch
                %216 = sbr.rel target = $region42
              $region47: #{scene_embed2_fwd.29} parent=39 // loop_exit
                _
            $region40: #{scene_embed2_fwd.29} parent=31 // pred_fallthru
              _
          $region32: #{scene_embed2_fwd.29} parent=27 // pred_fallthru
            _
          %252 = vnop
        $region28: #{scene_embed2_fwd.29} parent=23 // pred_fallthru
          _
        // Predicated region
        $region63: #{scene_embed2_fwd.29} parent=23 // pred_check
          %p253 = pneg %p79
        $region64: #{scene_embed2_fwd.29} parent=23 // pred_check_branch
          %255 = sbr.rel (%p253) target = $region66
        $region65: #{scene_embed2_fwd.29} parent=23 // pred_region
          %s256 = smul.u32 32, %s19
          %p257 = scmp.lt.s32.totalorder %s256, 95
          %s258 = scalar_select %p257, %s256, 95
          %p259 = scmp.lt.s32.totalorder %s18, 0
          %s260 = scalar_select %p259, %s18, 0
          %s261 = sadd.s32 %s260, %s258
          %s262 = smul.addr %s261, 4
          %s263 = scalar_lea.vmem %s1, %s262
          %s264 = smul.u32 32, %s19
        $region66: #{scene_embed2_fwd.29} parent=23 // pred_fallthru
          _
      $region24: #{scene_embed2_fwd.29} parent=5 // pred_fallthru
        _
      %p265 = scmp.le.s32.totalorder 1, %s10
      %p266 = scmp.lt.s32.totalorder %s10, 4
      %p267 = pnand %p265, %p266
      %p268 = pneg %p267
      // Predicated region
      $region67: #{scene_embed2_fwd.29} parent=5 // pred_check
        _
      $region68: #{scene_embed2_fwd.29} parent=5 // pred_check_branch
        %270 = sbr.rel (%p267) target = $region70
      $region69: #{scene_embed2_fwd.29} parent=5 // pred_region
        %s271 = ssub.s32 %s10, 1
        %s272 = sand.u32 %s44, 1
        %s273 = sand.u32 %s44, 1
        %s274 = smul.addr %s273, 32
        %s275 = scalar_lea.vmem [#allocation3], %s274
        // Predicated region
        $region71: #{scene_embed2_fwd.29} parent=69 // pred_check
          %p276 = pneg %p57
        $region72: #{scene_embed2_fwd.29} parent=69 // pred_check_branch
          %278 = sbr.rel (%p276) target = $region74
        $region73: #{scene_embed2_fwd.29} parent=69 // pred_region
          _
        $region74: #{scene_embed2_fwd.29} parent=69 // pred_fallthru
          _
        %s279 = sand.u32 %s44, 1
        %s280 = sand.u32 %s44, 1
        %s281 = smul.addr %s280, 32
        %s282 = scalar_lea.vmem [#allocation3], %s281
        %p283 = pneg %p57
        %p284 = pneg %p54
        %s285 = smul.u32 32, %s22
        %p286 = scmp.lt.s32.totalorder %s285, 95
        %s287 = scalar_select %p286, %s285, 95
        %p288 = scmp.lt.s32.totalorder %s21, 0
        %s289 = scalar_select %p288, %s21, 0
        %s290 = sadd.s32 %s289, %s287
        %s291 = smul.addr %s290, 4
        %s292 = scalar_lea.vmem %s1, %s291
        %p293 = pneg %p85
        %p294 = pneg %p82
        %p295 = scmp.lt.s32.totalorder %s21, 0
        %s296 = scalar_select %p295, %s21, 0
        %s297 = scalar_lea.vmem %s2, %s296
        %p298 = pneg %p111
        %p299 = pneg %p108
        %p300 = scmp.lt.s32.totalorder %s21, 0
        %s301 = scalar_select %p300, %s21, 0
        %s302 = scalar_lea.vmem %s3, %s301
        %p303 = pneg %p137
        %p304 = pneg %p134
        %p305 = pneg %p165
        %p306 = pneg %p162
        %s307 = smul.u32 4, %s20
        %p308 = scmp.lt.s32.totalorder %s307, 3
        %s309 = scalar_select %p308, %s307, 3
        %p310 = scmp.lt.s32.totalorder %s21, 0
        %s311 = scalar_select %p310, %s21, 0
        %s312 = sadd.s32 %s311, %s309
        %s313 = smul.addr %s312, 4
        %s314 = scalar_lea.vmem %s4, %s313
        %s315 = smul.u32 4, %s20
        %s316 = smul.u32 2, %s22
        %s317 = smul.u32 32, %s22
        %p318 = scmp.lt.s32.totalorder %s317, 95
        %s319 = scalar_select %p318, %s317, 95
        %p320 = scmp.lt.s32.totalorder %s21, 0
        %s321 = scalar_select %p320, %s21, 0
        %s322 = sadd.s32 %s321, %s319
        %s323 = smul.addr %s322, 4
        %s324 = scalar_lea.vmem %s1, %s323
        %s325 = smul.u32 32, %s22
        %p326 = scmp.lt.s32.totalorder %s21, 0
        %s327 = scalar_select %p326, %s21, 0
        %s328 = scalar_lea.vmem %s2, %s327
        %p329 = scmp.lt.s32.totalorder %s21, 0
        %s330 = scalar_select %p329, %s21, 0
        %s331 = scalar_lea.vmem %s3, %s330
        %s332 = smul.u32 4, %s20
        %p333 = scmp.lt.s32.totalorder %s332, 3
        %s334 = scalar_select %p333, %s332, 3
        %p335 = scmp.lt.s32.totalorder %s21, 0
        %s336 = scalar_select %p335, %s21, 0
        %s337 = sadd.s32 %s336, %s334
        %s338 = smul.addr %s337, 4
        %s339 = scalar_lea.vmem %s4, %s338
        %s340 = smul.u32 4, %s20
        %p342 = scmp.eq.s32.totalorder %s22, 0
        // Predicated region
        $region75: #{scene_embed2_fwd.29} parent=69 // pred_check
          %p343 = pneg %p342
        $region76: #{scene_embed2_fwd.29} parent=69 // pred_check_branch
          %345 = sbr.rel (%p343) target = $region78
        $region77: #{scene_embed2_fwd.29} parent=69 // pred_region
          %346 = vst [vmem:[#allocation2] sm:$0xff] 0.0
          %347 = vst [vmem:[#allocation2 + $0x8] sm:$0xff] 0.0
          %348 = vst [vmem:[#allocation2 + $0x10] sm:$0xff] 0.0
          %349 = vst [vmem:[#allocation2 + $0x18] sm:$0xff] 0.0
        $region78: #{scene_embed2_fwd.29} parent=69 // pred_fallthru
          _
        %v350 = vld [vmem:[#allocation2] sm:$0xff]
        %v351 = vld [vmem:[#allocation2 + $0x8] sm:$0xff]
        %v352 = vld [vmem:[#allocation2 + $0x10] sm:$0xff]
        %v353 = vld [vmem:[#allocation2 + $0x18] sm:$0xff]
        %v354 = vld [vmem:[%s275] sm:$0xff]
        %v355 = vld [vmem:[%s275 + $0x8] sm:$0xff]
        %v356 = vld [vmem:[%s275 + $0x10] sm:$0xff]
        %v357 = vld [vmem:[%s275 + $0x18] sm:$0xff]
        %v358 = vld [vmem:[%s324] sm:$0xf]
        %v359 = vld [vmem:[%s324 + $0x4] sm:$0xf]
        %v360 = vld [vmem:[%s324 + $0x8] sm:$0xf]
        %v361 = vld [vmem:[%s324 + $0xc] sm:$0xf]
        %v362 = vld [vmem:[%s324 + $0x10] sm:$0xf]
        %v363 = vld [vmem:[%s324 + $0x14] sm:$0xf]
        %v364 = vld [vmem:[%s324 + $0x18] sm:$0xf]
        %v365 = vld [vmem:[%s324 + $0x1c] sm:$0xf]
        %v366 = vld [vmem:[%s324 + $0x20] sm:$0xf]
        %v367 = vld [vmem:[%s324 + $0x24] sm:$0xf]
        %v368 = vld [vmem:[%s324 + $0x28] sm:$0xf]
        %v369 = vld [vmem:[%s324 + $0x2c] sm:$0xf]
        %v370 = vld [vmem:[%s324 + $0x30] sm:$0xf]
        %v371 = vld [vmem:[%s324 + $0x34] sm:$0xf]
        %v372 = vld [vmem:[%s324 + $0x38] sm:$0xf]
        %v373 = vld [vmem:[%s324 + $0x3c] sm:$0xf]
        %v374 = vld [vmem:[%s324 + $0x40] sm:$0xf]
        %v375 = vld [vmem:[%s324 + $0x44] sm:$0xf]
        %v376 = vld [vmem:[%s324 + $0x48] sm:$0xf]
        %v377 = vld [vmem:[%s324 + $0x4c] sm:$0xf]
        %v378 = vld [vmem:[%s324 + $0x50] sm:$0xf]
        %v379 = vld [vmem:[%s324 + $0x54] sm:$0xf]
        %v380 = vld [vmem:[%s324 + $0x58] sm:$0xf]
        %v381 = vld [vmem:[%s324 + $0x5c] sm:$0xf]
        %v382 = vld [vmem:[%s324 + $0x60] sm:$0xf]
        %v383 = vld [vmem:[%s324 + $0x64] sm:$0xf]
        %v384 = vld [vmem:[%s324 + $0x68] sm:$0xf]
        %v385 = vld [vmem:[%s324 + $0x6c] sm:$0xf]
        %v386 = vld [vmem:[%s324 + $0x70] sm:$0xf]
        %v387 = vld [vmem:[%s324 + $0x74] sm:$0xf]
        %v388 = vld [vmem:[%s324 + $0x78] sm:$0xf]
        %v389 = vld [vmem:[%s324 + $0x7c] sm:$0xf]
        %v394 = vunpack.c.l.b16 %v354
        %v395 = vunpack.c.h.b16 %v354
        %v396 = vunpack.c.l.b16 %v355
        %v397 = vunpack.c.h.b16 %v355
        %v398 = vunpack.c.l.b16 %v356
        %v399 = vunpack.c.h.b16 %v356
        %v400 = vunpack.c.l.b16 %v357
        %v401 = vunpack.c.h.b16 %v357
        %v402 = vpack.c.b16 %v396, %v394
        %v403 = vpack.c.b16 %v397, %v395
        %v404 = vpack.c.b16 %v400, %v398
        %v405 = vpack.c.b16 %v401, %v399
        %v442 = vunpack.c.l.b16 %v358
        %v443 = vunpack.c.l.b16 %v359
        %v444 = vunpack.c.l.b16 %v360
        %v445 = vunpack.c.l.b16 %v361
        %v446 = vunpack.c.l.b16 %v362
        %v447 = vunpack.c.l.b16 %v363
        %v448 = vunpack.c.l.b16 %v364
        %v449 = vunpack.c.l.b16 %v365
        %v450 = vunpack.c.l.b16 %v366
        %v451 = vunpack.c.l.b16 %v367
        %v452 = vunpack.c.l.b16 %v368
        %v453 = vunpack.c.l.b16 %v369
        %v454 = vunpack.c.l.b16 %v370
        %v455 = vunpack.c.l.b16 %v371
        %v456 = vunpack.c.l.b16 %v372
        %v457 = vunpack.c.l.b16 %v373
        %v458 = vunpack.c.l.b16 %v374
        %v459 = vunpack.c.l.b16 %v375
        %v460 = vunpack.c.l.b16 %v376
        %v461 = vunpack.c.l.b16 %v377
        %v462 = vunpack.c.l.b16 %v378
        %v463 = vunpack.c.l.b16 %v379
        %v464 = vunpack.c.l.b16 %v380
        %v465 = vunpack.c.l.b16 %v381
        %v466 = vunpack.c.l.b16 %v382
        %v467 = vunpack.c.l.b16 %v383
        %v468 = vunpack.c.l.b16 %v384
        %v469 = vunpack.c.l.b16 %v385
        %v470 = vunpack.c.l.b16 %v386
        %v471 = vunpack.c.l.b16 %v387
        %v472 = vunpack.c.l.b16 %v388
        %v473 = vunpack.c.l.b16 %v389
        %v474 = vpack.c.b16 %v443, %v442
        %v475 = vpack.c.b16 %v445, %v444
        %v476 = vpack.c.b16 %v447, %v446
        %v477 = vpack.c.b16 %v449, %v448
        %v478 = vpack.c.b16 %v451, %v450
        %v479 = vpack.c.b16 %v453, %v452
        %v480 = vpack.c.b16 %v455, %v454
        %v481 = vpack.c.b16 %v457, %v456
        %v482 = vpack.c.b16 %v459, %v458
        %v483 = vpack.c.b16 %v461, %v460
        %v484 = vpack.c.b16 %v463, %v462
        %v485 = vpack.c.b16 %v465, %v464
        %v486 = vpack.c.b16 %v467, %v466
        %v487 = vpack.c.b16 %v469, %v468
        %v488 = vpack.c.b16 %v471, %v470
        %v489 = vpack.c.b16 %v473, %v472
        %506 = vmatprep.subr.bf16.mxu0 0
        %507 = vmatpush1.bf16.msra.mxu0 %v474
        %508 = vmatprep.subr.bf16.mxu0 0
        %509 = vmatpush1.bf16.msra.mxu0 %v475
        %510 = vmatprep.subr.bf16.mxu0 0
        %511 = vmatpush1.bf16.msra.mxu0 %v476
        %512 = vmatprep.subr.bf16.mxu0 0
        %513 = vmatpush1.bf16.msra.mxu0 %v477
        %514 = vmatprep.subr.bf16.mxu0 0
        %515 = vmatpush1.bf16.msra.mxu0 %v478
        %516 = vmatprep.subr.bf16.mxu0 0
        %517 = vmatpush1.bf16.msra.mxu0 %v479
        %518 = vmatprep.subr.bf16.mxu0 0
        %519 = vmatpush1.bf16.msra.mxu0 %v480
        %520 = vmatprep.subr.bf16.mxu0 0
        %521 = vmatpush1.bf16.msra.mxu0 %v481
        %522 = vmatprep.subr.bf16.mxu0 0
        %523 = vmatpush1.bf16.msra.mxu0 %v482
        %524 = vmatprep.subr.bf16.mxu0 0
        %525 = vmatpush1.bf16.msra.mxu0 %v483
        %526 = vmatprep.subr.bf16.mxu0 0
        %527 = vmatpush1.bf16.msra.mxu0 %v484
        %528 = vmatprep.subr.bf16.mxu0 0
        %529 = vmatpush1.bf16.msra.mxu0 %v485
        %530 = vmatprep.subr.bf16.mxu0 0
        %531 = vmatpush1.bf16.msra.mxu0 %v486
        %532 = vmatprep.subr.bf16.mxu0 0
        %533 = vmatpush1.bf16.msra.mxu0 %v487
        %534 = vmatprep.subr.bf16.mxu0 0
        %535 = vmatpush1.bf16.msra.mxu0 %v488
        %536 = vmatprep.subr.bf16.mxu0 0
        %537 = vmatpush1.bf16.msra.mxu0 %v489
        %538 = vmatprep.mubr.bf16.mxu0 %v403
        %539 = vmatmul.mubr.bf16.gmra.mrb[0].mxu0 %v402
        %v540 = vpop.f32.mrb[0].mxu0
        %v541 = vadd.f32 0.0, %v540
        %v542 = vpop.f32.mrb[0].mxu0
        %v543 = vpop.f32.mrb[0].mxu0
        %v544 = vadd.f32 0.0, %v543
        %v545 = vpop.f32.mrb[0].mxu0
        %546 = vmatprep.mubr.bf16.mxu0 %v405
        %547 = vmatmul.mubr.bf16.gmra.mrb[0].mxu0 %v404
        %v548 = vpop.f32.mrb[0].mxu0
        %v549 = vadd.f32 0.0, %v548
        %v550 = vpop.f32.mrb[0].mxu0
        %v551 = vpop.f32.mrb[0].mxu0
        %v552 = vadd.f32 0.0, %v551
        %v553 = vpop.f32.mrb[0].mxu0
        %554 = vdwg.mxu0
        %v555 = vadd.f32 %v350, %v541
        %v556 = vadd.f32 %v351, %v544
        %v557 = vadd.f32 %v352, %v549
        %v558 = vadd.f32 %v353, %v552
        %559 = vst [vmem:[#allocation2] sm:$0xff] %v555
        %560 = vst [vmem:[#allocation2 + $0x8] sm:$0xff] %v556
        %561 = vst [vmem:[#allocation2 + $0x10] sm:$0xff] %v557
        %562 = vst [vmem:[#allocation2 + $0x18] sm:$0xff] %v558
        %p563 = scmp.eq.s32.totalorder %s22, 2
        // Predicated region
        $region79: #{scene_embed2_fwd.29} parent=69 // pred_check
          %p564 = pneg %p563
        $region80: #{scene_embed2_fwd.29} parent=69 // pred_check_branch
          %566 = sbr.rel (%p564) target = $region82
        $region81: #{scene_embed2_fwd.29} parent=69 // pred_region
          %v567 = vld [vmem:[#allocation2] sm:$0xff]
          %v568 = vld [vmem:[#allocation2 + $0x8] sm:$0xff]
          %v569 = vld [vmem:[#allocation2 + $0x10] sm:$0xff]
          %v570 = vld [vmem:[#allocation2 + $0x18] sm:$0xff]
          %v571 = vld [vmem:[%s328] sm:$0x1]
          %v573 = vlaneseq
          %v574 = vshrl.u32 %v573, 7
          %v575 = vsub.s32 0, %v574
          %v576 = vrot.slane %v571, %v575
          %v578 = vmul.f32 %v567, %v576
          %v579 = vmul.f32 %v568, %v576
          %v580 = vmul.f32 %v569, %v576
          %v581 = vmul.f32 %v570, %v576
          %v582 = vld [vmem:[%s331] sm:$0x1]
          %v584 = vlaneseq
          %v585 = vshrl.u32 %v584, 7
          %v586 = vsub.s32 0, %v585
          %v587 = vrot.slane %v582, %v586
          %v589 = vadd.f32 %v578, %v587
          %v590 = vadd.f32 %v579, %v587
          %v591 = vadd.f32 %v580, %v587
          %v592 = vadd.f32 %v581, %v587
          %v593 = vmax.f32 %v589, 0.0
          %v594 = vmax.f32 %v590, 0.0
          %v595 = vmax.f32 %v591, 0.0
          %v596 = vmax.f32 %v592, 0.0
          %v597 = vpack.c.bf16 %v594, %v593
          %v598 = vpack.c.bf16 %v596, %v595
          %v601 = vunpack.c.l.b16 %v597
          %v602 = vunpack.c.h.b16 %v597
          %v603 = vunpack.c.l.b16 %v598
          %v604 = vunpack.c.h.b16 %v598
          %v605 = vpack.c.b16 %v601, %v601
          %v606 = vpack.c.b16 %v602, %v602
          %v607 = vpack.c.b16 %v603, %v603
          %v608 = vpack.c.b16 %v604, %v604
          %613 = vst [vmem:[%s339] sm:$0xf] %v605
          %614 = vst [vmem:[%s339 + $0x4] sm:$0xf] %v606
          %615 = vst [vmem:[%s339 + $0x8] sm:$0xf] %v607
          %616 = vst [vmem:[%s339 + $0xc] sm:$0xf] %v608
        $region82: #{scene_embed2_fwd.29} parent=69 // pred_fallthru
          _
        %s617 = smul.u32 4, %s20
        %p618 = scmp.lt.s32.totalorder %s617, 3
        %s619 = scalar_select %p618, %s617, 3
        %p620 = scmp.lt.s32.totalorder %s21, 0
        %s621 = scalar_select %p620, %s21, 0
        %s622 = sadd.s32 %s621, %s619
        %s623 = smul.addr %s622, 4
        %s624 = scalar_lea.vmem %s4, %s623
        // Predicated region
        $region83: #{scene_embed2_fwd.29} parent=69 // pred_check
          %p625 = pneg %p162
        $region84: #{scene_embed2_fwd.29} parent=69 // pred_check_branch
          %627 = sbr.rel (%p625) target = $region86
        $region85: #{scene_embed2_fwd.29} parent=69 // pred_region
          %s628 = smul.u32 4, %s20
        $region86: #{scene_embed2_fwd.29} parent=69 // pred_fallthru
          _
        // Predicated region
        $region87: #{scene_embed2_fwd.29} parent=69 // pred_check
          %p629 = pneg %p162
        $region88: #{scene_embed2_fwd.29} parent=69 // pred_check_branch
          %631 = sbr.rel (%p629) target = $region90
        $region89: #{scene_embed2_fwd.29} parent=69 // pred_region
          %s632 = smul.u32 4, %s20
          %p633 = scmp.lt.s32.totalorder %s632, 3
          %s634 = scalar_select %p633, %s632, 3
          %p635 = scmp.lt.s32.totalorder %s21, 0
          %s636 = scalar_select %p635, %s21, 0
          %s637 = sadd.s32 %s636, %s634
          %s638 = smul.addr %s637, 4
          %s639 = scalar_lea.vmem %s4, %s638
        $region90: #{scene_embed2_fwd.29} parent=69 // pred_fallthru
          _
      $region70: #{scene_embed2_fwd.29} parent=5 // pred_fallthru
        _
      %p640 = scmp.le.s32.totalorder 2, %s10
      // Predicated region
      $region91: #{scene_embed2_fwd.29} parent=5 // pred_check
        %p641 = pneg %p640
      $region92: #{scene_embed2_fwd.29} parent=5 // pred_check_branch
        %643 = sbr.rel (%p641) target = $region94
      $region93: #{scene_embed2_fwd.29} parent=5 // pred_region
        %s644 = ssub.s32 %s10, 2
      $region94: #{scene_embed2_fwd.29} parent=5 // pred_fallthru
        _
    $region6: #{scene_embed2_fwd.29} parent=1 // loop_footer
      %s14 = sadd.s32 1, %s10
    $region7: #{scene_embed2_fwd.29} parent=1 // loop_footer_branch
      %9 = sbr.rel target = $region3
    $region8: #{scene_embed2_fwd.29} parent=1 // loop_exit
      _

// kernel: scene_embed2_fwd.32
$region0: #{scene_embed2_fwd.32}
  #allocation0 [shape = 'u32[]', space=smem, size = 0x4, offset = 0x4, fixed_abs, tag = 'smem constant byte address 0x4 - core index']
  #allocation1 [shape = 'u32[144,128]{1,0:T(1,128)}', space=vmem, size = 0x12000, scoped, tag = 'internal scratch']
  %s0 = inlined_call_operand.vmem [shape: bf16[2,2,2,2,128], index: 0, kind: input, shape index: {}]
  %s1 = inlined_call_operand.vmem [shape: bf16[2,2,2,64], index: 1, kind: output, shape index: {}]
  %s2 = sld [smem:[#allocation0]]
  $region37: #{scene_embed2_fwd.32} parent=0
    _
  %s4 = ssub.s32 1, %s2
  %s5 = scalar_select 0, %s4, %s2
  loop: start=0, step=1, limit=4
  $region2: #{scene_embed2_fwd.32} parent=0 // loop_pre_header
    _
  $region3: #{scene_embed2_fwd.32} parent=0 // loop_header
    %s7 = sphi 0, %s11
    %p8 = scmp.ge.s32.totalorder %s7, 4
    %s14 = sphi 0, %s26
    %s15 = sphi 0, %s22
    %s16 = sphi 0, %s14
    %s17 = sphi 0, %s15
    %s18 = sphi 0, %s16
    %s19 = sphi 0, %s17
    %s31 = sphi 0, %s33
    %s34 = sphi 0, %s31
    %s35 = sphi 0, %s34
    %s51 = sphi 0, %s35
    %s59 = sphi 0, %s61
    %s62 = sphi 0, %s59
    %s63 = sphi 0, %s62
    %s79 = sphi 0, %s63
  $region4: #{scene_embed2_fwd.32} parent=0 // loop_header_branch
    %10 = sbr.rel (%p8) target = $region8
  $region5: #{scene_embed2_fwd.32} parent=0 // loop_body
    %s12 = ssub.s32 %s7, 1
    %s13 = ssub.s32 %s7, 2
    %s20 = sadd.s32 1, %s15
    %p21 = scmp.ge.s32.totalorder %s20, 1
    %s22 = scalar_select %p21, 0, %s20
    %s23 = sadd.s32 1, %s14
    %s24 = scalar_select %p21, %s23, %s14
    %p25 = scmp.ge.s32.totalorder %s24, 2
    %s26 = scalar_select %p25, 0, %s24
    %s27 = ssub.s32 %s14, %s26
    %s28 = ssub.s32 %s15, %s22
    %s29 = sor.u32 %s27, %s28
    %p30 = scmp.eq.s32.totalorder %s29, 0
    %s32 = sadd.s32 %s31, 1
    %s33 = scalar_select %p30, %s31, %s32
    %p36 = pneg %p30
    %p37 = scmp.eq.s32.totalorder %s7, 1
    %p38 = por %p36, %p37
    %p39 = scmp.ne.s32.totalorder %s31, %s34
    %p40 = scmp.eq.s32.totalorder %s7, 0
    %p41 = por %p39, %p40
    %p42 = scmp.ne.s32.totalorder %s31, %s34
    %p43 = scmp.eq.s32.totalorder %s12, 1
    %p44 = por %p42, %p43
    %p45 = scmp.ne.s32.totalorder %s34, %s35
    %p46 = scmp.eq.s32.totalorder %s12, 0
    %p47 = por %p45, %p46
    %p48 = scmp.ne.s32.totalorder %s34, %s35
    %p49 = scmp.eq.s32.totalorder %s13, 1
    %p50 = por %p48, %p49
    %p52 = scmp.ne.s32.totalorder %s35, %s51
    %p53 = scmp.eq.s32.totalorder %s13, 0
    %p54 = por %p52, %p53
    %s55 = ssub.s32 %s14, %s26
    %s56 = ssub.s32 %s15, %s22
    %s57 = sor.u32 %s55, %s56
    %p58 = scmp.eq.s32.totalorder %s57, 0
    %s60 = sadd.s32 %s59, 1
    %s61 = scalar_select %p58, %s59, %s60
    %p64 = pneg %p58
    %p65 = scmp.eq.s32.totalorder %s7, 1
    %p66 = por %p64, %p65
    %p67 = scmp.ne.s32.totalorder %s59, %s62
    %p68 = scmp.eq.s32.totalorder %s7, 0
    %p69 = por %p67, %p68
    %p70 = scmp.ne.s32.totalorder %s59, %s62
    %p71 = scmp.eq.s32.totalorder %s12, 1
    %p72 = por %p70, %p71
    %p73 = scmp.ne.s32.totalorder %s62, %s63
    %p74 = scmp.eq.s32.totalorder %s12, 0
    %p75 = por %p73, %p74
    %p76 = scmp.ne.s32.totalorder %s62, %s63
    %p77 = scmp.eq.s32.totalorder %s13, 1
    %p78 = por %p76, %p77
    %p80 = scmp.ne.s32.totalorder %s63, %s79
    %p81 = scmp.eq.s32.totalorder %s13, 0
    %p82 = por %p80, %p81
    %p83 = scmp.le.s32.totalorder 1, %s7
    %p84 = scmp.lt.s32.totalorder %s7, 3
    %p85 = pnand %p83, %p84
    %p86 = pneg %p85
    // Predicated region
    $region9: #{scene_embed2_fwd.32} parent=5 // pred_check
      _
    $region10: #{scene_embed2_fwd.32} parent=5 // pred_check_branch
      %88 = sbr.rel (%p85) target = $region12
    $region11: #{scene_embed2_fwd.32} parent=5 // pred_region
      %s89 = ssub.s32 %s7, 1
    $region12: #{scene_embed2_fwd.32} parent=5 // pred_fallthru
      _
    %p90 = scmp.lt.s32.totalorder %s7, 2
    // Predicated region
    $region13: #{scene_embed2_fwd.32} parent=5 // pred_check
      %p91 = pneg %p90
    $region14: #{scene_embed2_fwd.32} parent=5 // pred_check_branch
      %93 = sbr.rel (%p91) target = $region16
    $region15: #{scene_embed2_fwd.32} parent=5 // pred_region
      // Predicated region
      $region17: #{scene_embed2_fwd.32} parent=15 // pred_check
        %p94 = pneg %p41
      $region18: #{scene_embed2_fwd.32} parent=15 // pred_check_branch
        %96 = sbr.rel (%p94) target = $region20
      $region19: #{scene_embed2_fwd.32} parent=15 // pred_region
        %s97 = smul.u32 2, %s15
        %p98 = scmp.lt.s32.totalorder %s14, 1
        %s99 = scalar_select %p98, %s14, 1
        %p100 = scmp.lt.s32.totalorder %s97, 1
        %s101 = scalar_select %p100, %s97, 1
        %s102 = smul.addr %s101, 2
        %s103 = smul.addr %s99, 4
        %s104 = sadd.s32 %s102, %s103
        %s105 = scalar_lea.vmem %s0, %s104
        %s106 = smul.u32 2, %s15
      $region20: #{scene_embed2_fwd.32} parent=15 // pred_fallthru
        _
    $region16: #{scene_embed2_fwd.32} parent=5 // pred_fallthru
      _
    %p107 = scmp.le.s32.totalorder 1, %s7
    %p108 = scmp.lt.s32.totalorder %s7, 3
    %p109 = pnand %p107, %p108
    %p110 = pneg %p109
    // Predicated region
    $region21: #{scene_embed2_fwd.32} parent=5 // pred_check
      _
    $region22: #{scene_embed2_fwd.32} parent=5 // pred_check_branch
      %112 = sbr.rel (%p109) target = $region24
    $region23: #{scene_embed2_fwd.32} parent=5 // pred_region
      %s113 = ssub.s32 %s7, 1
      %s114 = smul.u32 2, %s17
      %p115 = scmp.lt.s32.totalorder %s16, 1
      %s116 = scalar_select %p115, %s16, 1
      %p117 = scmp.lt.s32.totalorder %s114, 1
      %s118 = scalar_select %p117, %s114, 1
      %s119 = smul.addr %s118, 2
      %s120 = smul.addr %s116, 4
      %s121 = sadd.s32 %s119, %s120
      %s122 = scalar_lea.vmem %s0, %s121
      %p123 = pneg %p47
      %p124 = pneg %p44
      %p125 = pneg %p75
      %p126 = pneg %p72
      %s127 = smul.u32 2, %s17
      %p128 = scmp.lt.s32.totalorder %s16, 1
      %s129 = scalar_select %p128, %s16, 1
      %p130 = scmp.lt.s32.totalorder %s127, 1
      %s131 = scalar_select %p130, %s127, 1
      %s132 = smul.addr %s129, 2
      %s133 = sadd.s32 %s131, %s132
      %s134 = scalar_lea.vmem %s1, %s133
      %s135 = smul.u32 2, %s17
      %p136 = scmp.lt.s32.totalorder %s16, 1
      %s137 = scalar_select %p136, %s16, 1
      %p138 = scmp.lt.s32.totalorder %s135, 1
      %s139 = scalar_select %p138, %s135, 1
      %s140 = smul.addr %s139, 2
      %s141 = smul.addr %s137, 4
      %s142 = sadd.s32 %s140, %s141
      %s143 = scalar_lea.vmem %s0, %s142
      %s144 = smul.u32 2, %s17
      %s145 = smul.u32 2, %s17
      %p146 = scmp.lt.s32.totalorder %s16, 1
      %s147 = scalar_select %p146, %s16, 1
      %p148 = scmp.lt.s32.totalorder %s145, 1
      %s149 = scalar_select %p148, %s145, 1
      %s150 = smul.addr %s147, 2
      %s151 = sadd.s32 %s149, %s150
      %s152 = scalar_lea.vmem %s1, %s151
      %s153 = smul.u32 2, %s17
      %v154 = vld [vmem:[%s143] sm:$0x1]
      %v155 = vld [vmem:[%s143 + $0x2] sm:$0x1]
      %s156 = scalar_lea.vmem %s143, 1
      %v157 = vld [vmem:[%s156] sm:$0x1]
      %v158 = vld [vmem:[%s156 + $0x2] sm:$0x1]
      %v159 = vmax.bf16 %v154, %v157
      %v160 = vmax.bf16 %v155, %v158
      %163 = vrot.lane.b32.xlu0 %v159, 64
      %v164 = vpop.permute.xlu0 %163
      %165 = vrot.lane.b32.xlu0 %v160, 64
      %v166 = vpop.permute.xlu0 %165
      %v169 = vmax.bf16 %v159, %v164
      %v170 = vmax.bf16 %v160, %v166
      %vm171 = vcmask 516096
      %172 = vst.msk [vmem:[%s152] sm:$0x1] %vm171, %v169
      %173 = vst.msk [vmem:[%s152 + $0x1] sm:$0x1] %vm171, %v170
      %s174 = smul.u32 2, %s17
      %p175 = scmp.lt.s32.totalorder %s16, 1
      %s176 = scalar_select %p175, %s16, 1
      %p177 = scmp.lt.s32.totalorder %s174, 1
      %s178 = scalar_select %p177, %s174, 1
      %s179 = smul.addr %s176, 2
      %s180 = sadd.s32 %s178, %s179
      %s181 = scalar_lea.vmem %s1, %s180
      // Predicated region
      $region25: #{scene_embed2_fwd.32} parent=23 // pred_check
        %p182 = pneg %p72
      $region26: #{scene_embed2_fwd.32} parent=23 // pred_check_branch
        %184 = sbr.rel (%p182) target = $region28
      $region27: #{scene_embed2_fwd.32} parent=23 // pred_region
        %s185 = smul.u32 2, %s17
      $region28: #{scene_embed2_fwd.32} parent=23 // pred_fallthru
        _
    $region24: #{scene_embed2_fwd.32} parent=5 // pred_fallthru
      _
    %p186 = scmp.le.s32.totalorder 2, %s7
    // Predicated region
    $region29: #{scene_embed2_fwd.32} parent=5 // pred_check
      %p187 = pneg %p186
    $region30: #{scene_embed2_fwd.32} parent=5 // pred_check_branch
      %189 = sbr.rel (%p187) target = $region32
    $region31: #{scene_embed2_fwd.32} parent=5 // pred_region
      %s190 = ssub.s32 %s7, 2
      // Predicated region
      $region33: #{scene_embed2_fwd.32} parent=31 // pred_check
        %p191 = pneg %p78
      $region34: #{scene_embed2_fwd.32} parent=31 // pred_check_branch
        %193 = sbr.rel (%p191) target = $region36
      $region35: #{scene_embed2_fwd.32} parent=31 // pred_region
        %s194 = smul.u32 2, %s19
        %p195 = scmp.lt.s32.totalorder %s18, 1
        %s196 = scalar_select %p195, %s18, 1
        %p197 = scmp.lt.s32.totalorder %s194, 1
        %s198 = scalar_select %p197, %s194, 1
        %s199 = smul.addr %s196, 2
        %s200 = sadd.s32 %s198, %s199
        %s201 = scalar_lea.vmem %s1, %s200
      $region36: #{scene_embed2_fwd.32} parent=31 // pred_fallthru
        _
    $region32: #{scene_embed2_fwd.32} parent=5 // pred_fallthru
      _
  $region6: #{scene_embed2_fwd.32} parent=0 // loop_footer
    %s11 = sadd.s32 1, %s7
  $region7: #{scene_embed2_fwd.32} parent=0 // loop_footer_branch
    %6 = sbr.rel target = $region3
  $region8: #{scene_embed2_fwd.32} parent=0 // loop_exit
    _

// kernel: scene_embed2_fwd.34
$region0: #{scene_embed2_fwd.34}
  #allocation0 [shape = 'u32[]', space=smem, size = 0x4, offset = 0x4, fixed_abs, tag = 'smem constant byte address 0x4 - core index']
  #allocation1 [shape = 'u32[144,128]{1,0:T(1,128)}', space=vmem, size = 0x12000, scoped, tag = 'internal scratch']
  #allocation2 [shape = 'f32[8,128]{1,0:T(8,128)}', space=vmem, size = 0x1000, scoped, tag = 'scratch operand']
  %s0 = inlined_call_operand.vmem [shape: bf16[8,1280], index: 0, kind: input, shape index: {}]
  %s1 = inlined_call_operand.vmem [shape: bf16[1280,128], index: 1, kind: input, shape index: {}]
  %s2 = inlined_call_operand.vmem [shape: f32[1,128], index: 2, kind: input, shape index: {}]
  %s3 = inlined_call_operand.vmem [shape: f32[1,128], index: 3, kind: input, shape index: {}]
  %s4 = inlined_call_operand.vmem [shape: bf16[8,128], index: 4, kind: output, shape index: {}]
  %s5 = sld [smem:[#allocation0]]
  $region57: #{scene_embed2_fwd.34} parent=0
    _
  %s7 = ssub.s32 1, %s5
  %s8 = scalar_select 0, %s7, %s5
  loop: start=0, step=1, limit=7
  $region2: #{scene_embed2_fwd.34} parent=0 // loop_pre_header
    _
  $region3: #{scene_embed2_fwd.34} parent=0 // loop_header
    %s10 = sphi 0, %s14
    %p11 = scmp.ge.s32.totalorder %s10, 7
    %s17 = sphi 0, %s36
    %s18 = sphi 0, %s32
    %s19 = sphi 0, %s28
    %s20 = sphi 0, %s17
    %s21 = sphi 0, %s18
    %s22 = sphi 0, %s19
    %s23 = sphi 0, %s20
    %s24 = sphi 0, %s21
    %s25 = sphi 0, %s22
    %s41 = sphi 0, %s43
    %s44 = sphi 0, %s41
    %s45 = sphi 0, %s44
    %s61 = sphi 0, %s45
    %s69 = sphi 0, %s71
    %s72 = sphi 0, %s69
    %s73 = sphi 0, %s72
    %s89 = sphi 0, %s73
    %s95 = sphi 0, %s97
    %s98 = sphi 0, %s95
    %s99 = sphi 0, %s98
    %s115 = sphi 0, %s99
    %s121 = sphi 0, %s123
    %s124 = sphi 0, %s121
    %s125 = sphi 0, %s124
    %s141 = sphi 0, %s125
    %s149 = sphi 0, %s151
    %s152 = sphi 0, %s149
    %s153 = sphi 0, %s152
    %s169 = sphi 0, %s153
  $region4: #{scene_embed2_fwd.34} parent=0 // loop_header_branch
    %13 = sbr.rel (%p11) target = $region8
  $region5: #{scene_embed2_fwd.34} parent=0 // loop_body
    %s15 = ssub.s32 %s10, 1
    %s16 = ssub.s32 %s10, 2
    %s26 = sadd.s32 1, %s19
    %p27 = scmp.ge.s32.totalorder %s26, 5
    %s28 = scalar_select %p27, 0, %s26
    %s29 = sadd.s32 1, %s18
    %s30 = scalar_select %p27, %s29, %s18
    %p31 = scmp.ge.s32.totalorder %s30, 1
    %s32 = scalar_select %p31, 0, %s30
    %s33 = sadd.s32 1, %s17
    %s34 = scalar_select %p31, %s33, %s17
    %p35 = scmp.ge.s32.totalorder %s34, 1
    %s36 = scalar_select %p35, 0, %s34
    %s37 = ssub.s32 %s17, %s36
    %s38 = ssub.s32 %s19, %s28
    %s39 = sor.u32 %s37, %s38
    %p40 = scmp.eq.s32.totalorder %s39, 0
    %s42 = sadd.s32 %s41, 1
    %s43 = scalar_select %p40, %s41, %s42
    %p46 = pneg %p40
    %p47 = scmp.eq.s32.totalorder %s10, 4
    %p48 = por %p46, %p47
    %p49 = scmp.ne.s32.totalorder %s41, %s44
    %p50 = scmp.eq.s32.totalorder %s10, 0
    %p51 = por %p49, %p50
    %p52 = scmp.ne.s32.totalorder %s41, %s44
    %p53 = scmp.eq.s32.totalorder %s15, 4
    %p54 = por %p52, %p53
    %p55 = scmp.ne.s32.totalorder %s44, %s45
    %p56 = scmp.eq.s32.totalorder %s15, 0
    %p57 = por %p55, %p56
    %p58 = scmp.ne.s32.totalorder %s44, %s45
    %p59 = scmp.eq.s32.totalorder %s16, 4
    %p60 = por %p58, %p59
    %p62 = scmp.ne.s32.totalorder %s45, %s61
    %p63 = scmp.eq.s32.totalorder %s16, 0
    %p64 = por %p62, %p63
    %s65 = ssub.s32 %s19, %s28
    %s66 = ssub.s32 %s18, %s32
    %s67 = sor.u32 %s65, %s66
    %p68 = scmp.eq.s32.totalorder %s67, 0
    %s70 = sadd.s32 %s69, 1
    %s71 = scalar_select %p68, %s69, %s70
    %p74 = pneg %p68
    %p75 = scmp.eq.s32.totalorder %s10, 4
    %p76 = por %p74, %p75
    %p77 = scmp.ne.s32.totalorder %s69, %s72
    %p78 = scmp.eq.s32.totalorder %s10, 0
    %p79 = por %p77, %p78
    %p80 = scmp.ne.s32.totalorder %s69, %s72
    %p81 = scmp.eq.s32.totalorder %s15, 4
    %p82 = por %p80, %p81
    %p83 = scmp.ne.s32.totalorder %s72, %s73
    %p84 = scmp.eq.s32.totalorder %s15, 0
    %p85 = por %p83, %p84
    %p86 = scmp.ne.s32.totalorder %s72, %s73
    %p87 = scmp.eq.s32.totalorder %s16, 4
    %p88 = por %p86, %p87
    %p90 = scmp.ne.s32.totalorder %s73, %s89
    %p91 = scmp.eq.s32.totalorder %s16, 0
    %p92 = por %p90, %p91
    %s93 = ssub.s32 %s18, %s32
    %p94 = scmp.eq.s32.totalorder %s93, 0
    %s96 = sadd.s32 %s95, 1
    %s97 = scalar_select %p94, %s95, %s96
    %p100 = pneg %p94
    %p101 = scmp.eq.s32.totalorder %s10, 4
    %p102 = por %p100, %p101
    %p103 = scmp.ne.s32.totalorder %s95, %s98
    %p104 = scmp.eq.s32.totalorder %s10, 0
    %p105 = por %p103, %p104
    %p106 = scmp.ne.s32.totalorder %s95, %s98
    %p107 = scmp.eq.s32.totalorder %s15, 4
    %p108 = por %p106, %p107
    %p109 = scmp.ne.s32.totalorder %s98, %s99
    %p110 = scmp.eq.s32.totalorder %s15, 0
    %p111 = por %p109, %p110
    %p112 = scmp.ne.s32.totalorder %s98, %s99
    %p113 = scmp.eq.s32.totalorder %s16, 4
    %p114 = por %p112, %p113
    %p116 = scmp.ne.s32.totalorder %s99, %s115
    %p117 = scmp.eq.s32.totalorder %s16, 0
    %p118 = por %p116, %p117
    %s119 = ssub.s32 %s18, %s32
    %p120 = scmp.eq.s32.totalorder %s119, 0
    %s122 = sadd.s32 %s121, 1
    %s123 = scalar_select %p120, %s121, %s122
    %p126 = pneg %p120
    %p127 = scmp.eq.s32.totalorder %s10, 4
    %p128 = por %p126, %p127
    %p129 = scmp.ne.s32.totalorder %s121, %s124
    %p130 = scmp.eq.s32.totalorder %s10, 0
    %p131 = por %p129, %p130
    %p132 = scmp.ne.s32.totalorder %s121, %s124
    %p133 = scmp.eq.s32.totalorder %s15, 4
    %p134 = por %p132, %p133
    %p135 = scmp.ne.s32.totalorder %s124, %s125
    %p136 = scmp.eq.s32.totalorder %s15, 0
    %p137 = por %p135, %p136
    %p138 = scmp.ne.s32.totalorder %s124, %s125
    %p139 = scmp.eq.s32.totalorder %s16, 4
    %p140 = por %p138, %p139
    %p142 = scmp.ne.s32.totalorder %s125, %s141
    %p143 = scmp.eq.s32.totalorder %s16, 0
    %p144 = por %p142, %p143
    %s145 = ssub.s32 %s17, %s36
    %s146 = ssub.s32 %s18, %s32
    %s147 = sor.u32 %s145, %s146
    %p148 = scmp.eq.s32.totalorder %s147, 0
    %s150 = sadd.s32 %s149, 1
    %s151 = scalar_select %p148, %s149, %s150
    %p154 = pneg %p148
    %p155 = scmp.eq.s32.totalorder %s10, 4
    %p156 = por %p154, %p155
    %p157 = scmp.ne.s32.totalorder %s149, %s152
    %p158 = scmp.eq.s32.totalorder %s10, 0
    %p159 = por %p157, %p158
    %p160 = scmp.ne.s32.totalorder %s149, %s152
    %p161 = scmp.eq.s32.totalorder %s15, 4
    %p162 = por %p160, %p161
    %p163 = scmp.ne.s32.totalorder %s152, %s153
    %p164 = scmp.eq.s32.totalorder %s15, 0
    %p165 = por %p163, %p164
    %p166 = scmp.ne.s32.totalorder %s152, %s153
    %p167 = scmp.eq.s32.totalorder %s16, 4
    %p168 = por %p166, %p167
    %p170 = scmp.ne.s32.totalorder %s153, %s169
    %p171 = scmp.eq.s32.totalorder %s16, 0
    %p172 = por %p170, %p171
    %p173 = scmp.le.s32.totalorder 1, %s10
    %p174 = scmp.lt.s32.totalorder %s10, 6
    %p175 = pnand %p173, %p174
    %p176 = pneg %p175
    // Predicated region
    $region9: #{scene_embed2_fwd.34} parent=5 // pred_check
      _
    $region10: #{scene_embed2_fwd.34} parent=5 // pred_check_branch
      %178 = sbr.rel (%p175) target = $region12
    $region11: #{scene_embed2_fwd.34} parent=5 // pred_region
      %s179 = ssub.s32 %s10, 1
      // Predicated region
      $region13: #{scene_embed2_fwd.34} parent=11 // pred_check
        %p180 = pneg %p111
      $region14: #{scene_embed2_fwd.34} parent=11 // pred_check_branch
        %182 = sbr.rel (%p180) target = $region16
      $region15: #{scene_embed2_fwd.34} parent=11 // pred_region
        %p183 = scmp.lt.s32.totalorder %s21, 0
        %s184 = scalar_select %p183, %s21, 0
        %s185 = scalar_lea.vmem %s2, %s184
      $region16: #{scene_embed2_fwd.34} parent=11 // pred_fallthru
        _
      // Predicated region
      $region17: #{scene_embed2_fwd.34} parent=11 // pred_check
        %p186 = pneg %p137
      $region18: #{scene_embed2_fwd.34} parent=11 // pred_check_branch
        %188 = sbr.rel (%p186) target = $region20
      $region19: #{scene_embed2_fwd.34} parent=11 // pred_region
        %p189 = scmp.lt.s32.totalorder %s21, 0
        %s190 = scalar_select %p189, %s21, 0
        %s191 = scalar_lea.vmem %s3, %s190
      $region20: #{scene_embed2_fwd.34} parent=11 // pred_fallthru
        _
    $region12: #{scene_embed2_fwd.34} parent=5 // pred_fallthru
      _
    %p192 = scmp.lt.s32.totalorder %s10, 5
    // Predicated region
    $region21: #{scene_embed2_fwd.34} parent=5 // pred_check
      %p193 = pneg %p192
    $region22: #{scene_embed2_fwd.34} parent=5 // pred_check_branch
      %195 = sbr.rel (%p193) target = $region24
    $region23: #{scene_embed2_fwd.34} parent=5 // pred_region
      // Predicated region
      $region25: #{scene_embed2_fwd.34} parent=23 // pred_check
        %p196 = pneg %p51
      $region26: #{scene_embed2_fwd.34} parent=23 // pred_check_branch
        %198 = sbr.rel (%p196) target = $region28
      $region27: #{scene_embed2_fwd.34} parent=23 // pred_region
        %s199 = smul.u32 2, %s19
        %p200 = scmp.lt.s32.totalorder %s17, 0
        %s201 = scalar_select %p200, %s17, 0
        %p202 = scmp.lt.s32.totalorder %s199, 9
        %s203 = scalar_select %p202, %s199, 9
        %s204 = smul.addr %s201, 10
        %s205 = sadd.s32 %s203, %s204
        %s206 = smul.addr %s205, 4
        %s207 = scalar_lea.vmem %s0, %s206
        %s208 = smul.u32 2, %s19
      $region28: #{scene_embed2_fwd.34} parent=23 // pred_fallthru
        _
      // Predicated region
      $region29: #{scene_embed2_fwd.34} parent=23 // pred_check
        %p209 = pneg %p79
      $region30: #{scene_embed2_fwd.34} parent=23 // pred_check_branch
        %211 = sbr.rel (%p209) target = $region32
      $region31: #{scene_embed2_fwd.34} parent=23 // pred_region
        %s212 = smul.u32 32, %s19
        %p213 = scmp.lt.s32.totalorder %s212, 159
        %s214 = scalar_select %p213, %s212, 159
        %p215 = scmp.lt.s32.totalorder %s18, 0
        %s216 = scalar_select %p215, %s18, 0
        %s217 = sadd.s32 %s216, %s214
        %s218 = smul.addr %s217, 4
        %s219 = scalar_lea.vmem %s1, %s218
        %s220 = smul.u32 32, %s19
      $region32: #{scene_embed2_fwd.34} parent=23 // pred_fallthru
        _
    $region24: #{scene_embed2_fwd.34} parent=5 // pred_fallthru
      _
    %p221 = scmp.le.s32.totalorder 1, %s10
    %p222 = scmp.lt.s32.totalorder %s10, 6
    %p223 = pnand %p221, %p222
    %p224 = pneg %p223
    // Predicated region
    $region33: #{scene_embed2_fwd.34} parent=5 // pred_check
      _
    $region34: #{scene_embed2_fwd.34} parent=5 // pred_check_branch
      %226 = sbr.rel (%p223) target = $region36
    $region35: #{scene_embed2_fwd.34} parent=5 // pred_region
      %s227 = ssub.s32 %s10, 1
      %s228 = smul.u32 2, %s22
      %p229 = scmp.lt.s32.totalorder %s20, 0
      %s230 = scalar_select %p229, %s20, 0
      %p231 = scmp.lt.s32.totalorder %s228, 9
      %s232 = scalar_select %p231, %s228, 9
      %s233 = smul.addr %s230, 10
      %s234 = sadd.s32 %s232, %s233
      %s235 = smul.addr %s234, 4
      %s236 = scalar_lea.vmem %s0, %s235
      %p237 = pneg %p57
      %p238 = pneg %p54
      %s239 = smul.u32 32, %s22
      %p240 = scmp.lt.s32.totalorder %s239, 159
      %s241 = scalar_select %p240, %s239, 159
      %p242 = scmp.lt.s32.totalorder %s21, 0
      %s243 = scalar_select %p242, %s21, 0
      %s244 = sadd.s32 %s243, %s241
      %s245 = smul.addr %s244, 4
      %s246 = scalar_lea.vmem %s1, %s245
      %p247 = pneg %p85
      %p248 = pneg %p82
      %p249 = scmp.lt.s32.totalorder %s21, 0
      %s250 = scalar_select %p249, %s21, 0
      %s251 = scalar_lea.vmem %s2, %s250
      %p252 = pneg %p111
      %p253 = pneg %p108
      %p254 = scmp.lt.s32.totalorder %s21, 0
      %s255 = scalar_select %p254, %s21, 0
      %s256 = scalar_lea.vmem %s3, %s255
      %p257 = pneg %p137
      %p258 = pneg %p134
      %p259 = pneg %p165
      %p260 = pneg %p162
      %p261 = scmp.lt.s32.totalorder %s20, 0
      %s262 = scalar_select %p261, %s20, 0
      %p263 = scmp.lt.s32.totalorder %s21, 0
      %s264 = scalar_select %p263, %s21, 0
      %s265 = sadd.s32 %s264, %s262
      %s266 = smul.addr %s265, 4
      %s267 = scalar_lea.vmem %s4, %s266
      %s268 = smul.u32 2, %s22
      %p269 = scmp.lt.s32.totalorder %s20, 0
      %s270 = scalar_select %p269, %s20, 0
      %p271 = scmp.lt.s32.totalorder %s268, 9
      %s272 = scalar_select %p271, %s268, 9
      %s273 = smul.addr %s270, 10
      %s274 = sadd.s32 %s272, %s273
      %s275 = smul.addr %s274, 4
      %s276 = scalar_lea.vmem %s0, %s275
      %s277 = smul.u32 2, %s22
      %s278 = smul.u32 32, %s22
      %p279 = scmp.lt.s32.totalorder %s278, 159
      %s280 = scalar_select %p279, %s278, 159
      %p281 = scmp.lt.s32.totalorder %s21, 0
      %s282 = scalar_select %p281, %s21, 0
      %s283 = sadd.s32 %s282, %s280
      %s284 = smul.addr %s283, 4
      %s285 = scalar_lea.vmem %s1, %s284
      %s286 = smul.u32 32, %s22
      %p287 = scmp.lt.s32.totalorder %s21, 0
      %s288 = scalar_select %p287, %s21, 0
      %s289 = scalar_lea.vmem %s2, %s288
      %p290 = scmp.lt.s32.totalorder %s21, 0
      %s291 = scalar_select %p290, %s21, 0
      %s292 = scalar_lea.vmem %s3, %s291
      %p293 = scmp.lt.s32.totalorder %s20, 0
      %s294 = scalar_select %p293, %s20, 0
      %p295 = scmp.lt.s32.totalorder %s21, 0
      %s296 = scalar_select %p295, %s21, 0
      %s297 = sadd.s32 %s296, %s294
      %s298 = smul.addr %s297, 4
      %s299 = scalar_lea.vmem %s4, %s298
      %p301 = scmp.eq.s32.totalorder %s22, 0
      // Predicated region
      $region37: #{scene_embed2_fwd.34} parent=35 // pred_check
        %p302 = pneg %p301
      $region38: #{scene_embed2_fwd.34} parent=35 // pred_check_branch
        %304 = sbr.rel (%p302) target = $region40
      $region39: #{scene_embed2_fwd.34} parent=35 // pred_region
        %305 = vst [vmem:[#allocation2] sm:$0xff] 0.0
      $region40: #{scene_embed2_fwd.34} parent=35 // pred_fallthru
        _
      %v306 = vld [vmem:[#allocation2] sm:$0xff]
      %v307 = vld [vmem:[%s276] sm:$0xff]
      %v308 = vld [vmem:[%s285] sm:$0xf]
      %v309 = vld [vmem:[%s285 + $0x4] sm:$0xf]
      %v310 = vld [vmem:[%s285 + $0x8] sm:$0xf]
      %v311 = vld [vmem:[%s285 + $0xc] sm:$0xf]
      %v312 = vld [vmem:[%s285 + $0x10] sm:$0xf]
      %v313 = vld [vmem:[%s285 + $0x14] sm:$0xf]
      %v314 = vld [vmem:[%s285 + $0x18] sm:$0xf]
      %v315 = vld [vmem:[%s285 + $0x1c] sm:$0xf]
      %v316 = vld [vmem:[%s285 + $0x20] sm:$0xf]
      %v317 = vld [vmem:[%s285 + $0x24] sm:$0xf]
      %v318 = vld [vmem:[%s285 + $0x28] sm:$0xf]
      %v319 = vld [vmem:[%s285 + $0x2c] sm:$0xf]
      %v320 = vld [vmem:[%s285 + $0x30] sm:$0xf]
      %v321 = vld [vmem:[%s285 + $0x34] sm:$0xf]
      %v322 = vld [vmem:[%s285 + $0x38] sm:$0xf]
      %v323 = vld [vmem:[%s285 + $0x3c] sm:$0xf]
      %v324 = vld [vmem:[%s285 + $0x40] sm:$0xf]
      %v325 = vld [vmem:[%s285 + $0x44] sm:$0xf]
      %v326 = vld [vmem:[%s285 + $0x48] sm:$0xf]
      %v327 = vld [vmem:[%s285 + $0x4c] sm:$0xf]
      %v328 = vld [vmem:[%s285 + $0x50] sm:$0xf]
      %v329 = vld [vmem:[%s285 + $0x54] sm:$0xf]
      %v330 = vld [vmem:[%s285 + $0x58] sm:$0xf]
      %v331 = vld [vmem:[%s285 + $0x5c] sm:$0xf]
      %v332 = vld [vmem:[%s285 + $0x60] sm:$0xf]
      %v333 = vld [vmem:[%s285 + $0x64] sm:$0xf]
      %v334 = vld [vmem:[%s285 + $0x68] sm:$0xf]
      %v335 = vld [vmem:[%s285 + $0x6c] sm:$0xf]
      %v336 = vld [vmem:[%s285 + $0x70] sm:$0xf]
      %v337 = vld [vmem:[%s285 + $0x74] sm:$0xf]
      %v338 = vld [vmem:[%s285 + $0x78] sm:$0xf]
      %v339 = vld [vmem:[%s285 + $0x7c] sm:$0xf]
      %v341 = vunpack.c.l.b16 %v307
      %v342 = vunpack.c.h.b16 %v307
      %v343 = vpack.c.b16 %v341, %v341
      %v344 = vpack.c.b16 %v342, %v342
      %v379 = vunpack.c.l.b16 %v308
      %v380 = vunpack.c.l.b16 %v309
      %v381 = vunpack.c.l.b16 %v310
      %v382 = vunpack.c.l.b16 %v311
      %v383 = vunpack.c.l.b16 %v312
      %v384 = vunpack.c.l.b16 %v313
      %v385 = vunpack.c.l.b16 %v314
      %v386 = vunpack.c.l.b16 %v315
      %v387 = vunpack.c.l.b16 %v316
      %v388 = vunpack.c.l.b16 %v317
      %v389 = vunpack.c.l.b16 %v318
      %v390 = vunpack.c.l.b16 %v319
      %v391 = vunpack.c.l.b16 %v320
      %v392 = vunpack.c.l.b16 %v321
      %v393 = vunpack.c.l.b16 %v322
      %v394 = vunpack.c.l.b16 %v323
      %v395 = vunpack.c.l.b16 %v324
      %v396 = vunpack.c.l.b16 %v325
      %v397 = vunpack.c.l.b16 %v326
      %v398 = vunpack.c.l.b16 %v327
      %v399 = vunpack.c.l.b16 %v328
      %v400 = vunpack.c.l.b16 %v329
      %v401 = vunpack.c.l.b16 %v330
      %v402 = vunpack.c.l.b16 %v331
      %v403 = vunpack.c.l.b16 %v332
      %v404 = vunpack.c.l.b16 %v333
      %v405 = vunpack.c.l.b16 %v334
      %v406 = vunpack.c.l.b16 %v335
      %v407 = vunpack.c.l.b16 %v336
      %v408 = vunpack.c.l.b16 %v337
      %v409 = vunpack.c.l.b16 %v338
      %v410 = vunpack.c.l.b16 %v339
      %v411 = vpack.c.b16 %v380, %v379
      %v412 = vpack.c.b16 %v382, %v381
      %v413 = vpack.c.b16 %v384, %v383
      %v414 = vpack.c.b16 %v386, %v385
      %v415 = vpack.c.b16 %v388, %v387
      %v416 = vpack.c.b16 %v390, %v389
      %v417 = vpack.c.b16 %v392, %v391
      %v418 = vpack.c.b16 %v394, %v393
      %v419 = vpack.c.b16 %v396, %v395
      %v420 = vpack.c.b16 %v398, %v397
      %v421 = vpack.c.b16 %v400, %v399
      %v422 = vpack.c.b16 %v402, %v401
      %v423 = vpack.c.b16 %v404, %v403
      %v424 = vpack.c.b16 %v406, %v405
      %v425 = vpack.c.b16 %v408, %v407
      %v426 = vpack.c.b16 %v410, %v409
      %443 = vmatprep.subr.bf16.mxu0 0
      %444 = vmatpush1.bf16.msra.mxu0 %v411
      %445 = vmatprep.subr.bf16.mxu0 0
      %446 = vmatpush1.bf16.msra.mxu0 %v412
      %447 = vmatprep.subr.bf16.mxu0 0
      %448 = vmatpush1.bf16.msra.mxu0 %v413
      %449 = vmatprep.subr.bf16.mxu0 0
      %450 = vmatpush1.bf16.msra.mxu0 %v414
      %451 = vmatprep.subr.bf16.mxu0 0
      %452 = vmatpush1.bf16.msra.mxu0 %v415
      %453 = vmatprep.subr.bf16.mxu0 0
      %454 = vmatpush1.bf16.msra.mxu0 %v416
      %455 = vmatprep.subr.bf16.mxu0 0
      %456 = vmatpush1.bf16.msra.mxu0 %v417
      %457 = vmatprep.subr.bf16.mxu0 0
      %458 = vmatpush1.bf16.msra.mxu0 %v418
      %459 = vmatprep.subr.bf16.mxu0 0
      %460 = vmatpush1.bf16.msra.mxu0 %v419
      %461 = vmatprep.subr.bf16.mxu0 0
      %462 = vmatpush1.bf16.msra.mxu0 %v420
      %463 = vmatprep.subr.bf16.mxu0 0
      %464 = vmatpush1.bf16.msra.mxu0 %v421
      %465 = vmatprep.subr.bf16.mxu0 0
      %466 = vmatpush1.bf16.msra.mxu0 %v422
      %467 = vmatprep.subr.bf16.mxu0 0
      %468 = vmatpush1.bf16.msra.mxu0 %v423
      %469 = vmatprep.subr.bf16.mxu0 0
      %470 = vmatpush1.bf16.msra.mxu0 %v424
      %471 = vmatprep.subr.bf16.mxu0 0
      %472 = vmatpush1.bf16.msra.mxu0 %v425
      %473 = vmatprep.subr.bf16.mxu0 0
      %474 = vmatpush1.bf16.msra.mxu0 %v426
      %475 = vmatprep.mubr.bf16.mxu0 %v344
      %476 = vmatmul.mubr.bf16.gmra.mrb[0].mxu0 %v343
      %v477 = vpop.f32.mrb[0].mxu0
      %v478 = vadd.f32 0.0, %v477
      %v479 = vpop.f32.mrb[0].mxu0
      %v480 = vpop.f32.mrb[0].mxu0
      %v481 = vpop.f32.mrb[0].mxu0
      %482 = vdwg.mxu0
      %v483 = vadd.f32 %v306, %v478
      %484 = vst [vmem:[#allocation2] sm:$0xff] %v483
      %p485 = scmp.eq.s32.totalorder %s22, 4
      // Predicated region
      $region41: #{scene_embed2_fwd.34} parent=35 // pred_check
        %p486 = pneg %p485
      $region42: #{scene_embed2_fwd.34} parent=35 // pred_check_branch
        %488 = sbr.rel (%p486) target = $region44
      $region43: #{scene_embed2_fwd.34} parent=35 // pred_region
        %v489 = vld [vmem:[#allocation2] sm:$0xff]
        %v490 = vld [vmem:[%s289] sm:$0x1]
        %v492 = vlaneseq
        %v493 = vshrl.u32 %v492, 7
        %v494 = vsub.s32 0, %v493
        %v495 = vrot.slane %v490, %v494
        %v497 = vmul.f32 %v489, %v495
        %v498 = vld [vmem:[%s292] sm:$0x1]
        %v500 = vlaneseq
        %v501 = vshrl.u32 %v500, 7
        %v502 = vsub.s32 0, %v501
        %v503 = vrot.slane %v498, %v502
        %v505 = vadd.f32 %v497, %v503
        %v506 = vmax.f32 %v505, 0.0
        %v507 = vpack.c.bf16 %v506, %v506
        %508 = vst [vmem:[%s299] sm:$0xf] %v507
      $region44: #{scene_embed2_fwd.34} parent=35 // pred_fallthru
        _
      %p509 = scmp.lt.s32.totalorder %s20, 0
      %s510 = scalar_select %p509, %s20, 0
      %p511 = scmp.lt.s32.totalorder %s21, 0
      %s512 = scalar_select %p511, %s21, 0
      %s513 = sadd.s32 %s512, %s510
      %s514 = smul.addr %s513, 4
      %s515 = scalar_lea.vmem %s4, %s514
      // Predicated region
      $region45: #{scene_embed2_fwd.34} parent=35 // pred_check
        %p516 = pneg %p162
      $region46: #{scene_embed2_fwd.34} parent=35 // pred_check_branch
        %518 = sbr.rel (%p516) target = $region48
      $region47: #{scene_embed2_fwd.34} parent=35 // pred_region
        _
      $region48: #{scene_embed2_fwd.34} parent=35 // pred_fallthru
        _
      // Predicated region
      $region49: #{scene_embed2_fwd.34} parent=35 // pred_check
        %p519 = pneg %p162
      $region50: #{scene_embed2_fwd.34} parent=35 // pred_check_branch
        %521 = sbr.rel (%p519) target = $region52
      $region51: #{scene_embed2_fwd.34} parent=35 // pred_region
        %p522 = scmp.lt.s32.totalorder %s20, 0
        %s523 = scalar_select %p522, %s20, 0
        %p524 = scmp.lt.s32.totalorder %s21, 0
        %s525 = scalar_select %p524, %s21, 0
        %s526 = sadd.s32 %s525, %s523
        %s527 = smul.addr %s526, 4
        %s528 = scalar_lea.vmem %s4, %s527
      $region52: #{scene_embed2_fwd.34} parent=35 // pred_fallthru
        _
    $region36: #{scene_embed2_fwd.34} parent=5 // pred_fallthru
      _
    %p529 = scmp.le.s32.totalorder 2, %s10
    // Predicated region
    $region53: #{scene_embed2_fwd.34} parent=5 // pred_check
      %p530 = pneg %p529
    $region54: #{scene_embed2_fwd.34} parent=5 // pred_check_branch
      %532 = sbr.rel (%p530) target = $region56
    $region55: #{scene_embed2_fwd.34} parent=5 // pred_region
      %s533 = ssub.s32 %s10, 2
    $region56: #{scene_embed2_fwd.34} parent=5 // pred_fallthru
      _
  $region6: #{scene_embed2_fwd.34} parent=0 // loop_footer
    %s14 = sadd.s32 1, %s10
  $region7: #{scene_embed2_fwd.34} parent=0 // loop_footer_branch
    %9 = sbr.rel target = $region3
  $region8: #{scene_embed2_fwd.34} parent=0 // loop_exit
    _

// kernel: scene_embed2_fwd.33
$region0: #{scene_embed2_fwd.33}
  #allocation0 [shape = 'u32[]', space=smem, size = 0x4, offset = 0x4, fixed_abs, tag = 'smem constant byte address 0x4 - core index']
  #allocation1 [shape = 'u32[144,128]{1,0:T(1,128)}', space=vmem, size = 0x12000, scoped, tag = 'internal scratch']
  #allocation2 [shape = 'f32[8,128]{1,0:T(8,128)}', space=vmem, size = 0x1000, scoped, tag = 'scratch operand']
  %s0 = inlined_call_operand.vmem [shape: bf16[8,768], index: 0, kind: input, shape index: {}]
  %s1 = inlined_call_operand.vmem [shape: bf16[768,128], index: 1, kind: input, shape index: {}]
  %s2 = inlined_call_operand.vmem [shape: f32[1,128], index: 2, kind: input, shape index: {}]
  %s3 = inlined_call_operand.vmem [shape: f32[1,128], index: 3, kind: input, shape index: {}]
  %s4 = inlined_call_operand.vmem [shape: bf16[8,128], index: 4, kind: output, shape index: {}]
  %s5 = sld [smem:[#allocation0]]
  $region57: #{scene_embed2_fwd.33} parent=0
    _
  %s7 = ssub.s32 1, %s5
  %s8 = scalar_select 0, %s7, %s5
  loop: start=0, step=1, limit=5
  $region2: #{scene_embed2_fwd.33} parent=0 // loop_pre_header
    _
  $region3: #{scene_embed2_fwd.33} parent=0 // loop_header
    %s10 = sphi 0, %s14
    %p11 = scmp.ge.s32.totalorder %s10, 5
    %s17 = sphi 0, %s36
    %s18 = sphi 0, %s32
    %s19 = sphi 0, %s28
    %s20 = sphi 0, %s17
    %s21 = sphi 0, %s18
    %s22 = sphi 0, %s19
    %s23 = sphi 0, %s20
    %s24 = sphi 0, %s21
    %s25 = sphi 0, %s22
    %s41 = sphi 0, %s43
    %s44 = sphi 0, %s41
    %s45 = sphi 0, %s44
    %s61 = sphi 0, %s45
    %s69 = sphi 0, %s71
    %s72 = sphi 0, %s69
    %s73 = sphi 0, %s72
    %s89 = sphi 0, %s73
    %s95 = sphi 0, %s97
    %s98 = sphi 0, %s95
    %s99 = sphi 0, %s98
    %s115 = sphi 0, %s99
    %s121 = sphi 0, %s123
    %s124 = sphi 0, %s121
    %s125 = sphi 0, %s124
    %s141 = sphi 0, %s125
    %s149 = sphi 0, %s151
    %s152 = sphi 0, %s149
    %s153 = sphi 0, %s152
    %s169 = sphi 0, %s153
  $region4: #{scene_embed2_fwd.33} parent=0 // loop_header_branch
    %13 = sbr.rel (%p11) target = $region8
  $region5: #{scene_embed2_fwd.33} parent=0 // loop_body
    %s15 = ssub.s32 %s10, 1
    %s16 = ssub.s32 %s10, 2
    %s26 = sadd.s32 1, %s19
    %p27 = scmp.ge.s32.totalorder %s26, 3
    %s28 = scalar_select %p27, 0, %s26
    %s29 = sadd.s32 1, %s18
    %s30 = scalar_select %p27, %s29, %s18
    %p31 = scmp.ge.s32.totalorder %s30, 1
    %s32 = scalar_select %p31, 0, %s30
    %s33 = sadd.s32 1, %s17
    %s34 = scalar_select %p31, %s33, %s17
    %p35 = scmp.ge.s32.totalorder %s34, 1
    %s36 = scalar_select %p35, 0, %s34
    %s37 = ssub.s32 %s17, %s36
    %s38 = ssub.s32 %s19, %s28
    %s39 = sor.u32 %s37, %s38
    %p40 = scmp.eq.s32.totalorder %s39, 0
    %s42 = sadd.s32 %s41, 1
    %s43 = scalar_select %p40, %s41, %s42
    %p46 = pneg %p40
    %p47 = scmp.eq.s32.totalorder %s10, 2
    %p48 = por %p46, %p47
    %p49 = scmp.ne.s32.totalorder %s41, %s44
    %p50 = scmp.eq.s32.totalorder %s10, 0
    %p51 = por %p49, %p50
    %p52 = scmp.ne.s32.totalorder %s41, %s44
    %p53 = scmp.eq.s32.totalorder %s15, 2
    %p54 = por %p52, %p53
    %p55 = scmp.ne.s32.totalorder %s44, %s45
    %p56 = scmp.eq.s32.totalorder %s15, 0
    %p57 = por %p55, %p56
    %p58 = scmp.ne.s32.totalorder %s44, %s45
    %p59 = scmp.eq.s32.totalorder %s16, 2
    %p60 = por %p58, %p59
    %p62 = scmp.ne.s32.totalorder %s45, %s61
    %p63 = scmp.eq.s32.totalorder %s16, 0
    %p64 = por %p62, %p63
    %s65 = ssub.s32 %s19, %s28
    %s66 = ssub.s32 %s18, %s32
    %s67 = sor.u32 %s65, %s66
    %p68 = scmp.eq.s32.totalorder %s67, 0
    %s70 = sadd.s32 %s69, 1
    %s71 = scalar_select %p68, %s69, %s70
    %p74 = pneg %p68
    %p75 = scmp.eq.s32.totalorder %s10, 2
    %p76 = por %p74, %p75
    %p77 = scmp.ne.s32.totalorder %s69, %s72
    %p78 = scmp.eq.s32.totalorder %s10, 0
    %p79 = por %p77, %p78
    %p80 = scmp.ne.s32.totalorder %s69, %s72
    %p81 = scmp.eq.s32.totalorder %s15, 2
    %p82 = por %p80, %p81
    %p83 = scmp.ne.s32.totalorder %s72, %s73
    %p84 = scmp.eq.s32.totalorder %s15, 0
    %p85 = por %p83, %p84
    %p86 = scmp.ne.s32.totalorder %s72, %s73
    %p87 = scmp.eq.s32.totalorder %s16, 2
    %p88 = por %p86, %p87
    %p90 = scmp.ne.s32.totalorder %s73, %s89
    %p91 = scmp.eq.s32.totalorder %s16, 0
    %p92 = por %p90, %p91
    %s93 = ssub.s32 %s18, %s32
    %p94 = scmp.eq.s32.totalorder %s93, 0
    %s96 = sadd.s32 %s95, 1
    %s97 = scalar_select %p94, %s95, %s96
    %p100 = pneg %p94
    %p101 = scmp.eq.s32.totalorder %s10, 2
    %p102 = por %p100, %p101
    %p103 = scmp.ne.s32.totalorder %s95, %s98
    %p104 = scmp.eq.s32.totalorder %s10, 0
    %p105 = por %p103, %p104
    %p106 = scmp.ne.s32.totalorder %s95, %s98
    %p107 = scmp.eq.s32.totalorder %s15, 2
    %p108 = por %p106, %p107
    %p109 = scmp.ne.s32.totalorder %s98, %s99
    %p110 = scmp.eq.s32.totalorder %s15, 0
    %p111 = por %p109, %p110
    %p112 = scmp.ne.s32.totalorder %s98, %s99
    %p113 = scmp.eq.s32.totalorder %s16, 2
    %p114 = por %p112, %p113
    %p116 = scmp.ne.s32.totalorder %s99, %s115
    %p117 = scmp.eq.s32.totalorder %s16, 0
    %p118 = por %p116, %p117
    %s119 = ssub.s32 %s18, %s32
    %p120 = scmp.eq.s32.totalorder %s119, 0
    %s122 = sadd.s32 %s121, 1
    %s123 = scalar_select %p120, %s121, %s122
    %p126 = pneg %p120
    %p127 = scmp.eq.s32.totalorder %s10, 2
    %p128 = por %p126, %p127
    %p129 = scmp.ne.s32.totalorder %s121, %s124
    %p130 = scmp.eq.s32.totalorder %s10, 0
    %p131 = por %p129, %p130
    %p132 = scmp.ne.s32.totalorder %s121, %s124
    %p133 = scmp.eq.s32.totalorder %s15, 2
    %p134 = por %p132, %p133
    %p135 = scmp.ne.s32.totalorder %s124, %s125
    %p136 = scmp.eq.s32.totalorder %s15, 0
    %p137 = por %p135, %p136
    %p138 = scmp.ne.s32.totalorder %s124, %s125
    %p139 = scmp.eq.s32.totalorder %s16, 2
    %p140 = por %p138, %p139
    %p142 = scmp.ne.s32.totalorder %s125, %s141
    %p143 = scmp.eq.s32.totalorder %s16, 0
    %p144 = por %p142, %p143
    %s145 = ssub.s32 %s17, %s36
    %s146 = ssub.s32 %s18, %s32
    %s147 = sor.u32 %s145, %s146
    %p148 = scmp.eq.s32.totalorder %s147, 0
    %s150 = sadd.s32 %s149, 1
    %s151 = scalar_select %p148, %s149, %s150
    %p154 = pneg %p148
    %p155 = scmp.eq.s32.totalorder %s10, 2
    %p156 = por %p154, %p155
    %p157 = scmp.ne.s32.totalorder %s149, %s152
    %p158 = scmp.eq.s32.totalorder %s10, 0
    %p159 = por %p157, %p158
    %p160 = scmp.ne.s32.totalorder %s149, %s152
    %p161 = scmp.eq.s32.totalorder %s15, 2
    %p162 = por %p160, %p161
    %p163 = scmp.ne.s32.totalorder %s152, %s153
    %p164 = scmp.eq.s32.totalorder %s15, 0
    %p165 = por %p163, %p164
    %p166 = scmp.ne.s32.totalorder %s152, %s153
    %p167 = scmp.eq.s32.totalorder %s16, 2
    %p168 = por %p166, %p167
    %p170 = scmp.ne.s32.totalorder %s153, %s169
    %p171 = scmp.eq.s32.totalorder %s16, 0
    %p172 = por %p170, %p171
    %p173 = scmp.le.s32.totalorder 1, %s10
    %p174 = scmp.lt.s32.totalorder %s10, 4
    %p175 = pnand %p173, %p174
    %p176 = pneg %p175
    // Predicated region
    $region9: #{scene_embed2_fwd.33} parent=5 // pred_check
      _
    $region10: #{scene_embed2_fwd.33} parent=5 // pred_check_branch
      %178 = sbr.rel (%p175) target = $region12
    $region11: #{scene_embed2_fwd.33} parent=5 // pred_region
      %s179 = ssub.s32 %s10, 1
      // Predicated region
      $region13: #{scene_embed2_fwd.33} parent=11 // pred_check
        %p180 = pneg %p111
      $region14: #{scene_embed2_fwd.33} parent=11 // pred_check_branch
        %182 = sbr.rel (%p180) target = $region16
      $region15: #{scene_embed2_fwd.33} parent=11 // pred_region
        %p183 = scmp.lt.s32.totalorder %s21, 0
        %s184 = scalar_select %p183, %s21, 0
        %s185 = scalar_lea.vmem %s2, %s184
      $region16: #{scene_embed2_fwd.33} parent=11 // pred_fallthru
        _
      // Predicated region
      $region17: #{scene_embed2_fwd.33} parent=11 // pred_check
        %p186 = pneg %p137
      $region18: #{scene_embed2_fwd.33} parent=11 // pred_check_branch
        %188 = sbr.rel (%p186) target = $region20
      $region19: #{scene_embed2_fwd.33} parent=11 // pred_region
        %p189 = scmp.lt.s32.totalorder %s21, 0
        %s190 = scalar_select %p189, %s21, 0
        %s191 = scalar_lea.vmem %s3, %s190
      $region20: #{scene_embed2_fwd.33} parent=11 // pred_fallthru
        _
    $region12: #{scene_embed2_fwd.33} parent=5 // pred_fallthru
      _
    %p192 = scmp.lt.s32.totalorder %s10, 3
    // Predicated region
    $region21: #{scene_embed2_fwd.33} parent=5 // pred_check
      %p193 = pneg %p192
    $region22: #{scene_embed2_fwd.33} parent=5 // pred_check_branch
      %195 = sbr.rel (%p193) target = $region24
    $region23: #{scene_embed2_fwd.33} parent=5 // pred_region
      // Predicated region
      $region25: #{scene_embed2_fwd.33} parent=23 // pred_check
        %p196 = pneg %p51
      $region26: #{scene_embed2_fwd.33} parent=23 // pred_check_branch
        %198 = sbr.rel (%p196) target = $region28
      $region27: #{scene_embed2_fwd.33} parent=23 // pred_region
        %s199 = smul.u32 2, %s19
        %p200 = scmp.lt.s32.totalorder %s17, 0
        %s201 = scalar_select %p200, %s17, 0
        %p202 = scmp.lt.s32.totalorder %s199, 5
        %s203 = scalar_select %p202, %s199, 5
        %s204 = smul.addr %s201, 6
        %s205 = sadd.s32 %s203, %s204
        %s206 = smul.addr %s205, 4
        %s207 = scalar_lea.vmem %s0, %s206
        %s208 = smul.u32 2, %s19
      $region28: #{scene_embed2_fwd.33} parent=23 // pred_fallthru
        _
      // Predicated region
      $region29: #{scene_embed2_fwd.33} parent=23 // pred_check
        %p209 = pneg %p79
      $region30: #{scene_embed2_fwd.33} parent=23 // pred_check_branch
        %211 = sbr.rel (%p209) target = $region32
      $region31: #{scene_embed2_fwd.33} parent=23 // pred_region
        %s212 = smul.u32 32, %s19
        %p213 = scmp.lt.s32.totalorder %s212, 95
        %s214 = scalar_select %p213, %s212, 95
        %p215 = scmp.lt.s32.totalorder %s18, 0
        %s216 = scalar_select %p215, %s18, 0
        %s217 = sadd.s32 %s216, %s214
        %s218 = smul.addr %s217, 4
        %s219 = scalar_lea.vmem %s1, %s218
        %s220 = smul.u32 32, %s19
      $region32: #{scene_embed2_fwd.33} parent=23 // pred_fallthru
        _
    $region24: #{scene_embed2_fwd.33} parent=5 // pred_fallthru
      _
    %p221 = scmp.le.s32.totalorder 1, %s10
    %p222 = scmp.lt.s32.totalorder %s10, 4
    %p223 = pnand %p221, %p222
    %p224 = pneg %p223
    // Predicated region
    $region33: #{scene_embed2_fwd.33} parent=5 // pred_check
      _
    $region34: #{scene_embed2_fwd.33} parent=5 // pred_check_branch
      %226 = sbr.rel (%p223) target = $region36
    $region35: #{scene_embed2_fwd.33} parent=5 // pred_region
      %s227 = ssub.s32 %s10, 1
      %s228 = smul.u32 2, %s22
      %p229 = scmp.lt.s32.totalorder %s20, 0
      %s230 = scalar_select %p229, %s20, 0
      %p231 = scmp.lt.s32.totalorder %s228, 5
      %s232 = scalar_select %p231, %s228, 5
      %s233 = smul.addr %s230, 6
      %s234 = sadd.s32 %s232, %s233
      %s235 = smul.addr %s234, 4
      %s236 = scalar_lea.vmem %s0, %s235
      %p237 = pneg %p57
      %p238 = pneg %p54
      %s239 = smul.u32 32, %s22
      %p240 = scmp.lt.s32.totalorder %s239, 95
      %s241 = scalar_select %p240, %s239, 95
      %p242 = scmp.lt.s32.totalorder %s21, 0
      %s243 = scalar_select %p242, %s21, 0
      %s244 = sadd.s32 %s243, %s241
      %s245 = smul.addr %s244, 4
      %s246 = scalar_lea.vmem %s1, %s245
      %p247 = pneg %p85
      %p248 = pneg %p82
      %p249 = scmp.lt.s32.totalorder %s21, 0
      %s250 = scalar_select %p249, %s21, 0
      %s251 = scalar_lea.vmem %s2, %s250
      %p252 = pneg %p111
      %p253 = pneg %p108
      %p254 = scmp.lt.s32.totalorder %s21, 0
      %s255 = scalar_select %p254, %s21, 0
      %s256 = scalar_lea.vmem %s3, %s255
      %p257 = pneg %p137
      %p258 = pneg %p134
      %p259 = pneg %p165
      %p260 = pneg %p162
      %p261 = scmp.lt.s32.totalorder %s20, 0
      %s262 = scalar_select %p261, %s20, 0
      %p263 = scmp.lt.s32.totalorder %s21, 0
      %s264 = scalar_select %p263, %s21, 0
      %s265 = sadd.s32 %s264, %s262
      %s266 = smul.addr %s265, 4
      %s267 = scalar_lea.vmem %s4, %s266
      %s268 = smul.u32 2, %s22
      %p269 = scmp.lt.s32.totalorder %s20, 0
      %s270 = scalar_select %p269, %s20, 0
      %p271 = scmp.lt.s32.totalorder %s268, 5
      %s272 = scalar_select %p271, %s268, 5
      %s273 = smul.addr %s270, 6
      %s274 = sadd.s32 %s272, %s273
      %s275 = smul.addr %s274, 4
      %s276 = scalar_lea.vmem %s0, %s275
      %s277 = smul.u32 2, %s22
      %s278 = smul.u32 32, %s22
      %p279 = scmp.lt.s32.totalorder %s278, 95
      %s280 = scalar_select %p279, %s278, 95
      %p281 = scmp.lt.s32.totalorder %s21, 0
      %s282 = scalar_select %p281, %s21, 0
      %s283 = sadd.s32 %s282, %s280
      %s284 = smul.addr %s283, 4
      %s285 = scalar_lea.vmem %s1, %s284
      %s286 = smul.u32 32, %s22
      %p287 = scmp.lt.s32.totalorder %s21, 0
      %s288 = scalar_select %p287, %s21, 0
      %s289 = scalar_lea.vmem %s2, %s288
      %p290 = scmp.lt.s32.totalorder %s21, 0
      %s291 = scalar_select %p290, %s21, 0
      %s292 = scalar_lea.vmem %s3, %s291
      %p293 = scmp.lt.s32.totalorder %s20, 0
      %s294 = scalar_select %p293, %s20, 0
      %p295 = scmp.lt.s32.totalorder %s21, 0
      %s296 = scalar_select %p295, %s21, 0
      %s297 = sadd.s32 %s296, %s294
      %s298 = smul.addr %s297, 4
      %s299 = scalar_lea.vmem %s4, %s298
      %p301 = scmp.eq.s32.totalorder %s22, 0
      // Predicated region
      $region37: #{scene_embed2_fwd.33} parent=35 // pred_check
        %p302 = pneg %p301
      $region38: #{scene_embed2_fwd.33} parent=35 // pred_check_branch
        %304 = sbr.rel (%p302) target = $region40
      $region39: #{scene_embed2_fwd.33} parent=35 // pred_region
        %305 = vst [vmem:[#allocation2] sm:$0xff] 0.0
      $region40: #{scene_embed2_fwd.33} parent=35 // pred_fallthru
        _
      %v306 = vld [vmem:[#allocation2] sm:$0xff]
      %v307 = vld [vmem:[%s276] sm:$0xff]
      %v308 = vld [vmem:[%s285] sm:$0xf]
      %v309 = vld [vmem:[%s285 + $0x4] sm:$0xf]
      %v310 = vld [vmem:[%s285 + $0x8] sm:$0xf]
      %v311 = vld [vmem:[%s285 + $0xc] sm:$0xf]
      %v312 = vld [vmem:[%s285 + $0x10] sm:$0xf]
      %v313 = vld [vmem:[%s285 + $0x14] sm:$0xf]
      %v314 = vld [vmem:[%s285 + $0x18] sm:$0xf]
      %v315 = vld [vmem:[%s285 + $0x1c] sm:$0xf]
      %v316 = vld [vmem:[%s285 + $0x20] sm:$0xf]
      %v317 = vld [vmem:[%s285 + $0x24] sm:$0xf]
      %v318 = vld [vmem:[%s285 + $0x28] sm:$0xf]
      %v319 = vld [vmem:[%s285 + $0x2c] sm:$0xf]
      %v320 = vld [vmem:[%s285 + $0x30] sm:$0xf]
      %v321 = vld [vmem:[%s285 + $0x34] sm:$0xf]
      %v322 = vld [vmem:[%s285 + $0x38] sm:$0xf]
      %v323 = vld [vmem:[%s285 + $0x3c] sm:$0xf]
      %v324 = vld [vmem:[%s285 + $0x40] sm:$0xf]
      %v325 = vld [vmem:[%s285 + $0x44] sm:$0xf]
      %v326 = vld [vmem:[%s285 + $0x48] sm:$0xf]
      %v327 = vld [vmem:[%s285 + $0x4c] sm:$0xf]
      %v328 = vld [vmem:[%s285 + $0x50] sm:$0xf]
      %v329 = vld [vmem:[%s285 + $0x54] sm:$0xf]
      %v330 = vld [vmem:[%s285 + $0x58] sm:$0xf]
      %v331 = vld [vmem:[%s285 + $0x5c] sm:$0xf]
      %v332 = vld [vmem:[%s285 + $0x60] sm:$0xf]
      %v333 = vld [vmem:[%s285 + $0x64] sm:$0xf]
      %v334 = vld [vmem:[%s285 + $0x68] sm:$0xf]
      %v335 = vld [vmem:[%s285 + $0x6c] sm:$0xf]
      %v336 = vld [vmem:[%s285 + $0x70] sm:$0xf]
      %v337 = vld [vmem:[%s285 + $0x74] sm:$0xf]
      %v338 = vld [vmem:[%s285 + $0x78] sm:$0xf]
      %v339 = vld [vmem:[%s285 + $0x7c] sm:$0xf]
      %v341 = vunpack.c.l.b16 %v307
      %v342 = vunpack.c.h.b16 %v307
      %v343 = vpack.c.b16 %v341, %v341
      %v344 = vpack.c.b16 %v342, %v342
      %v379 = vunpack.c.l.b16 %v308
      %v380 = vunpack.c.l.b16 %v309
      %v381 = vunpack.c.l.b16 %v310
      %v382 = vunpack.c.l.b16 %v311
      %v383 = vunpack.c.l.b16 %v312
      %v384 = vunpack.c.l.b16 %v313
      %v385 = vunpack.c.l.b16 %v314
      %v386 = vunpack.c.l.b16 %v315
      %v387 = vunpack.c.l.b16 %v316
      %v388 = vunpack.c.l.b16 %v317
      %v389 = vunpack.c.l.b16 %v318
      %v390 = vunpack.c.l.b16 %v319
      %v391 = vunpack.c.l.b16 %v320
      %v392 = vunpack.c.l.b16 %v321
      %v393 = vunpack.c.l.b16 %v322
      %v394 = vunpack.c.l.b16 %v323
      %v395 = vunpack.c.l.b16 %v324
      %v396 = vunpack.c.l.b16 %v325
      %v397 = vunpack.c.l.b16 %v326
      %v398 = vunpack.c.l.b16 %v327
      %v399 = vunpack.c.l.b16 %v328
      %v400 = vunpack.c.l.b16 %v329
      %v401 = vunpack.c.l.b16 %v330
      %v402 = vunpack.c.l.b16 %v331
      %v403 = vunpack.c.l.b16 %v332
      %v404 = vunpack.c.l.b16 %v333
      %v405 = vunpack.c.l.b16 %v334
      %v406 = vunpack.c.l.b16 %v335
      %v407 = vunpack.c.l.b16 %v336
      %v408 = vunpack.c.l.b16 %v337
      %v409 = vunpack.c.l.b16 %v338
      %v410 = vunpack.c.l.b16 %v339
      %v411 = vpack.c.b16 %v380, %v379
      %v412 = vpack.c.b16 %v382, %v381
      %v413 = vpack.c.b16 %v384, %v383
      %v414 = vpack.c.b16 %v386, %v385
      %v415 = vpack.c.b16 %v388, %v387
      %v416 = vpack.c.b16 %v390, %v389
      %v417 = vpack.c.b16 %v392, %v391
      %v418 = vpack.c.b16 %v394, %v393
      %v419 = vpack.c.b16 %v396, %v395
      %v420 = vpack.c.b16 %v398, %v397
      %v421 = vpack.c.b16 %v400, %v399
      %v422 = vpack.c.b16 %v402, %v401
      %v423 = vpack.c.b16 %v404, %v403
      %v424 = vpack.c.b16 %v406, %v405
      %v425 = vpack.c.b16 %v408, %v407
      %v426 = vpack.c.b16 %v410, %v409
      %443 = vmatprep.subr.bf16.mxu0 0
      %444 = vmatpush1.bf16.msra.mxu0 %v411
      %445 = vmatprep.subr.bf16.mxu0 0
      %446 = vmatpush1.bf16.msra.mxu0 %v412
      %447 = vmatprep.subr.bf16.mxu0 0
      %448 = vmatpush1.bf16.msra.mxu0 %v413
      %449 = vmatprep.subr.bf16.mxu0 0
      %450 = vmatpush1.bf16.msra.mxu0 %v414
      %451 = vmatprep.subr.bf16.mxu0 0
      %452 = vmatpush1.bf16.msra.mxu0 %v415
      %453 = vmatprep.subr.bf16.mxu0 0
      %454 = vmatpush1.bf16.msra.mxu0 %v416
      %455 = vmatprep.subr.bf16.mxu0 0
      %456 = vmatpush1.bf16.msra.mxu0 %v417
      %457 = vmatprep.subr.bf16.mxu0 0
      %458 = vmatpush1.bf16.msra.mxu0 %v418
      %459 = vmatprep.subr.bf16.mxu0 0
      %460 = vmatpush1.bf16.msra.mxu0 %v419
      %461 = vmatprep.subr.bf16.mxu0 0
      %462 = vmatpush1.bf16.msra.mxu0 %v420
      %463 = vmatprep.subr.bf16.mxu0 0
      %464 = vmatpush1.bf16.msra.mxu0 %v421
      %465 = vmatprep.subr.bf16.mxu0 0
      %466 = vmatpush1.bf16.msra.mxu0 %v422
      %467 = vmatprep.subr.bf16.mxu0 0
      %468 = vmatpush1.bf16.msra.mxu0 %v423
      %469 = vmatprep.subr.bf16.mxu0 0
      %470 = vmatpush1.bf16.msra.mxu0 %v424
      %471 = vmatprep.subr.bf16.mxu0 0
      %472 = vmatpush1.bf16.msra.mxu0 %v425
      %473 = vmatprep.subr.bf16.mxu0 0
      %474 = vmatpush1.bf16.msra.mxu0 %v426
      %475 = vmatprep.mubr.bf16.mxu0 %v344
      %476 = vmatmul.mubr.bf16.gmra.mrb[0].mxu0 %v343
      %v477 = vpop.f32.mrb[0].mxu0
      %v478 = vadd.f32 0.0, %v477
      %v479 = vpop.f32.mrb[0].mxu0
      %v480 = vpop.f32.mrb[0].mxu0
      %v481 = vpop.f32.mrb[0].mxu0
      %482 = vdwg.mxu0
      %v483 = vadd.f32 %v306, %v478
      %484 = vst [vmem:[#allocation2] sm:$0xff] %v483
      %p485 = scmp.eq.s32.totalorder %s22, 2
      // Predicated region
      $region41: #{scene_embed2_fwd.33} parent=35 // pred_check
        %p486 = pneg %p485
      $region42: #{scene_embed2_fwd.33} parent=35 // pred_check_branch
        %488 = sbr.rel (%p486) target = $region44
      $region43: #{scene_embed2_fwd.33} parent=35 // pred_region
        %v489 = vld [vmem:[#allocation2] sm:$0xff]
        %v490 = vld [vmem:[%s289] sm:$0x1]
        %v492 = vlaneseq
        %v493 = vshrl.u32 %v492, 7
        %v494 = vsub.s32 0, %v493
        %v495 = vrot.slane %v490, %v494
        %v497 = vmul.f32 %v489, %v495
        %v498 = vld [vmem:[%s292] sm:$0x1]
        %v500 = vlaneseq
        %v501 = vshrl.u32 %v500, 7
        %v502 = vsub.s32 0, %v501
        %v503 = vrot.slane %v498, %v502
        %v505 = vadd.f32 %v497, %v503
        %v506 = vmax.f32 %v505, 0.0
        %v507 = vpack.c.bf16 %v506, %v506
        %508 = vst [vmem:[%s299] sm:$0xf] %v507
      $region44: #{scene_embed2_fwd.33} parent=35 // pred_fallthru
        _
      %p509 = scmp.lt.s32.totalorder %s20, 0
      %s510 = scalar_select %p509, %s20, 0
      %p511 = scmp.lt.s32.totalorder %s21, 0
      %s512 = scalar_select %p511, %s21, 0
      %s513 = sadd.s32 %s512, %s510
      %s514 = smul.addr %s513, 4
      %s515 = scalar_lea.vmem %s4, %s514
      // Predicated region
      $region45: #{scene_embed2_fwd.33} parent=35 // pred_check
        %p516 = pneg %p162
      $region46: #{scene_embed2_fwd.33} parent=35 // pred_check_branch
        %518 = sbr.rel (%p516) target = $region48
      $region47: #{scene_embed2_fwd.33} parent=35 // pred_region
        _
      $region48: #{scene_embed2_fwd.33} parent=35 // pred_fallthru
        _
      // Predicated region
      $region49: #{scene_embed2_fwd.33} parent=35 // pred_check
        %p519 = pneg %p162
      $region50: #{scene_embed2_fwd.33} parent=35 // pred_check_branch
        %521 = sbr.rel (%p519) target = $region52
      $region51: #{scene_embed2_fwd.33} parent=35 // pred_region
        %p522 = scmp.lt.s32.totalorder %s20, 0
        %s523 = scalar_select %p522, %s20, 0
        %p524 = scmp.lt.s32.totalorder %s21, 0
        %s525 = scalar_select %p524, %s21, 0
        %s526 = sadd.s32 %s525, %s523
        %s527 = smul.addr %s526, 4
        %s528 = scalar_lea.vmem %s4, %s527
      $region52: #{scene_embed2_fwd.33} parent=35 // pred_fallthru
        _
    $region36: #{scene_embed2_fwd.33} parent=5 // pred_fallthru
      _
    %p529 = scmp.le.s32.totalorder 2, %s10
    // Predicated region
    $region53: #{scene_embed2_fwd.33} parent=5 // pred_check
      %p530 = pneg %p529
    $region54: #{scene_embed2_fwd.33} parent=5 // pred_check_branch
      %532 = sbr.rel (%p530) target = $region56
    $region55: #{scene_embed2_fwd.33} parent=5 // pred_region
      %s533 = ssub.s32 %s10, 2
    $region56: #{scene_embed2_fwd.33} parent=5 // pred_fallthru
      _
  $region6: #{scene_embed2_fwd.33} parent=0 // loop_footer
    %s14 = sadd.s32 1, %s10
  $region7: #{scene_embed2_fwd.33} parent=0 // loop_footer_branch
    %9 = sbr.rel target = $region3
  $region8: #{scene_embed2_fwd.33} parent=0 // loop_exit
    _

// kernel: scene_embed2_fwd.36
$region0: #{scene_embed2_fwd.36}
  #allocation0 [shape = 'u32[]', space=smem, size = 0x4, offset = 0x4, fixed_abs, tag = 'smem constant byte address 0x4 - core index']
  #allocation1 [shape = 'u32[144,128]{1,0:T(1,128)}', space=vmem, size = 0x12000, scoped, tag = 'internal scratch']
  %s0 = inlined_call_operand.vmem [shape: bf16[2,1,2,1,256], index: 0, kind: input, shape index: {}]
  %s1 = inlined_call_operand.vmem [shape: bf16[2,1,1,128], index: 1, kind: output, shape index: {}]
  %s2 = sld [smem:[#allocation0]]
  $region37: #{scene_embed2_fwd.36} parent=0
    _
  %s4 = ssub.s32 1, %s2
  %s5 = scalar_select 0, %s4, %s2
  loop: start=0, step=1, limit=4
  $region2: #{scene_embed2_fwd.36} parent=0 // loop_pre_header
    _
  $region3: #{scene_embed2_fwd.36} parent=0 // loop_header
    %s7 = sphi 0, %s11
    %p8 = scmp.ge.s32.totalorder %s7, 4
    %s14 = sphi 0, %s26
    %s15 = sphi 0, %s22
    %s16 = sphi 0, %s14
    %s17 = sphi 0, %s15
    %s18 = sphi 0, %s16
    %s19 = sphi 0, %s17
    %s31 = sphi 0, %s33
    %s34 = sphi 0, %s31
    %s35 = sphi 0, %s34
    %s51 = sphi 0, %s35
    %s59 = sphi 0, %s61
    %s62 = sphi 0, %s59
    %s63 = sphi 0, %s62
    %s79 = sphi 0, %s63
  $region4: #{scene_embed2_fwd.36} parent=0 // loop_header_branch
    %10 = sbr.rel (%p8) target = $region8
  $region5: #{scene_embed2_fwd.36} parent=0 // loop_body
    %s12 = ssub.s32 %s7, 1
    %s13 = ssub.s32 %s7, 2
    %s20 = sadd.s32 1, %s15
    %p21 = scmp.ge.s32.totalorder %s20, 1
    %s22 = scalar_select %p21, 0, %s20
    %s23 = sadd.s32 1, %s14
    %s24 = scalar_select %p21, %s23, %s14
    %p25 = scmp.ge.s32.totalorder %s24, 2
    %s26 = scalar_select %p25, 0, %s24
    %s27 = ssub.s32 %s14, %s26
    %s28 = ssub.s32 %s15, %s22
    %s29 = sor.u32 %s27, %s28
    %p30 = scmp.eq.s32.totalorder %s29, 0
    %s32 = sadd.s32 %s31, 1
    %s33 = scalar_select %p30, %s31, %s32
    %p36 = pneg %p30
    %p37 = scmp.eq.s32.totalorder %s7, 1
    %p38 = por %p36, %p37
    %p39 = scmp.ne.s32.totalorder %s31, %s34
    %p40 = scmp.eq.s32.totalorder %s7, 0
    %p41 = por %p39, %p40
    %p42 = scmp.ne.s32.totalorder %s31, %s34
    %p43 = scmp.eq.s32.totalorder %s12, 1
    %p44 = por %p42, %p43
    %p45 = scmp.ne.s32.totalorder %s34, %s35
    %p46 = scmp.eq.s32.totalorder %s12, 0
    %p47 = por %p45, %p46
    %p48 = scmp.ne.s32.totalorder %s34, %s35
    %p49 = scmp.eq.s32.totalorder %s13, 1
    %p50 = por %p48, %p49
    %p52 = scmp.ne.s32.totalorder %s35, %s51
    %p53 = scmp.eq.s32.totalorder %s13, 0
    %p54 = por %p52, %p53
    %s55 = ssub.s32 %s14, %s26
    %s56 = ssub.s32 %s15, %s22
    %s57 = sor.u32 %s55, %s56
    %p58 = scmp.eq.s32.totalorder %s57, 0
    %s60 = sadd.s32 %s59, 1
    %s61 = scalar_select %p58, %s59, %s60
    %p64 = pneg %p58
    %p65 = scmp.eq.s32.totalorder %s7, 1
    %p66 = por %p64, %p65
    %p67 = scmp.ne.s32.totalorder %s59, %s62
    %p68 = scmp.eq.s32.totalorder %s7, 0
    %p69 = por %p67, %p68
    %p70 = scmp.ne.s32.totalorder %s59, %s62
    %p71 = scmp.eq.s32.totalorder %s12, 1
    %p72 = por %p70, %p71
    %p73 = scmp.ne.s32.totalorder %s62, %s63
    %p74 = scmp.eq.s32.totalorder %s12, 0
    %p75 = por %p73, %p74
    %p76 = scmp.ne.s32.totalorder %s62, %s63
    %p77 = scmp.eq.s32.totalorder %s13, 1
    %p78 = por %p76, %p77
    %p80 = scmp.ne.s32.totalorder %s63, %s79
    %p81 = scmp.eq.s32.totalorder %s13, 0
    %p82 = por %p80, %p81
    %p83 = scmp.le.s32.totalorder 1, %s7
    %p84 = scmp.lt.s32.totalorder %s7, 3
    %p85 = pnand %p83, %p84
    %p86 = pneg %p85
    // Predicated region
    $region9: #{scene_embed2_fwd.36} parent=5 // pred_check
      _
    $region10: #{scene_embed2_fwd.36} parent=5 // pred_check_branch
      %88 = sbr.rel (%p85) target = $region12
    $region11: #{scene_embed2_fwd.36} parent=5 // pred_region
      %s89 = ssub.s32 %s7, 1
    $region12: #{scene_embed2_fwd.36} parent=5 // pred_fallthru
      _
    %p90 = scmp.lt.s32.totalorder %s7, 2
    // Predicated region
    $region13: #{scene_embed2_fwd.36} parent=5 // pred_check
      %p91 = pneg %p90
    $region14: #{scene_embed2_fwd.36} parent=5 // pred_check_branch
      %93 = sbr.rel (%p91) target = $region16
    $region15: #{scene_embed2_fwd.36} parent=5 // pred_region
      // Predicated region
      $region17: #{scene_embed2_fwd.36} parent=15 // pred_check
        %p94 = pneg %p41
      $region18: #{scene_embed2_fwd.36} parent=15 // pred_check_branch
        %96 = sbr.rel (%p94) target = $region20
      $region19: #{scene_embed2_fwd.36} parent=15 // pred_region
        %p97 = scmp.lt.s32.totalorder %s14, 1
        %s98 = scalar_select %p97, %s14, 1
        %p99 = scmp.lt.s32.totalorder %s15, 0
        %s100 = scalar_select %p99, %s15, 0
        %s101 = smul.addr %s100, 4
        %s102 = smul.addr %s98, 4
        %s103 = sadd.s32 %s101, %s102
        %s104 = scalar_lea.vmem %s0, %s103
      $region20: #{scene_embed2_fwd.36} parent=15 // pred_fallthru
        _
    $region16: #{scene_embed2_fwd.36} parent=5 // pred_fallthru
      _
    %p105 = scmp.le.s32.totalorder 1, %s7
    %p106 = scmp.lt.s32.totalorder %s7, 3
    %p107 = pnand %p105, %p106
    %p108 = pneg %p107
    // Predicated region
    $region21: #{scene_embed2_fwd.36} parent=5 // pred_check
      _
    $region22: #{scene_embed2_fwd.36} parent=5 // pred_check_branch
      %110 = sbr.rel (%p107) target = $region24
    $region23: #{scene_embed2_fwd.36} parent=5 // pred_region
      %s111 = ssub.s32 %s7, 1
      %p112 = scmp.lt.s32.totalorder %s16, 1
      %s113 = scalar_select %p112, %s16, 1
      %p114 = scmp.lt.s32.totalorder %s17, 0
      %s115 = scalar_select %p114, %s17, 0
      %s116 = smul.addr %s115, 4
      %s117 = smul.addr %s113, 4
      %s118 = sadd.s32 %s116, %s117
      %s119 = scalar_lea.vmem %s0, %s118
      %p120 = pneg %p47
      %p121 = pneg %p44
      %p122 = pneg %p75
      %p123 = pneg %p72
      %p124 = scmp.lt.s32.totalorder %s16, 1
      %s125 = scalar_select %p124, %s16, 1
      %p126 = scmp.lt.s32.totalorder %s17, 0
      %s127 = scalar_select %p126, %s17, 0
      %s128 = sadd.s32 %s127, %s125
      %s129 = scalar_lea.vmem %s1, %s128
      %p130 = scmp.lt.s32.totalorder %s16, 1
      %s131 = scalar_select %p130, %s16, 1
      %p132 = scmp.lt.s32.totalorder %s17, 0
      %s133 = scalar_select %p132, %s17, 0
      %s134 = smul.addr %s133, 4
      %s135 = smul.addr %s131, 4
      %s136 = sadd.s32 %s134, %s135
      %s137 = scalar_lea.vmem %s0, %s136
      %p138 = scmp.lt.s32.totalorder %s16, 1
      %s139 = scalar_select %p138, %s16, 1
      %p140 = scmp.lt.s32.totalorder %s17, 0
      %s141 = scalar_select %p140, %s17, 0
      %s142 = sadd.s32 %s141, %s139
      %s143 = scalar_lea.vmem %s1, %s142
      %v144 = vld [vmem:[%s137] sm:$0x3]
      %s145 = scalar_lea.vmem %s137, 2
      %v146 = vld [vmem:[%s145] sm:$0x3]
      %v147 = vmax.bf16 %v144, %v146
      %v149 = vrot.slane %v147, 1
      %v151 = vmax.bf16 %v147, %v149
      %vm152 = vcmask 1040384
      %vm153 = vsmask.f32 256
      %vm154 = vmand %vm152, %vm153
      %v155 = vld [vmem:[%s143] sm:$0x1]
      %v156 = vsel %vm154, %v151, %v155
      %157 = vst [vmem:[%s143] sm:$0x1] %v156
      %p158 = scmp.lt.s32.totalorder %s16, 1
      %s159 = scalar_select %p158, %s16, 1
      %p160 = scmp.lt.s32.totalorder %s17, 0
      %s161 = scalar_select %p160, %s17, 0
      %s162 = sadd.s32 %s161, %s159
      %s163 = scalar_lea.vmem %s1, %s162
      // Predicated region
      $region25: #{scene_embed2_fwd.36} parent=23 // pred_check
        %p164 = pneg %p72
      $region26: #{scene_embed2_fwd.36} parent=23 // pred_check_branch
        %166 = sbr.rel (%p164) target = $region28
      $region27: #{scene_embed2_fwd.36} parent=23 // pred_region
        _
      $region28: #{scene_embed2_fwd.36} parent=23 // pred_fallthru
        _
    $region24: #{scene_embed2_fwd.36} parent=5 // pred_fallthru
      _
    %p167 = scmp.le.s32.totalorder 2, %s7
    // Predicated region
    $region29: #{scene_embed2_fwd.36} parent=5 // pred_check
      %p168 = pneg %p167
    $region30: #{scene_embed2_fwd.36} parent=5 // pred_check_branch
      %170 = sbr.rel (%p168) target = $region32
    $region31: #{scene_embed2_fwd.36} parent=5 // pred_region
      %s171 = ssub.s32 %s7, 2
      // Predicated region
      $region33: #{scene_embed2_fwd.36} parent=31 // pred_check
        %p172 = pneg %p78
      $region34: #{scene_embed2_fwd.36} parent=31 // pred_check_branch
        %174 = sbr.rel (%p172) target = $region36
      $region35: #{scene_embed2_fwd.36} parent=31 // pred_region
        %p175 = scmp.lt.s32.totalorder %s18, 1
        %s176 = scalar_select %p175, %s18, 1
        %p177 = scmp.lt.s32.totalorder %s19, 0
        %s178 = scalar_select %p177, %s19, 0
        %s179 = sadd.s32 %s178, %s176
        %s180 = scalar_lea.vmem %s1, %s179
      $region36: #{scene_embed2_fwd.36} parent=31 // pred_fallthru
        _
    $region32: #{scene_embed2_fwd.36} parent=5 // pred_fallthru
      _
  $region6: #{scene_embed2_fwd.36} parent=0 // loop_footer
    %s11 = sadd.s32 1, %s7
  $region7: #{scene_embed2_fwd.36} parent=0 // loop_footer_branch
    %6 = sbr.rel target = $region3
  $region8: #{scene_embed2_fwd.36} parent=0 // loop_exit
    _

// kernel: scene_embed2_fwd.40
$region0: #{scene_embed2_fwd.40}
  #allocation0 [shape = 'u32[]', space=smem, size = 0x4, offset = 0x4, fixed_abs, tag = 'smem constant byte address 0x4 - core index']
  #allocation1 [shape = 'u32[144,128]{1,0:T(1,128)}', space=vmem, size = 0x12000, scoped, tag = 'internal scratch']
  #allocation2 [shape = 'f32[8,128]{1,0:T(8,128)}', space=vmem, size = 0x1000, scoped, tag = 'scratch operand']
  %s0 = inlined_call_operand.vmem [shape: bf16[8,2304], index: 0, kind: input, shape index: {}]
  %s1 = inlined_call_operand.vmem [shape: bf16[2304,128], index: 1, kind: input, shape index: {}]
  %s2 = inlined_call_operand.vmem [shape: f32[1,128], index: 2, kind: input, shape index: {}]
  %s3 = inlined_call_operand.vmem [shape: f32[1,128], index: 3, kind: input, shape index: {}]
  %s4 = inlined_call_operand.vmem [shape: bf16[8,128], index: 4, kind: output, shape index: {}]
  %s5 = sld [smem:[#allocation0]]
  $region57: #{scene_embed2_fwd.40} parent=0
    _
  %s7 = ssub.s32 1, %s5
  %s8 = scalar_select 0, %s7, %s5
  loop: start=0, step=1, limit=11
  $region2: #{scene_embed2_fwd.40} parent=0 // loop_pre_header
    _
  $region3: #{scene_embed2_fwd.40} parent=0 // loop_header
    %s10 = sphi 0, %s14
    %p11 = scmp.ge.s32.totalorder %s10, 11
    %s17 = sphi 0, %s36
    %s18 = sphi 0, %s32
    %s19 = sphi 0, %s28
    %s20 = sphi 0, %s17
    %s21 = sphi 0, %s18
    %s22 = sphi 0, %s19
    %s23 = sphi 0, %s20
    %s24 = sphi 0, %s21
    %s25 = sphi 0, %s22
    %s41 = sphi 0, %s43
    %s44 = sphi 0, %s41
    %s45 = sphi 0, %s44
    %s61 = sphi 0, %s45
    %s69 = sphi 0, %s71
    %s72 = sphi 0, %s69
    %s73 = sphi 0, %s72
    %s89 = sphi 0, %s73
    %s95 = sphi 0, %s97
    %s98 = sphi 0, %s95
    %s99 = sphi 0, %s98
    %s115 = sphi 0, %s99
    %s121 = sphi 0, %s123
    %s124 = sphi 0, %s121
    %s125 = sphi 0, %s124
    %s141 = sphi 0, %s125
    %s149 = sphi 0, %s151
    %s152 = sphi 0, %s149
    %s153 = sphi 0, %s152
    %s169 = sphi 0, %s153
  $region4: #{scene_embed2_fwd.40} parent=0 // loop_header_branch
    %13 = sbr.rel (%p11) target = $region8
  $region5: #{scene_embed2_fwd.40} parent=0 // loop_body
    %s15 = ssub.s32 %s10, 1
    %s16 = ssub.s32 %s10, 2
    %s26 = sadd.s32 1, %s19
    %p27 = scmp.ge.s32.totalorder %s26, 9
    %s28 = scalar_select %p27, 0, %s26
    %s29 = sadd.s32 1, %s18
    %s30 = scalar_select %p27, %s29, %s18
    %p31 = scmp.ge.s32.totalorder %s30, 1
    %s32 = scalar_select %p31, 0, %s30
    %s33 = sadd.s32 1, %s17
    %s34 = scalar_select %p31, %s33, %s17
    %p35 = scmp.ge.s32.totalorder %s34, 1
    %s36 = scalar_select %p35, 0, %s34
    %s37 = ssub.s32 %s17, %s36
    %s38 = ssub.s32 %s19, %s28
    %s39 = sor.u32 %s37, %s38
    %p40 = scmp.eq.s32.totalorder %s39, 0
    %s42 = sadd.s32 %s41, 1
    %s43 = scalar_select %p40, %s41, %s42
    %p46 = pneg %p40
    %p47 = scmp.eq.s32.totalorder %s10, 8
    %p48 = por %p46, %p47
    %p49 = scmp.ne.s32.totalorder %s41, %s44
    %p50 = scmp.eq.s32.totalorder %s10, 0
    %p51 = por %p49, %p50
    %p52 = scmp.ne.s32.totalorder %s41, %s44
    %p53 = scmp.eq.s32.totalorder %s15, 8
    %p54 = por %p52, %p53
    %p55 = scmp.ne.s32.totalorder %s44, %s45
    %p56 = scmp.eq.s32.totalorder %s15, 0
    %p57 = por %p55, %p56
    %p58 = scmp.ne.s32.totalorder %s44, %s45
    %p59 = scmp.eq.s32.totalorder %s16, 8
    %p60 = por %p58, %p59
    %p62 = scmp.ne.s32.totalorder %s45, %s61
    %p63 = scmp.eq.s32.totalorder %s16, 0
    %p64 = por %p62, %p63
    %s65 = ssub.s32 %s19, %s28
    %s66 = ssub.s32 %s18, %s32
    %s67 = sor.u32 %s65, %s66
    %p68 = scmp.eq.s32.totalorder %s67, 0
    %s70 = sadd.s32 %s69, 1
    %s71 = scalar_select %p68, %s69, %s70
    %p74 = pneg %p68
    %p75 = scmp.eq.s32.totalorder %s10, 8
    %p76 = por %p74, %p75
    %p77 = scmp.ne.s32.totalorder %s69, %s72
    %p78 = scmp.eq.s32.totalorder %s10, 0
    %p79 = por %p77, %p78
    %p80 = scmp.ne.s32.totalorder %s69, %s72
    %p81 = scmp.eq.s32.totalorder %s15, 8
    %p82 = por %p80, %p81
    %p83 = scmp.ne.s32.totalorder %s72, %s73
    %p84 = scmp.eq.s32.totalorder %s15, 0
    %p85 = por %p83, %p84
    %p86 = scmp.ne.s32.totalorder %s72, %s73
    %p87 = scmp.eq.s32.totalorder %s16, 8
    %p88 = por %p86, %p87
    %p90 = scmp.ne.s32.totalorder %s73, %s89
    %p91 = scmp.eq.s32.totalorder %s16, 0
    %p92 = por %p90, %p91
    %s93 = ssub.s32 %s18, %s32
    %p94 = scmp.eq.s32.totalorder %s93, 0
    %s96 = sadd.s32 %s95, 1
    %s97 = scalar_select %p94, %s95, %s96
    %p100 = pneg %p94
    %p101 = scmp.eq.s32.totalorder %s10, 8
    %p102 = por %p100, %p101
    %p103 = scmp.ne.s32.totalorder %s95, %s98
    %p104 = scmp.eq.s32.totalorder %s10, 0
    %p105 = por %p103, %p104
    %p106 = scmp.ne.s32.totalorder %s95, %s98
    %p107 = scmp.eq.s32.totalorder %s15, 8
    %p108 = por %p106, %p107
    %p109 = scmp.ne.s32.totalorder %s98, %s99
    %p110 = scmp.eq.s32.totalorder %s15, 0
    %p111 = por %p109, %p110
    %p112 = scmp.ne.s32.totalorder %s98, %s99
    %p113 = scmp.eq.s32.totalorder %s16, 8
    %p114 = por %p112, %p113
    %p116 = scmp.ne.s32.totalorder %s99, %s115
    %p117 = scmp.eq.s32.totalorder %s16, 0
    %p118 = por %p116, %p117
    %s119 = ssub.s32 %s18, %s32
    %p120 = scmp.eq.s32.totalorder %s119, 0
    %s122 = sadd.s32 %s121, 1
    %s123 = scalar_select %p120, %s121, %s122
    %p126 = pneg %p120
    %p127 = scmp.eq.s32.totalorder %s10, 8
    %p128 = por %p126, %p127
    %p129 = scmp.ne.s32.totalorder %s121, %s124
    %p130 = scmp.eq.s32.totalorder %s10, 0
    %p131 = por %p129, %p130
    %p132 = scmp.ne.s32.totalorder %s121, %s124
    %p133 = scmp.eq.s32.totalorder %s15, 8
    %p134 = por %p132, %p133
    %p135 = scmp.ne.s32.totalorder %s124, %s125
    %p136 = scmp.eq.s32.totalorder %s15, 0
    %p137 = por %p135, %p136
    %p138 = scmp.ne.s32.totalorder %s124, %s125
    %p139 = scmp.eq.s32.totalorder %s16, 8
    %p140 = por %p138, %p139
    %p142 = scmp.ne.s32.totalorder %s125, %s141
    %p143 = scmp.eq.s32.totalorder %s16, 0
    %p144 = por %p142, %p143
    %s145 = ssub.s32 %s17, %s36
    %s146 = ssub.s32 %s18, %s32
    %s147 = sor.u32 %s145, %s146
    %p148 = scmp.eq.s32.totalorder %s147, 0
    %s150 = sadd.s32 %s149, 1
    %s151 = scalar_select %p148, %s149, %s150
    %p154 = pneg %p148
    %p155 = scmp.eq.s32.totalorder %s10, 8
    %p156 = por %p154, %p155
    %p157 = scmp.ne.s32.totalorder %s149, %s152
    %p158 = scmp.eq.s32.totalorder %s10, 0
    %p159 = por %p157, %p158
    %p160 = scmp.ne.s32.totalorder %s149, %s152
    %p161 = scmp.eq.s32.totalorder %s15, 8
    %p162 = por %p160, %p161
    %p163 = scmp.ne.s32.totalorder %s152, %s153
    %p164 = scmp.eq.s32.totalorder %s15, 0
    %p165 = por %p163, %p164
    %p166 = scmp.ne.s32.totalorder %s152, %s153
    %p167 = scmp.eq.s32.totalorder %s16, 8
    %p168 = por %p166, %p167
    %p170 = scmp.ne.s32.totalorder %s153, %s169
    %p171 = scmp.eq.s32.totalorder %s16, 0
    %p172 = por %p170, %p171
    %p173 = scmp.le.s32.totalorder 1, %s10
    %p174 = scmp.lt.s32.totalorder %s10, 10
    %p175 = pnand %p173, %p174
    %p176 = pneg %p175
    // Predicated region
    $region9: #{scene_embed2_fwd.40} parent=5 // pred_check
      _
    $region10: #{scene_embed2_fwd.40} parent=5 // pred_check_branch
      %178 = sbr.rel (%p175) target = $region12
    $region11: #{scene_embed2_fwd.40} parent=5 // pred_region
      %s179 = ssub.s32 %s10, 1
      // Predicated region
      $region13: #{scene_embed2_fwd.40} parent=11 // pred_check
        %p180 = pneg %p111
      $region14: #{scene_embed2_fwd.40} parent=11 // pred_check_branch
        %182 = sbr.rel (%p180) target = $region16
      $region15: #{scene_embed2_fwd.40} parent=11 // pred_region
        %p183 = scmp.lt.s32.totalorder %s21, 0
        %s184 = scalar_select %p183, %s21, 0
        %s185 = scalar_lea.vmem %s2, %s184
      $region16: #{scene_embed2_fwd.40} parent=11 // pred_fallthru
        _
      // Predicated region
      $region17: #{scene_embed2_fwd.40} parent=11 // pred_check
        %p186 = pneg %p137
      $region18: #{scene_embed2_fwd.40} parent=11 // pred_check_branch
        %188 = sbr.rel (%p186) target = $region20
      $region19: #{scene_embed2_fwd.40} parent=11 // pred_region
        %p189 = scmp.lt.s32.totalorder %s21, 0
        %s190 = scalar_select %p189, %s21, 0
        %s191 = scalar_lea.vmem %s3, %s190
      $region20: #{scene_embed2_fwd.40} parent=11 // pred_fallthru
        _
    $region12: #{scene_embed2_fwd.40} parent=5 // pred_fallthru
      _
    %p192 = scmp.lt.s32.totalorder %s10, 9
    // Predicated region
    $region21: #{scene_embed2_fwd.40} parent=5 // pred_check
      %p193 = pneg %p192
    $region22: #{scene_embed2_fwd.40} parent=5 // pred_check_branch
      %195 = sbr.rel (%p193) target = $region24
    $region23: #{scene_embed2_fwd.40} parent=5 // pred_region
      // Predicated region
      $region25: #{scene_embed2_fwd.40} parent=23 // pred_check
        %p196 = pneg %p51
      $region26: #{scene_embed2_fwd.40} parent=23 // pred_check_branch
        %198 = sbr.rel (%p196) target = $region28
      $region27: #{scene_embed2_fwd.40} parent=23 // pred_region
        %s199 = smul.u32 2, %s19
        %p200 = scmp.lt.s32.totalorder %s17, 0
        %s201 = scalar_select %p200, %s17, 0
        %p202 = scmp.lt.s32.totalorder %s199, 17
        %s203 = scalar_select %p202, %s199, 17
        %s204 = smul.addr %s201, 18
        %s205 = sadd.s32 %s203, %s204
        %s206 = smul.addr %s205, 4
        %s207 = scalar_lea.vmem %s0, %s206
        %s208 = smul.u32 2, %s19
      $region28: #{scene_embed2_fwd.40} parent=23 // pred_fallthru
        _
      // Predicated region
      $region29: #{scene_embed2_fwd.40} parent=23 // pred_check
        %p209 = pneg %p79
      $region30: #{scene_embed2_fwd.40} parent=23 // pred_check_branch
        %211 = sbr.rel (%p209) target = $region32
      $region31: #{scene_embed2_fwd.40} parent=23 // pred_region
        %s212 = smul.u32 32, %s19
        %p213 = scmp.lt.s32.totalorder %s212, 287
        %s214 = scalar_select %p213, %s212, 287
        %p215 = scmp.lt.s32.totalorder %s18, 0
        %s216 = scalar_select %p215, %s18, 0
        %s217 = sadd.s32 %s216, %s214
        %s218 = smul.addr %s217, 4
        %s219 = scalar_lea.vmem %s1, %s218
        %s220 = smul.u32 32, %s19
      $region32: #{scene_embed2_fwd.40} parent=23 // pred_fallthru
        _
    $region24: #{scene_embed2_fwd.40} parent=5 // pred_fallthru
      _
    %p221 = scmp.le.s32.totalorder 1, %s10
    %p222 = scmp.lt.s32.totalorder %s10, 10
    %p223 = pnand %p221, %p222
    %p224 = pneg %p223
    // Predicated region
    $region33: #{scene_embed2_fwd.40} parent=5 // pred_check
      _
    $region34: #{scene_embed2_fwd.40} parent=5 // pred_check_branch
      %226 = sbr.rel (%p223) target = $region36
    $region35: #{scene_embed2_fwd.40} parent=5 // pred_region
      %s227 = ssub.s32 %s10, 1
      %s228 = smul.u32 2, %s22
      %p229 = scmp.lt.s32.totalorder %s20, 0
      %s230 = scalar_select %p229, %s20, 0
      %p231 = scmp.lt.s32.totalorder %s228, 17
      %s232 = scalar_select %p231, %s228, 17
      %s233 = smul.addr %s230, 18
      %s234 = sadd.s32 %s232, %s233
      %s235 = smul.addr %s234, 4
      %s236 = scalar_lea.vmem %s0, %s235
      %p237 = pneg %p57
      %p238 = pneg %p54
      %s239 = smul.u32 32, %s22
      %p240 = scmp.lt.s32.totalorder %s239, 287
      %s241 = scalar_select %p240, %s239, 287
      %p242 = scmp.lt.s32.totalorder %s21, 0
      %s243 = scalar_select %p242, %s21, 0
      %s244 = sadd.s32 %s243, %s241
      %s245 = smul.addr %s244, 4
      %s246 = scalar_lea.vmem %s1, %s245
      %p247 = pneg %p85
      %p248 = pneg %p82
      %p249 = scmp.lt.s32.totalorder %s21, 0
      %s250 = scalar_select %p249, %s21, 0
      %s251 = scalar_lea.vmem %s2, %s250
      %p252 = pneg %p111
      %p253 = pneg %p108
      %p254 = scmp.lt.s32.totalorder %s21, 0
      %s255 = scalar_select %p254, %s21, 0
      %s256 = scalar_lea.vmem %s3, %s255
      %p257 = pneg %p137
      %p258 = pneg %p134
      %p259 = pneg %p165
      %p260 = pneg %p162
      %p261 = scmp.lt.s32.totalorder %s20, 0
      %s262 = scalar_select %p261, %s20, 0
      %p263 = scmp.lt.s32.totalorder %s21, 0
      %s264 = scalar_select %p263, %s21, 0
      %s265 = sadd.s32 %s264, %s262
      %s266 = smul.addr %s265, 4
      %s267 = scalar_lea.vmem %s4, %s266
      %s268 = smul.u32 2, %s22
      %p269 = scmp.lt.s32.totalorder %s20, 0
      %s270 = scalar_select %p269, %s20, 0
      %p271 = scmp.lt.s32.totalorder %s268, 17
      %s272 = scalar_select %p271, %s268, 17
      %s273 = smul.addr %s270, 18
      %s274 = sadd.s32 %s272, %s273
      %s275 = smul.addr %s274, 4
      %s276 = scalar_lea.vmem %s0, %s275
      %s277 = smul.u32 2, %s22
      %s278 = smul.u32 32, %s22
      %p279 = scmp.lt.s32.totalorder %s278, 287
      %s280 = scalar_select %p279, %s278, 287
      %p281 = scmp.lt.s32.totalorder %s21, 0
      %s282 = scalar_select %p281, %s21, 0
      %s283 = sadd.s32 %s282, %s280
      %s284 = smul.addr %s283, 4
      %s285 = scalar_lea.vmem %s1, %s284
      %s286 = smul.u32 32, %s22
      %p287 = scmp.lt.s32.totalorder %s21, 0
      %s288 = scalar_select %p287, %s21, 0
      %s289 = scalar_lea.vmem %s2, %s288
      %p290 = scmp.lt.s32.totalorder %s21, 0
      %s291 = scalar_select %p290, %s21, 0
      %s292 = scalar_lea.vmem %s3, %s291
      %p293 = scmp.lt.s32.totalorder %s20, 0
      %s294 = scalar_select %p293, %s20, 0
      %p295 = scmp.lt.s32.totalorder %s21, 0
      %s296 = scalar_select %p295, %s21, 0
      %s297 = sadd.s32 %s296, %s294
      %s298 = smul.addr %s297, 4
      %s299 = scalar_lea.vmem %s4, %s298
      %p301 = scmp.eq.s32.totalorder %s22, 0
      // Predicated region
      $region37: #{scene_embed2_fwd.40} parent=35 // pred_check
        %p302 = pneg %p301
      $region38: #{scene_embed2_fwd.40} parent=35 // pred_check_branch
        %304 = sbr.rel (%p302) target = $region40
      $region39: #{scene_embed2_fwd.40} parent=35 // pred_region
        %305 = vst [vmem:[#allocation2] sm:$0xff] 0.0
      $region40: #{scene_embed2_fwd.40} parent=35 // pred_fallthru
        _
      %v306 = vld [vmem:[#allocation2] sm:$0xff]
      %v307 = vld [vmem:[%s276] sm:$0xff]
      %v308 = vld [vmem:[%s285] sm:$0xf]
      %v309 = vld [vmem:[%s285 + $0x4] sm:$0xf]
      %v310 = vld [vmem:[%s285 + $0x8] sm:$0xf]
      %v311 = vld [vmem:[%s285 + $0xc] sm:$0xf]
      %v312 = vld [vmem:[%s285 + $0x10] sm:$0xf]
      %v313 = vld [vmem:[%s285 + $0x14] sm:$0xf]
      %v314 = vld [vmem:[%s285 + $0x18] sm:$0xf]
      %v315 = vld [vmem:[%s285 + $0x1c] sm:$0xf]
      %v316 = vld [vmem:[%s285 + $0x20] sm:$0xf]
      %v317 = vld [vmem:[%s285 + $0x24] sm:$0xf]
      %v318 = vld [vmem:[%s285 + $0x28] sm:$0xf]
      %v319 = vld [vmem:[%s285 + $0x2c] sm:$0xf]
      %v320 = vld [vmem:[%s285 + $0x30] sm:$0xf]
      %v321 = vld [vmem:[%s285 + $0x34] sm:$0xf]
      %v322 = vld [vmem:[%s285 + $0x38] sm:$0xf]
      %v323 = vld [vmem:[%s285 + $0x3c] sm:$0xf]
      %v324 = vld [vmem:[%s285 + $0x40] sm:$0xf]
      %v325 = vld [vmem:[%s285 + $0x44] sm:$0xf]
      %v326 = vld [vmem:[%s285 + $0x48] sm:$0xf]
      %v327 = vld [vmem:[%s285 + $0x4c] sm:$0xf]
      %v328 = vld [vmem:[%s285 + $0x50] sm:$0xf]
      %v329 = vld [vmem:[%s285 + $0x54] sm:$0xf]
      %v330 = vld [vmem:[%s285 + $0x58] sm:$0xf]
      %v331 = vld [vmem:[%s285 + $0x5c] sm:$0xf]
      %v332 = vld [vmem:[%s285 + $0x60] sm:$0xf]
      %v333 = vld [vmem:[%s285 + $0x64] sm:$0xf]
      %v334 = vld [vmem:[%s285 + $0x68] sm:$0xf]
      %v335 = vld [vmem:[%s285 + $0x6c] sm:$0xf]
      %v336 = vld [vmem:[%s285 + $0x70] sm:$0xf]
      %v337 = vld [vmem:[%s285 + $0x74] sm:$0xf]
      %v338 = vld [vmem:[%s285 + $0x78] sm:$0xf]
      %v339 = vld [vmem:[%s285 + $0x7c] sm:$0xf]
      %v341 = vunpack.c.l.b16 %v307
      %v342 = vunpack.c.h.b16 %v307
      %v343 = vpack.c.b16 %v341, %v341
      %v344 = vpack.c.b16 %v342, %v342
      %v379 = vunpack.c.l.b16 %v308
      %v380 = vunpack.c.l.b16 %v309
      %v381 = vunpack.c.l.b16 %v310
      %v382 = vunpack.c.l.b16 %v311
      %v383 = vunpack.c.l.b16 %v312
      %v384 = vunpack.c.l.b16 %v313
      %v385 = vunpack.c.l.b16 %v314
      %v386 = vunpack.c.l.b16 %v315
      %v387 = vunpack.c.l.b16 %v316
      %v388 = vunpack.c.l.b16 %v317
      %v389 = vunpack.c.l.b16 %v318
      %v390 = vunpack.c.l.b16 %v319
      %v391 = vunpack.c.l.b16 %v320
      %v392 = vunpack.c.l.b16 %v321
      %v393 = vunpack.c.l.b16 %v322
      %v394 = vunpack.c.l.b16 %v323
      %v395 = vunpack.c.l.b16 %v324
      %v396 = vunpack.c.l.b16 %v325
      %v397 = vunpack.c.l.b16 %v326
      %v398 = vunpack.c.l.b16 %v327
      %v399 = vunpack.c.l.b16 %v328
      %v400 = vunpack.c.l.b16 %v329
      %v401 = vunpack.c.l.b16 %v330
      %v402 = vunpack.c.l.b16 %v331
      %v403 = vunpack.c.l.b16 %v332
      %v404 = vunpack.c.l.b16 %v333
      %v405 = vunpack.c.l.b16 %v334
      %v406 = vunpack.c.l.b16 %v335
      %v407 = vunpack.c.l.b16 %v336
      %v408 = vunpack.c.l.b16 %v337
      %v409 = vunpack.c.l.b16 %v338
      %v410 = vunpack.c.l.b16 %v339
      %v411 = vpack.c.b16 %v380, %v379
      %v412 = vpack.c.b16 %v382, %v381
      %v413 = vpack.c.b16 %v384, %v383
      %v414 = vpack.c.b16 %v386, %v385
      %v415 = vpack.c.b16 %v388, %v387
      %v416 = vpack.c.b16 %v390, %v389
      %v417 = vpack.c.b16 %v392, %v391
      %v418 = vpack.c.b16 %v394, %v393
      %v419 = vpack.c.b16 %v396, %v395
      %v420 = vpack.c.b16 %v398, %v397
      %v421 = vpack.c.b16 %v400, %v399
      %v422 = vpack.c.b16 %v402, %v401
      %v423 = vpack.c.b16 %v404, %v403
      %v424 = vpack.c.b16 %v406, %v405
      %v425 = vpack.c.b16 %v408, %v407
      %v426 = vpack.c.b16 %v410, %v409
      %443 = vmatprep.subr.bf16.mxu0 0
      %444 = vmatpush1.bf16.msra.mxu0 %v411
      %445 = vmatprep.subr.bf16.mxu0 0
      %446 = vmatpush1.bf16.msra.mxu0 %v412
      %447 = vmatprep.subr.bf16.mxu0 0
      %448 = vmatpush1.bf16.msra.mxu0 %v413
      %449 = vmatprep.subr.bf16.mxu0 0
      %450 = vmatpush1.bf16.msra.mxu0 %v414
      %451 = vmatprep.subr.bf16.mxu0 0
      %452 = vmatpush1.bf16.msra.mxu0 %v415
      %453 = vmatprep.subr.bf16.mxu0 0
      %454 = vmatpush1.bf16.msra.mxu0 %v416
      %455 = vmatprep.subr.bf16.mxu0 0
      %456 = vmatpush1.bf16.msra.mxu0 %v417
      %457 = vmatprep.subr.bf16.mxu0 0
      %458 = vmatpush1.bf16.msra.mxu0 %v418
      %459 = vmatprep.subr.bf16.mxu0 0
      %460 = vmatpush1.bf16.msra.mxu0 %v419
      %461 = vmatprep.subr.bf16.mxu0 0
      %462 = vmatpush1.bf16.msra.mxu0 %v420
      %463 = vmatprep.subr.bf16.mxu0 0
      %464 = vmatpush1.bf16.msra.mxu0 %v421
      %465 = vmatprep.subr.bf16.mxu0 0
      %466 = vmatpush1.bf16.msra.mxu0 %v422
      %467 = vmatprep.subr.bf16.mxu0 0
      %468 = vmatpush1.bf16.msra.mxu0 %v423
      %469 = vmatprep.subr.bf16.mxu0 0
      %470 = vmatpush1.bf16.msra.mxu0 %v424
      %471 = vmatprep.subr.bf16.mxu0 0
      %472 = vmatpush1.bf16.msra.mxu0 %v425
      %473 = vmatprep.subr.bf16.mxu0 0
      %474 = vmatpush1.bf16.msra.mxu0 %v426
      %475 = vmatprep.mubr.bf16.mxu0 %v344
      %476 = vmatmul.mubr.bf16.gmra.mrb[0].mxu0 %v343
      %v477 = vpop.f32.mrb[0].mxu0
      %v478 = vadd.f32 0.0, %v477
      %v479 = vpop.f32.mrb[0].mxu0
      %v480 = vpop.f32.mrb[0].mxu0
      %v481 = vpop.f32.mrb[0].mxu0
      %482 = vdwg.mxu0
      %v483 = vadd.f32 %v306, %v478
      %484 = vst [vmem:[#allocation2] sm:$0xff] %v483
      %p485 = scmp.eq.s32.totalorder %s22, 8
      // Predicated region
      $region41: #{scene_embed2_fwd.40} parent=35 // pred_check
        %p486 = pneg %p485
      $region42: #{scene_embed2_fwd.40} parent=35 // pred_check_branch
        %488 = sbr.rel (%p486) target = $region44
      $region43: #{scene_embed2_fwd.40} parent=35 // pred_region
        %v489 = vld [vmem:[#allocation2] sm:$0xff]
        %v490 = vld [vmem:[%s289] sm:$0x1]
        %v492 = vlaneseq
        %v493 = vshrl.u32 %v492, 7
        %v494 = vsub.s32 0, %v493
        %v495 = vrot.slane %v490, %v494
        %v497 = vmul.f32 %v489, %v495
        %v498 = vld [vmem:[%s292] sm:$0x1]
        %v500 = vlaneseq
        %v501 = vshrl.u32 %v500, 7
        %v502 = vsub.s32 0, %v501
        %v503 = vrot.slane %v498, %v502
        %v505 = vadd.f32 %v497, %v503
        %v506 = vmax.f32 %v505, 0.0
        %v507 = vpack.c.bf16 %v506, %v506
        %508 = vst [vmem:[%s299] sm:$0xf] %v507
      $region44: #{scene_embed2_fwd.40} parent=35 // pred_fallthru
        _
      %p509 = scmp.lt.s32.totalorder %s20, 0
      %s510 = scalar_select %p509, %s20, 0
      %p511 = scmp.lt.s32.totalorder %s21, 0
      %s512 = scalar_select %p511, %s21, 0
      %s513 = sadd.s32 %s512, %s510
      %s514 = smul.addr %s513, 4
      %s515 = scalar_lea.vmem %s4, %s514
      // Predicated region
      $region45: #{scene_embed2_fwd.40} parent=35 // pred_check
        %p516 = pneg %p162
      $region46: #{scene_embed2_fwd.40} parent=35 // pred_check_branch
        %518 = sbr.rel (%p516) target = $region48
      $region47: #{scene_embed2_fwd.40} parent=35 // pred_region
        _
      $region48: #{scene_embed2_fwd.40} parent=35 // pred_fallthru
        _
      // Predicated region
      $region49: #{scene_embed2_fwd.40} parent=35 // pred_check
        %p519 = pneg %p162
      $region50: #{scene_embed2_fwd.40} parent=35 // pred_check_branch
        %521 = sbr.rel (%p519) target = $region52
      $region51: #{scene_embed2_fwd.40} parent=35 // pred_region
        %p522 = scmp.lt.s32.totalorder %s20, 0
        %s523 = scalar_select %p522, %s20, 0
        %p524 = scmp.lt.s32.totalorder %s21, 0
        %s525 = scalar_select %p524, %s21, 0
        %s526 = sadd.s32 %s525, %s523
        %s527 = smul.addr %s526, 4
        %s528 = scalar_lea.vmem %s4, %s527
      $region52: #{scene_embed2_fwd.40} parent=35 // pred_fallthru
        _
    $region36: #{scene_embed2_fwd.40} parent=5 // pred_fallthru
      _
    %p529 = scmp.le.s32.totalorder 2, %s10
    // Predicated region
    $region53: #{scene_embed2_fwd.40} parent=5 // pred_check
      %p530 = pneg %p529
    $region54: #{scene_embed2_fwd.40} parent=5 // pred_check_branch
      %532 = sbr.rel (%p530) target = $region56
    $region55: #{scene_embed2_fwd.40} parent=5 // pred_region
      %s533 = ssub.s32 %s10, 2
    $region56: #{scene_embed2_fwd.40} parent=5 // pred_fallthru
      _
  $region6: #{scene_embed2_fwd.40} parent=0 // loop_footer
    %s14 = sadd.s32 1, %s10
  $region7: #{scene_embed2_fwd.40} parent=0 // loop_footer_branch
    %9 = sbr.rel target = $region3
  $region8: #{scene_embed2_fwd.40} parent=0 // loop_exit
    _

// kernel: scene_embed2_fwd.47
$region0: #{scene_embed2_fwd.47}
  #allocation0 [shape = 'u32[]', space=smem, size = 0x4, offset = 0x4, fixed_abs, tag = 'smem constant byte address 0x4 - core index']
  #allocation1 [shape = 'u32[144,128]{1,0:T(1,128)}', space=vmem, size = 0x12000, scoped, tag = 'internal scratch']
  #allocation2 [shape = 'f32[32,128]{1,0:T(8,128)}', space=vmem, size = 0x4000, scoped, tag = 'scratch operand']
  %s0 = inlined_call_operand.vmem [shape: bf16[32,1792], index: 0, kind: input, shape index: {}]
  %s1 = inlined_call_operand.vmem [shape: bf16[1792,128], index: 1, kind: input, shape index: {}]
  %s2 = inlined_call_operand.vmem [shape: f32[1,128], index: 2, kind: input, shape index: {}]
  %s3 = inlined_call_operand.vmem [shape: f32[1,128], index: 3, kind: input, shape index: {}]
  %s4 = inlined_call_operand.vmem [shape: bf16[32,128], index: 4, kind: output, shape index: {}]
  %s5 = sld [smem:[#allocation0]]
  $region95: #{scene_embed2_fwd.47} parent=0
    _
  %s7 = ssub.s32 1, %s5
  %s8 = scalar_select 0, %s7, %s5
  $region1: #{scene_embed2_fwd.47} parent=0
    #allocation3 [shape = 'u8[32768]{0}', space=vmem, size = 0x8000, scoped, tag = 'input window, operand 0']
    loop: start=0, step=1, limit=9
    $region2: #{scene_embed2_fwd.47} parent=1 // loop_pre_header
      _
    $region3: #{scene_embed2_fwd.47} parent=1 // loop_header
      %s10 = sphi 0, %s14
      %p11 = scmp.ge.s32.totalorder %s10, 9
      %s17 = sphi 0, %s36
      %s18 = sphi 0, %s32
      %s19 = sphi 0, %s28
      %s20 = sphi 0, %s17
      %s21 = sphi 0, %s18
      %s22 = sphi 0, %s19
      %s23 = sphi 0, %s20
      %s24 = sphi 0, %s21
      %s25 = sphi 0, %s22
      %s41 = sphi 0, %s43
      %s44 = sphi 0, %s41
      %s45 = sphi 0, %s44
      %s61 = sphi 0, %s45
      %s69 = sphi 0, %s71
      %s72 = sphi 0, %s69
      %s73 = sphi 0, %s72
      %s89 = sphi 0, %s73
      %s95 = sphi 0, %s97
      %s98 = sphi 0, %s95
      %s99 = sphi 0, %s98
      %s115 = sphi 0, %s99
      %s121 = sphi 0, %s123
      %s124 = sphi 0, %s121
      %s125 = sphi 0, %s124
      %s141 = sphi 0, %s125
      %s149 = sphi 0, %s151
      %s152 = sphi 0, %s149
      %s153 = sphi 0, %s152
      %s169 = sphi 0, %s153
    $region4: #{scene_embed2_fwd.47} parent=1 // loop_header_branch
      %13 = sbr.rel (%p11) target = $region8
    $region5: #{scene_embed2_fwd.47} parent=1 // loop_body
      %s15 = ssub.s32 %s10, 1
      %s16 = ssub.s32 %s10, 2
      %s26 = sadd.s32 1, %s19
      %p27 = scmp.ge.s32.totalorder %s26, 7
      %s28 = scalar_select %p27, 0, %s26
      %s29 = sadd.s32 1, %s18
      %s30 = scalar_select %p27, %s29, %s18
      %p31 = scmp.ge.s32.totalorder %s30, 1
      %s32 = scalar_select %p31, 0, %s30
      %s33 = sadd.s32 1, %s17
      %s34 = scalar_select %p31, %s33, %s17
      %p35 = scmp.ge.s32.totalorder %s34, 1
      %s36 = scalar_select %p35, 0, %s34
      %s37 = ssub.s32 %s17, %s36
      %s38 = ssub.s32 %s19, %s28
      %s39 = sor.u32 %s37, %s38
      %p40 = scmp.eq.s32.totalorder %s39, 0
      %s42 = sadd.s32 %s41, 1
      %s43 = scalar_select %p40, %s41, %s42
      %p46 = pneg %p40
      %p47 = scmp.eq.s32.totalorder %s10, 6
      %p48 = por %p46, %p47
      %p49 = scmp.ne.s32.totalorder %s41, %s44
      %p50 = scmp.eq.s32.totalorder %s10, 0
      %p51 = por %p49, %p50
      %p52 = scmp.ne.s32.totalorder %s41, %s44
      %p53 = scmp.eq.s32.totalorder %s15, 6
      %p54 = por %p52, %p53
      %p55 = scmp.ne.s32.totalorder %s44, %s45
      %p56 = scmp.eq.s32.totalorder %s15, 0
      %p57 = por %p55, %p56
      %p58 = scmp.ne.s32.totalorder %s44, %s45
      %p59 = scmp.eq.s32.totalorder %s16, 6
      %p60 = por %p58, %p59
      %p62 = scmp.ne.s32.totalorder %s45, %s61
      %p63 = scmp.eq.s32.totalorder %s16, 0
      %p64 = por %p62, %p63
      %s65 = ssub.s32 %s19, %s28
      %s66 = ssub.s32 %s18, %s32
      %s67 = sor.u32 %s65, %s66
      %p68 = scmp.eq.s32.totalorder %s67, 0
      %s70 = sadd.s32 %s69, 1
      %s71 = scalar_select %p68, %s69, %s70
      %p74 = pneg %p68
      %p75 = scmp.eq.s32.totalorder %s10, 6
      %p76 = por %p74, %p75
      %p77 = scmp.ne.s32.totalorder %s69, %s72
      %p78 = scmp.eq.s32.totalorder %s10, 0
      %p79 = por %p77, %p78
      %p80 = scmp.ne.s32.totalorder %s69, %s72
      %p81 = scmp.eq.s32.totalorder %s15, 6
      %p82 = por %p80, %p81
      %p83 = scmp.ne.s32.totalorder %s72, %s73
      %p84 = scmp.eq.s32.totalorder %s15, 0
      %p85 = por %p83, %p84
      %p86 = scmp.ne.s32.totalorder %s72, %s73
      %p87 = scmp.eq.s32.totalorder %s16, 6
      %p88 = por %p86, %p87
      %p90 = scmp.ne.s32.totalorder %s73, %s89
      %p91 = scmp.eq.s32.totalorder %s16, 0
      %p92 = por %p90, %p91
      %s93 = ssub.s32 %s18, %s32
      %p94 = scmp.eq.s32.totalorder %s93, 0
      %s96 = sadd.s32 %s95, 1
      %s97 = scalar_select %p94, %s95, %s96
      %p100 = pneg %p94
      %p101 = scmp.eq.s32.totalorder %s10, 6
      %p102 = por %p100, %p101
      %p103 = scmp.ne.s32.totalorder %s95, %s98
      %p104 = scmp.eq.s32.totalorder %s10, 0
      %p105 = por %p103, %p104
      %p106 = scmp.ne.s32.totalorder %s95, %s98
      %p107 = scmp.eq.s32.totalorder %s15, 6
      %p108 = por %p106, %p107
      %p109 = scmp.ne.s32.totalorder %s98, %s99
      %p110 = scmp.eq.s32.totalorder %s15, 0
      %p111 = por %p109, %p110
      %p112 = scmp.ne.s32.totalorder %s98, %s99
      %p113 = scmp.eq.s32.totalorder %s16, 6
      %p114 = por %p112, %p113
      %p116 = scmp.ne.s32.totalorder %s99, %s115
      %p117 = scmp.eq.s32.totalorder %s16, 0
      %p118 = por %p116, %p117
      %s119 = ssub.s32 %s18, %s32
      %p120 = scmp.eq.s32.totalorder %s119, 0
      %s122 = sadd.s32 %s121, 1
      %s123 = scalar_select %p120, %s121, %s122
      %p126 = pneg %p120
      %p127 = scmp.eq.s32.totalorder %s10, 6
      %p128 = por %p126, %p127
      %p129 = scmp.ne.s32.totalorder %s121, %s124
      %p130 = scmp.eq.s32.totalorder %s10, 0
      %p131 = por %p129, %p130
      %p132 = scmp.ne.s32.totalorder %s121, %s124
      %p133 = scmp.eq.s32.totalorder %s15, 6
      %p134 = por %p132, %p133
      %p135 = scmp.ne.s32.totalorder %s124, %s125
      %p136 = scmp.eq.s32.totalorder %s15, 0
      %p137 = por %p135, %p136
      %p138 = scmp.ne.s32.totalorder %s124, %s125
      %p139 = scmp.eq.s32.totalorder %s16, 6
      %p140 = por %p138, %p139
      %p142 = scmp.ne.s32.totalorder %s125, %s141
      %p143 = scmp.eq.s32.totalorder %s16, 0
      %p144 = por %p142, %p143
      %s145 = ssub.s32 %s17, %s36
      %s146 = ssub.s32 %s18, %s32
      %s147 = sor.u32 %s145, %s146
      %p148 = scmp.eq.s32.totalorder %s147, 0
      %s150 = sadd.s32 %s149, 1
      %s151 = scalar_select %p148, %s149, %s150
      %p154 = pneg %p148
      %p155 = scmp.eq.s32.totalorder %s10, 6
      %p156 = por %p154, %p155
      %p157 = scmp.ne.s32.totalorder %s149, %s152
      %p158 = scmp.eq.s32.totalorder %s10, 0
      %p159 = por %p157, %p158
      %p160 = scmp.ne.s32.totalorder %s149, %s152
      %p161 = scmp.eq.s32.totalorder %s15, 6
      %p162 = por %p160, %p161
      %p163 = scmp.ne.s32.totalorder %s152, %s153
      %p164 = scmp.eq.s32.totalorder %s15, 0
      %p165 = por %p163, %p164
      %p166 = scmp.ne.s32.totalorder %s152, %s153
      %p167 = scmp.eq.s32.totalorder %s16, 6
      %p168 = por %p166, %p167
      %p170 = scmp.ne.s32.totalorder %s153, %s169
      %p171 = scmp.eq.s32.totalorder %s16, 0
      %p172 = por %p170, %p171
      %p173 = scmp.le.s32.totalorder 1, %s10
      %p174 = scmp.lt.s32.totalorder %s10, 8
      %p175 = pnand %p173, %p174
      %p176 = pneg %p175
      // Predicated region
      $region9: #{scene_embed2_fwd.47} parent=5 // pred_check
        _
      $region10: #{scene_embed2_fwd.47} parent=5 // pred_check_branch
        %178 = sbr.rel (%p175) target = $region12
      $region11: #{scene_embed2_fwd.47} parent=5 // pred_region
        %s179 = ssub.s32 %s10, 1
        // Predicated region
        $region13: #{scene_embed2_fwd.47} parent=11 // pred_check
          %p180 = pneg %p111
        $region14: #{scene_embed2_fwd.47} parent=11 // pred_check_branch
          %182 = sbr.rel (%p180) target = $region16
        $region15: #{scene_embed2_fwd.47} parent=11 // pred_region
          %p183 = scmp.lt.s32.totalorder %s21, 0
          %s184 = scalar_select %p183, %s21, 0
          %s185 = scalar_lea.vmem %s2, %s184
        $region16: #{scene_embed2_fwd.47} parent=11 // pred_fallthru
          _
        // Predicated region
        $region17: #{scene_embed2_fwd.47} parent=11 // pred_check
          %p186 = pneg %p137
        $region18: #{scene_embed2_fwd.47} parent=11 // pred_check_branch
          %188 = sbr.rel (%p186) target = $region20
        $region19: #{scene_embed2_fwd.47} parent=11 // pred_region
          %p189 = scmp.lt.s32.totalorder %s21, 0
          %s190 = scalar_select %p189, %s21, 0
          %s191 = scalar_lea.vmem %s3, %s190
        $region20: #{scene_embed2_fwd.47} parent=11 // pred_fallthru
          _
      $region12: #{scene_embed2_fwd.47} parent=5 // pred_fallthru
        _
      %p192 = scmp.lt.s32.totalorder %s10, 7
      // Predicated region
      $region21: #{scene_embed2_fwd.47} parent=5 // pred_check
        %p193 = pneg %p192
      $region22: #{scene_embed2_fwd.47} parent=5 // pred_check_branch
        %195 = sbr.rel (%p193) target = $region24
      $region23: #{scene_embed2_fwd.47} parent=5 // pred_region
        // Predicated region
        $region25: #{scene_embed2_fwd.47} parent=23 // pred_check
          %p196 = pneg %p51
        $region26: #{scene_embed2_fwd.47} parent=23 // pred_check_branch
          %198 = sbr.rel (%p196) target = $region28
        $region27: #{scene_embed2_fwd.47} parent=23 // pred_region
          %s199 = sand.u32 %s41, 1
          %s200 = sand.u32 %s41, 1
          %s201 = smul.addr %s200, 32
          %s202 = scalar_lea.vmem [#allocation3], %s201
          %s203 = smul.u32 4, %s17
          %s204 = smul.u32 2, %s19
          %s205 = smul.addr %s203, 14
          %s206 = sadd.s32 %s204, %s205
          %s207 = smul.addr %s206, 4
          %s208 = scalar_lea.vmem %s0, %s207
          // Predicated region
          $region29: #{scene_embed2_fwd.47} parent=27 // pred_check
            _
          $region30: #{scene_embed2_fwd.47} parent=27 // pred_check_branch
            %210 = sbr.rel (0) target = $region32
          $region31: #{scene_embed2_fwd.47} parent=27 // pred_region
            // Predicated region
            $region33: #{scene_embed2_fwd.47} parent=31 // pred_check
              _
            $region34: #{scene_embed2_fwd.47} parent=31 // pred_check_branch
              %212 = sbr.rel (0) target = $region36
            $region35: #{scene_embed2_fwd.47} parent=31 // pred_region
              // Predicated region
              $region48: #{scene_embed2_fwd.47} parent=35 // pred_check
                _
              $region49: #{scene_embed2_fwd.47} parent=35 // pred_check_branch
                %233 = sbr.rel (0) target = $region51
              $region50: #{scene_embed2_fwd.47} parent=35 // pred_region
                loop: start=0, step=1, limit=1
                $region52: #{scene_embed2_fwd.47} parent=50 // loop_pre_header
                  _
                $region53: #{scene_embed2_fwd.47} parent=50 // loop_header
                  %s235 = sphi 0, %s239
                  %p236 = scmp.ge.s32.totalorder %s235, 1
                  %s240 = sphi %s208, %s208
                  %s241 = sphi %s202, %s202
                $region54: #{scene_embed2_fwd.47} parent=50 // loop_header_branch
                  %238 = sbr.rel (%p236) target = $region58
                $region55: #{scene_embed2_fwd.47} parent=50 // loop_body
                  %v242 = vld [vmem:[%s240] sm:$0xff]
                  %243 = vst [vmem:[%s241] sm:$0xff] %v242
                  %v244 = vld [vmem:[%s240 + $0x38] sm:$0xff]
                  %245 = vst [vmem:[%s241 + $0x8] sm:$0xff] %v244
                  %v246 = vld [vmem:[%s240 + $0x70] sm:$0xff]
                  %247 = vst [vmem:[%s241 + $0x10] sm:$0xff] %v246
                  %v248 = vld [vmem:[%s240 + $0xa8] sm:$0xff]
                  %249 = vst [vmem:[%s241 + $0x18] sm:$0xff] %v248
                $region56: #{scene_embed2_fwd.47} parent=50 // loop_footer
                  %s239 = sadd.s32 1, %s235
                $region57: #{scene_embed2_fwd.47} parent=50 // loop_footer_branch
                  %234 = sbr.rel target = $region53
                $region58: #{scene_embed2_fwd.47} parent=50 // loop_exit
                  _
              $region51: #{scene_embed2_fwd.47} parent=35 // pred_fallthru
                _
              // Predicated region
              $region59: #{scene_embed2_fwd.47} parent=35 // pred_check
                _
              $region60: #{scene_embed2_fwd.47} parent=35 // pred_check_branch
                %251 = sbr.rel target = $region62
              $region61: #{scene_embed2_fwd.47} parent=35 // pred_region
                _
              $region62: #{scene_embed2_fwd.47} parent=35 // pred_fallthru
                _
            $region36: #{scene_embed2_fwd.47} parent=31 // pred_fallthru
              _
            // Predicated region
            $region37: #{scene_embed2_fwd.47} parent=31 // pred_check
              _
            $region38: #{scene_embed2_fwd.47} parent=31 // pred_check_branch
              %214 = sbr.rel target = $region40
            $region39: #{scene_embed2_fwd.47} parent=31 // pred_region
              loop: start=0, step=1, limit=1
              $region41: #{scene_embed2_fwd.47} parent=39 // loop_pre_header
                _
              $region42: #{scene_embed2_fwd.47} parent=39 // loop_header
                %s217 = sphi 0, %s221
                %p218 = scmp.ge.s32.totalorder %s217, 1
                %s222 = sphi %s208, %s208
                %s223 = sphi %s202, %s202
              $region43: #{scene_embed2_fwd.47} parent=39 // loop_header_branch
                %220 = sbr.rel (%p218) target = $region47
              $region44: #{scene_embed2_fwd.47} parent=39 // loop_body
                %v224 = vld [vmem:[%s222] sm:$0xff]
                %225 = vst [vmem:[%s223] sm:$0xff] %v224
                %v226 = vld [vmem:[%s222 + $0x38] sm:$0xff]
                %227 = vst [vmem:[%s223 + $0x8] sm:$0xff] %v226
                %v228 = vld [vmem:[%s222 + $0x70] sm:$0xff]
                %229 = vst [vmem:[%s223 + $0x10] sm:$0xff] %v228
                %v230 = vld [vmem:[%s222 + $0xa8] sm:$0xff]
                %231 = vst [vmem:[%s223 + $0x18] sm:$0xff] %v230
              $region45: #{scene_embed2_fwd.47} parent=39 // loop_footer
                %s221 = sadd.s32 1, %s217
              $region46: #{scene_embed2_fwd.47} parent=39 // loop_footer_branch
                %216 = sbr.rel target = $region42
              $region47: #{scene_embed2_fwd.47} parent=39 // loop_exit
                _
            $region40: #{scene_embed2_fwd.47} parent=31 // pred_fallthru
              _
          $region32: #{scene_embed2_fwd.47} parent=27 // pred_fallthru
            _
          %252 = vnop
        $region28: #{scene_embed2_fwd.47} parent=23 // pred_fallthru
          _
        // Predicated region
        $region63: #{scene_embed2_fwd.47} parent=23 // pred_check
          %p253 = pneg %p79
        $region64: #{scene_embed2_fwd.47} parent=23 // pred_check_branch
          %255 = sbr.rel (%p253) target = $region66
        $region65: #{scene_embed2_fwd.47} parent=23 // pred_region
          %s256 = smul.u32 32, %s19
          %p257 = scmp.lt.s32.totalorder %s256, 223
          %s258 = scalar_select %p257, %s256, 223
          %p259 = scmp.lt.s32.totalorder %s18, 0
          %s260 = scalar_select %p259, %s18, 0
          %s261 = sadd.s32 %s260, %s258
          %s262 = smul.addr %s261, 4
          %s263 = scalar_lea.vmem %s1, %s262
          %s264 = smul.u32 32, %s19
        $region66: #{scene_embed2_fwd.47} parent=23 // pred_fallthru
          _
      $region24: #{scene_embed2_fwd.47} parent=5 // pred_fallthru
        _
      %p265 = scmp.le.s32.totalorder 1, %s10
      %p266 = scmp.lt.s32.totalorder %s10, 8
      %p267 = pnand %p265, %p266
      %p268 = pneg %p267
      // Predicated region
      $region67: #{scene_embed2_fwd.47} parent=5 // pred_check
        _
      $region68: #{scene_embed2_fwd.47} parent=5 // pred_check_branch
        %270 = sbr.rel (%p267) target = $region70
      $region69: #{scene_embed2_fwd.47} parent=5 // pred_region
        %s271 = ssub.s32 %s10, 1
        %s272 = sand.u32 %s44, 1
        %s273 = sand.u32 %s44, 1
        %s274 = smul.addr %s273, 32
        %s275 = scalar_lea.vmem [#allocation3], %s274
        // Predicated region
        $region71: #{scene_embed2_fwd.47} parent=69 // pred_check
          %p276 = pneg %p57
        $region72: #{scene_embed2_fwd.47} parent=69 // pred_check_branch
          %278 = sbr.rel (%p276) target = $region74
        $region73: #{scene_embed2_fwd.47} parent=69 // pred_region
          _
        $region74: #{scene_embed2_fwd.47} parent=69 // pred_fallthru
          _
        %s279 = sand.u32 %s44, 1
        %s280 = sand.u32 %s44, 1
        %s281 = smul.addr %s280, 32
        %s282 = scalar_lea.vmem [#allocation3], %s281
        %p283 = pneg %p57
        %p284 = pneg %p54
        %s285 = smul.u32 32, %s22
        %p286 = scmp.lt.s32.totalorder %s285, 223
        %s287 = scalar_select %p286, %s285, 223
        %p288 = scmp.lt.s32.totalorder %s21, 0
        %s289 = scalar_select %p288, %s21, 0
        %s290 = sadd.s32 %s289, %s287
        %s291 = smul.addr %s290, 4
        %s292 = scalar_lea.vmem %s1, %s291
        %p293 = pneg %p85
        %p294 = pneg %p82
        %p295 = scmp.lt.s32.totalorder %s21, 0
        %s296 = scalar_select %p295, %s21, 0
        %s297 = scalar_lea.vmem %s2, %s296
        %p298 = pneg %p111
        %p299 = pneg %p108
        %p300 = scmp.lt.s32.totalorder %s21, 0
        %s301 = scalar_select %p300, %s21, 0
        %s302 = scalar_lea.vmem %s3, %s301
        %p303 = pneg %p137
        %p304 = pneg %p134
        %p305 = pneg %p165
        %p306 = pneg %p162
        %s307 = smul.u32 4, %s20
        %p308 = scmp.lt.s32.totalorder %s307, 3
        %s309 = scalar_select %p308, %s307, 3
        %p310 = scmp.lt.s32.totalorder %s21, 0
        %s311 = scalar_select %p310, %s21, 0
        %s312 = sadd.s32 %s311, %s309
        %s313 = smul.addr %s312, 4
        %s314 = scalar_lea.vmem %s4, %s313
        %s315 = smul.u32 4, %s20
        %s316 = smul.u32 2, %s22
        %s317 = smul.u32 32, %s22
        %p318 = scmp.lt.s32.totalorder %s317, 223
        %s319 = scalar_select %p318, %s317, 223
        %p320 = scmp.lt.s32.totalorder %s21, 0
        %s321 = scalar_select %p320, %s21, 0
        %s322 = sadd.s32 %s321, %s319
        %s323 = smul.addr %s322, 4
        %s324 = scalar_lea.vmem %s1, %s323
        %s325 = smul.u32 32, %s22
        %p326 = scmp.lt.s32.totalorder %s21, 0
        %s327 = scalar_select %p326, %s21, 0
        %s328 = scalar_lea.vmem %s2, %s327
        %p329 = scmp.lt.s32.totalorder %s21, 0
        %s330 = scalar_select %p329, %s21, 0
        %s331 = scalar_lea.vmem %s3, %s330
        %s332 = smul.u32 4, %s20
        %p333 = scmp.lt.s32.totalorder %s332, 3
        %s334 = scalar_select %p333, %s332, 3
        %p335 = scmp.lt.s32.totalorder %s21, 0
        %s336 = scalar_select %p335, %s21, 0
        %s337 = sadd.s32 %s336, %s334
        %s338 = smul.addr %s337, 4
        %s339 = scalar_lea.vmem %s4, %s338
        %s340 = smul.u32 4, %s20
        %p342 = scmp.eq.s32.totalorder %s22, 0
        // Predicated region
        $region75: #{scene_embed2_fwd.47} parent=69 // pred_check
          %p343 = pneg %p342
        $region76: #{scene_embed2_fwd.47} parent=69 // pred_check_branch
          %345 = sbr.rel (%p343) target = $region78
        $region77: #{scene_embed2_fwd.47} parent=69 // pred_region
          %346 = vst [vmem:[#allocation2] sm:$0xff] 0.0
          %347 = vst [vmem:[#allocation2 + $0x8] sm:$0xff] 0.0
          %348 = vst [vmem:[#allocation2 + $0x10] sm:$0xff] 0.0
          %349 = vst [vmem:[#allocation2 + $0x18] sm:$0xff] 0.0
        $region78: #{scene_embed2_fwd.47} parent=69 // pred_fallthru
          _
        %v350 = vld [vmem:[#allocation2] sm:$0xff]
        %v351 = vld [vmem:[#allocation2 + $0x8] sm:$0xff]
        %v352 = vld [vmem:[#allocation2 + $0x10] sm:$0xff]
        %v353 = vld [vmem:[#allocation2 + $0x18] sm:$0xff]
        %v354 = vld [vmem:[%s275] sm:$0xff]
        %v355 = vld [vmem:[%s275 + $0x8] sm:$0xff]
        %v356 = vld [vmem:[%s275 + $0x10] sm:$0xff]
        %v357 = vld [vmem:[%s275 + $0x18] sm:$0xff]
        %v358 = vld [vmem:[%s324] sm:$0xf]
        %v359 = vld [vmem:[%s324 + $0x4] sm:$0xf]
        %v360 = vld [vmem:[%s324 + $0x8] sm:$0xf]
        %v361 = vld [vmem:[%s324 + $0xc] sm:$0xf]
        %v362 = vld [vmem:[%s324 + $0x10] sm:$0xf]
        %v363 = vld [vmem:[%s324 + $0x14] sm:$0xf]
        %v364 = vld [vmem:[%s324 + $0x18] sm:$0xf]
        %v365 = vld [vmem:[%s324 + $0x1c] sm:$0xf]
        %v366 = vld [vmem:[%s324 + $0x20] sm:$0xf]
        %v367 = vld [vmem:[%s324 + $0x24] sm:$0xf]
        %v368 = vld [vmem:[%s324 + $0x28] sm:$0xf]
        %v369 = vld [vmem:[%s324 + $0x2c] sm:$0xf]
        %v370 = vld [vmem:[%s324 + $0x30] sm:$0xf]
        %v371 = vld [vmem:[%s324 + $0x34] sm:$0xf]
        %v372 = vld [vmem:[%s324 + $0x38] sm:$0xf]
        %v373 = vld [vmem:[%s324 + $0x3c] sm:$0xf]
        %v374 = vld [vmem:[%s324 + $0x40] sm:$0xf]
        %v375 = vld [vmem:[%s324 + $0x44] sm:$0xf]
        %v376 = vld [vmem:[%s324 + $0x48] sm:$0xf]
        %v377 = vld [vmem:[%s324 + $0x4c] sm:$0xf]
        %v378 = vld [vmem:[%s324 + $0x50] sm:$0xf]
        %v379 = vld [vmem:[%s324 + $0x54] sm:$0xf]
        %v380 = vld [vmem:[%s324 + $0x58] sm:$0xf]
        %v381 = vld [vmem:[%s324 + $0x5c] sm:$0xf]
        %v382 = vld [vmem:[%s324 + $0x60] sm:$0xf]
        %v383 = vld [vmem:[%s324 + $0x64] sm:$0xf]
        %v384 = vld [vmem:[%s324 + $0x68] sm:$0xf]
        %v385 = vld [vmem:[%s324 + $0x6c] sm:$0xf]
        %v386 = vld [vmem:[%s324 + $0x70] sm:$0xf]
        %v387 = vld [vmem:[%s324 + $0x74] sm:$0xf]
        %v388 = vld [vmem:[%s324 + $0x78] sm:$0xf]
        %v389 = vld [vmem:[%s324 + $0x7c] sm:$0xf]
        %v394 = vunpack.c.l.b16 %v354
        %v395 = vunpack.c.h.b16 %v354
        %v396 = vunpack.c.l.b16 %v355
        %v397 = vunpack.c.h.b16 %v355
        %v398 = vunpack.c.l.b16 %v356
        %v399 = vunpack.c.h.b16 %v356
        %v400 = vunpack.c.l.b16 %v357
        %v401 = vunpack.c.h.b16 %v357
        %v402 = vpack.c.b16 %v396, %v394
        %v403 = vpack.c.b16 %v397, %v395
        %v404 = vpack.c.b16 %v400, %v398
        %v405 = vpack.c.b16 %v401, %v399
        %v442 = vunpack.c.l.b16 %v358
        %v443 = vunpack.c.l.b16 %v359
        %v444 = vunpack.c.l.b16 %v360
        %v445 = vunpack.c.l.b16 %v361
        %v446 = vunpack.c.l.b16 %v362
        %v447 = vunpack.c.l.b16 %v363
        %v448 = vunpack.c.l.b16 %v364
        %v449 = vunpack.c.l.b16 %v365
        %v450 = vunpack.c.l.b16 %v366
        %v451 = vunpack.c.l.b16 %v367
        %v452 = vunpack.c.l.b16 %v368
        %v453 = vunpack.c.l.b16 %v369
        %v454 = vunpack.c.l.b16 %v370
        %v455 = vunpack.c.l.b16 %v371
        %v456 = vunpack.c.l.b16 %v372
        %v457 = vunpack.c.l.b16 %v373
        %v458 = vunpack.c.l.b16 %v374
        %v459 = vunpack.c.l.b16 %v375
        %v460 = vunpack.c.l.b16 %v376
        %v461 = vunpack.c.l.b16 %v377
        %v462 = vunpack.c.l.b16 %v378
        %v463 = vunpack.c.l.b16 %v379
        %v464 = vunpack.c.l.b16 %v380
        %v465 = vunpack.c.l.b16 %v381
        %v466 = vunpack.c.l.b16 %v382
        %v467 = vunpack.c.l.b16 %v383
        %v468 = vunpack.c.l.b16 %v384
        %v469 = vunpack.c.l.b16 %v385
        %v470 = vunpack.c.l.b16 %v386
        %v471 = vunpack.c.l.b16 %v387
        %v472 = vunpack.c.l.b16 %v388
        %v473 = vunpack.c.l.b16 %v389
        %v474 = vpack.c.b16 %v443, %v442
        %v475 = vpack.c.b16 %v445, %v444
        %v476 = vpack.c.b16 %v447, %v446
        %v477 = vpack.c.b16 %v449, %v448
        %v478 = vpack.c.b16 %v451, %v450
        %v479 = vpack.c.b16 %v453, %v452
        %v480 = vpack.c.b16 %v455, %v454
        %v481 = vpack.c.b16 %v457, %v456
        %v482 = vpack.c.b16 %v459, %v458
        %v483 = vpack.c.b16 %v461, %v460
        %v484 = vpack.c.b16 %v463, %v462
        %v485 = vpack.c.b16 %v465, %v464
        %v486 = vpack.c.b16 %v467, %v466
        %v487 = vpack.c.b16 %v469, %v468
        %v488 = vpack.c.b16 %v471, %v470
        %v489 = vpack.c.b16 %v473, %v472
        %506 = vmatprep.subr.bf16.mxu0 0
        %507 = vmatpush1.bf16.msra.mxu0 %v474
        %508 = vmatprep.subr.bf16.mxu0 0
        %509 = vmatpush1.bf16.msra.mxu0 %v475
        %510 = vmatprep.subr.bf16.mxu0 0
        %511 = vmatpush1.bf16.msra.mxu0 %v476
        %512 = vmatprep.subr.bf16.mxu0 0
        %513 = vmatpush1.bf16.msra.mxu0 %v477
        %514 = vmatprep.subr.bf16.mxu0 0
        %515 = vmatpush1.bf16.msra.mxu0 %v478
        %516 = vmatprep.subr.bf16.mxu0 0
        %517 = vmatpush1.bf16.msra.mxu0 %v479
        %518 = vmatprep.subr.bf16.mxu0 0
        %519 = vmatpush1.bf16.msra.mxu0 %v480
        %520 = vmatprep.subr.bf16.mxu0 0
        %521 = vmatpush1.bf16.msra.mxu0 %v481
        %522 = vmatprep.subr.bf16.mxu0 0
        %523 = vmatpush1.bf16.msra.mxu0 %v482
        %524 = vmatprep.subr.bf16.mxu0 0
        %525 = vmatpush1.bf16.msra.mxu0 %v483
        %526 = vmatprep.subr.bf16.mxu0 0
        %527 = vmatpush1.bf16.msra.mxu0 %v484
        %528 = vmatprep.subr.bf16.mxu0 0
        %529 = vmatpush1.bf16.msra.mxu0 %v485
        %530 = vmatprep.subr.bf16.mxu0 0
        %531 = vmatpush1.bf16.msra.mxu0 %v486
        %532 = vmatprep.subr.bf16.mxu0 0
        %533 = vmatpush1.bf16.msra.mxu0 %v487
        %534 = vmatprep.subr.bf16.mxu0 0
        %535 = vmatpush1.bf16.msra.mxu0 %v488
        %536 = vmatprep.subr.bf16.mxu0 0
        %537 = vmatpush1.bf16.msra.mxu0 %v489
        %538 = vmatprep.mubr.bf16.mxu0 %v403
        %539 = vmatmul.mubr.bf16.gmra.mrb[0].mxu0 %v402
        %v540 = vpop.f32.mrb[0].mxu0
        %v541 = vadd.f32 0.0, %v540
        %v542 = vpop.f32.mrb[0].mxu0
        %v543 = vpop.f32.mrb[0].mxu0
        %v544 = vadd.f32 0.0, %v543
        %v545 = vpop.f32.mrb[0].mxu0
        %546 = vmatprep.mubr.bf16.mxu0 %v405
        %547 = vmatmul.mubr.bf16.gmra.mrb[0].mxu0 %v404
        %v548 = vpop.f32.mrb[0].mxu0
        %v549 = vadd.f32 0.0, %v548
        %v550 = vpop.f32.mrb[0].mxu0
        %v551 = vpop.f32.mrb[0].mxu0
        %v552 = vadd.f32 0.0, %v551
        %v553 = vpop.f32.mrb[0].mxu0
        %554 = vdwg.mxu0
        %v555 = vadd.f32 %v350, %v541
        %v556 = vadd.f32 %v351, %v544
        %v557 = vadd.f32 %v352, %v549
        %v558 = vadd.f32 %v353, %v552
        %559 = vst [vmem:[#allocation2] sm:$0xff] %v555
        %560 = vst [vmem:[#allocation2 + $0x8] sm:$0xff] %v556
        %561 = vst [vmem:[#allocation2 + $0x10] sm:$0xff] %v557
        %562 = vst [vmem:[#allocation2 + $0x18] sm:$0xff] %v558
        %p563 = scmp.eq.s32.totalorder %s22, 6
        // Predicated region
        $region79: #{scene_embed2_fwd.47} parent=69 // pred_check
          %p564 = pneg %p563
        $region80: #{scene_embed2_fwd.47} parent=69 // pred_check_branch
          %566 = sbr.rel (%p564) target = $region82
        $region81: #{scene_embed2_fwd.47} parent=69 // pred_region
          %v567 = vld [vmem:[#allocation2] sm:$0xff]
          %v568 = vld [vmem:[#allocation2 + $0x8] sm:$0xff]
          %v569 = vld [vmem:[#allocation2 + $0x10] sm:$0xff]
          %v570 = vld [vmem:[#allocation2 + $0x18] sm:$0xff]
          %v571 = vld [vmem:[%s328] sm:$0x1]
          %v573 = vlaneseq
          %v574 = vshrl.u32 %v573, 7
          %v575 = vsub.s32 0, %v574
          %v576 = vrot.slane %v571, %v575
          %v578 = vmul.f32 %v567, %v576
          %v579 = vmul.f32 %v568, %v576
          %v580 = vmul.f32 %v569, %v576
          %v581 = vmul.f32 %v570, %v576
          %v582 = vld [vmem:[%s331] sm:$0x1]
          %v584 = vlaneseq
          %v585 = vshrl.u32 %v584, 7
          %v586 = vsub.s32 0, %v585
          %v587 = vrot.slane %v582, %v586
          %v589 = vadd.f32 %v578, %v587
          %v590 = vadd.f32 %v579, %v587
          %v591 = vadd.f32 %v580, %v587
          %v592 = vadd.f32 %v581, %v587
          %v593 = vmax.f32 %v589, 0.0
          %v594 = vmax.f32 %v590, 0.0
          %v595 = vmax.f32 %v591, 0.0
          %v596 = vmax.f32 %v592, 0.0
          %v597 = vpack.c.bf16 %v594, %v593
          %v598 = vpack.c.bf16 %v596, %v595
          %v601 = vunpack.c.l.b16 %v597
          %v602 = vunpack.c.h.b16 %v597
          %v603 = vunpack.c.l.b16 %v598
          %v604 = vunpack.c.h.b16 %v598
          %v605 = vpack.c.b16 %v601, %v601
          %v606 = vpack.c.b16 %v602, %v602
          %v607 = vpack.c.b16 %v603, %v603
          %v608 = vpack.c.b16 %v604, %v604
          %613 = vst [vmem:[%s339] sm:$0xf] %v605
          %614 = vst [vmem:[%s339 + $0x4] sm:$0xf] %v606
          %615 = vst [vmem:[%s339 + $0x8] sm:$0xf] %v607
          %616 = vst [vmem:[%s339 + $0xc] sm:$0xf] %v608
        $region82: #{scene_embed2_fwd.47} parent=69 // pred_fallthru
          _
        %s617 = smul.u32 4, %s20
        %p618 = scmp.lt.s32.totalorder %s617, 3
        %s619 = scalar_select %p618, %s617, 3
        %p620 = scmp.lt.s32.totalorder %s21, 0
        %s621 = scalar_select %p620, %s21, 0
        %s622 = sadd.s32 %s621, %s619
        %s623 = smul.addr %s622, 4
        %s624 = scalar_lea.vmem %s4, %s623
        // Predicated region
        $region83: #{scene_embed2_fwd.47} parent=69 // pred_check
          %p625 = pneg %p162
        $region84: #{scene_embed2_fwd.47} parent=69 // pred_check_branch
          %627 = sbr.rel (%p625) target = $region86
        $region85: #{scene_embed2_fwd.47} parent=69 // pred_region
          %s628 = smul.u32 4, %s20
        $region86: #{scene_embed2_fwd.47} parent=69 // pred_fallthru
          _
        // Predicated region
        $region87: #{scene_embed2_fwd.47} parent=69 // pred_check
          %p629 = pneg %p162
        $region88: #{scene_embed2_fwd.47} parent=69 // pred_check_branch
          %631 = sbr.rel (%p629) target = $region90
        $region89: #{scene_embed2_fwd.47} parent=69 // pred_region
          %s632 = smul.u32 4, %s20
          %p633 = scmp.lt.s32.totalorder %s632, 3
          %s634 = scalar_select %p633, %s632, 3
          %p635 = scmp.lt.s32.totalorder %s21, 0
          %s636 = scalar_select %p635, %s21, 0
          %s637 = sadd.s32 %s636, %s634
          %s638 = smul.addr %s637, 4
          %s639 = scalar_lea.vmem %s4, %s638
        $region90: #{scene_embed2_fwd.47} parent=69 // pred_fallthru
          _
      $region70: #{scene_embed2_fwd.47} parent=5 // pred_fallthru
        _
      %p640 = scmp.le.s32.totalorder 2, %s10
      // Predicated region
      $region91: #{scene_embed2_fwd.47} parent=5 // pred_check
        %p641 = pneg %p640
      $region92: #{scene_embed2_fwd.47} parent=5 // pred_check_branch
        %643 = sbr.rel (%p641) target = $region94
      $region93: #{scene_embed2_fwd.47} parent=5 // pred_region
        %s644 = ssub.s32 %s10, 2
      $region94: #{scene_embed2_fwd.47} parent=5 // pred_fallthru
        _
    $region6: #{scene_embed2_fwd.47} parent=1 // loop_footer
      %s14 = sadd.s32 1, %s10
    $region7: #{scene_embed2_fwd.47} parent=1 // loop_footer_branch
      %9 = sbr.rel target = $region3
    $region8: #{scene_embed2_fwd.47} parent=1 // loop_exit
      _

// kernel: scene_embed2_fwd.48
$region0: #{scene_embed2_fwd.48}
  #allocation0 [shape = 'u32[]', space=smem, size = 0x4, offset = 0x4, fixed_abs, tag = 'smem constant byte address 0x4 - core index']
  #allocation1 [shape = 'u32[144,128]{1,0:T(1,128)}', space=vmem, size = 0x12000, scoped, tag = 'internal scratch']
  #allocation2 [shape = 'f32[32,128]{1,0:T(8,128)}', space=vmem, size = 0x4000, scoped, tag = 'scratch operand']
  %s0 = inlined_call_operand.vmem [shape: bf16[32,1280], index: 0, kind: input, shape index: {}]
  %s1 = inlined_call_operand.vmem [shape: bf16[1280,128], index: 1, kind: input, shape index: {}]
  %s2 = inlined_call_operand.vmem [shape: f32[1,128], index: 2, kind: input, shape index: {}]
  %s3 = inlined_call_operand.vmem [shape: f32[1,128], index: 3, kind: input, shape index: {}]
  %s4 = inlined_call_operand.vmem [shape: bf16[32,128], index: 4, kind: output, shape index: {}]
  %s5 = sld [smem:[#allocation0]]
  $region95: #{scene_embed2_fwd.48} parent=0
    _
  %s7 = ssub.s32 1, %s5
  %s8 = scalar_select 0, %s7, %s5
  $region1: #{scene_embed2_fwd.48} parent=0
    #allocation3 [shape = 'u8[32768]{0}', space=vmem, size = 0x8000, scoped, tag = 'input window, operand 0']
    loop: start=0, step=1, limit=7
    $region2: #{scene_embed2_fwd.48} parent=1 // loop_pre_header
      _
    $region3: #{scene_embed2_fwd.48} parent=1 // loop_header
      %s10 = sphi 0, %s14
      %p11 = scmp.ge.s32.totalorder %s10, 7
      %s17 = sphi 0, %s36
      %s18 = sphi 0, %s32
      %s19 = sphi 0, %s28
      %s20 = sphi 0, %s17
      %s21 = sphi 0, %s18
      %s22 = sphi 0, %s19
      %s23 = sphi 0, %s20
      %s24 = sphi 0, %s21
      %s25 = sphi 0, %s22
      %s41 = sphi 0, %s43
      %s44 = sphi 0, %s41
      %s45 = sphi 0, %s44
      %s61 = sphi 0, %s45
      %s69 = sphi 0, %s71
      %s72 = sphi 0, %s69
      %s73 = sphi 0, %s72
      %s89 = sphi 0, %s73
      %s95 = sphi 0, %s97
      %s98 = sphi 0, %s95
      %s99 = sphi 0, %s98
      %s115 = sphi 0, %s99
      %s121 = sphi 0, %s123
      %s124 = sphi 0, %s121
      %s125 = sphi 0, %s124
      %s141 = sphi 0, %s125
      %s149 = sphi 0, %s151
      %s152 = sphi 0, %s149
      %s153 = sphi 0, %s152
      %s169 = sphi 0, %s153
    $region4: #{scene_embed2_fwd.48} parent=1 // loop_header_branch
      %13 = sbr.rel (%p11) target = $region8
    $region5: #{scene_embed2_fwd.48} parent=1 // loop_body
      %s15 = ssub.s32 %s10, 1
      %s16 = ssub.s32 %s10, 2
      %s26 = sadd.s32 1, %s19
      %p27 = scmp.ge.s32.totalorder %s26, 5
      %s28 = scalar_select %p27, 0, %s26
      %s29 = sadd.s32 1, %s18
      %s30 = scalar_select %p27, %s29, %s18
      %p31 = scmp.ge.s32.totalorder %s30, 1
      %s32 = scalar_select %p31, 0, %s30
      %s33 = sadd.s32 1, %s17
      %s34 = scalar_select %p31, %s33, %s17
      %p35 = scmp.ge.s32.totalorder %s34, 1
      %s36 = scalar_select %p35, 0, %s34
      %s37 = ssub.s32 %s17, %s36
      %s38 = ssub.s32 %s19, %s28
      %s39 = sor.u32 %s37, %s38
      %p40 = scmp.eq.s32.totalorder %s39, 0
      %s42 = sadd.s32 %s41, 1
      %s43 = scalar_select %p40, %s41, %s42
      %p46 = pneg %p40
      %p47 = scmp.eq.s32.totalorder %s10, 4
      %p48 = por %p46, %p47
      %p49 = scmp.ne.s32.totalorder %s41, %s44
      %p50 = scmp.eq.s32.totalorder %s10, 0
      %p51 = por %p49, %p50
      %p52 = scmp.ne.s32.totalorder %s41, %s44
      %p53 = scmp.eq.s32.totalorder %s15, 4
      %p54 = por %p52, %p53
      %p55 = scmp.ne.s32.totalorder %s44, %s45
      %p56 = scmp.eq.s32.totalorder %s15, 0
      %p57 = por %p55, %p56
      %p58 = scmp.ne.s32.totalorder %s44, %s45
      %p59 = scmp.eq.s32.totalorder %s16, 4
      %p60 = por %p58, %p59
      %p62 = scmp.ne.s32.totalorder %s45, %s61
      %p63 = scmp.eq.s32.totalorder %s16, 0
      %p64 = por %p62, %p63
      %s65 = ssub.s32 %s19, %s28
      %s66 = ssub.s32 %s18, %s32
      %s67 = sor.u32 %s65, %s66
      %p68 = scmp.eq.s32.totalorder %s67, 0
      %s70 = sadd.s32 %s69, 1
      %s71 = scalar_select %p68, %s69, %s70
      %p74 = pneg %p68
      %p75 = scmp.eq.s32.totalorder %s10, 4
      %p76 = por %p74, %p75
      %p77 = scmp.ne.s32.totalorder %s69, %s72
      %p78 = scmp.eq.s32.totalorder %s10, 0
      %p79 = por %p77, %p78
      %p80 = scmp.ne.s32.totalorder %s69, %s72
      %p81 = scmp.eq.s32.totalorder %s15, 4
      %p82 = por %p80, %p81
      %p83 = scmp.ne.s32.totalorder %s72, %s73
      %p84 = scmp.eq.s32.totalorder %s15, 0
      %p85 = por %p83, %p84
      %p86 = scmp.ne.s32.totalorder %s72, %s73
      %p87 = scmp.eq.s32.totalorder %s16, 4
      %p88 = por %p86, %p87
      %p90 = scmp.ne.s32.totalorder %s73, %s89
      %p91 = scmp.eq.s32.totalorder %s16, 0
      %p92 = por %p90, %p91
      %s93 = ssub.s32 %s18, %s32
      %p94 = scmp.eq.s32.totalorder %s93, 0
      %s96 = sadd.s32 %s95, 1
      %s97 = scalar_select %p94, %s95, %s96
      %p100 = pneg %p94
      %p101 = scmp.eq.s32.totalorder %s10, 4
      %p102 = por %p100, %p101
      %p103 = scmp.ne.s32.totalorder %s95, %s98
      %p104 = scmp.eq.s32.totalorder %s10, 0
      %p105 = por %p103, %p104
      %p106 = scmp.ne.s32.totalorder %s95, %s98
      %p107 = scmp.eq.s32.totalorder %s15, 4
      %p108 = por %p106, %p107
      %p109 = scmp.ne.s32.totalorder %s98, %s99
      %p110 = scmp.eq.s32.totalorder %s15, 0
      %p111 = por %p109, %p110
      %p112 = scmp.ne.s32.totalorder %s98, %s99
      %p113 = scmp.eq.s32.totalorder %s16, 4
      %p114 = por %p112, %p113
      %p116 = scmp.ne.s32.totalorder %s99, %s115
      %p117 = scmp.eq.s32.totalorder %s16, 0
      %p118 = por %p116, %p117
      %s119 = ssub.s32 %s18, %s32
      %p120 = scmp.eq.s32.totalorder %s119, 0
      %s122 = sadd.s32 %s121, 1
      %s123 = scalar_select %p120, %s121, %s122
      %p126 = pneg %p120
      %p127 = scmp.eq.s32.totalorder %s10, 4
      %p128 = por %p126, %p127
      %p129 = scmp.ne.s32.totalorder %s121, %s124
      %p130 = scmp.eq.s32.totalorder %s10, 0
      %p131 = por %p129, %p130
      %p132 = scmp.ne.s32.totalorder %s121, %s124
      %p133 = scmp.eq.s32.totalorder %s15, 4
      %p134 = por %p132, %p133
      %p135 = scmp.ne.s32.totalorder %s124, %s125
      %p136 = scmp.eq.s32.totalorder %s15, 0
      %p137 = por %p135, %p136
      %p138 = scmp.ne.s32.totalorder %s124, %s125
      %p139 = scmp.eq.s32.totalorder %s16, 4
      %p140 = por %p138, %p139
      %p142 = scmp.ne.s32.totalorder %s125, %s141
      %p143 = scmp.eq.s32.totalorder %s16, 0
      %p144 = por %p142, %p143
      %s145 = ssub.s32 %s17, %s36
      %s146 = ssub.s32 %s18, %s32
      %s147 = sor.u32 %s145, %s146
      %p148 = scmp.eq.s32.totalorder %s147, 0
      %s150 = sadd.s32 %s149, 1
      %s151 = scalar_select %p148, %s149, %s150
      %p154 = pneg %p148
      %p155 = scmp.eq.s32.totalorder %s10, 4
      %p156 = por %p154, %p155
      %p157 = scmp.ne.s32.totalorder %s149, %s152
      %p158 = scmp.eq.s32.totalorder %s10, 0
      %p159 = por %p157, %p158
      %p160 = scmp.ne.s32.totalorder %s149, %s152
      %p161 = scmp.eq.s32.totalorder %s15, 4
      %p162 = por %p160, %p161
      %p163 = scmp.ne.s32.totalorder %s152, %s153
      %p164 = scmp.eq.s32.totalorder %s15, 0
      %p165 = por %p163, %p164
      %p166 = scmp.ne.s32.totalorder %s152, %s153
      %p167 = scmp.eq.s32.totalorder %s16, 4
      %p168 = por %p166, %p167
      %p170 = scmp.ne.s32.totalorder %s153, %s169
      %p171 = scmp.eq.s32.totalorder %s16, 0
      %p172 = por %p170, %p171
      %p173 = scmp.le.s32.totalorder 1, %s10
      %p174 = scmp.lt.s32.totalorder %s10, 6
      %p175 = pnand %p173, %p174
      %p176 = pneg %p175
      // Predicated region
      $region9: #{scene_embed2_fwd.48} parent=5 // pred_check
        _
      $region10: #{scene_embed2_fwd.48} parent=5 // pred_check_branch
        %178 = sbr.rel (%p175) target = $region12
      $region11: #{scene_embed2_fwd.48} parent=5 // pred_region
        %s179 = ssub.s32 %s10, 1
        // Predicated region
        $region13: #{scene_embed2_fwd.48} parent=11 // pred_check
          %p180 = pneg %p111
        $region14: #{scene_embed2_fwd.48} parent=11 // pred_check_branch
          %182 = sbr.rel (%p180) target = $region16
        $region15: #{scene_embed2_fwd.48} parent=11 // pred_region
          %p183 = scmp.lt.s32.totalorder %s21, 0
          %s184 = scalar_select %p183, %s21, 0
          %s185 = scalar_lea.vmem %s2, %s184
        $region16: #{scene_embed2_fwd.48} parent=11 // pred_fallthru
          _
        // Predicated region
        $region17: #{scene_embed2_fwd.48} parent=11 // pred_check
          %p186 = pneg %p137
        $region18: #{scene_embed2_fwd.48} parent=11 // pred_check_branch
          %188 = sbr.rel (%p186) target = $region20
        $region19: #{scene_embed2_fwd.48} parent=11 // pred_region
          %p189 = scmp.lt.s32.totalorder %s21, 0
          %s190 = scalar_select %p189, %s21, 0
          %s191 = scalar_lea.vmem %s3, %s190
        $region20: #{scene_embed2_fwd.48} parent=11 // pred_fallthru
          _
      $region12: #{scene_embed2_fwd.48} parent=5 // pred_fallthru
        _
      %p192 = scmp.lt.s32.totalorder %s10, 5
      // Predicated region
      $region21: #{scene_embed2_fwd.48} parent=5 // pred_check
        %p193 = pneg %p192
      $region22: #{scene_embed2_fwd.48} parent=5 // pred_check_branch
        %195 = sbr.rel (%p193) target = $region24
      $region23: #{scene_embed2_fwd.48} parent=5 // pred_region
        // Predicated region
        $region25: #{scene_embed2_fwd.48} parent=23 // pred_check
          %p196 = pneg %p51
        $region26: #{scene_embed2_fwd.48} parent=23 // pred_check_branch
          %198 = sbr.rel (%p196) target = $region28
        $region27: #{scene_embed2_fwd.48} parent=23 // pred_region
          %s199 = sand.u32 %s41, 1
          %s200 = sand.u32 %s41, 1
          %s201 = smul.addr %s200, 32
          %s202 = scalar_lea.vmem [#allocation3], %s201
          %s203 = smul.u32 4, %s17
          %s204 = smul.u32 2, %s19
          %s205 = smul.addr %s203, 10
          %s206 = sadd.s32 %s204, %s205
          %s207 = smul.addr %s206, 4
          %s208 = scalar_lea.vmem %s0, %s207
          // Predicated region
          $region29: #{scene_embed2_fwd.48} parent=27 // pred_check
            _
          $region30: #{scene_embed2_fwd.48} parent=27 // pred_check_branch
            %210 = sbr.rel (0) target = $region32
          $region31: #{scene_embed2_fwd.48} parent=27 // pred_region
            // Predicated region
            $region33: #{scene_embed2_fwd.48} parent=31 // pred_check
              _
            $region34: #{scene_embed2_fwd.48} parent=31 // pred_check_branch
              %212 = sbr.rel (0) target = $region36
            $region35: #{scene_embed2_fwd.48} parent=31 // pred_region
              // Predicated region
              $region48: #{scene_embed2_fwd.48} parent=35 // pred_check
                _
              $region49: #{scene_embed2_fwd.48} parent=35 // pred_check_branch
                %233 = sbr.rel (0) target = $region51
              $region50: #{scene_embed2_fwd.48} parent=35 // pred_region
                loop: start=0, step=1, limit=1
                $region52: #{scene_embed2_fwd.48} parent=50 // loop_pre_header
                  _
                $region53: #{scene_embed2_fwd.48} parent=50 // loop_header
                  %s235 = sphi 0, %s239
                  %p236 = scmp.ge.s32.totalorder %s235, 1
                  %s240 = sphi %s208, %s208
                  %s241 = sphi %s202, %s202
                $region54: #{scene_embed2_fwd.48} parent=50 // loop_header_branch
                  %238 = sbr.rel (%p236) target = $region58
                $region55: #{scene_embed2_fwd.48} parent=50 // loop_body
                  %v242 = vld [vmem:[%s240] sm:$0xff]
                  %243 = vst [vmem:[%s241] sm:$0xff] %v242
                  %v244 = vld [vmem:[%s240 + $0x28] sm:$0xff]
                  %245 = vst [vmem:[%s241 + $0x8] sm:$0xff] %v244
                  %v246 = vld [vmem:[%s240 + $0x50] sm:$0xff]
                  %247 = vst [vmem:[%s241 + $0x10] sm:$0xff] %v246
                  %v248 = vld [vmem:[%s240 + $0x78] sm:$0xff]
                  %249 = vst [vmem:[%s241 + $0x18] sm:$0xff] %v248
                $region56: #{scene_embed2_fwd.48} parent=50 // loop_footer
                  %s239 = sadd.s32 1, %s235
                $region57: #{scene_embed2_fwd.48} parent=50 // loop_footer_branch
                  %234 = sbr.rel target = $region53
                $region58: #{scene_embed2_fwd.48} parent=50 // loop_exit
                  _
              $region51: #{scene_embed2_fwd.48} parent=35 // pred_fallthru
                _
              // Predicated region
              $region59: #{scene_embed2_fwd.48} parent=35 // pred_check
                _
              $region60: #{scene_embed2_fwd.48} parent=35 // pred_check_branch
                %251 = sbr.rel target = $region62
              $region61: #{scene_embed2_fwd.48} parent=35 // pred_region
                _
              $region62: #{scene_embed2_fwd.48} parent=35 // pred_fallthru
                _
            $region36: #{scene_embed2_fwd.48} parent=31 // pred_fallthru
              _
            // Predicated region
            $region37: #{scene_embed2_fwd.48} parent=31 // pred_check
              _
            $region38: #{scene_embed2_fwd.48} parent=31 // pred_check_branch
              %214 = sbr.rel target = $region40
            $region39: #{scene_embed2_fwd.48} parent=31 // pred_region
              loop: start=0, step=1, limit=1
              $region41: #{scene_embed2_fwd.48} parent=39 // loop_pre_header
                _
              $region42: #{scene_embed2_fwd.48} parent=39 // loop_header
                %s217 = sphi 0, %s221
                %p218 = scmp.ge.s32.totalorder %s217, 1
                %s222 = sphi %s208, %s208
                %s223 = sphi %s202, %s202
              $region43: #{scene_embed2_fwd.48} parent=39 // loop_header_branch
                %220 = sbr.rel (%p218) target = $region47
              $region44: #{scene_embed2_fwd.48} parent=39 // loop_body
                %v224 = vld [vmem:[%s222] sm:$0xff]
                %225 = vst [vmem:[%s223] sm:$0xff] %v224
                %v226 = vld [vmem:[%s222 + $0x28] sm:$0xff]
                %227 = vst [vmem:[%s223 + $0x8] sm:$0xff] %v226
                %v228 = vld [vmem:[%s222 + $0x50] sm:$0xff]
                %229 = vst [vmem:[%s223 + $0x10] sm:$0xff] %v228
                %v230 = vld [vmem:[%s222 + $0x78] sm:$0xff]
                %231 = vst [vmem:[%s223 + $0x18] sm:$0xff] %v230
              $region45: #{scene_embed2_fwd.48} parent=39 // loop_footer
                %s221 = sadd.s32 1, %s217
              $region46: #{scene_embed2_fwd.48} parent=39 // loop_footer_branch
                %216 = sbr.rel target = $region42
              $region47: #{scene_embed2_fwd.48} parent=39 // loop_exit
                _
            $region40: #{scene_embed2_fwd.48} parent=31 // pred_fallthru
              _
          $region32: #{scene_embed2_fwd.48} parent=27 // pred_fallthru
            _
          %252 = vnop
        $region28: #{scene_embed2_fwd.48} parent=23 // pred_fallthru
          _
        // Predicated region
        $region63: #{scene_embed2_fwd.48} parent=23 // pred_check
          %p253 = pneg %p79
        $region64: #{scene_embed2_fwd.48} parent=23 // pred_check_branch
          %255 = sbr.rel (%p253) target = $region66
        $region65: #{scene_embed2_fwd.48} parent=23 // pred_region
          %s256 = smul.u32 32, %s19
          %p257 = scmp.lt.s32.totalorder %s256, 159
          %s258 = scalar_select %p257, %s256, 159
          %p259 = scmp.lt.s32.totalorder %s18, 0
          %s260 = scalar_select %p259, %s18, 0
          %s261 = sadd.s32 %s260, %s258
          %s262 = smul.addr %s261, 4
          %s263 = scalar_lea.vmem %s1, %s262
          %s264 = smul.u32 32, %s19
        $region66: #{scene_embed2_fwd.48} parent=23 // pred_fallthru
          _
      $region24: #{scene_embed2_fwd.48} parent=5 // pred_fallthru
        _
      %p265 = scmp.le.s32.totalorder 1, %s10
      %p266 = scmp.lt.s32.totalorder %s10, 6
      %p267 = pnand %p265, %p266
      %p268 = pneg %p267
      // Predicated region
      $region67: #{scene_embed2_fwd.48} parent=5 // pred_check
        _
      $region68: #{scene_embed2_fwd.48} parent=5 // pred_check_branch
        %270 = sbr.rel (%p267) target = $region70
      $region69: #{scene_embed2_fwd.48} parent=5 // pred_region
        %s271 = ssub.s32 %s10, 1
        %s272 = sand.u32 %s44, 1
        %s273 = sand.u32 %s44, 1
        %s274 = smul.addr %s273, 32
        %s275 = scalar_lea.vmem [#allocation3], %s274
        // Predicated region
        $region71: #{scene_embed2_fwd.48} parent=69 // pred_check
          %p276 = pneg %p57
        $region72: #{scene_embed2_fwd.48} parent=69 // pred_check_branch
          %278 = sbr.rel (%p276) target = $region74
        $region73: #{scene_embed2_fwd.48} parent=69 // pred_region
          _
        $region74: #{scene_embed2_fwd.48} parent=69 // pred_fallthru
          _
        %s279 = sand.u32 %s44, 1
        %s280 = sand.u32 %s44, 1
        %s281 = smul.addr %s280, 32
        %s282 = scalar_lea.vmem [#allocation3], %s281
        %p283 = pneg %p57
        %p284 = pneg %p54
        %s285 = smul.u32 32, %s22
        %p286 = scmp.lt.s32.totalorder %s285, 159
        %s287 = scalar_select %p286, %s285, 159
        %p288 = scmp.lt.s32.totalorder %s21, 0
        %s289 = scalar_select %p288, %s21, 0
        %s290 = sadd.s32 %s289, %s287
        %s291 = smul.addr %s290, 4
        %s292 = scalar_lea.vmem %s1, %s291
        %p293 = pneg %p85
        %p294 = pneg %p82
        %p295 = scmp.lt.s32.totalorder %s21, 0
        %s296 = scalar_select %p295, %s21, 0
        %s297 = scalar_lea.vmem %s2, %s296
        %p298 = pneg %p111
        %p299 = pneg %p108
        %p300 = scmp.lt.s32.totalorder %s21, 0
        %s301 = scalar_select %p300, %s21, 0
        %s302 = scalar_lea.vmem %s3, %s301
        %p303 = pneg %p137
        %p304 = pneg %p134
        %p305 = pneg %p165
        %p306 = pneg %p162
        %s307 = smul.u32 4, %s20
        %p308 = scmp.lt.s32.totalorder %s307, 3
        %s309 = scalar_select %p308, %s307, 3
        %p310 = scmp.lt.s32.totalorder %s21, 0
        %s311 = scalar_select %p310, %s21, 0
        %s312 = sadd.s32 %s311, %s309
        %s313 = smul.addr %s312, 4
        %s314 = scalar_lea.vmem %s4, %s313
        %s315 = smul.u32 4, %s20
        %s316 = smul.u32 2, %s22
        %s317 = smul.u32 32, %s22
        %p318 = scmp.lt.s32.totalorder %s317, 159
        %s319 = scalar_select %p318, %s317, 159
        %p320 = scmp.lt.s32.totalorder %s21, 0
        %s321 = scalar_select %p320, %s21, 0
        %s322 = sadd.s32 %s321, %s319
        %s323 = smul.addr %s322, 4
        %s324 = scalar_lea.vmem %s1, %s323
        %s325 = smul.u32 32, %s22
        %p326 = scmp.lt.s32.totalorder %s21, 0
        %s327 = scalar_select %p326, %s21, 0
        %s328 = scalar_lea.vmem %s2, %s327
        %p329 = scmp.lt.s32.totalorder %s21, 0
        %s330 = scalar_select %p329, %s21, 0
        %s331 = scalar_lea.vmem %s3, %s330
        %s332 = smul.u32 4, %s20
        %p333 = scmp.lt.s32.totalorder %s332, 3
        %s334 = scalar_select %p333, %s332, 3
        %p335 = scmp.lt.s32.totalorder %s21, 0
        %s336 = scalar_select %p335, %s21, 0
        %s337 = sadd.s32 %s336, %s334
        %s338 = smul.addr %s337, 4
        %s339 = scalar_lea.vmem %s4, %s338
        %s340 = smul.u32 4, %s20
        %p342 = scmp.eq.s32.totalorder %s22, 0
        // Predicated region
        $region75: #{scene_embed2_fwd.48} parent=69 // pred_check
          %p343 = pneg %p342
        $region76: #{scene_embed2_fwd.48} parent=69 // pred_check_branch
          %345 = sbr.rel (%p343) target = $region78
        $region77: #{scene_embed2_fwd.48} parent=69 // pred_region
          %346 = vst [vmem:[#allocation2] sm:$0xff] 0.0
          %347 = vst [vmem:[#allocation2 + $0x8] sm:$0xff] 0.0
          %348 = vst [vmem:[#allocation2 + $0x10] sm:$0xff] 0.0
          %349 = vst [vmem:[#allocation2 + $0x18] sm:$0xff] 0.0
        $region78: #{scene_embed2_fwd.48} parent=69 // pred_fallthru
          _
        %v350 = vld [vmem:[#allocation2] sm:$0xff]
        %v351 = vld [vmem:[#allocation2 + $0x8] sm:$0xff]
        %v352 = vld [vmem:[#allocation2 + $0x10] sm:$0xff]
        %v353 = vld [vmem:[#allocation2 + $0x18] sm:$0xff]
        %v354 = vld [vmem:[%s275] sm:$0xff]
        %v355 = vld [vmem:[%s275 + $0x8] sm:$0xff]
        %v356 = vld [vmem:[%s275 + $0x10] sm:$0xff]
        %v357 = vld [vmem:[%s275 + $0x18] sm:$0xff]
        %v358 = vld [vmem:[%s324] sm:$0xf]
        %v359 = vld [vmem:[%s324 + $0x4] sm:$0xf]
        %v360 = vld [vmem:[%s324 + $0x8] sm:$0xf]
        %v361 = vld [vmem:[%s324 + $0xc] sm:$0xf]
        %v362 = vld [vmem:[%s324 + $0x10] sm:$0xf]
        %v363 = vld [vmem:[%s324 + $0x14] sm:$0xf]
        %v364 = vld [vmem:[%s324 + $0x18] sm:$0xf]
        %v365 = vld [vmem:[%s324 + $0x1c] sm:$0xf]
        %v366 = vld [vmem:[%s324 + $0x20] sm:$0xf]
        %v367 = vld [vmem:[%s324 + $0x24] sm:$0xf]
        %v368 = vld [vmem:[%s324 + $0x28] sm:$0xf]
        %v369 = vld [vmem:[%s324 + $0x2c] sm:$0xf]
        %v370 = vld [vmem:[%s324 + $0x30] sm:$0xf]
        %v371 = vld [vmem:[%s324 + $0x34] sm:$0xf]
        %v372 = vld [vmem:[%s324 + $0x38] sm:$0xf]
        %v373 = vld [vmem:[%s324 + $0x3c] sm:$0xf]
        %v374 = vld [vmem:[%s324 + $0x40] sm:$0xf]
        %v375 = vld [vmem:[%s324 + $0x44] sm:$0xf]
        %v376 = vld [vmem:[%s324 + $0x48] sm:$0xf]
        %v377 = vld [vmem:[%s324 + $0x4c] sm:$0xf]
        %v378 = vld [vmem:[%s324 + $0x50] sm:$0xf]
        %v379 = vld [vmem:[%s324 + $0x54] sm:$0xf]
        %v380 = vld [vmem:[%s324 + $0x58] sm:$0xf]
        %v381 = vld [vmem:[%s324 + $0x5c] sm:$0xf]
        %v382 = vld [vmem:[%s324 + $0x60] sm:$0xf]
        %v383 = vld [vmem:[%s324 + $0x64] sm:$0xf]
        %v384 = vld [vmem:[%s324 + $0x68] sm:$0xf]
        %v385 = vld [vmem:[%s324 + $0x6c] sm:$0xf]
        %v386 = vld [vmem:[%s324 + $0x70] sm:$0xf]
        %v387 = vld [vmem:[%s324 + $0x74] sm:$0xf]
        %v388 = vld [vmem:[%s324 + $0x78] sm:$0xf]
        %v389 = vld [vmem:[%s324 + $0x7c] sm:$0xf]
        %v394 = vunpack.c.l.b16 %v354
        %v395 = vunpack.c.h.b16 %v354
        %v396 = vunpack.c.l.b16 %v355
        %v397 = vunpack.c.h.b16 %v355
        %v398 = vunpack.c.l.b16 %v356
        %v399 = vunpack.c.h.b16 %v356
        %v400 = vunpack.c.l.b16 %v357
        %v401 = vunpack.c.h.b16 %v357
        %v402 = vpack.c.b16 %v396, %v394
        %v403 = vpack.c.b16 %v397, %v395
        %v404 = vpack.c.b16 %v400, %v398
        %v405 = vpack.c.b16 %v401, %v399
        %v442 = vunpack.c.l.b16 %v358
        %v443 = vunpack.c.l.b16 %v359
        %v444 = vunpack.c.l.b16 %v360
        %v445 = vunpack.c.l.b16 %v361
        %v446 = vunpack.c.l.b16 %v362
        %v447 = vunpack.c.l.b16 %v363
        %v448 = vunpack.c.l.b16 %v364
        %v449 = vunpack.c.l.b16 %v365
        %v450 = vunpack.c.l.b16 %v366
        %v451 = vunpack.c.l.b16 %v367
        %v452 = vunpack.c.l.b16 %v368
        %v453 = vunpack.c.l.b16 %v369
        %v454 = vunpack.c.l.b16 %v370
        %v455 = vunpack.c.l.b16 %v371
        %v456 = vunpack.c.l.b16 %v372
        %v457 = vunpack.c.l.b16 %v373
        %v458 = vunpack.c.l.b16 %v374
        %v459 = vunpack.c.l.b16 %v375
        %v460 = vunpack.c.l.b16 %v376
        %v461 = vunpack.c.l.b16 %v377
        %v462 = vunpack.c.l.b16 %v378
        %v463 = vunpack.c.l.b16 %v379
        %v464 = vunpack.c.l.b16 %v380
        %v465 = vunpack.c.l.b16 %v381
        %v466 = vunpack.c.l.b16 %v382
        %v467 = vunpack.c.l.b16 %v383
        %v468 = vunpack.c.l.b16 %v384
        %v469 = vunpack.c.l.b16 %v385
        %v470 = vunpack.c.l.b16 %v386
        %v471 = vunpack.c.l.b16 %v387
        %v472 = vunpack.c.l.b16 %v388
        %v473 = vunpack.c.l.b16 %v389
        %v474 = vpack.c.b16 %v443, %v442
        %v475 = vpack.c.b16 %v445, %v444
        %v476 = vpack.c.b16 %v447, %v446
        %v477 = vpack.c.b16 %v449, %v448
        %v478 = vpack.c.b16 %v451, %v450
        %v479 = vpack.c.b16 %v453, %v452
        %v480 = vpack.c.b16 %v455, %v454
        %v481 = vpack.c.b16 %v457, %v456
        %v482 = vpack.c.b16 %v459, %v458
        %v483 = vpack.c.b16 %v461, %v460
        %v484 = vpack.c.b16 %v463, %v462
        %v485 = vpack.c.b16 %v465, %v464
        %v486 = vpack.c.b16 %v467, %v466
        %v487 = vpack.c.b16 %v469, %v468
        %v488 = vpack.c.b16 %v471, %v470
        %v489 = vpack.c.b16 %v473, %v472
        %506 = vmatprep.subr.bf16.mxu0 0
        %507 = vmatpush1.bf16.msra.mxu0 %v474
        %508 = vmatprep.subr.bf16.mxu0 0
        %509 = vmatpush1.bf16.msra.mxu0 %v475
        %510 = vmatprep.subr.bf16.mxu0 0
        %511 = vmatpush1.bf16.msra.mxu0 %v476
        %512 = vmatprep.subr.bf16.mxu0 0
        %513 = vmatpush1.bf16.msra.mxu0 %v477
        %514 = vmatprep.subr.bf16.mxu0 0
        %515 = vmatpush1.bf16.msra.mxu0 %v478
        %516 = vmatprep.subr.bf16.mxu0 0
        %517 = vmatpush1.bf16.msra.mxu0 %v479
        %518 = vmatprep.subr.bf16.mxu0 0
        %519 = vmatpush1.bf16.msra.mxu0 %v480
        %520 = vmatprep.subr.bf16.mxu0 0
        %521 = vmatpush1.bf16.msra.mxu0 %v481
        %522 = vmatprep.subr.bf16.mxu0 0
        %523 = vmatpush1.bf16.msra.mxu0 %v482
        %524 = vmatprep.subr.bf16.mxu0 0
        %525 = vmatpush1.bf16.msra.mxu0 %v483
        %526 = vmatprep.subr.bf16.mxu0 0
        %527 = vmatpush1.bf16.msra.mxu0 %v484
        %528 = vmatprep.subr.bf16.mxu0 0
        %529 = vmatpush1.bf16.msra.mxu0 %v485
        %530 = vmatprep.subr.bf16.mxu0 0
        %531 = vmatpush1.bf16.msra.mxu0 %v486
        %532 = vmatprep.subr.bf16.mxu0 0
        %533 = vmatpush1.bf16.msra.mxu0 %v487
        %534 = vmatprep.subr.bf16.mxu0 0
        %535 = vmatpush1.bf16.msra.mxu0 %v488
        %536 = vmatprep.subr.bf16.mxu0 0
        %537 = vmatpush1.bf16.msra.mxu0 %v489
        %538 = vmatprep.mubr.bf16.mxu0 %v403
        %539 = vmatmul.mubr.bf16.gmra.mrb[0].mxu0 %v402
        %v540 = vpop.f32.mrb[0].mxu0
        %v541 = vadd.f32 0.0, %v540
        %v542 = vpop.f32.mrb[0].mxu0
        %v543 = vpop.f32.mrb[0].mxu0
        %v544 = vadd.f32 0.0, %v543
        %v545 = vpop.f32.mrb[0].mxu0
        %546 = vmatprep.mubr.bf16.mxu0 %v405
        %547 = vmatmul.mubr.bf16.gmra.mrb[0].mxu0 %v404
        %v548 = vpop.f32.mrb[0].mxu0
        %v549 = vadd.f32 0.0, %v548
        %v550 = vpop.f32.mrb[0].mxu0
        %v551 = vpop.f32.mrb[0].mxu0
        %v552 = vadd.f32 0.0, %v551
        %v553 = vpop.f32.mrb[0].mxu0
        %554 = vdwg.mxu0
        %v555 = vadd.f32 %v350, %v541
        %v556 = vadd.f32 %v351, %v544
        %v557 = vadd.f32 %v352, %v549
        %v558 = vadd.f32 %v353, %v552
        %559 = vst [vmem:[#allocation2] sm:$0xff] %v555
        %560 = vst [vmem:[#allocation2 + $0x8] sm:$0xff] %v556
        %561 = vst [vmem:[#allocation2 + $0x10] sm:$0xff] %v557
        %562 = vst [vmem:[#allocation2 + $0x18] sm:$0xff] %v558
        %p563 = scmp.eq.s32.totalorder %s22, 4
        // Predicated region
        $region79: #{scene_embed2_fwd.48} parent=69 // pred_check
          %p564 = pneg %p563
        $region80: #{scene_embed2_fwd.48} parent=69 // pred_check_branch
          %566 = sbr.rel (%p564) target = $region82
        $region81: #{scene_embed2_fwd.48} parent=69 // pred_region
          %v567 = vld [vmem:[#allocation2] sm:$0xff]
          %v568 = vld [vmem:[#allocation2 + $0x8] sm:$0xff]
          %v569 = vld [vmem:[#allocation2 + $0x10] sm:$0xff]
          %v570 = vld [vmem:[#allocation2 + $0x18] sm:$0xff]
          %v571 = vld [vmem:[%s328] sm:$0x1]
          %v573 = vlaneseq
          %v574 = vshrl.u32 %v573, 7
          %v575 = vsub.s32 0, %v574
          %v576 = vrot.slane %v571, %v575
          %v578 = vmul.f32 %v567, %v576
          %v579 = vmul.f32 %v568, %v576
          %v580 = vmul.f32 %v569, %v576
          %v581 = vmul.f32 %v570, %v576
          %v582 = vld [vmem:[%s331] sm:$0x1]
          %v584 = vlaneseq
          %v585 = vshrl.u32 %v584, 7
          %v586 = vsub.s32 0, %v585
          %v587 = vrot.slane %v582, %v586
          %v589 = vadd.f32 %v578, %v587
          %v590 = vadd.f32 %v579, %v587
          %v591 = vadd.f32 %v580, %v587
          %v592 = vadd.f32 %v581, %v587
          %v593 = vmax.f32 %v589, 0.0
          %v594 = vmax.f32 %v590, 0.0
          %v595 = vmax.f32 %v591, 0.0
          %v596 = vmax.f32 %v592, 0.0
          %v597 = vpack.c.bf16 %v594, %v593
          %v598 = vpack.c.bf16 %v596, %v595
          %v601 = vunpack.c.l.b16 %v597
          %v602 = vunpack.c.h.b16 %v597
          %v603 = vunpack.c.l.b16 %v598
          %v604 = vunpack.c.h.b16 %v598
          %v605 = vpack.c.b16 %v601, %v601
          %v606 = vpack.c.b16 %v602, %v602
          %v607 = vpack.c.b16 %v603, %v603
          %v608 = vpack.c.b16 %v604, %v604
          %613 = vst [vmem:[%s339] sm:$0xf] %v605
          %614 = vst [vmem:[%s339 + $0x4] sm:$0xf] %v606
          %615 = vst [vmem:[%s339 + $0x8] sm:$0xf] %v607
          %616 = vst [vmem:[%s339 + $0xc] sm:$0xf] %v608
        $region82: #{scene_embed2_fwd.48} parent=69 // pred_fallthru
          _
        %s617 = smul.u32 4, %s20
        %p618 = scmp.lt.s32.totalorder %s617, 3
        %s619 = scalar_select %p618, %s617, 3
        %p620 = scmp.lt.s32.totalorder %s21, 0
        %s621 = scalar_select %p620, %s21, 0
        %s622 = sadd.s32 %s621, %s619
        %s623 = smul.addr %s622, 4
        %s624 = scalar_lea.vmem %s4, %s623
        // Predicated region
        $region83: #{scene_embed2_fwd.48} parent=69 // pred_check
          %p625 = pneg %p162
        $region84: #{scene_embed2_fwd.48} parent=69 // pred_check_branch
          %627 = sbr.rel (%p625) target = $region86
        $region85: #{scene_embed2_fwd.48} parent=69 // pred_region
          %s628 = smul.u32 4, %s20
        $region86: #{scene_embed2_fwd.48} parent=69 // pred_fallthru
          _
        // Predicated region
        $region87: #{scene_embed2_fwd.48} parent=69 // pred_check
          %p629 = pneg %p162
        $region88: #{scene_embed2_fwd.48} parent=69 // pred_check_branch
          %631 = sbr.rel (%p629) target = $region90
        $region89: #{scene_embed2_fwd.48} parent=69 // pred_region
          %s632 = smul.u32 4, %s20
          %p633 = scmp.lt.s32.totalorder %s632, 3
          %s634 = scalar_select %p633, %s632, 3
          %p635 = scmp.lt.s32.totalorder %s21, 0
          %s636 = scalar_select %p635, %s21, 0
          %s637 = sadd.s32 %s636, %s634
          %s638 = smul.addr %s637, 4
          %s639 = scalar_lea.vmem %s4, %s638
        $region90: #{scene_embed2_fwd.48} parent=69 // pred_fallthru
          _
      $region70: #{scene_embed2_fwd.48} parent=5 // pred_fallthru
        _
      %p640 = scmp.le.s32.totalorder 2, %s10
      // Predicated region
      $region91: #{scene_embed2_fwd.48} parent=5 // pred_check
        %p641 = pneg %p640
      $region92: #{scene_embed2_fwd.48} parent=5 // pred_check_branch
        %643 = sbr.rel (%p641) target = $region94
      $region93: #{scene_embed2_fwd.48} parent=5 // pred_region
        %s644 = ssub.s32 %s10, 2
      $region94: #{scene_embed2_fwd.48} parent=5 // pred_fallthru
        _
    $region6: #{scene_embed2_fwd.48} parent=1 // loop_footer
      %s14 = sadd.s32 1, %s10
    $region7: #{scene_embed2_fwd.48} parent=1 // loop_footer_branch
      %9 = sbr.rel target = $region3
    $region8: #{scene_embed2_fwd.48} parent=1 // loop_exit
      _

// kernel: scene_embed2_fwd.49
$region0: #{scene_embed2_fwd.49}
  #allocation0 [shape = 'u32[]', space=smem, size = 0x4, offset = 0x4, fixed_abs, tag = 'smem constant byte address 0x4 - core index']
  #allocation1 [shape = 'u32[144,128]{1,0:T(1,128)}', space=vmem, size = 0x12000, scoped, tag = 'internal scratch']
  %s0 = inlined_call_operand.vmem [shape: bf16[32,128], index: 0, kind: input, shape index: {}]
  %s1 = inlined_call_operand.vmem [shape: bf16[128,1024], index: 1, kind: input, shape index: {}]
  %s2 = inlined_call_operand.vmem [shape: f32[1,1024], index: 2, kind: input, shape index: {}]
  %s3 = inlined_call_operand.vmem [shape: bf16[1024,128], index: 3, kind: input, shape index: {}]
  %s4 = inlined_call_operand.vmem [shape: f32[1,128], index: 4, kind: input, shape index: {}]
  %s5 = inlined_call_operand.vmem [shape: f32[32,128], index: 5, kind: output, shape index: {}]
  %s6 = sld [smem:[#allocation0]]
  $region30: #{scene_embed2_fwd.49} parent=0
    _
  %s8 = ssub.s32 1, %s6
  %s9 = scalar_select 0, %s8, %s6
  // Predicated region
  $region2: #{scene_embed2_fwd.49} parent=0 // pred_check
    _
  $region3: #{scene_embed2_fwd.49} parent=0 // pred_check_branch
    %11 = sbr.rel (0) target = $region5
  $region4: #{scene_embed2_fwd.49} parent=0 // pred_region
    _
  $region5: #{scene_embed2_fwd.49} parent=0 // pred_fallthru
    _
  // Predicated region
  $region6: #{scene_embed2_fwd.49} parent=0 // pred_check
    _
  $region7: #{scene_embed2_fwd.49} parent=0 // pred_check_branch
    %13 = sbr.rel (0) target = $region9
  $region8: #{scene_embed2_fwd.49} parent=0 // pred_region
    _
  $region9: #{scene_embed2_fwd.49} parent=0 // pred_fallthru
    _
  // Predicated region
  $region10: #{scene_embed2_fwd.49} parent=0 // pred_check
    _
  $region11: #{scene_embed2_fwd.49} parent=0 // pred_check_branch
    %15 = sbr.rel (0) target = $region13
  $region12: #{scene_embed2_fwd.49} parent=0 // pred_region
    _
  $region13: #{scene_embed2_fwd.49} parent=0 // pred_fallthru
    _
  // Predicated region
  $region14: #{scene_embed2_fwd.49} parent=0 // pred_check
    _
  $region15: #{scene_embed2_fwd.49} parent=0 // pred_check_branch
    %17 = sbr.rel (0) target = $region17
  $region16: #{scene_embed2_fwd.49} parent=0 // pred_region
    _
  $region17: #{scene_embed2_fwd.49} parent=0 // pred_fallthru
    _
  // Predicated region
  $region18: #{scene_embed2_fwd.49} parent=0 // pred_check
    _
  $region19: #{scene_embed2_fwd.49} parent=0 // pred_check_branch
    %19 = sbr.rel (0) target = $region21
  $region20: #{scene_embed2_fwd.49} parent=0 // pred_region
    _
  $region21: #{scene_embed2_fwd.49} parent=0 // pred_fallthru
    _
  %v21 = vld [vmem:[%s0] sm:$0xf]
  %v22 = vld [vmem:[%s0 + $0x4] sm:$0xf]
  %v23 = vld [vmem:[%s0 + $0x8] sm:$0xf]
  %v24 = vld [vmem:[%s0 + $0xc] sm:$0xf]
  %v25 = vld [vmem:[%s1] sm:$0xff]
  %v26 = vld [vmem:[%s1 + $0x8] sm:$0xff]
  %v27 = vld [vmem:[%s1 + $0x10] sm:$0xff]
  %v28 = vld [vmem:[%s1 + $0x18] sm:$0xff]
  %v29 = vld [vmem:[%s1 + $0x20] sm:$0xff]
  %v30 = vld [vmem:[%s1 + $0x28] sm:$0xff]
  %v31 = vld [vmem:[%s1 + $0x30] sm:$0xff]
  %v32 = vld [vmem:[%s1 + $0x38] sm:$0xff]
  %v33 = vld [vmem:[%s1 + $0x40] sm:$0xff]
  %v34 = vld [vmem:[%s1 + $0x48] sm:$0xff]
  %v35 = vld [vmem:[%s1 + $0x50] sm:$0xff]
  %v36 = vld [vmem:[%s1 + $0x58] sm:$0xff]
  %v37 = vld [vmem:[%s1 + $0x60] sm:$0xff]
  %v38 = vld [vmem:[%s1 + $0x68] sm:$0xff]
  %v39 = vld [vmem:[%s1 + $0x70] sm:$0xff]
  %v40 = vld [vmem:[%s1 + $0x78] sm:$0xff]
  %v41 = vld [vmem:[%s1 + $0x80] sm:$0xff]
  %v42 = vld [vmem:[%s1 + $0x88] sm:$0xff]
  %v43 = vld [vmem:[%s1 + $0x90] sm:$0xff]
  %v44 = vld [vmem:[%s1 + $0x98] sm:$0xff]
  %v45 = vld [vmem:[%s1 + $0xa0] sm:$0xff]
  %v46 = vld [vmem:[%s1 + $0xa8] sm:$0xff]
  %v47 = vld [vmem:[%s1 + $0xb0] sm:$0xff]
  %v48 = vld [vmem:[%s1 + $0xb8] sm:$0xff]
  %v49 = vld [vmem:[%s1 + $0xc0] sm:$0xff]
  %v50 = vld [vmem:[%s1 + $0xc8] sm:$0xff]
  %v51 = vld [vmem:[%s1 + $0xd0] sm:$0xff]
  %v52 = vld [vmem:[%s1 + $0xd8] sm:$0xff]
  %v53 = vld [vmem:[%s1 + $0xe0] sm:$0xff]
  %v54 = vld [vmem:[%s1 + $0xe8] sm:$0xff]
  %v55 = vld [vmem:[%s1 + $0xf0] sm:$0xff]
  %v56 = vld [vmem:[%s1 + $0xf8] sm:$0xff]
  %v57 = vld [vmem:[%s1 + $0x100] sm:$0xff]
  %v58 = vld [vmem:[%s1 + $0x108] sm:$0xff]
  %v59 = vld [vmem:[%s1 + $0x110] sm:$0xff]
  %v60 = vld [vmem:[%s1 + $0x118] sm:$0xff]
  %v61 = vld [vmem:[%s1 + $0x120] sm:$0xff]
  %v62 = vld [vmem:[%s1 + $0x128] sm:$0xff]
  %v63 = vld [vmem:[%s1 + $0x130] sm:$0xff]
  %v64 = vld [vmem:[%s1 + $0x138] sm:$0xff]
  %v65 = vld [vmem:[%s1 + $0x140] sm:$0xff]
  %v66 = vld [vmem:[%s1 + $0x148] sm:$0xff]
  %v67 = vld [vmem:[%s1 + $0x150] sm:$0xff]
  %v68 = vld [vmem:[%s1 + $0x158] sm:$0xff]
  %v69 = vld [vmem:[%s1 + $0x160] sm:$0xff]
  %v70 = vld [vmem:[%s1 + $0x168] sm:$0xff]
  %v71 = vld [vmem:[%s1 + $0x170] sm:$0xff]
  %v72 = vld [vmem:[%s1 + $0x178] sm:$0xff]
  %v73 = vld [vmem:[%s1 + $0x180] sm:$0xff]
  %v74 = vld [vmem:[%s1 + $0x188] sm:$0xff]
  %v75 = vld [vmem:[%s1 + $0x190] sm:$0xff]
  %v76 = vld [vmem:[%s1 + $0x198] sm:$0xff]
  %v77 = vld [vmem:[%s1 + $0x1a0] sm:$0xff]
  %v78 = vld [vmem:[%s1 + $0x1a8] sm:$0xff]
  %v79 = vld [vmem:[%s1 + $0x1b0] sm:$0xff]
  %v80 = vld [vmem:[%s1 + $0x1b8] sm:$0xff]
  %v81 = vld [vmem:[%s1 + $0x1c0] sm:$0xff]
  %v82 = vld [vmem:[%s1 + $0x1c8] sm:$0xff]
  %v83 = vld [vmem:[%s1 + $0x1d0] sm:$0xff]
  %v84 = vld [vmem:[%s1 + $0x1d8] sm:$0xff]
  %v85 = vld [vmem:[%s1 + $0x1e0] sm:$0xff]
  %v86 = vld [vmem:[%s1 + $0x1e8] sm:$0xff]
  %v87 = vld [vmem:[%s1 + $0x1f0] sm:$0xff]
  %v88 = vld [vmem:[%s1 + $0x1f8] sm:$0xff]
  %v89 = vld [vmem:[%s2] sm:$0xff]
  %v91 = vlaneseq
  %v92 = vshrl.u32 %v91, 7
  %v93 = vsub.s32 0, %v92
  %v94 = vrot.slane %v89, %v93
  %v95 = vlaneseq
  %v96 = vshrl.u32 %v95, 7
  %v97 = vsub.s32 1, %v96
  %v98 = vrot.slane %v89, %v97
  %v99 = vlaneseq
  %v100 = vshrl.u32 %v99, 7
  %v101 = vsub.s32 2, %v100
  %v102 = vrot.slane %v89, %v101
  %v103 = vlaneseq
  %v104 = vshrl.u32 %v103, 7
  %v105 = vsub.s32 3, %v104
  %v106 = vrot.slane %v89, %v105
  %v107 = vlaneseq
  %v108 = vshrl.u32 %v107, 7
  %v109 = vsub.s32 4, %v108
  %v110 = vrot.slane %v89, %v109
  %v111 = vlaneseq
  %v112 = vshrl.u32 %v111, 7
  %v113 = vsub.s32 5, %v112
  %v114 = vrot.slane %v89, %v113
  %v115 = vlaneseq
  %v116 = vshrl.u32 %v115, 7
  %v117 = vsub.s32 6, %v116
  %v118 = vrot.slane %v89, %v117
  %v119 = vlaneseq
  %v120 = vshrl.u32 %v119, 7
  %v121 = vsub.s32 7, %v120
  %v122 = vrot.slane %v89, %v121
  %v135 = vunpack.c.l.b16 %v21
  %v136 = vunpack.c.l.b16 %v22
  %v137 = vunpack.c.l.b16 %v23
  %v138 = vunpack.c.l.b16 %v24
  %v139 = vpack.c.b16 %v136, %v135
  %v140 = vpack.c.b16 %v138, %v137
  %v207 = vunpack.c.l.b16 %v25
  %v208 = vunpack.c.h.b16 %v25
  %v209 = vunpack.c.l.b16 %v26
  %v210 = vunpack.c.h.b16 %v26
  %v211 = vunpack.c.l.b16 %v27
  %v212 = vunpack.c.h.b16 %v27
  %v213 = vunpack.c.l.b16 %v28
  %v214 = vunpack.c.h.b16 %v28
  %v215 = vunpack.c.l.b16 %v29
  %v216 = vunpack.c.h.b16 %v29
  %v217 = vunpack.c.l.b16 %v30
  %v218 = vunpack.c.h.b16 %v30
  %v219 = vunpack.c.l.b16 %v31
  %v220 = vunpack.c.h.b16 %v31
  %v221 = vunpack.c.l.b16 %v32
  %v222 = vunpack.c.h.b16 %v32
  %v223 = vunpack.c.l.b16 %v33
  %v224 = vunpack.c.h.b16 %v33
  %v225 = vunpack.c.l.b16 %v34
  %v226 = vunpack.c.h.b16 %v34
  %v227 = vunpack.c.l.b16 %v35
  %v228 = vunpack.c.h.b16 %v35
  %v229 = vunpack.c.l.b16 %v36
  %v230 = vunpack.c.h.b16 %v36
  %v231 = vunpack.c.l.b16 %v37
  %v232 = vunpack.c.h.b16 %v37
  %v233 = vunpack.c.l.b16 %v38
  %v234 = vunpack.c.h.b16 %v38
  %v235 = vunpack.c.l.b16 %v39
  %v236 = vunpack.c.h.b16 %v39
  %v237 = vunpack.c.l.b16 %v40
  %v238 = vunpack.c.h.b16 %v40
  %v239 = vunpack.c.l.b16 %v41
  %v240 = vunpack.c.h.b16 %v41
  %v241 = vunpack.c.l.b16 %v42
  %v242 = vunpack.c.h.b16 %v42
  %v243 = vunpack.c.l.b16 %v43
  %v244 = vunpack.c.h.b16 %v43
  %v245 = vunpack.c.l.b16 %v44
  %v246 = vunpack.c.h.b16 %v44
  %v247 = vunpack.c.l.b16 %v45
  %v248 = vunpack.c.h.b16 %v45
  %v249 = vunpack.c.l.b16 %v46
  %v250 = vunpack.c.h.b16 %v46
  %v251 = vunpack.c.l.b16 %v47
  %v252 = vunpack.c.h.b16 %v47
  %v253 = vunpack.c.l.b16 %v48
  %v254 = vunpack.c.h.b16 %v48
  %v255 = vunpack.c.l.b16 %v49
  %v256 = vunpack.c.h.b16 %v49
  %v257 = vunpack.c.l.b16 %v50
  %v258 = vunpack.c.h.b16 %v50
  %v259 = vunpack.c.l.b16 %v51
  %v260 = vunpack.c.h.b16 %v51
  %v261 = vunpack.c.l.b16 %v52
  %v262 = vunpack.c.h.b16 %v52
  %v263 = vunpack.c.l.b16 %v53
  %v264 = vunpack.c.h.b16 %v53
  %v265 = vunpack.c.l.b16 %v54
  %v266 = vunpack.c.h.b16 %v54
  %v267 = vunpack.c.l.b16 %v55
  %v268 = vunpack.c.h.b16 %v55
  %v269 = vunpack.c.l.b16 %v56
  %v270 = vunpack.c.h.b16 %v56
  %v271 = vunpack.c.l.b16 %v57
  %v272 = vunpack.c.h.b16 %v57
  %v273 = vunpack.c.l.b16 %v58
  %v274 = vunpack.c.h.b16 %v58
  %v275 = vunpack.c.l.b16 %v59
  %v276 = vunpack.c.h.b16 %v59
  %v277 = vunpack.c.l.b16 %v60
  %v278 = vunpack.c.h.b16 %v60
  %v279 = vunpack.c.l.b16 %v61
  %v280 = vunpack.c.h.b16 %v61
  %v281 = vunpack.c.l.b16 %v62
  %v282 = vunpack.c.h.b16 %v62
  %v283 = vunpack.c.l.b16 %v63
  %v284 = vunpack.c.h.b16 %v63
  %v285 = vunpack.c.l.b16 %v64
  %v286 = vunpack.c.h.b16 %v64
  %v287 = vunpack.c.l.b16 %v65
  %v288 = vunpack.c.h.b16 %v65
  %v289 = vunpack.c.l.b16 %v66
  %v290 = vunpack.c.h.b16 %v66
  %v291 = vunpack.c.l.b16 %v67
  %v292 = vunpack.c.h.b16 %v67
  %v293 = vunpack.c.l.b16 %v68
  %v294 = vunpack.c.h.b16 %v68
  %v295 = vunpack.c.l.b16 %v69
  %v296 = vunpack.c.h.b16 %v69
  %v297 = vunpack.c.l.b16 %v70
  %v298 = vunpack.c.h.b16 %v70
  %v299 = vunpack.c.l.b16 %v71
  %v300 = vunpack.c.h.b16 %v71
  %v301 = vunpack.c.l.b16 %v72
  %v302 = vunpack.c.h.b16 %v72
  %v303 = vunpack.c.l.b16 %v73
  %v304 = vunpack.c.h.b16 %v73
  %v305 = vunpack.c.l.b16 %v74
  %v306 = vunpack.c.h.b16 %v74
  %v307 = vunpack.c.l.b16 %v75
  %v308 = vunpack.c.h.b16 %v75
  %v309 = vunpack.c.l.b16 %v76
  %v310 = vunpack.c.h.b16 %v76
  %v311 = vunpack.c.l.b16 %v77
  %v312 = vunpack.c.h.b16 %v77
  %v313 = vunpack.c.l.b16 %v78
  %v314 = vunpack.c.h.b16 %v78
  %v315 = vunpack.c.l.b16 %v79
  %v316 = vunpack.c.h.b16 %v79
  %v317 = vunpack.c.l.b16 %v80
  %v318 = vunpack.c.h.b16 %v80
  %v319 = vunpack.c.l.b16 %v81
  %v320 = vunpack.c.h.b16 %v81
  %v321 = vunpack.c.l.b16 %v82
  %v322 = vunpack.c.h.b16 %v82
  %v323 = vunpack.c.l.b16 %v83
  %v324 = vunpack.c.h.b16 %v83
  %v325 = vunpack.c.l.b16 %v84
  %v326 = vunpack.c.h.b16 %v84
  %v327 = vunpack.c.l.b16 %v85
  %v328 = vunpack.c.h.b16 %v85
  %v329 = vunpack.c.l.b16 %v86
  %v330 = vunpack.c.h.b16 %v86
  %v331 = vunpack.c.l.b16 %v87
  %v332 = vunpack.c.h.b16 %v87
  %v333 = vunpack.c.l.b16 %v88
  %v334 = vunpack.c.h.b16 %v88
  %v335 = vpack.c.b16 %v215, %v207
  %v336 = vpack.c.b16 %v216, %v208
  %v337 = vpack.c.b16 %v217, %v209
  %v338 = vpack.c.b16 %v218, %v210
  %v339 = vpack.c.b16 %v219, %v211
  %v340 = vpack.c.b16 %v220, %v212
  %v341 = vpack.c.b16 %v221, %v213
  %v342 = vpack.c.b16 %v222, %v214
  %v343 = vpack.c.b16 %v231, %v223
  %v344 = vpack.c.b16 %v232, %v224
  %v345 = vpack.c.b16 %v233, %v225
  %v346 = vpack.c.b16 %v234, %v226
  %v347 = vpack.c.b16 %v235, %v227
  %v348 = vpack.c.b16 %v236, %v228
  %v349 = vpack.c.b16 %v237, %v229
  %v350 = vpack.c.b16 %v238, %v230
  %v351 = vpack.c.b16 %v247, %v239
  %v352 = vpack.c.b16 %v248, %v240
  %v353 = vpack.c.b16 %v249, %v241
  %v354 = vpack.c.b16 %v250, %v242
  %v355 = vpack.c.b16 %v251, %v243
  %v356 = vpack.c.b16 %v252, %v244
  %v357 = vpack.c.b16 %v253, %v245
  %v358 = vpack.c.b16 %v254, %v246
  %v359 = vpack.c.b16 %v263, %v255
  %v360 = vpack.c.b16 %v264, %v256
  %v361 = vpack.c.b16 %v265, %v257
  %v362 = vpack.c.b16 %v266, %v258
  %v363 = vpack.c.b16 %v267, %v259
  %v364 = vpack.c.b16 %v268, %v260
  %v365 = vpack.c.b16 %v269, %v261
  %v366 = vpack.c.b16 %v270, %v262
  %v367 = vpack.c.b16 %v279, %v271
  %v368 = vpack.c.b16 %v280, %v272
  %v369 = vpack.c.b16 %v281, %v273
  %v370 = vpack.c.b16 %v282, %v274
  %v371 = vpack.c.b16 %v283, %v275
  %v372 = vpack.c.b16 %v284, %v276
  %v373 = vpack.c.b16 %v285, %v277
  %v374 = vpack.c.b16 %v286, %v278
  %v375 = vpack.c.b16 %v295, %v287
  %v376 = vpack.c.b16 %v296, %v288
  %v377 = vpack.c.b16 %v297, %v289
  %v378 = vpack.c.b16 %v298, %v290
  %v379 = vpack.c.b16 %v299, %v291
  %v380 = vpack.c.b16 %v300, %v292
  %v381 = vpack.c.b16 %v301, %v293
  %v382 = vpack.c.b16 %v302, %v294
  %v383 = vpack.c.b16 %v311, %v303
  %v384 = vpack.c.b16 %v312, %v304
  %v385 = vpack.c.b16 %v313, %v305
  %v386 = vpack.c.b16 %v314, %v306
  %v387 = vpack.c.b16 %v315, %v307
  %v388 = vpack.c.b16 %v316, %v308
  %v389 = vpack.c.b16 %v317, %v309
  %v390 = vpack.c.b16 %v318, %v310
  %v391 = vpack.c.b16 %v327, %v319
  %v392 = vpack.c.b16 %v328, %v320
  %v393 = vpack.c.b16 %v329, %v321
  %v394 = vpack.c.b16 %v330, %v322
  %v395 = vpack.c.b16 %v331, %v323
  %v396 = vpack.c.b16 %v332, %v324
  %v397 = vpack.c.b16 %v333, %v325
  %v398 = vpack.c.b16 %v334, %v326
  %463 = vmatprep.subr.bf16.mxu0 %v336
  %464 = vmatpush1.bf16.msra.mxu0 %v335
  %465 = vmatprep.subr.bf16.mxu0 %v344
  %466 = vmatpush1.bf16.msra.mxu0 %v343
  %467 = vmatprep.subr.bf16.mxu0 %v352
  %468 = vmatpush1.bf16.msra.mxu0 %v351
  %469 = vmatprep.subr.bf16.mxu0 %v360
  %470 = vmatpush1.bf16.msra.mxu0 %v359
  %471 = vmatprep.subr.bf16.mxu0 %v368
  %472 = vmatpush1.bf16.msra.mxu0 %v367
  %473 = vmatprep.subr.bf16.mxu0 %v376
  %474 = vmatpush1.bf16.msra.mxu0 %v375
  %475 = vmatprep.subr.bf16.mxu0 %v384
  %476 = vmatpush1.bf16.msra.mxu0 %v383
  %477 = vmatprep.subr.bf16.mxu0 %v392
  %478 = vmatpush1.bf16.msra.mxu0 %v391
  %479 = vmatprep.subr.bf16.mxu0 0
  %480 = vmatpush1.bf16.msra.mxu0 0
  %481 = vmatprep.subr.bf16.mxu0 0
  %482 = vmatpush1.bf16.msra.mxu0 0
  %483 = vmatprep.subr.bf16.mxu0 0
  %484 = vmatpush1.bf16.msra.mxu0 0
  %485 = vmatprep.subr.bf16.mxu0 0
  %486 = vmatpush1.bf16.msra.mxu0 0
  %487 = vmatprep.subr.bf16.mxu0 0
  %488 = vmatpush1.bf16.msra.mxu0 0
  %489 = vmatprep.subr.bf16.mxu0 0
  %490 = vmatpush1.bf16.msra.mxu0 0
  %491 = vmatprep.subr.bf16.mxu0 0
  %492 = vmatpush1.bf16.msra.mxu0 0
  %493 = vmatprep.subr.bf16.mxu0 0
  %494 = vmatpush1.bf16.msra.mxu0 0
  %495 = vmatprep.mubr.bf16.mxu0 0
  %496 = vmatmul.mubr.bf16.gmra.mrb[0].mxu0 %v139
  %v497 = vpop.f32.mrb[0].mxu0
  %v498 = vadd.f32 %v94, %v497
  %v499 = vpop.f32.mrb[0].mxu0
  %v500 = vadd.f32 %v98, %v499
  %v501 = vpop.f32.mrb[0].mxu0
  %v502 = vadd.f32 %v94, %v501
  %v503 = vpop.f32.mrb[0].mxu0
  %v504 = vadd.f32 %v98, %v503
  %505 = vmatprep.mubr.bf16.mxu0 0
  %506 = vmatmul.mubr.bf16.gmra.mrb[0].mxu0 %v140
  %v507 = vpop.f32.mrb[0].mxu0
  %v508 = vadd.f32 %v94, %v507
  %v509 = vpop.f32.mrb[0].mxu0
  %v510 = vadd.f32 %v98, %v509
  %v511 = vpop.f32.mrb[0].mxu0
  %v512 = vadd.f32 %v94, %v511
  %v513 = vpop.f32.mrb[0].mxu0
  %v514 = vadd.f32 %v98, %v513
  %515 = vdwg.mxu0
  %516 = vmatprep.subr.bf16.mxu0 %v338
  %517 = vmatpush1.bf16.msra.mxu0 %v337
  %518 = vmatprep.subr.bf16.mxu0 %v346
  %519 = vmatpush1.bf16.msra.mxu0 %v345
  %520 = vmatprep.subr.bf16.mxu0 %v354
  %521 = vmatpush1.bf16.msra.mxu0 %v353
  %522 = vmatprep.subr.bf16.mxu0 %v362
  %523 = vmatpush1.bf16.msra.mxu0 %v361
  %524 = vmatprep.subr.bf16.mxu0 %v370
  %525 = vmatpush1.bf16.msra.mxu0 %v369
  %526 = vmatprep.subr.bf16.mxu0 %v378
  %527 = vmatpush1.bf16.msra.mxu0 %v377
  %528 = vmatprep.subr.bf16.mxu0 %v386
  %529 = vmatpush1.bf16.msra.mxu0 %v385
  %530 = vmatprep.subr.bf16.mxu0 %v394
  %531 = vmatpush1.bf16.msra.mxu0 %v393
  %532 = vmatprep.subr.bf16.mxu0 0
  %533 = vmatpush1.bf16.msra.mxu0 0
  %534 = vmatprep.subr.bf16.mxu0 0
  %535 = vmatpush1.bf16.msra.mxu0 0
  %536 = vmatprep.subr.bf16.mxu0 0
  %537 = vmatpush1.bf16.msra.mxu0 0
  %538 = vmatprep.subr.bf16.mxu0 0
  %539 = vmatpush1.bf16.msra.mxu0 0
  %540 = vmatprep.subr.bf16.mxu0 0
  %541 = vmatpush1.bf16.msra.mxu0 0
  %542 = vmatprep.subr.bf16.mxu0 0
  %543 = vmatpush1.bf16.msra.mxu0 0
  %544 = vmatprep.subr.bf16.mxu0 0
  %545 = vmatpush1.bf16.msra.mxu0 0
  %546 = vmatprep.subr.bf16.mxu0 0
  %547 = vmatpush1.bf16.msra.mxu0 0
  %548 = vmatprep.mubr.bf16.mxu0 0
  %549 = vmatmul.mubr.bf16.gmra.mrb[0].mxu0 %v139
  %v550 = vpop.f32.mrb[0].mxu0
  %v551 = vadd.f32 %v102, %v550
  %v552 = vpop.f32.mrb[0].mxu0
  %v553 = vadd.f32 %v106, %v552
  %v554 = vpop.f32.mrb[0].mxu0
  %v555 = vadd.f32 %v102, %v554
  %v556 = vpop.f32.mrb[0].mxu0
  %v557 = vadd.f32 %v106, %v556
  %558 = vmatprep.mubr.bf16.mxu0 0
  %559 = vmatmul.mubr.bf16.gmra.mrb[0].mxu0 %v140
  %v560 = vpop.f32.mrb[0].mxu0
  %v561 = vadd.f32 %v102, %v560
  %v562 = vpop.f32.mrb[0].mxu0
  %v563 = vadd.f32 %v106, %v562
  %v564 = vpop.f32.mrb[0].mxu0
  %v565 = vadd.f32 %v102, %v564
  %v566 = vpop.f32.mrb[0].mxu0
  %v567 = vadd.f32 %v106, %v566
  %568 = vdwg.mxu0
  %569 = vmatprep.subr.bf16.mxu0 %v340
  %570 = vmatpush1.bf16.msra.mxu0 %v339
  %571 = vmatprep.subr.bf16.mxu0 %v348
  %572 = vmatpush1.bf16.msra.mxu0 %v347
  %573 = vmatprep.subr.bf16.mxu0 %v356
  %574 = vmatpush1.bf16.msra.mxu0 %v355
  %575 = vmatprep.subr.bf16.mxu0 %v364
  %576 = vmatpush1.bf16.msra.mxu0 %v363
  %577 = vmatprep.subr.bf16.mxu0 %v372
  %578 = vmatpush1.bf16.msra.mxu0 %v371
  %579 = vmatprep.subr.bf16.mxu0 %v380
  %580 = vmatpush1.bf16.msra.mxu0 %v379
  %581 = vmatprep.subr.bf16.mxu0 %v388
  %582 = vmatpush1.bf16.msra.mxu0 %v387
  %583 = vmatprep.subr.bf16.mxu0 %v396
  %584 = vmatpush1.bf16.msra.mxu0 %v395
  %585 = vmatprep.subr.bf16.mxu0 0
  %586 = vmatpush1.bf16.msra.mxu0 0
  %587 = vmatprep.subr.bf16.mxu0 0
  %588 = vmatpush1.bf16.msra.mxu0 0
  %589 = vmatprep.subr.bf16.mxu0 0
  %590 = vmatpush1.bf16.msra.mxu0 0
  %591 = vmatprep.subr.bf16.mxu0 0
  %592 = vmatpush1.bf16.msra.mxu0 0
  %593 = vmatprep.subr.bf16.mxu0 0
  %594 = vmatpush1.bf16.msra.mxu0 0
  %595 = vmatprep.subr.bf16.mxu0 0
  %596 = vmatpush1.bf16.msra.mxu0 0
  %597 = vmatprep.subr.bf16.mxu0 0
  %598 = vmatpush1.bf16.msra.mxu0 0
  %599 = vmatprep.subr.bf16.mxu0 0
  %600 = vmatpush1.bf16.msra.mxu0 0
  %601 = vmatprep.mubr.bf16.mxu0 0
  %602 = vmatmul.mubr.bf16.gmra.mrb[0].mxu0 %v139
  %v603 = vpop.f32.mrb[0].mxu0
  %v604 = vadd.f32 %v110, %v603
  %v605 = vpop.f32.mrb[0].mxu0
  %v606 = vadd.f32 %v114, %v605
  %v607 = vpop.f32.mrb[0].mxu0
  %v608 = vadd.f32 %v110, %v607
  %v609 = vpop.f32.mrb[0].mxu0
  %v610 = vadd.f32 %v114, %v609
  %611 = vmatprep.mubr.bf16.mxu0 0
  %612 = vmatmul.mubr.bf16.gmra.mrb[0].mxu0 %v140
  %v613 = vpop.f32.mrb[0].mxu0
  %v614 = vadd.f32 %v110, %v613
  %v615 = vpop.f32.mrb[0].mxu0
  %v616 = vadd.f32 %v114, %v615
  %v617 = vpop.f32.mrb[0].mxu0
  %v618 = vadd.f32 %v110, %v617
  %v619 = vpop.f32.mrb[0].mxu0
  %v620 = vadd.f32 %v114, %v619
  %621 = vdwg.mxu0
  %622 = vmatprep.subr.bf16.mxu0 %v342
  %623 = vmatpush1.bf16.msra.mxu0 %v341
  %624 = vmatprep.subr.bf16.mxu0 %v350
  %625 = vmatpush1.bf16.msra.mxu0 %v349
  %626 = vmatprep.subr.bf16.mxu0 %v358
  %627 = vmatpush1.bf16.msra.mxu0 %v357
  %628 = vmatprep.subr.bf16.mxu0 %v366
  %629 = vmatpush1.bf16.msra.mxu0 %v365
  %630 = vmatprep.subr.bf16.mxu0 %v374
  %631 = vmatpush1.bf16.msra.mxu0 %v373
  %632 = vmatprep.subr.bf16.mxu0 %v382
  %633 = vmatpush1.bf16.msra.mxu0 %v381
  %634 = vmatprep.subr.bf16.mxu0 %v390
  %635 = vmatpush1.bf16.msra.mxu0 %v389
  %636 = vmatprep.subr.bf16.mxu0 %v398
  %637 = vmatpush1.bf16.msra.mxu0 %v397
  %638 = vmatprep.subr.bf16.mxu0 0
  %639 = vmatpush1.bf16.msra.mxu0 0
  %640 = vmatprep.subr.bf16.mxu0 0
  %641 = vmatpush1.bf16.msra.mxu0 0
  %642 = vmatprep.subr.bf16.mxu0 0
  %643 = vmatpush1.bf16.msra.mxu0 0
  %644 = vmatprep.subr.bf16.mxu0 0
  %645 = vmatpush1.bf16.msra.mxu0 0
  %646 = vmatprep.subr.bf16.mxu0 0
  %647 = vmatpush1.bf16.msra.mxu0 0
  %648 = vmatprep.subr.bf16.mxu0 0
  %649 = vmatpush1.bf16.msra.mxu0 0
  %650 = vmatprep.subr.bf16.mxu0 0
  %651 = vmatpush1.bf16.msra.mxu0 0
  %652 = vmatprep.subr.bf16.mxu0 0
  %653 = vmatpush1.bf16.msra.mxu0 0
  %654 = vmatprep.mubr.bf16.mxu0 0
  %655 = vmatmul.mubr.bf16.gmra.mrb[0].mxu0 %v139
  %v656 = vpop.f32.mrb[0].mxu0
  %v657 = vadd.f32 %v118, %v656
  %v658 = vpop.f32.mrb[0].mxu0
  %v659 = vadd.f32 %v122, %v658
  %v660 = vpop.f32.mrb[0].mxu0
  %v661 = vadd.f32 %v118, %v660
  %v662 = vpop.f32.mrb[0].mxu0
  %v663 = vadd.f32 %v122, %v662
  %664 = vmatprep.mubr.bf16.mxu0 0
  %665 = vmatmul.mubr.bf16.gmra.mrb[0].mxu0 %v140
  %v666 = vpop.f32.mrb[0].mxu0
  %v667 = vadd.f32 %v118, %v666
  %v668 = vpop.f32.mrb[0].mxu0
  %v669 = vadd.f32 %v122, %v668
  %v670 = vpop.f32.mrb[0].mxu0
  %v671 = vadd.f32 %v118, %v670
  %v672 = vpop.f32.mrb[0].mxu0
  %v673 = vadd.f32 %v122, %v672
  %674 = vdwg.mxu0
  %v675 = vmax.f32 %v498, 0.0
  %v676 = vmax.f32 %v500, 0.0
  %v677 = vmax.f32 %v551, 0.0
  %v678 = vmax.f32 %v553, 0.0
  %v679 = vmax.f32 %v604, 0.0
  %v680 = vmax.f32 %v606, 0.0
  %v681 = vmax.f32 %v657, 0.0
  %v682 = vmax.f32 %v659, 0.0
  %v683 = vmax.f32 %v502, 0.0
  %v684 = vmax.f32 %v504, 0.0
  %v685 = vmax.f32 %v555, 0.0
  %v686 = vmax.f32 %v557, 0.0
  %v687 = vmax.f32 %v608, 0.0
  %v688 = vmax.f32 %v610, 0.0
  %v689 = vmax.f32 %v661, 0.0
  %v690 = vmax.f32 %v663, 0.0
  %v691 = vmax.f32 %v508, 0.0
  %v692 = vmax.f32 %v510, 0.0
  %v693 = vmax.f32 %v561, 0.0
  %v694 = vmax.f32 %v563, 0.0
  %v695 = vmax.f32 %v614, 0.0
  %v696 = vmax.f32 %v616, 0.0
  %v697 = vmax.f32 %v667, 0.0
  %v698 = vmax.f32 %v669, 0.0
  %v699 = vmax.f32 %v512, 0.0
  %v700 = vmax.f32 %v514, 0.0
  %v701 = vmax.f32 %v565, 0.0
  %v702 = vmax.f32 %v567, 0.0
  %v703 = vmax.f32 %v618, 0.0
  %v704 = vmax.f32 %v620, 0.0
  %v705 = vmax.f32 %v671, 0.0
  %v706 = vmax.f32 %v673, 0.0
  %v707 = vpack.c.bf16 %v683, %v675
  %v708 = vpack.c.bf16 %v684, %v676
  %v709 = vpack.c.bf16 %v685, %v677
  %v710 = vpack.c.bf16 %v686, %v678
  %v711 = vpack.c.bf16 %v687, %v679
  %v712 = vpack.c.bf16 %v688, %v680
  %v713 = vpack.c.bf16 %v689, %v681
  %v714 = vpack.c.bf16 %v690, %v682
  %v715 = vpack.c.bf16 %v699, %v691
  %v716 = vpack.c.bf16 %v700, %v692
  %v717 = vpack.c.bf16 %v701, %v693
  %v718 = vpack.c.bf16 %v702, %v694
  %v719 = vpack.c.bf16 %v703, %v695
  %v720 = vpack.c.bf16 %v704, %v696
  %v721 = vpack.c.bf16 %v705, %v697
  %v722 = vpack.c.bf16 %v706, %v698
  %v723 = vld [vmem:[%s3] sm:$0xf]
  %v724 = vld [vmem:[%s3 + $0x4] sm:$0xf]
  %v725 = vld [vmem:[%s3 + $0x8] sm:$0xf]
  %v726 = vld [vmem:[%s3 + $0xc] sm:$0xf]
  %v727 = vld [vmem:[%s3 + $0x10] sm:$0xf]
  %v728 = vld [vmem:[%s3 + $0x14] sm:$0xf]
  %v729 = vld [vmem:[%s3 + $0x18] sm:$0xf]
  %v730 = vld [vmem:[%s3 + $0x1c] sm:$0xf]
  %v731 = vld [vmem:[%s3 + $0x20] sm:$0xf]
  %v732 = vld [vmem:[%s3 + $0x24] sm:$0xf]
  %v733 = vld [vmem:[%s3 + $0x28] sm:$0xf]
  %v734 = vld [vmem:[%s3 + $0x2c] sm:$0xf]
  %v735 = vld [vmem:[%s3 + $0x30] sm:$0xf]
  %v736 = vld [vmem:[%s3 + $0x34] sm:$0xf]
  %v737 = vld [vmem:[%s3 + $0x38] sm:$0xf]
  %v738 = vld [vmem:[%s3 + $0x3c] sm:$0xf]
  %v739 = vld [vmem:[%s3 + $0x40] sm:$0xf]
  %v740 = vld [vmem:[%s3 + $0x44] sm:$0xf]
  %v741 = vld [vmem:[%s3 + $0x48] sm:$0xf]
  %v742 = vld [vmem:[%s3 + $0x4c] sm:$0xf]
  %v743 = vld [vmem:[%s3 + $0x50] sm:$0xf]
  %v744 = vld [vmem:[%s3 + $0x54] sm:$0xf]
  %v745 = vld [vmem:[%s3 + $0x58] sm:$0xf]
  %v746 = vld [vmem:[%s3 + $0x5c] sm:$0xf]
  %v747 = vld [vmem:[%s3 + $0x60] sm:$0xf]
  %v748 = vld [vmem:[%s3 + $0x64] sm:$0xf]
  %v749 = vld [vmem:[%s3 + $0x68] sm:$0xf]
  %v750 = vld [vmem:[%s3 + $0x6c] sm:$0xf]
  %v751 = vld [vmem:[%s3 + $0x70] sm:$0xf]
  %v752 = vld [vmem:[%s3 + $0x74] sm:$0xf]
  %v753 = vld [vmem:[%s3 + $0x78] sm:$0xf]
  %v754 = vld [vmem:[%s3 + $0x7c] sm:$0xf]
  %v755 = vld [vmem:[%s3 + $0x80] sm:$0xf]
  %v756 = vld [vmem:[%s3 + $0x84] sm:$0xf]
  %v757 = vld [vmem:[%s3 + $0x88] sm:$0xf]
  %v758 = vld [vmem:[%s3 + $0x8c] sm:$0xf]
  %v759 = vld [vmem:[%s3 + $0x90] sm:$0xf]
  %v760 = vld [vmem:[%s3 + $0x94] sm:$0xf]
  %v761 = vld [vmem:[%s3 + $0x98] sm:$0xf]
  %v762 = vld [vmem:[%s3 + $0x9c] sm:$0xf]
  %v763 = vld [vmem:[%s3 + $0xa0] sm:$0xf]
  %v764 = vld [vmem:[%s3 + $0xa4] sm:$0xf]
  %v765 = vld [vmem:[%s3 + $0xa8] sm:$0xf]
  %v766 = vld [vmem:[%s3 + $0xac] sm:$0xf]
  %v767 = vld [vmem:[%s3 + $0xb0] sm:$0xf]
  %v768 = vld [vmem:[%s3 + $0xb4] sm:$0xf]
  %v769 = vld [vmem:[%s3 + $0xb8] sm:$0xf]
  %v770 = vld [vmem:[%s3 + $0xbc] sm:$0xf]
  %v771 = vld [vmem:[%s3 + $0xc0] sm:$0xf]
  %v772 = vld [vmem:[%s3 + $0xc4] sm:$0xf]
  %v773 = vld [vmem:[%s3 + $0xc8] sm:$0xf]
  %v774 = vld [vmem:[%s3 + $0xcc] sm:$0xf]
  %v775 = vld [vmem:[%s3 + $0xd0] sm:$0xf]
  %v776 = vld [vmem:[%s3 + $0xd4] sm:$0xf]
  %v777 = vld [vmem:[%s3 + $0xd8] sm:$0xf]
  %v778 = vld [vmem:[%s3 + $0xdc] sm:$0xf]
  %v779 = vld [vmem:[%s3 + $0xe0] sm:$0xf]
  %v780 = vld [vmem:[%s3 + $0xe4] sm:$0xf]
  %v781 = vld [vmem:[%s3 + $0xe8] sm:$0xf]
  %v782 = vld [vmem:[%s3 + $0xec] sm:$0xf]
  %v783 = vld [vmem:[%s3 + $0xf0] sm:$0xf]
  %v784 = vld [vmem:[%s3 + $0xf4] sm:$0xf]
  %v785 = vld [vmem:[%s3 + $0xf8] sm:$0xf]
  %v786 = vld [vmem:[%s3 + $0xfc] sm:$0xf]
  %v787 = vld [vmem:[%s3 + $0x100] sm:$0xf]
  %v788 = vld [vmem:[%s3 + $0x104] sm:$0xf]
  %v789 = vld [vmem:[%s3 + $0x108] sm:$0xf]
  %v790 = vld [vmem:[%s3 + $0x10c] sm:$0xf]
  %v791 = vld [vmem:[%s3 + $0x110] sm:$0xf]
  %v792 = vld [vmem:[%s3 + $0x114] sm:$0xf]
  %v793 = vld [vmem:[%s3 + $0x118] sm:$0xf]
  %v794 = vld [vmem:[%s3 + $0x11c] sm:$0xf]
  %v795 = vld [vmem:[%s3 + $0x120] sm:$0xf]
  %v796 = vld [vmem:[%s3 + $0x124] sm:$0xf]
  %v797 = vld [vmem:[%s3 + $0x128] sm:$0xf]
  %v798 = vld [vmem:[%s3 + $0x12c] sm:$0xf]
  %v799 = vld [vmem:[%s3 + $0x130] sm:$0xf]
  %v800 = vld [vmem:[%s3 + $0x134] sm:$0xf]
  %v801 = vld [vmem:[%s3 + $0x138] sm:$0xf]
  %v802 = vld [vmem:[%s3 + $0x13c] sm:$0xf]
  %v803 = vld [vmem:[%s3 + $0x140] sm:$0xf]
  %v804 = vld [vmem:[%s3 + $0x144] sm:$0xf]
  %v805 = vld [vmem:[%s3 + $0x148] sm:$0xf]
  %v806 = vld [vmem:[%s3 + $0x14c] sm:$0xf]
  %v807 = vld [vmem:[%s3 + $0x150] sm:$0xf]
  %v808 = vld [vmem:[%s3 + $0x154] sm:$0xf]
  %v809 = vld [vmem:[%s3 + $0x158] sm:$0xf]
  %v810 = vld [vmem:[%s3 + $0x15c] sm:$0xf]
  %v811 = vld [vmem:[%s3 + $0x160] sm:$0xf]
  %v812 = vld [vmem:[%s3 + $0x164] sm:$0xf]
  %v813 = vld [vmem:[%s3 + $0x168] sm:$0xf]
  %v814 = vld [vmem:[%s3 + $0x16c] sm:$0xf]
  %v815 = vld [vmem:[%s3 + $0x170] sm:$0xf]
  %v816 = vld [vmem:[%s3 + $0x174] sm:$0xf]
  %v817 = vld [vmem:[%s3 + $0x178] sm:$0xf]
  %v818 = vld [vmem:[%s3 + $0x17c] sm:$0xf]
  %v819 = vld [vmem:[%s3 + $0x180] sm:$0xf]
  %v820 = vld [vmem:[%s3 + $0x184] sm:$0xf]
  %v821 = vld [vmem:[%s3 + $0x188] sm:$0xf]
  %v822 = vld [vmem:[%s3 + $0x18c] sm:$0xf]
  %v823 = vld [vmem:[%s3 + $0x190] sm:$0xf]
  %v824 = vld [vmem:[%s3 + $0x194] sm:$0xf]
  %v825 = vld [vmem:[%s3 + $0x198] sm:$0xf]
  %v826 = vld [vmem:[%s3 + $0x19c] sm:$0xf]
  %v827 = vld [vmem:[%s3 + $0x1a0] sm:$0xf]
  %v828 = vld [vmem:[%s3 + $0x1a4] sm:$0xf]
  %v829 = vld [vmem:[%s3 + $0x1a8] sm:$0xf]
  %v830 = vld [vmem:[%s3 + $0x1ac] sm:$0xf]
  %v831 = vld [vmem:[%s3 + $0x1b0] sm:$0xf]
  %v832 = vld [vmem:[%s3 + $0x1b4] sm:$0xf]
  %v833 = vld [vmem:[%s3 + $0x1b8] sm:$0xf]
  %v834 = vld [vmem:[%s3 + $0x1bc] sm:$0xf]
  %v835 = vld [vmem:[%s3 + $0x1c0] sm:$0xf]
  %v836 = vld [vmem:[%s3 + $0x1c4] sm:$0xf]
  %v837 = vld [vmem:[%s3 + $0x1c8] sm:$0xf]
  %v838 = vld [vmem:[%s3 + $0x1cc] sm:$0xf]
  %v839 = vld [vmem:[%s3 + $0x1d0] sm:$0xf]
  %v840 = vld [vmem:[%s3 + $0x1d4] sm:$0xf]
  %v841 = vld [vmem:[%s3 + $0x1d8] sm:$0xf]
  %v842 = vld [vmem:[%s3 + $0x1dc] sm:$0xf]
  %v843 = vld [vmem:[%s3 + $0x1e0] sm:$0xf]
  %v844 = vld [vmem:[%s3 + $0x1e4] sm:$0xf]
  %v845 = vld [vmem:[%s3 + $0x1e8] sm:$0xf]
  %v846 = vld [vmem:[%s3 + $0x1ec] sm:$0xf]
  %v847 = vld [vmem:[%s3 + $0x1f0] sm:$0xf]
  %v848 = vld [vmem:[%s3 + $0x1f4] sm:$0xf]
  %v849 = vld [vmem:[%s3 + $0x1f8] sm:$0xf]
  %v850 = vld [vmem:[%s3 + $0x1fc] sm:$0xf]
  %v851 = vld [vmem:[%s4] sm:$0x1]
  %v853 = vlaneseq
  %v854 = vshrl.u32 %v853, 7
  %v855 = vsub.s32 0, %v854
  %v856 = vrot.slane %v851, %v855
  %v986 = vunpack.c.l.b16 %v723
  %v987 = vunpack.c.l.b16 %v724
  %v988 = vunpack.c.l.b16 %v725
  %v989 = vunpack.c.l.b16 %v726
  %v990 = vunpack.c.l.b16 %v727
  %v991 = vunpack.c.l.b16 %v728
  %v992 = vunpack.c.l.b16 %v729
  %v993 = vunpack.c.l.b16 %v730
  %v994 = vunpack.c.l.b16 %v731
  %v995 = vunpack.c.l.b16 %v732
  %v996 = vunpack.c.l.b16 %v733
  %v997 = vunpack.c.l.b16 %v734
  %v998 = vunpack.c.l.b16 %v735
  %v999 = vunpack.c.l.b16 %v736
  %v1000 = vunpack.c.l.b16 %v737
  %v1001 = vunpack.c.l.b16 %v738
  %v1002 = vunpack.c.l.b16 %v739
  %v1003 = vunpack.c.l.b16 %v740
  %v1004 = vunpack.c.l.b16 %v741
  %v1005 = vunpack.c.l.b16 %v742
  %v1006 = vunpack.c.l.b16 %v743
  %v1007 = vunpack.c.l.b16 %v744
  %v1008 = vunpack.c.l.b16 %v745
  %v1009 = vunpack.c.l.b16 %v746
  %v1010 = vunpack.c.l.b16 %v747
  %v1011 = vunpack.c.l.b16 %v748
  %v1012 = vunpack.c.l.b16 %v749
  %v1013 = vunpack.c.l.b16 %v750
  %v1014 = vunpack.c.l.b16 %v751
  %v1015 = vunpack.c.l.b16 %v752
  %v1016 = vunpack.c.l.b16 %v753
  %v1017 = vunpack.c.l.b16 %v754
  %v1018 = vunpack.c.l.b16 %v755
  %v1019 = vunpack.c.l.b16 %v756
  %v1020 = vunpack.c.l.b16 %v757
  %v1021 = vunpack.c.l.b16 %v758
  %v1022 = vunpack.c.l.b16 %v759
  %v1023 = vunpack.c.l.b16 %v760
  %v1024 = vunpack.c.l.b16 %v761
  %v1025 = vunpack.c.l.b16 %v762
  %v1026 = vunpack.c.l.b16 %v763
  %v1027 = vunpack.c.l.b16 %v764
  %v1028 = vunpack.c.l.b16 %v765
  %v1029 = vunpack.c.l.b16 %v766
  %v1030 = vunpack.c.l.b16 %v767
  %v1031 = vunpack.c.l.b16 %v768
  %v1032 = vunpack.c.l.b16 %v769
  %v1033 = vunpack.c.l.b16 %v770
  %v1034 = vunpack.c.l.b16 %v771
  %v1035 = vunpack.c.l.b16 %v772
  %v1036 = vunpack.c.l.b16 %v773
  %v1037 = vunpack.c.l.b16 %v774
  %v1038 = vunpack.c.l.b16 %v775
  %v1039 = vunpack.c.l.b16 %v776
  %v1040 = vunpack.c.l.b16 %v777
  %v1041 = vunpack.c.l.b16 %v778
  %v1042 = vunpack.c.l.b16 %v779
  %v1043 = vunpack.c.l.b16 %v780
  %v1044 = vunpack.c.l.b16 %v781
  %v1045 = vunpack.c.l.b16 %v782
  %v1046 = vunpack.c.l.b16 %v783
  %v1047 = vunpack.c.l.b16 %v784
  %v1048 = vunpack.c.l.b16 %v785
  %v1049 = vunpack.c.l.b16 %v786
  %v1050 = vunpack.c.l.b16 %v787
  %v1051 = vunpack.c.l.b16 %v788
  %v1052 = vunpack.c.l.b16 %v789
  %v1053 = vunpack.c.l.b16 %v790
  %v1054 = vunpack.c.l.b16 %v791
  %v1055 = vunpack.c.l.b16 %v792
  %v1056 = vunpack.c.l.b16 %v793
  %v1057 = vunpack.c.l.b16 %v794
  %v1058 = vunpack.c.l.b16 %v795
  %v1059 = vunpack.c.l.b16 %v796
  %v1060 = vunpack.c.l.b16 %v797
  %v1061 = vunpack.c.l.b16 %v798
  %v1062 = vunpack.c.l.b16 %v799
  %v1063 = vunpack.c.l.b16 %v800
  %v1064 = vunpack.c.l.b16 %v801
  %v1065 = vunpack.c.l.b16 %v802
  %v1066 = vunpack.c.l.b16 %v803
  %v1067 = vunpack.c.l.b16 %v804
  %v1068 = vunpack.c.l.b16 %v805
  %v1069 = vunpack.c.l.b16 %v806
  %v1070 = vunpack.c.l.b16 %v807
  %v1071 = vunpack.c.l.b16 %v808
  %v1072 = vunpack.c.l.b16 %v809
  %v1073 = vunpack.c.l.b16 %v810
  %v1074 = vunpack.c.l.b16 %v811
  %v1075 = vunpack.c.l.b16 %v812
  %v1076 = vunpack.c.l.b16 %v813
  %v1077 = vunpack.c.l.b16 %v814
  %v1078 = vunpack.c.l.b16 %v815
  %v1079 = vunpack.c.l.b16 %v816
  %v1080 = vunpack.c.l.b16 %v817
  %v1081 = vunpack.c.l.b16 %v818
  %v1082 = vunpack.c.l.b16 %v819
  %v1083 = vunpack.c.l.b16 %v820
  %v1084 = vunpack.c.l.b16 %v821
  %v1085 = vunpack.c.l.b16 %v822
  %v1086 = vunpack.c.l.b16 %v823
  %v1087 = vunpack.c.l.b16 %v824
  %v1088 = vunpack.c.l.b16 %v825
  %v1089 = vunpack.c.l.b16 %v826
  %v1090 = vunpack.c.l.b16 %v827
  %v1091 = vunpack.c.l.b16 %v828
  %v1092 = vunpack.c.l.b16 %v829
  %v1093 = vunpack.c.l.b16 %v830
  %v1094 = vunpack.c.l.b16 %v831
  %v1095 = vunpack.c.l.b16 %v832
  %v1096 = vunpack.c.l.b16 %v833
  %v1097 = vunpack.c.l.b16 %v834
  %v1098 = vunpack.c.l.b16 %v835
  %v1099 = vunpack.c.l.b16 %v836
  %v1100 = vunpack.c.l.b16 %v837
  %v1101 = vunpack.c.l.b16 %v838
  %v1102 = vunpack.c.l.b16 %v839
  %v1103 = vunpack.c.l.b16 %v840
  %v1104 = vunpack.c.l.b16 %v841
  %v1105 = vunpack.c.l.b16 %v842
  %v1106 = vunpack.c.l.b16 %v843
  %v1107 = vunpack.c.l.b16 %v844
  %v1108 = vunpack.c.l.b16 %v845
  %v1109 = vunpack.c.l.b16 %v846
  %v1110 = vunpack.c.l.b16 %v847
  %v1111 = vunpack.c.l.b16 %v848
  %v1112 = vunpack.c.l.b16 %v849
  %v1113 = vunpack.c.l.b16 %v850
  %v1114 = vpack.c.b16 %v987, %v986
  %v1115 = vpack.c.b16 %v989, %v988
  %v1116 = vpack.c.b16 %v991, %v990
  %v1117 = vpack.c.b16 %v993, %v992
  %v1118 = vpack.c.b16 %v995, %v994
  %v1119 = vpack.c.b16 %v997, %v996
  %v1120 = vpack.c.b16 %v999, %v998
  %v1121 = vpack.c.b16 %v1001, %v1000
  %v1122 = vpack.c.b16 %v1003, %v1002
  %v1123 = vpack.c.b16 %v1005, %v1004
  %v1124 = vpack.c.b16 %v1007, %v1006
  %v1125 = vpack.c.b16 %v1009, %v1008
  %v1126 = vpack.c.b16 %v1011, %v1010
  %v1127 = vpack.c.b16 %v1013, %v1012
  %v1128 = vpack.c.b16 %v1015, %v1014
  %v1129 = vpack.c.b16 %v1017, %v1016
  %v1130 = vpack.c.b16 %v1019, %v1018
  %v1131 = vpack.c.b16 %v1021, %v1020
  %v1132 = vpack.c.b16 %v1023, %v1022
  %v1133 = vpack.c.b16 %v1025, %v1024
  %v1134 = vpack.c.b16 %v1027, %v1026
  %v1135 = vpack.c.b16 %v1029, %v1028
  %v1136 = vpack.c.b16 %v1031, %v1030
  %v1137 = vpack.c.b16 %v1033, %v1032
  %v1138 = vpack.c.b16 %v1035, %v1034
  %v1139 = vpack.c.b16 %v1037, %v1036
  %v1140 = vpack.c.b16 %v1039, %v1038
  %v1141 = vpack.c.b16 %v1041, %v1040
  %v1142 = vpack.c.b16 %v1043, %v1042
  %v1143 = vpack.c.b16 %v1045, %v1044
  %v1144 = vpack.c.b16 %v1047, %v1046
  %v1145 = vpack.c.b16 %v1049, %v1048
  %v1146 = vpack.c.b16 %v1051, %v1050
  %v1147 = vpack.c.b16 %v1053, %v1052
  %v1148 = vpack.c.b16 %v1055, %v1054
  %v1149 = vpack.c.b16 %v1057, %v1056
  %v1150 = vpack.c.b16 %v1059, %v1058
  %v1151 = vpack.c.b16 %v1061, %v1060
  %v1152 = vpack.c.b16 %v1063, %v1062
  %v1153 = vpack.c.b16 %v1065, %v1064
  %v1154 = vpack.c.b16 %v1067, %v1066
  %v1155 = vpack.c.b16 %v1069, %v1068
  %v1156 = vpack.c.b16 %v1071, %v1070
  %v1157 = vpack.c.b16 %v1073, %v1072
  %v1158 = vpack.c.b16 %v1075, %v1074
  %v1159 = vpack.c.b16 %v1077, %v1076
  %v1160 = vpack.c.b16 %v1079, %v1078
  %v1161 = vpack.c.b16 %v1081, %v1080
  %v1162 = vpack.c.b16 %v1083, %v1082
  %v1163 = vpack.c.b16 %v1085, %v1084
  %v1164 = vpack.c.b16 %v1087, %v1086
  %v1165 = vpack.c.b16 %v1089, %v1088
  %v1166 = vpack.c.b16 %v1091, %v1090
  %v1167 = vpack.c.b16 %v1093, %v1092
  %v1168 = vpack.c.b16 %v1095, %v1094
  %v1169 = vpack.c.b16 %v1097, %v1096
  %v1170 = vpack.c.b16 %v1099, %v1098
  %v1171 = vpack.c.b16 %v1101, %v1100
  %v1172 = vpack.c.b16 %v1103, %v1102
  %v1173 = vpack.c.b16 %v1105, %v1104
  %v1174 = vpack.c.b16 %v1107, %v1106
  %v1175 = vpack.c.b16 %v1109, %v1108
  %v1176 = vpack.c.b16 %v1111, %v1110
  %v1177 = vpack.c.b16 %v1113, %v1112
  %1242 = vmatprep.subr.bf16.mxu0 0
  %1243 = vmatpush1.bf16.msra.mxu0 %v1114
  %1244 = vmatprep.subr.bf16.mxu0 0
  %1245 = vmatpush1.bf16.msra.mxu0 %v1115
  %1246 = vmatprep.subr.bf16.mxu0 0
  %1247 = vmatpush1.bf16.msra.mxu0 %v1116
  %1248 = vmatprep.subr.bf16.mxu0 0
  %1249 = vmatpush1.bf16.msra.mxu0 %v1117
  %1250 = vmatprep.subr.bf16.mxu0 0
  %1251 = vmatpush1.bf16.msra.mxu0 %v1118
  %1252 = vmatprep.subr.bf16.mxu0 0
  %1253 = vmatpush1.bf16.msra.mxu0 %v1119
  %1254 = vmatprep.subr.bf16.mxu0 0
  %1255 = vmatpush1.bf16.msra.mxu0 %v1120
  %1256 = vmatprep.subr.bf16.mxu0 0
  %1257 = vmatpush1.bf16.msra.mxu0 %v1121
  %1258 = vmatprep.subr.bf16.mxu0 0
  %1259 = vmatpush1.bf16.msra.mxu0 %v1122
  %1260 = vmatprep.subr.bf16.mxu0 0
  %1261 = vmatpush1.bf16.msra.mxu0 %v1123
  %1262 = vmatprep.subr.bf16.mxu0 0
  %1263 = vmatpush1.bf16.msra.mxu0 %v1124
  %1264 = vmatprep.subr.bf16.mxu0 0
  %1265 = vmatpush1.bf16.msra.mxu0 %v1125
  %1266 = vmatprep.subr.bf16.mxu0 0
  %1267 = vmatpush1.bf16.msra.mxu0 %v1126
  %1268 = vmatprep.subr.bf16.mxu0 0
  %1269 = vmatpush1.bf16.msra.mxu0 %v1127
  %1270 = vmatprep.subr.bf16.mxu0 0
  %1271 = vmatpush1.bf16.msra.mxu0 %v1128
  %1272 = vmatprep.subr.bf16.mxu0 0
  %1273 = vmatpush1.bf16.msra.mxu0 %v1129
  %1274 = vmatprep.mubr.bf16.mxu0 %v708
  %1275 = vmatmul.mubr.bf16.gmra.mrb[0].mxu0 %v707
  %v1276 = vpop.f32.mrb[0].mxu0
  %v1277 = vadd.f32 %v856, %v1276
  %v1278 = vpop.f32.mrb[0].mxu0
  %v1279 = vpop.f32.mrb[0].mxu0
  %v1280 = vadd.f32 %v856, %v1279
  %v1281 = vpop.f32.mrb[0].mxu0
  %1282 = vmatprep.mubr.bf16.mxu0 %v716
  %1283 = vmatmul.mubr.bf16.gmra.mrb[0].mxu0 %v715
  %v1284 = vpop.f32.mrb[0].mxu0
  %v1285 = vadd.f32 %v856, %v1284
  %v1286 = vpop.f32.mrb[0].mxu0
  %v1287 = vpop.f32.mrb[0].mxu0
  %v1288 = vadd.f32 %v856, %v1287
  %v1289 = vpop.f32.mrb[0].mxu0
  %1290 = vdwg.mxu0
  %1291 = vmatprep.subr.bf16.mxu0 0
  %1292 = vmatpush1.bf16.msra.mxu0 %v1130
  %1293 = vmatprep.subr.bf16.mxu0 0
  %1294 = vmatpush1.bf16.msra.mxu0 %v1131
  %1295 = vmatprep.subr.bf16.mxu0 0
  %1296 = vmatpush1.bf16.msra.mxu0 %v1132
  %1297 = vmatprep.subr.bf16.mxu0 0
  %1298 = vmatpush1.bf16.msra.mxu0 %v1133
  %1299 = vmatprep.subr.bf16.mxu0 0
  %1300 = vmatpush1.bf16.msra.mxu0 %v1134
  %1301 = vmatprep.subr.bf16.mxu0 0
  %1302 = vmatpush1.bf16.msra.mxu0 %v1135
  %1303 = vmatprep.subr.bf16.mxu0 0
  %1304 = vmatpush1.bf16.msra.mxu0 %v1136
  %1305 = vmatprep.subr.bf16.mxu0 0
  %1306 = vmatpush1.bf16.msra.mxu0 %v1137
  %1307 = vmatprep.subr.bf16.mxu0 0
  %1308 = vmatpush1.bf16.msra.mxu0 %v1138
  %1309 = vmatprep.subr.bf16.mxu0 0
  %1310 = vmatpush1.bf16.msra.mxu0 %v1139
  %1311 = vmatprep.subr.bf16.mxu0 0
  %1312 = vmatpush1.bf16.msra.mxu0 %v1140
  %1313 = vmatprep.subr.bf16.mxu0 0
  %1314 = vmatpush1.bf16.msra.mxu0 %v1141
  %1315 = vmatprep.subr.bf16.mxu0 0
  %1316 = vmatpush1.bf16.msra.mxu0 %v1142
  %1317 = vmatprep.subr.bf16.mxu0 0
  %1318 = vmatpush1.bf16.msra.mxu0 %v1143
  %1319 = vmatprep.subr.bf16.mxu0 0
  %1320 = vmatpush1.bf16.msra.mxu0 %v1144
  %1321 = vmatprep.subr.bf16.mxu0 0
  %1322 = vmatpush1.bf16.msra.mxu0 %v1145
  %1323 = vmatprep.mubr.bf16.mxu0 %v710
  %1324 = vmatmul.mubr.bf16.gmra.mrb[0].mxu0 %v709
  %v1325 = vpop.f32.mrb[0].mxu0
  %v1326 = vadd.f32 %v1277, %v1325
  %v1327 = vpop.f32.mrb[0].mxu0
  %v1328 = vpop.f32.mrb[0].mxu0
  %v1329 = vadd.f32 %v1280, %v1328
  %v1330 = vpop.f32.mrb[0].mxu0
  %1331 = vmatprep.mubr.bf16.mxu0 %v718
  %1332 = vmatmul.mubr.bf16.gmra.mrb[0].mxu0 %v717
  %v1333 = vpop.f32.mrb[0].mxu0
  %v1334 = vadd.f32 %v1285, %v1333
  %v1335 = vpop.f32.mrb[0].mxu0
  %v1336 = vpop.f32.mrb[0].mxu0
  %v1337 = vadd.f32 %v1288, %v1336
  %v1338 = vpop.f32.mrb[0].mxu0
  %1339 = vdwg.mxu0
  %1340 = vmatprep.subr.bf16.mxu0 0
  %1341 = vmatpush1.bf16.msra.mxu0 %v1146
  %1342 = vmatprep.subr.bf16.mxu0 0
  %1343 = vmatpush1.bf16.msra.mxu0 %v1147
  %1344 = vmatprep.subr.bf16.mxu0 0
  %1345 = vmatpush1.bf16.msra.mxu0 %v1148
  %1346 = vmatprep.subr.bf16.mxu0 0
  %1347 = vmatpush1.bf16.msra.mxu0 %v1149
  %1348 = vmatprep.subr.bf16.mxu0 0
  %1349 = vmatpush1.bf16.msra.mxu0 %v1150
  %1350 = vmatprep.subr.bf16.mxu0 0
  %1351 = vmatpush1.bf16.msra.mxu0 %v1151
  %1352 = vmatprep.subr.bf16.mxu0 0
  %1353 = vmatpush1.bf16.msra.mxu0 %v1152
  %1354 = vmatprep.subr.bf16.mxu0 0
  %1355 = vmatpush1.bf16.msra.mxu0 %v1153
  %1356 = vmatprep.subr.bf16.mxu0 0
  %1357 = vmatpush1.bf16.msra.mxu0 %v1154
  %1358 = vmatprep.subr.bf16.mxu0 0
  %1359 = vmatpush1.bf16.msra.mxu0 %v1155
  %1360 = vmatprep.subr.bf16.mxu0 0
  %1361 = vmatpush1.bf16.msra.mxu0 %v1156
  %1362 = vmatprep.subr.bf16.mxu0 0
  %1363 = vmatpush1.bf16.msra.mxu0 %v1157
  %1364 = vmatprep.subr.bf16.mxu0 0
  %1365 = vmatpush1.bf16.msra.mxu0 %v1158
  %1366 = vmatprep.subr.bf16.mxu0 0
  %1367 = vmatpush1.bf16.msra.mxu0 %v1159
  %1368 = vmatprep.subr.bf16.mxu0 0
  %1369 = vmatpush1.bf16.msra.mxu0 %v1160
  %1370 = vmatprep.subr.bf16.mxu0 0
  %1371 = vmatpush1.bf16.msra.mxu0 %v1161
  %1372 = vmatprep.mubr.bf16.mxu0 %v712
  %1373 = vmatmul.mubr.bf16.gmra.mrb[0].mxu0 %v711
  %v1374 = vpop.f32.mrb[0].mxu0
  %v1375 = vadd.f32 %v1326, %v1374
  %v1376 = vpop.f32.mrb[0].mxu0
  %v1377 = vpop.f32.mrb[0].mxu0
  %v1378 = vadd.f32 %v1329, %v1377
  %v1379 = vpop.f32.mrb[0].mxu0
  %1380 = vmatprep.mubr.bf16.mxu0 %v720
  %1381 = vmatmul.mubr.bf16.gmra.mrb[0].mxu0 %v719
  %v1382 = vpop.f32.mrb[0].mxu0
  %v1383 = vadd.f32 %v1334, %v1382
  %v1384 = vpop.f32.mrb[0].mxu0
  %v1385 = vpop.f32.mrb[0].mxu0
  %v1386 = vadd.f32 %v1337, %v1385
  %v1387 = vpop.f32.mrb[0].mxu0
  %1388 = vdwg.mxu0
  %1389 = vmatprep.subr.bf16.mxu0 0
  %1390 = vmatpush1.bf16.msra.mxu0 %v1162
  %1391 = vmatprep.subr.bf16.mxu0 0
  %1392 = vmatpush1.bf16.msra.mxu0 %v1163
  %1393 = vmatprep.subr.bf16.mxu0 0
  %1394 = vmatpush1.bf16.msra.mxu0 %v1164
  %1395 = vmatprep.subr.bf16.mxu0 0
  %1396 = vmatpush1.bf16.msra.mxu0 %v1165
  %1397 = vmatprep.subr.bf16.mxu0 0
  %1398 = vmatpush1.bf16.msra.mxu0 %v1166
  %1399 = vmatprep.subr.bf16.mxu0 0
  %1400 = vmatpush1.bf16.msra.mxu0 %v1167
  %1401 = vmatprep.subr.bf16.mxu0 0
  %1402 = vmatpush1.bf16.msra.mxu0 %v1168
  %1403 = vmatprep.subr.bf16.mxu0 0
  %1404 = vmatpush1.bf16.msra.mxu0 %v1169
  %1405 = vmatprep.subr.bf16.mxu0 0
  %1406 = vmatpush1.bf16.msra.mxu0 %v1170
  %1407 = vmatprep.subr.bf16.mxu0 0
  %1408 = vmatpush1.bf16.msra.mxu0 %v1171
  %1409 = vmatprep.subr.bf16.mxu0 0
  %1410 = vmatpush1.bf16.msra.mxu0 %v1172
  %1411 = vmatprep.subr.bf16.mxu0 0
  %1412 = vmatpush1.bf16.msra.mxu0 %v1173
  %1413 = vmatprep.subr.bf16.mxu0 0
  %1414 = vmatpush1.bf16.msra.mxu0 %v1174
  %1415 = vmatprep.subr.bf16.mxu0 0
  %1416 = vmatpush1.bf16.msra.mxu0 %v1175
  %1417 = vmatprep.subr.bf16.mxu0 0
  %1418 = vmatpush1.bf16.msra.mxu0 %v1176
  %1419 = vmatprep.subr.bf16.mxu0 0
  %1420 = vmatpush1.bf16.msra.mxu0 %v1177
  %1421 = vmatprep.mubr.bf16.mxu0 %v714
  %1422 = vmatmul.mubr.bf16.gmra.mrb[0].mxu0 %v713
  %v1423 = vpop.f32.mrb[0].mxu0
  %v1424 = vadd.f32 %v1375, %v1423
  %v1425 = vpop.f32.mrb[0].mxu0
  %v1426 = vpop.f32.mrb[0].mxu0
  %v1427 = vadd.f32 %v1378, %v1426
  %v1428 = vpop.f32.mrb[0].mxu0
  %1429 = vmatprep.mubr.bf16.mxu0 %v722
  %1430 = vmatmul.mubr.bf16.gmra.mrb[0].mxu0 %v721
  %v1431 = vpop.f32.mrb[0].mxu0
  %v1432 = vadd.f32 %v1383, %v1431
  %v1433 = vpop.f32.mrb[0].mxu0
  %v1434 = vpop.f32.mrb[0].mxu0
  %v1435 = vadd.f32 %v1386, %v1434
  %v1436 = vpop.f32.mrb[0].mxu0
  %1437 = vdwg.mxu0
  %v1438 = vmax.f32 %v1424, 0.0
  %v1439 = vmax.f32 %v1427, 0.0
  %v1440 = vmax.f32 %v1432, 0.0
  %v1441 = vmax.f32 %v1435, 0.0
  %1442 = vst [vmem:[%s5] sm:$0xff] %v1438
  %1443 = vst [vmem:[%s5 + $0x8] sm:$0xff] %v1439
  %1444 = vst [vmem:[%s5 + $0x10] sm:$0xff] %v1440
  %1445 = vst [vmem:[%s5 + $0x18] sm:$0xff] %v1441
  // Predicated region
  $region22: #{scene_embed2_fwd.49} parent=0 // pred_check
    _
  $region23: #{scene_embed2_fwd.49} parent=0 // pred_check_branch
    %1447 = sbr.rel (0) target = $region25
  $region24: #{scene_embed2_fwd.49} parent=0 // pred_region
    _
  $region25: #{scene_embed2_fwd.49} parent=0 // pred_fallthru
    _
  // Predicated region
  $region26: #{scene_embed2_fwd.49} parent=0 // pred_check
    _
  $region27: #{scene_embed2_fwd.49} parent=0 // pred_check_branch
    %1449 = sbr.rel (0) target = $region29
  $region28: #{scene_embed2_fwd.49} parent=0 // pred_region
    _
  $region29: #{scene_embed2_fwd.49} parent=0 // pred_fallthru
    _

// kernel: scene_embed2_fwd.44
$region0: #{scene_embed2_fwd.44}
  #allocation0 [shape = 'u32[]', space=smem, size = 0x4, offset = 0x4, fixed_abs, tag = 'smem constant byte address 0x4 - core index']
  #allocation1 [shape = 'u32[144,128]{1,0:T(1,128)}', space=vmem, size = 0x12000, scoped, tag = 'internal scratch']
  %s0 = inlined_call_operand.vmem [shape: bf16[32,128], index: 0, kind: input, shape index: {}]
  %s1 = inlined_call_operand.vmem [shape: bf16[128,1024], index: 1, kind: input, shape index: {}]
  %s2 = inlined_call_operand.vmem [shape: f32[1,1024], index: 2, kind: input, shape index: {}]
  %s3 = inlined_call_operand.vmem [shape: bf16[1024,128], index: 3, kind: input, shape index: {}]
  %s4 = inlined_call_operand.vmem [shape: f32[1,128], index: 4, kind: input, shape index: {}]
  %s5 = inlined_call_operand.hbm [shape: f32[32,128], index: 5, kind: output, shape index: {}]
  %s6 = sld [smem:[#allocation0]]
  $region30: #{scene_embed2_fwd.44} parent=0
    _
  %s8 = ssub.s32 1, %s6
  %s9 = scalar_select 0, %s8, %s6
  $region1: #{scene_embed2_fwd.44} parent=0
    #allocation2 [shape = 'u8[16384]{0}', space=vmem, size = 0x4000, scoped, tag = 'output window, operand 0, single buffered']
    #allocation3 [shape = 's32[1]{0}', space=sflag, size = 0x4, scoped, tag = 'scoped memory for scene_embed2_fwd.44']
    %10 = vsyncpa [#allocation3], 0
    // Predicated region
    $region2: #{scene_embed2_fwd.44} parent=1 // pred_check
      _
    $region3: #{scene_embed2_fwd.44} parent=1 // pred_check_branch
      %12 = sbr.rel (0) target = $region5
    $region4: #{scene_embed2_fwd.44} parent=1 // pred_region
      _
    $region5: #{scene_embed2_fwd.44} parent=1 // pred_fallthru
      _
    // Predicated region
    $region6: #{scene_embed2_fwd.44} parent=1 // pred_check
      _
    $region7: #{scene_embed2_fwd.44} parent=1 // pred_check_branch
      %14 = sbr.rel (0) target = $region9
    $region8: #{scene_embed2_fwd.44} parent=1 // pred_region
      _
    $region9: #{scene_embed2_fwd.44} parent=1 // pred_fallthru
      _
    // Predicated region
    $region10: #{scene_embed2_fwd.44} parent=1 // pred_check
      _
    $region11: #{scene_embed2_fwd.44} parent=1 // pred_check_branch
      %16 = sbr.rel (0) target = $region13
    $region12: #{scene_embed2_fwd.44} parent=1 // pred_region
      _
    $region13: #{scene_embed2_fwd.44} parent=1 // pred_fallthru
      _
    // Predicated region
    $region14: #{scene_embed2_fwd.44} parent=1 // pred_check
      _
    $region15: #{scene_embed2_fwd.44} parent=1 // pred_check_branch
      %18 = sbr.rel (0) target = $region17
    $region16: #{scene_embed2_fwd.44} parent=1 // pred_region
      _
    $region17: #{scene_embed2_fwd.44} parent=1 // pred_fallthru
      _
    // Predicated region
    $region18: #{scene_embed2_fwd.44} parent=1 // pred_check
      _
    $region19: #{scene_embed2_fwd.44} parent=1 // pred_check_branch
      %20 = sbr.rel (0) target = $region21
    $region20: #{scene_embed2_fwd.44} parent=1 // pred_region
      _
    $region21: #{scene_embed2_fwd.44} parent=1 // pred_fallthru
      _
    %v22 = vld [vmem:[%s0] sm:$0xf]
    %v23 = vld [vmem:[%s0 + $0x4] sm:$0xf]
    %v24 = vld [vmem:[%s0 + $0x8] sm:$0xf]
    %v25 = vld [vmem:[%s0 + $0xc] sm:$0xf]
    %v26 = vld [vmem:[%s1] sm:$0xff]
    %v27 = vld [vmem:[%s1 + $0x8] sm:$0xff]
    %v28 = vld [vmem:[%s1 + $0x10] sm:$0xff]
    %v29 = vld [vmem:[%s1 + $0x18] sm:$0xff]
    %v30 = vld [vmem:[%s1 + $0x20] sm:$0xff]
    %v31 = vld [vmem:[%s1 + $0x28] sm:$0xff]
    %v32 = vld [vmem:[%s1 + $0x30] sm:$0xff]
    %v33 = vld [vmem:[%s1 + $0x38] sm:$0xff]
    %v34 = vld [vmem:[%s1 + $0x40] sm:$0xff]
    %v35 = vld [vmem:[%s1 + $0x48] sm:$0xff]
    %v36 = vld [vmem:[%s1 + $0x50] sm:$0xff]
    %v37 = vld [vmem:[%s1 + $0x58] sm:$0xff]
    %v38 = vld [vmem:[%s1 + $0x60] sm:$0xff]
    %v39 = vld [vmem:[%s1 + $0x68] sm:$0xff]
    %v40 = vld [vmem:[%s1 + $0x70] sm:$0xff]
    %v41 = vld [vmem:[%s1 + $0x78] sm:$0xff]
    %v42 = vld [vmem:[%s1 + $0x80] sm:$0xff]
    %v43 = vld [vmem:[%s1 + $0x88] sm:$0xff]
    %v44 = vld [vmem:[%s1 + $0x90] sm:$0xff]
    %v45 = vld [vmem:[%s1 + $0x98] sm:$0xff]
    %v46 = vld [vmem:[%s1 + $0xa0] sm:$0xff]
    %v47 = vld [vmem:[%s1 + $0xa8] sm:$0xff]
    %v48 = vld [vmem:[%s1 + $0xb0] sm:$0xff]
    %v49 = vld [vmem:[%s1 + $0xb8] sm:$0xff]
    %v50 = vld [vmem:[%s1 + $0xc0] sm:$0xff]
    %v51 = vld [vmem:[%s1 + $0xc8] sm:$0xff]
    %v52 = vld [vmem:[%s1 + $0xd0] sm:$0xff]
    %v53 = vld [vmem:[%s1 + $0xd8] sm:$0xff]
    %v54 = vld [vmem:[%s1 + $0xe0] sm:$0xff]
    %v55 = vld [vmem:[%s1 + $0xe8] sm:$0xff]
    %v56 = vld [vmem:[%s1 + $0xf0] sm:$0xff]
    %v57 = vld [vmem:[%s1 + $0xf8] sm:$0xff]
    %v58 = vld [vmem:[%s1 + $0x100] sm:$0xff]
    %v59 = vld [vmem:[%s1 + $0x108] sm:$0xff]
    %v60 = vld [vmem:[%s1 + $0x110] sm:$0xff]
    %v61 = vld [vmem:[%s1 + $0x118] sm:$0xff]
    %v62 = vld [vmem:[%s1 + $0x120] sm:$0xff]
    %v63 = vld [vmem:[%s1 + $0x128] sm:$0xff]
    %v64 = vld [vmem:[%s1 + $0x130] sm:$0xff]
    %v65 = vld [vmem:[%s1 + $0x138] sm:$0xff]
    %v66 = vld [vmem:[%s1 + $0x140] sm:$0xff]
    %v67 = vld [vmem:[%s1 + $0x148] sm:$0xff]
    %v68 = vld [vmem:[%s1 + $0x150] sm:$0xff]
    %v69 = vld [vmem:[%s1 + $0x158] sm:$0xff]
    %v70 = vld [vmem:[%s1 + $0x160] sm:$0xff]
    %v71 = vld [vmem:[%s1 + $0x168] sm:$0xff]
    %v72 = vld [vmem:[%s1 + $0x170] sm:$0xff]
    %v73 = vld [vmem:[%s1 + $0x178] sm:$0xff]
    %v74 = vld [vmem:[%s1 + $0x180] sm:$0xff]
    %v75 = vld [vmem:[%s1 + $0x188] sm:$0xff]
    %v76 = vld [vmem:[%s1 + $0x190] sm:$0xff]
    %v77 = vld [vmem:[%s1 + $0x198] sm:$0xff]
    %v78 = vld [vmem:[%s1 + $0x1a0] sm:$0xff]
    %v79 = vld [vmem:[%s1 + $0x1a8] sm:$0xff]
    %v80 = vld [vmem:[%s1 + $0x1b0] sm:$0xff]
    %v81 = vld [vmem:[%s1 + $0x1b8] sm:$0xff]
    %v82 = vld [vmem:[%s1 + $0x1c0] sm:$0xff]
    %v83 = vld [vmem:[%s1 + $0x1c8] sm:$0xff]
    %v84 = vld [vmem:[%s1 + $0x1d0] sm:$0xff]
    %v85 = vld [vmem:[%s1 + $0x1d8] sm:$0xff]
    %v86 = vld [vmem:[%s1 + $0x1e0] sm:$0xff]
    %v87 = vld [vmem:[%s1 + $0x1e8] sm:$0xff]
    %v88 = vld [vmem:[%s1 + $0x1f0] sm:$0xff]
    %v89 = vld [vmem:[%s1 + $0x1f8] sm:$0xff]
    %v90 = vld [vmem:[%s2] sm:$0xff]
    %v92 = vlaneseq
    %v93 = vshrl.u32 %v92, 7
    %v94 = vsub.s32 0, %v93
    %v95 = vrot.slane %v90, %v94
    %v96 = vlaneseq
    %v97 = vshrl.u32 %v96, 7
    %v98 = vsub.s32 1, %v97
    %v99 = vrot.slane %v90, %v98
    %v100 = vlaneseq
    %v101 = vshrl.u32 %v100, 7
    %v102 = vsub.s32 2, %v101
    %v103 = vrot.slane %v90, %v102
    %v104 = vlaneseq
    %v105 = vshrl.u32 %v104, 7
    %v106 = vsub.s32 3, %v105
    %v107 = vrot.slane %v90, %v106
    %v108 = vlaneseq
    %v109 = vshrl.u32 %v108, 7
    %v110 = vsub.s32 4, %v109
    %v111 = vrot.slane %v90, %v110
    %v112 = vlaneseq
    %v113 = vshrl.u32 %v112, 7
    %v114 = vsub.s32 5, %v113
    %v115 = vrot.slane %v90, %v114
    %v116 = vlaneseq
    %v117 = vshrl.u32 %v116, 7
    %v118 = vsub.s32 6, %v117
    %v119 = vrot.slane %v90, %v118
    %v120 = vlaneseq
    %v121 = vshrl.u32 %v120, 7
    %v122 = vsub.s32 7, %v121
    %v123 = vrot.slane %v90, %v122
    %v136 = vunpack.c.l.b16 %v22
    %v137 = vunpack.c.l.b16 %v23
    %v138 = vunpack.c.l.b16 %v24
    %v139 = vunpack.c.l.b16 %v25
    %v140 = vpack.c.b16 %v137, %v136
    %v141 = vpack.c.b16 %v139, %v138
    %v208 = vunpack.c.l.b16 %v26
    %v209 = vunpack.c.h.b16 %v26
    %v210 = vunpack.c.l.b16 %v27
    %v211 = vunpack.c.h.b16 %v27
    %v212 = vunpack.c.l.b16 %v28
    %v213 = vunpack.c.h.b16 %v28
    %v214 = vunpack.c.l.b16 %v29
    %v215 = vunpack.c.h.b16 %v29
    %v216 = vunpack.c.l.b16 %v30
    %v217 = vunpack.c.h.b16 %v30
    %v218 = vunpack.c.l.b16 %v31
    %v219 = vunpack.c.h.b16 %v31
    %v220 = vunpack.c.l.b16 %v32
    %v221 = vunpack.c.h.b16 %v32
    %v222 = vunpack.c.l.b16 %v33
    %v223 = vunpack.c.h.b16 %v33
    %v224 = vunpack.c.l.b16 %v34
    %v225 = vunpack.c.h.b16 %v34
    %v226 = vunpack.c.l.b16 %v35
    %v227 = vunpack.c.h.b16 %v35
    %v228 = vunpack.c.l.b16 %v36
    %v229 = vunpack.c.h.b16 %v36
    %v230 = vunpack.c.l.b16 %v37
    %v231 = vunpack.c.h.b16 %v37
    %v232 = vunpack.c.l.b16 %v38
    %v233 = vunpack.c.h.b16 %v38
    %v234 = vunpack.c.l.b16 %v39
    %v235 = vunpack.c.h.b16 %v39
    %v236 = vunpack.c.l.b16 %v40
    %v237 = vunpack.c.h.b16 %v40
    %v238 = vunpack.c.l.b16 %v41
    %v239 = vunpack.c.h.b16 %v41
    %v240 = vunpack.c.l.b16 %v42
    %v241 = vunpack.c.h.b16 %v42
    %v242 = vunpack.c.l.b16 %v43
    %v243 = vunpack.c.h.b16 %v43
    %v244 = vunpack.c.l.b16 %v44
    %v245 = vunpack.c.h.b16 %v44
    %v246 = vunpack.c.l.b16 %v45
    %v247 = vunpack.c.h.b16 %v45
    %v248 = vunpack.c.l.b16 %v46
    %v249 = vunpack.c.h.b16 %v46
    %v250 = vunpack.c.l.b16 %v47
    %v251 = vunpack.c.h.b16 %v47
    %v252 = vunpack.c.l.b16 %v48
    %v253 = vunpack.c.h.b16 %v48
    %v254 = vunpack.c.l.b16 %v49
    %v255 = vunpack.c.h.b16 %v49
    %v256 = vunpack.c.l.b16 %v50
    %v257 = vunpack.c.h.b16 %v50
    %v258 = vunpack.c.l.b16 %v51
    %v259 = vunpack.c.h.b16 %v51
    %v260 = vunpack.c.l.b16 %v52
    %v261 = vunpack.c.h.b16 %v52
    %v262 = vunpack.c.l.b16 %v53
    %v263 = vunpack.c.h.b16 %v53
    %v264 = vunpack.c.l.b16 %v54
    %v265 = vunpack.c.h.b16 %v54
    %v266 = vunpack.c.l.b16 %v55
    %v267 = vunpack.c.h.b16 %v55
    %v268 = vunpack.c.l.b16 %v56
    %v269 = vunpack.c.h.b16 %v56
    %v270 = vunpack.c.l.b16 %v57
    %v271 = vunpack.c.h.b16 %v57
    %v272 = vunpack.c.l.b16 %v58
    %v273 = vunpack.c.h.b16 %v58
    %v274 = vunpack.c.l.b16 %v59
    %v275 = vunpack.c.h.b16 %v59
    %v276 = vunpack.c.l.b16 %v60
    %v277 = vunpack.c.h.b16 %v60
    %v278 = vunpack.c.l.b16 %v61
    %v279 = vunpack.c.h.b16 %v61
    %v280 = vunpack.c.l.b16 %v62
    %v281 = vunpack.c.h.b16 %v62
    %v282 = vunpack.c.l.b16 %v63
    %v283 = vunpack.c.h.b16 %v63
    %v284 = vunpack.c.l.b16 %v64
    %v285 = vunpack.c.h.b16 %v64
    %v286 = vunpack.c.l.b16 %v65
    %v287 = vunpack.c.h.b16 %v65
    %v288 = vunpack.c.l.b16 %v66
    %v289 = vunpack.c.h.b16 %v66
    %v290 = vunpack.c.l.b16 %v67
    %v291 = vunpack.c.h.b16 %v67
    %v292 = vunpack.c.l.b16 %v68
    %v293 = vunpack.c.h.b16 %v68
    %v294 = vunpack.c.l.b16 %v69
    %v295 = vunpack.c.h.b16 %v69
    %v296 = vunpack.c.l.b16 %v70
    %v297 = vunpack.c.h.b16 %v70
    %v298 = vunpack.c.l.b16 %v71
    %v299 = vunpack.c.h.b16 %v71
    %v300 = vunpack.c.l.b16 %v72
    %v301 = vunpack.c.h.b16 %v72
    %v302 = vunpack.c.l.b16 %v73
    %v303 = vunpack.c.h.b16 %v73
    %v304 = vunpack.c.l.b16 %v74
    %v305 = vunpack.c.h.b16 %v74
    %v306 = vunpack.c.l.b16 %v75
    %v307 = vunpack.c.h.b16 %v75
    %v308 = vunpack.c.l.b16 %v76
    %v309 = vunpack.c.h.b16 %v76
    %v310 = vunpack.c.l.b16 %v77
    %v311 = vunpack.c.h.b16 %v77
    %v312 = vunpack.c.l.b16 %v78
    %v313 = vunpack.c.h.b16 %v78
    %v314 = vunpack.c.l.b16 %v79
    %v315 = vunpack.c.h.b16 %v79
    %v316 = vunpack.c.l.b16 %v80
    %v317 = vunpack.c.h.b16 %v80
    %v318 = vunpack.c.l.b16 %v81
    %v319 = vunpack.c.h.b16 %v81
    %v320 = vunpack.c.l.b16 %v82
    %v321 = vunpack.c.h.b16 %v82
    %v322 = vunpack.c.l.b16 %v83
    %v323 = vunpack.c.h.b16 %v83
    %v324 = vunpack.c.l.b16 %v84
    %v325 = vunpack.c.h.b16 %v84
    %v326 = vunpack.c.l.b16 %v85
    %v327 = vunpack.c.h.b16 %v85
    %v328 = vunpack.c.l.b16 %v86
    %v329 = vunpack.c.h.b16 %v86
    %v330 = vunpack.c.l.b16 %v87
    %v331 = vunpack.c.h.b16 %v87
    %v332 = vunpack.c.l.b16 %v88
    %v333 = vunpack.c.h.b16 %v88
    %v334 = vunpack.c.l.b16 %v89
    %v335 = vunpack.c.h.b16 %v89
    %v336 = vpack.c.b16 %v216, %v208
    %v337 = vpack.c.b16 %v217, %v209
    %v338 = vpack.c.b16 %v218, %v210
    %v339 = vpack.c.b16 %v219, %v211
    %v340 = vpack.c.b16 %v220, %v212
    %v341 = vpack.c.b16 %v221, %v213
    %v342 = vpack.c.b16 %v222, %v214
    %v343 = vpack.c.b16 %v223, %v215
    %v344 = vpack.c.b16 %v232, %v224
    %v345 = vpack.c.b16 %v233, %v225
    %v346 = vpack.c.b16 %v234, %v226
    %v347 = vpack.c.b16 %v235, %v227
    %v348 = vpack.c.b16 %v236, %v228
    %v349 = vpack.c.b16 %v237, %v229
    %v350 = vpack.c.b16 %v238, %v230
    %v351 = vpack.c.b16 %v239, %v231
    %v352 = vpack.c.b16 %v248, %v240
    %v353 = vpack.c.b16 %v249, %v241
    %v354 = vpack.c.b16 %v250, %v242
    %v355 = vpack.c.b16 %v251, %v243
    %v356 = vpack.c.b16 %v252, %v244
    %v357 = vpack.c.b16 %v253, %v245
    %v358 = vpack.c.b16 %v254, %v246
    %v359 = vpack.c.b16 %v255, %v247
    %v360 = vpack.c.b16 %v264, %v256
    %v361 = vpack.c.b16 %v265, %v257
    %v362 = vpack.c.b16 %v266, %v258
    %v363 = vpack.c.b16 %v267, %v259
    %v364 = vpack.c.b16 %v268, %v260
    %v365 = vpack.c.b16 %v269, %v261
    %v366 = vpack.c.b16 %v270, %v262
    %v367 = vpack.c.b16 %v271, %v263
    %v368 = vpack.c.b16 %v280, %v272
    %v369 = vpack.c.b16 %v281, %v273
    %v370 = vpack.c.b16 %v282, %v274
    %v371 = vpack.c.b16 %v283, %v275
    %v372 = vpack.c.b16 %v284, %v276
    %v373 = vpack.c.b16 %v285, %v277
    %v374 = vpack.c.b16 %v286, %v278
    %v375 = vpack.c.b16 %v287, %v279
    %v376 = vpack.c.b16 %v296, %v288
    %v377 = vpack.c.b16 %v297, %v289
    %v378 = vpack.c.b16 %v298, %v290
    %v379 = vpack.c.b16 %v299, %v291
    %v380 = vpack.c.b16 %v300, %v292
    %v381 = vpack.c.b16 %v301, %v293
    %v382 = vpack.c.b16 %v302, %v294
    %v383 = vpack.c.b16 %v303, %v295
    %v384 = vpack.c.b16 %v312, %v304
    %v385 = vpack.c.b16 %v313, %v305
    %v386 = vpack.c.b16 %v314, %v306
    %v387 = vpack.c.b16 %v315, %v307
    %v388 = vpack.c.b16 %v316, %v308
    %v389 = vpack.c.b16 %v317, %v309
    %v390 = vpack.c.b16 %v318, %v310
    %v391 = vpack.c.b16 %v319, %v311
    %v392 = vpack.c.b16 %v328, %v320
    %v393 = vpack.c.b16 %v329, %v321
    %v394 = vpack.c.b16 %v330, %v322
    %v395 = vpack.c.b16 %v331, %v323
    %v396 = vpack.c.b16 %v332, %v324
    %v397 = vpack.c.b16 %v333, %v325
    %v398 = vpack.c.b16 %v334, %v326
    %v399 = vpack.c.b16 %v335, %v327
    %464 = vmatprep.subr.bf16.mxu0 %v337
    %465 = vmatpush1.bf16.msra.mxu0 %v336
    %466 = vmatprep.subr.bf16.mxu0 %v345
    %467 = vmatpush1.bf16.msra.mxu0 %v344
    %468 = vmatprep.subr.bf16.mxu0 %v353
    %469 = vmatpush1.bf16.msra.mxu0 %v352
    %470 = vmatprep.subr.bf16.mxu0 %v361
    %471 = vmatpush1.bf16.msra.mxu0 %v360
    %472 = vmatprep.subr.bf16.mxu0 %v369
    %473 = vmatpush1.bf16.msra.mxu0 %v368
    %474 = vmatprep.subr.bf16.mxu0 %v377
    %475 = vmatpush1.bf16.msra.mxu0 %v376
    %476 = vmatprep.subr.bf16.mxu0 %v385
    %477 = vmatpush1.bf16.msra.mxu0 %v384
    %478 = vmatprep.subr.bf16.mxu0 %v393
    %479 = vmatpush1.bf16.msra.mxu0 %v392
    %480 = vmatprep.subr.bf16.mxu0 0
    %481 = vmatpush1.bf16.msra.mxu0 0
    %482 = vmatprep.subr.bf16.mxu0 0
    %483 = vmatpush1.bf16.msra.mxu0 0
    %484 = vmatprep.subr.bf16.mxu0 0
    %485 = vmatpush1.bf16.msra.mxu0 0
    %486 = vmatprep.subr.bf16.mxu0 0
    %487 = vmatpush1.bf16.msra.mxu0 0
    %488 = vmatprep.subr.bf16.mxu0 0
    %489 = vmatpush1.bf16.msra.mxu0 0
    %490 = vmatprep.subr.bf16.mxu0 0
    %491 = vmatpush1.bf16.msra.mxu0 0
    %492 = vmatprep.subr.bf16.mxu0 0
    %493 = vmatpush1.bf16.msra.mxu0 0
    %494 = vmatprep.subr.bf16.mxu0 0
    %495 = vmatpush1.bf16.msra.mxu0 0
    %496 = vmatprep.mubr.bf16.mxu0 0
    %497 = vmatmul.mubr.bf16.gmra.mrb[0].mxu0 %v140
    %v498 = vpop.f32.mrb[0].mxu0
    %v499 = vadd.f32 %v95, %v498
    %v500 = vpop.f32.mrb[0].mxu0
    %v501 = vadd.f32 %v99, %v500
    %v502 = vpop.f32.mrb[0].mxu0
    %v503 = vadd.f32 %v95, %v502
    %v504 = vpop.f32.mrb[0].mxu0
    %v505 = vadd.f32 %v99, %v504
    %506 = vmatprep.mubr.bf16.mxu0 0
    %507 = vmatmul.mubr.bf16.gmra.mrb[0].mxu0 %v141
    %v508 = vpop.f32.mrb[0].mxu0
    %v509 = vadd.f32 %v95, %v508
    %v510 = vpop.f32.mrb[0].mxu0
    %v511 = vadd.f32 %v99, %v510
    %v512 = vpop.f32.mrb[0].mxu0
    %v513 = vadd.f32 %v95, %v512
    %v514 = vpop.f32.mrb[0].mxu0
    %v515 = vadd.f32 %v99, %v514
    %516 = vdwg.mxu0
    %517 = vmatprep.subr.bf16.mxu0 %v339
    %518 = vmatpush1.bf16.msra.mxu0 %v338
    %519 = vmatprep.subr.bf16.mxu0 %v347
    %520 = vmatpush1.bf16.msra.mxu0 %v346
    %521 = vmatprep.subr.bf16.mxu0 %v355
    %522 = vmatpush1.bf16.msra.mxu0 %v354
    %523 = vmatprep.subr.bf16.mxu0 %v363
    %524 = vmatpush1.bf16.msra.mxu0 %v362
    %525 = vmatprep.subr.bf16.mxu0 %v371
    %526 = vmatpush1.bf16.msra.mxu0 %v370
    %527 = vmatprep.subr.bf16.mxu0 %v379
    %528 = vmatpush1.bf16.msra.mxu0 %v378
    %529 = vmatprep.subr.bf16.mxu0 %v387
    %530 = vmatpush1.bf16.msra.mxu0 %v386
    %531 = vmatprep.subr.bf16.mxu0 %v395
    %532 = vmatpush1.bf16.msra.mxu0 %v394
    %533 = vmatprep.subr.bf16.mxu0 0
    %534 = vmatpush1.bf16.msra.mxu0 0
    %535 = vmatprep.subr.bf16.mxu0 0
    %536 = vmatpush1.bf16.msra.mxu0 0
    %537 = vmatprep.subr.bf16.mxu0 0
    %538 = vmatpush1.bf16.msra.mxu0 0
    %539 = vmatprep.subr.bf16.mxu0 0
    %540 = vmatpush1.bf16.msra.mxu0 0
    %541 = vmatprep.subr.bf16.mxu0 0
    %542 = vmatpush1.bf16.msra.mxu0 0
    %543 = vmatprep.subr.bf16.mxu0 0
    %544 = vmatpush1.bf16.msra.mxu0 0
    %545 = vmatprep.subr.bf16.mxu0 0
    %546 = vmatpush1.bf16.msra.mxu0 0
    %547 = vmatprep.subr.bf16.mxu0 0
    %548 = vmatpush1.bf16.msra.mxu0 0
    %549 = vmatprep.mubr.bf16.mxu0 0
    %550 = vmatmul.mubr.bf16.gmra.mrb[0].mxu0 %v140
    %v551 = vpop.f32.mrb[0].mxu0
    %v552 = vadd.f32 %v103, %v551
    %v553 = vpop.f32.mrb[0].mxu0
    %v554 = vadd.f32 %v107, %v553
    %v555 = vpop.f32.mrb[0].mxu0
    %v556 = vadd.f32 %v103, %v555
    %v557 = vpop.f32.mrb[0].mxu0
    %v558 = vadd.f32 %v107, %v557
    %559 = vmatprep.mubr.bf16.mxu0 0
    %560 = vmatmul.mubr.bf16.gmra.mrb[0].mxu0 %v141
    %v561 = vpop.f32.mrb[0].mxu0
    %v562 = vadd.f32 %v103, %v561
    %v563 = vpop.f32.mrb[0].mxu0
    %v564 = vadd.f32 %v107, %v563
    %v565 = vpop.f32.mrb[0].mxu0
    %v566 = vadd.f32 %v103, %v565
    %v567 = vpop.f32.mrb[0].mxu0
    %v568 = vadd.f32 %v107, %v567
    %569 = vdwg.mxu0
    %570 = vmatprep.subr.bf16.mxu0 %v341
    %571 = vmatpush1.bf16.msra.mxu0 %v340
    %572 = vmatprep.subr.bf16.mxu0 %v349
    %573 = vmatpush1.bf16.msra.mxu0 %v348
    %574 = vmatprep.subr.bf16.mxu0 %v357
    %575 = vmatpush1.bf16.msra.mxu0 %v356
    %576 = vmatprep.subr.bf16.mxu0 %v365
    %577 = vmatpush1.bf16.msra.mxu0 %v364
    %578 = vmatprep.subr.bf16.mxu0 %v373
    %579 = vmatpush1.bf16.msra.mxu0 %v372
    %580 = vmatprep.subr.bf16.mxu0 %v381
    %581 = vmatpush1.bf16.msra.mxu0 %v380
    %582 = vmatprep.subr.bf16.mxu0 %v389
    %583 = vmatpush1.bf16.msra.mxu0 %v388
    %584 = vmatprep.subr.bf16.mxu0 %v397
    %585 = vmatpush1.bf16.msra.mxu0 %v396
    %586 = vmatprep.subr.bf16.mxu0 0
    %587 = vmatpush1.bf16.msra.mxu0 0
    %588 = vmatprep.subr.bf16.mxu0 0
    %589 = vmatpush1.bf16.msra.mxu0 0
    %590 = vmatprep.subr.bf16.mxu0 0
    %591 = vmatpush1.bf16.msra.mxu0 0
    %592 = vmatprep.subr.bf16.mxu0 0
    %593 = vmatpush1.bf16.msra.mxu0 0
    %594 = vmatprep.subr.bf16.mxu0 0
    %595 = vmatpush1.bf16.msra.mxu0 0
    %596 = vmatprep.subr.bf16.mxu0 0
    %597 = vmatpush1.bf16.msra.mxu0 0
    %598 = vmatprep.subr.bf16.mxu0 0
    %599 = vmatpush1.bf16.msra.mxu0 0
    %600 = vmatprep.subr.bf16.mxu0 0
    %601 = vmatpush1.bf16.msra.mxu0 0
    %602 = vmatprep.mubr.bf16.mxu0 0
    %603 = vmatmul.mubr.bf16.gmra.mrb[0].mxu0 %v140
    %v604 = vpop.f32.mrb[0].mxu0
    %v605 = vadd.f32 %v111, %v604
    %v606 = vpop.f32.mrb[0].mxu0
    %v607 = vadd.f32 %v115, %v606
    %v608 = vpop.f32.mrb[0].mxu0
    %v609 = vadd.f32 %v111, %v608
    %v610 = vpop.f32.mrb[0].mxu0
    %v611 = vadd.f32 %v115, %v610
    %612 = vmatprep.mubr.bf16.mxu0 0
    %613 = vmatmul.mubr.bf16.gmra.mrb[0].mxu0 %v141
    %v614 = vpop.f32.mrb[0].mxu0
    %v615 = vadd.f32 %v111, %v614
    %v616 = vpop.f32.mrb[0].mxu0
    %v617 = vadd.f32 %v115, %v616
    %v618 = vpop.f32.mrb[0].mxu0
    %v619 = vadd.f32 %v111, %v618
    %v620 = vpop.f32.mrb[0].mxu0
    %v621 = vadd.f32 %v115, %v620
    %622 = vdwg.mxu0
    %623 = vmatprep.subr.bf16.mxu0 %v343
    %624 = vmatpush1.bf16.msra.mxu0 %v342
    %625 = vmatprep.subr.bf16.mxu0 %v351
    %626 = vmatpush1.bf16.msra.mxu0 %v350
    %627 = vmatprep.subr.bf16.mxu0 %v359
    %628 = vmatpush1.bf16.msra.mxu0 %v358
    %629 = vmatprep.subr.bf16.mxu0 %v367
    %630 = vmatpush1.bf16.msra.mxu0 %v366
    %631 = vmatprep.subr.bf16.mxu0 %v375
    %632 = vmatpush1.bf16.msra.mxu0 %v374
    %633 = vmatprep.subr.bf16.mxu0 %v383
    %634 = vmatpush1.bf16.msra.mxu0 %v382
    %635 = vmatprep.subr.bf16.mxu0 %v391
    %636 = vmatpush1.bf16.msra.mxu0 %v390
    %637 = vmatprep.subr.bf16.mxu0 %v399
    %638 = vmatpush1.bf16.msra.mxu0 %v398
    %639 = vmatprep.subr.bf16.mxu0 0
    %640 = vmatpush1.bf16.msra.mxu0 0
    %641 = vmatprep.subr.bf16.mxu0 0
    %642 = vmatpush1.bf16.msra.mxu0 0
    %643 = vmatprep.subr.bf16.mxu0 0
    %644 = vmatpush1.bf16.msra.mxu0 0
    %645 = vmatprep.subr.bf16.mxu0 0
    %646 = vmatpush1.bf16.msra.mxu0 0
    %647 = vmatprep.subr.bf16.mxu0 0
    %648 = vmatpush1.bf16.msra.mxu0 0
    %649 = vmatprep.subr.bf16.mxu0 0
    %650 = vmatpush1.bf16.msra.mxu0 0
    %651 = vmatprep.subr.bf16.mxu0 0
    %652 = vmatpush1.bf16.msra.mxu0 0
    %653 = vmatprep.subr.bf16.mxu0 0
    %654 = vmatpush1.bf16.msra.mxu0 0
    %655 = vmatprep.mubr.bf16.mxu0 0
    %656 = vmatmul.mubr.bf16.gmra.mrb[0].mxu0 %v140
    %v657 = vpop.f32.mrb[0].mxu0
    %v658 = vadd.f32 %v119, %v657
    %v659 = vpop.f32.mrb[0].mxu0
    %v660 = vadd.f32 %v123, %v659
    %v661 = vpop.f32.mrb[0].mxu0
    %v662 = vadd.f32 %v119, %v661
    %v663 = vpop.f32.mrb[0].mxu0
    %v664 = vadd.f32 %v123, %v663
    %665 = vmatprep.mubr.bf16.mxu0 0
    %666 = vmatmul.mubr.bf16.gmra.mrb[0].mxu0 %v141
    %v667 = vpop.f32.mrb[0].mxu0
    %v668 = vadd.f32 %v119, %v667
    %v669 = vpop.f32.mrb[0].mxu0
    %v670 = vadd.f32 %v123, %v669
    %v671 = vpop.f32.mrb[0].mxu0
    %v672 = vadd.f32 %v119, %v671
    %v673 = vpop.f32.mrb[0].mxu0
    %v674 = vadd.f32 %v123, %v673
    %675 = vdwg.mxu0
    %v676 = vmax.f32 %v499, 0.0
    %v677 = vmax.f32 %v501, 0.0
    %v678 = vmax.f32 %v552, 0.0
    %v679 = vmax.f32 %v554, 0.0
    %v680 = vmax.f32 %v605, 0.0
    %v681 = vmax.f32 %v607, 0.0
    %v682 = vmax.f32 %v658, 0.0
    %v683 = vmax.f32 %v660, 0.0
    %v684 = vmax.f32 %v503, 0.0
    %v685 = vmax.f32 %v505, 0.0
    %v686 = vmax.f32 %v556, 0.0
    %v687 = vmax.f32 %v558, 0.0
    %v688 = vmax.f32 %v609, 0.0
    %v689 = vmax.f32 %v611, 0.0
    %v690 = vmax.f32 %v662, 0.0
    %v691 = vmax.f32 %v664, 0.0
    %v692 = vmax.f32 %v509, 0.0
    %v693 = vmax.f32 %v511, 0.0
    %v694 = vmax.f32 %v562, 0.0
    %v695 = vmax.f32 %v564, 0.0
    %v696 = vmax.f32 %v615, 0.0
    %v697 = vmax.f32 %v617, 0.0
    %v698 = vmax.f32 %v668, 0.0
    %v699 = vmax.f32 %v670, 0.0
    %v700 = vmax.f32 %v513, 0.0
    %v701 = vmax.f32 %v515, 0.0
    %v702 = vmax.f32 %v566, 0.0
    %v703 = vmax.f32 %v568, 0.0
    %v704 = vmax.f32 %v619, 0.0
    %v705 = vmax.f32 %v621, 0.0
    %v706 = vmax.f32 %v672, 0.0
    %v707 = vmax.f32 %v674, 0.0
    %v708 = vpack.c.bf16 %v684, %v676
    %v709 = vpack.c.bf16 %v685, %v677
    %v710 = vpack.c.bf16 %v686, %v678
    %v711 = vpack.c.bf16 %v687, %v679
    %v712 = vpack.c.bf16 %v688, %v680
    %v713 = vpack.c.bf16 %v689, %v681
    %v714 = vpack.c.bf16 %v690, %v682
    %v715 = vpack.c.bf16 %v691, %v683
    %v716 = vpack.c.bf16 %v700, %v692
    %v717 = vpack.c.bf16 %v701, %v693
    %v718 = vpack.c.bf16 %v702, %v694
    %v719 = vpack.c.bf16 %v703, %v695
    %v720 = vpack.c.bf16 %v704, %v696
    %v721 = vpack.c.bf16 %v705, %v697
    %v722 = vpack.c.bf16 %v706, %v698
    %v723 = vpack.c.bf16 %v707, %v699
    %v724 = vld [vmem:[%s3] sm:$0xf]
    %v725 = vld [vmem:[%s3 + $0x4] sm:$0xf]
    %v726 = vld [vmem:[%s3 + $0x8] sm:$0xf]
    %v727 = vld [vmem:[%s3 + $0xc] sm:$0xf]
    %v728 = vld [vmem:[%s3 + $0x10] sm:$0xf]
    %v729 = vld [vmem:[%s3 + $0x14] sm:$0xf]
    %v730 = vld [vmem:[%s3 + $0x18] sm:$0xf]
    %v731 = vld [vmem:[%s3 + $0x1c] sm:$0xf]
    %v732 = vld [vmem:[%s3 + $0x20] sm:$0xf]
    %v733 = vld [vmem:[%s3 + $0x24] sm:$0xf]
    %v734 = vld [vmem:[%s3 + $0x28] sm:$0xf]
    %v735 = vld [vmem:[%s3 + $0x2c] sm:$0xf]
    %v736 = vld [vmem:[%s3 + $0x30] sm:$0xf]
    %v737 = vld [vmem:[%s3 + $0x34] sm:$0xf]
    %v738 = vld [vmem:[%s3 + $0x38] sm:$0xf]
    %v739 = vld [vmem:[%s3 + $0x3c] sm:$0xf]
    %v740 = vld [vmem:[%s3 + $0x40] sm:$0xf]
    %v741 = vld [vmem:[%s3 + $0x44] sm:$0xf]
    %v742 = vld [vmem:[%s3 + $0x48] sm:$0xf]
    %v743 = vld [vmem:[%s3 + $0x4c] sm:$0xf]
    %v744 = vld [vmem:[%s3 + $0x50] sm:$0xf]
    %v745 = vld [vmem:[%s3 + $0x54] sm:$0xf]
    %v746 = vld [vmem:[%s3 + $0x58] sm:$0xf]
    %v747 = vld [vmem:[%s3 + $0x5c] sm:$0xf]
    %v748 = vld [vmem:[%s3 + $0x60] sm:$0xf]
    %v749 = vld [vmem:[%s3 + $0x64] sm:$0xf]
    %v750 = vld [vmem:[%s3 + $0x68] sm:$0xf]
    %v751 = vld [vmem:[%s3 + $0x6c] sm:$0xf]
    %v752 = vld [vmem:[%s3 + $0x70] sm:$0xf]
    %v753 = vld [vmem:[%s3 + $0x74] sm:$0xf]
    %v754 = vld [vmem:[%s3 + $0x78] sm:$0xf]
    %v755 = vld [vmem:[%s3 + $0x7c] sm:$0xf]
    %v756 = vld [vmem:[%s3 + $0x80] sm:$0xf]
    %v757 = vld [vmem:[%s3 + $0x84] sm:$0xf]
    %v758 = vld [vmem:[%s3 + $0x88] sm:$0xf]
    %v759 = vld [vmem:[%s3 + $0x8c] sm:$0xf]
    %v760 = vld [vmem:[%s3 + $0x90] sm:$0xf]
    %v761 = vld [vmem:[%s3 + $0x94] sm:$0xf]
    %v762 = vld [vmem:[%s3 + $0x98] sm:$0xf]
    %v763 = vld [vmem:[%s3 + $0x9c] sm:$0xf]
    %v764 = vld [vmem:[%s3 + $0xa0] sm:$0xf]
    %v765 = vld [vmem:[%s3 + $0xa4] sm:$0xf]
    %v766 = vld [vmem:[%s3 + $0xa8] sm:$0xf]
    %v767 = vld [vmem:[%s3 + $0xac] sm:$0xf]
    %v768 = vld [vmem:[%s3 + $0xb0] sm:$0xf]
    %v769 = vld [vmem:[%s3 + $0xb4] sm:$0xf]
    %v770 = vld [vmem:[%s3 + $0xb8] sm:$0xf]
    %v771 = vld [vmem:[%s3 + $0xbc] sm:$0xf]
    %v772 = vld [vmem:[%s3 + $0xc0] sm:$0xf]
    %v773 = vld [vmem:[%s3 + $0xc4] sm:$0xf]
    %v774 = vld [vmem:[%s3 + $0xc8] sm:$0xf]
    %v775 = vld [vmem:[%s3 + $0xcc] sm:$0xf]
    %v776 = vld [vmem:[%s3 + $0xd0] sm:$0xf]
    %v777 = vld [vmem:[%s3 + $0xd4] sm:$0xf]
    %v778 = vld [vmem:[%s3 + $0xd8] sm:$0xf]
    %v779 = vld [vmem:[%s3 + $0xdc] sm:$0xf]
    %v780 = vld [vmem:[%s3 + $0xe0] sm:$0xf]
    %v781 = vld [vmem:[%s3 + $0xe4] sm:$0xf]
    %v782 = vld [vmem:[%s3 + $0xe8] sm:$0xf]
    %v783 = vld [vmem:[%s3 + $0xec] sm:$0xf]
    %v784 = vld [vmem:[%s3 + $0xf0] sm:$0xf]
    %v785 = vld [vmem:[%s3 + $0xf4] sm:$0xf]
    %v786 = vld [vmem:[%s3 + $0xf8] sm:$0xf]
    %v787 = vld [vmem:[%s3 + $0xfc] sm:$0xf]
    %v788 = vld [vmem:[%s3 + $0x100] sm:$0xf]
    %v789 = vld [vmem:[%s3 + $0x104] sm:$0xf]
    %v790 = vld [vmem:[%s3 + $0x108] sm:$0xf]
    %v791 = vld [vmem:[%s3 + $0x10c] sm:$0xf]
    %v792 = vld [vmem:[%s3 + $0x110] sm:$0xf]
    %v793 = vld [vmem:[%s3 + $0x114] sm:$0xf]
    %v794 = vld [vmem:[%s3 + $0x118] sm:$0xf]
    %v795 = vld [vmem:[%s3 + $0x11c] sm:$0xf]
    %v796 = vld [vmem:[%s3 + $0x120] sm:$0xf]
    %v797 = vld [vmem:[%s3 + $0x124] sm:$0xf]
    %v798 = vld [vmem:[%s3 + $0x128] sm:$0xf]
    %v799 = vld [vmem:[%s3 + $0x12c] sm:$0xf]
    %v800 = vld [vmem:[%s3 + $0x130] sm:$0xf]
    %v801 = vld [vmem:[%s3 + $0x134] sm:$0xf]
    %v802 = vld [vmem:[%s3 + $0x138] sm:$0xf]
    %v803 = vld [vmem:[%s3 + $0x13c] sm:$0xf]
    %v804 = vld [vmem:[%s3 + $0x140] sm:$0xf]
    %v805 = vld [vmem:[%s3 + $0x144] sm:$0xf]
    %v806 = vld [vmem:[%s3 + $0x148] sm:$0xf]
    %v807 = vld [vmem:[%s3 + $0x14c] sm:$0xf]
    %v808 = vld [vmem:[%s3 + $0x150] sm:$0xf]
    %v809 = vld [vmem:[%s3 + $0x154] sm:$0xf]
    %v810 = vld [vmem:[%s3 + $0x158] sm:$0xf]
    %v811 = vld [vmem:[%s3 + $0x15c] sm:$0xf]
    %v812 = vld [vmem:[%s3 + $0x160] sm:$0xf]
    %v813 = vld [vmem:[%s3 + $0x164] sm:$0xf]
    %v814 = vld [vmem:[%s3 + $0x168] sm:$0xf]
    %v815 = vld [vmem:[%s3 + $0x16c] sm:$0xf]
    %v816 = vld [vmem:[%s3 + $0x170] sm:$0xf]
    %v817 = vld [vmem:[%s3 + $0x174] sm:$0xf]
    %v818 = vld [vmem:[%s3 + $0x178] sm:$0xf]
    %v819 = vld [vmem:[%s3 + $0x17c] sm:$0xf]
    %v820 = vld [vmem:[%s3 + $0x180] sm:$0xf]
    %v821 = vld [vmem:[%s3 + $0x184] sm:$0xf]
    %v822 = vld [vmem:[%s3 + $0x188] sm:$0xf]
    %v823 = vld [vmem:[%s3 + $0x18c] sm:$0xf]
    %v824 = vld [vmem:[%s3 + $0x190] sm:$0xf]
    %v825 = vld [vmem:[%s3 + $0x194] sm:$0xf]
    %v826 = vld [vmem:[%s3 + $0x198] sm:$0xf]
    %v827 = vld [vmem:[%s3 + $0x19c] sm:$0xf]
    %v828 = vld [vmem:[%s3 + $0x1a0] sm:$0xf]
    %v829 = vld [vmem:[%s3 + $0x1a4] sm:$0xf]
    %v830 = vld [vmem:[%s3 + $0x1a8] sm:$0xf]
    %v831 = vld [vmem:[%s3 + $0x1ac] sm:$0xf]
    %v832 = vld [vmem:[%s3 + $0x1b0] sm:$0xf]
    %v833 = vld [vmem:[%s3 + $0x1b4] sm:$0xf]
    %v834 = vld [vmem:[%s3 + $0x1b8] sm:$0xf]
    %v835 = vld [vmem:[%s3 + $0x1bc] sm:$0xf]
    %v836 = vld [vmem:[%s3 + $0x1c0] sm:$0xf]
    %v837 = vld [vmem:[%s3 + $0x1c4] sm:$0xf]
    %v838 = vld [vmem:[%s3 + $0x1c8] sm:$0xf]
    %v839 = vld [vmem:[%s3 + $0x1cc] sm:$0xf]
    %v840 = vld [vmem:[%s3 + $0x1d0] sm:$0xf]
    %v841 = vld [vmem:[%s3 + $0x1d4] sm:$0xf]
    %v842 = vld [vmem:[%s3 + $0x1d8] sm:$0xf]
    %v843 = vld [vmem:[%s3 + $0x1dc] sm:$0xf]
    %v844 = vld [vmem:[%s3 + $0x1e0] sm:$0xf]
    %v845 = vld [vmem:[%s3 + $0x1e4] sm:$0xf]
    %v846 = vld [vmem:[%s3 + $0x1e8] sm:$0xf]
    %v847 = vld [vmem:[%s3 + $0x1ec] sm:$0xf]
    %v848 = vld [vmem:[%s3 + $0x1f0] sm:$0xf]
    %v849 = vld [vmem:[%s3 + $0x1f4] sm:$0xf]
    %v850 = vld [vmem:[%s3 + $0x1f8] sm:$0xf]
    %v851 = vld [vmem:[%s3 + $0x1fc] sm:$0xf]
    %v852 = vld [vmem:[%s4] sm:$0x1]
    %v854 = vlaneseq
    %v855 = vshrl.u32 %v854, 7
    %v856 = vsub.s32 0, %v855
    %v857 = vrot.slane %v852, %v856
    %v987 = vunpack.c.l.b16 %v724
    %v988 = vunpack.c.l.b16 %v725
    %v989 = vunpack.c.l.b16 %v726
    %v990 = vunpack.c.l.b16 %v727
    %v991 = vunpack.c.l.b16 %v728
    %v992 = vunpack.c.l.b16 %v729
    %v993 = vunpack.c.l.b16 %v730
    %v994 = vunpack.c.l.b16 %v731
    %v995 = vunpack.c.l.b16 %v732
    %v996 = vunpack.c.l.b16 %v733
    %v997 = vunpack.c.l.b16 %v734
    %v998 = vunpack.c.l.b16 %v735
    %v999 = vunpack.c.l.b16 %v736
    %v1000 = vunpack.c.l.b16 %v737
    %v1001 = vunpack.c.l.b16 %v738
    %v1002 = vunpack.c.l.b16 %v739
    %v1003 = vunpack.c.l.b16 %v740
    %v1004 = vunpack.c.l.b16 %v741
    %v1005 = vunpack.c.l.b16 %v742
    %v1006 = vunpack.c.l.b16 %v743
    %v1007 = vunpack.c.l.b16 %v744
    %v1008 = vunpack.c.l.b16 %v745
    %v1009 = vunpack.c.l.b16 %v746
    %v1010 = vunpack.c.l.b16 %v747
    %v1011 = vunpack.c.l.b16 %v748
    %v1012 = vunpack.c.l.b16 %v749
    %v1013 = vunpack.c.l.b16 %v750
    %v1014 = vunpack.c.l.b16 %v751
    %v1015 = vunpack.c.l.b16 %v752
    %v1016 = vunpack.c.l.b16 %v753
    %v1017 = vunpack.c.l.b16 %v754
    %v1018 = vunpack.c.l.b16 %v755
    %v1019 = vunpack.c.l.b16 %v756
    %v1020 = vunpack.c.l.b16 %v757
    %v1021 = vunpack.c.l.b16 %v758
    %v1022 = vunpack.c.l.b16 %v759
    %v1023 = vunpack.c.l.b16 %v760
    %v1024 = vunpack.c.l.b16 %v761
    %v1025 = vunpack.c.l.b16 %v762
    %v1026 = vunpack.c.l.b16 %v763
    %v1027 = vunpack.c.l.b16 %v764
    %v1028 = vunpack.c.l.b16 %v765
    %v1029 = vunpack.c.l.b16 %v766
    %v1030 = vunpack.c.l.b16 %v767
    %v1031 = vunpack.c.l.b16 %v768
    %v1032 = vunpack.c.l.b16 %v769
    %v1033 = vunpack.c.l.b16 %v770
    %v1034 = vunpack.c.l.b16 %v771
    %v1035 = vunpack.c.l.b16 %v772
    %v1036 = vunpack.c.l.b16 %v773
    %v1037 = vunpack.c.l.b16 %v774
    %v1038 = vunpack.c.l.b16 %v775
    %v1039 = vunpack.c.l.b16 %v776
    %v1040 = vunpack.c.l.b16 %v777
    %v1041 = vunpack.c.l.b16 %v778
    %v1042 = vunpack.c.l.b16 %v779
    %v1043 = vunpack.c.l.b16 %v780
    %v1044 = vunpack.c.l.b16 %v781
    %v1045 = vunpack.c.l.b16 %v782
    %v1046 = vunpack.c.l.b16 %v783
    %v1047 = vunpack.c.l.b16 %v784
    %v1048 = vunpack.c.l.b16 %v785
    %v1049 = vunpack.c.l.b16 %v786
    %v1050 = vunpack.c.l.b16 %v787
    %v1051 = vunpack.c.l.b16 %v788
    %v1052 = vunpack.c.l.b16 %v789
    %v1053 = vunpack.c.l.b16 %v790
    %v1054 = vunpack.c.l.b16 %v791
    %v1055 = vunpack.c.l.b16 %v792
    %v1056 = vunpack.c.l.b16 %v793
    %v1057 = vunpack.c.l.b16 %v794
    %v1058 = vunpack.c.l.b16 %v795
    %v1059 = vunpack.c.l.b16 %v796
    %v1060 = vunpack.c.l.b16 %v797
    %v1061 = vunpack.c.l.b16 %v798
    %v1062 = vunpack.c.l.b16 %v799
    %v1063 = vunpack.c.l.b16 %v800
    %v1064 = vunpack.c.l.b16 %v801
    %v1065 = vunpack.c.l.b16 %v802
    %v1066 = vunpack.c.l.b16 %v803
    %v1067 = vunpack.c.l.b16 %v804
    %v1068 = vunpack.c.l.b16 %v805
    %v1069 = vunpack.c.l.b16 %v806
    %v1070 = vunpack.c.l.b16 %v807
    %v1071 = vunpack.c.l.b16 %v808
    %v1072 = vunpack.c.l.b16 %v809
    %v1073 = vunpack.c.l.b16 %v810
    %v1074 = vunpack.c.l.b16 %v811
    %v1075 = vunpack.c.l.b16 %v812
    %v1076 = vunpack.c.l.b16 %v813
    %v1077 = vunpack.c.l.b16 %v814
    %v1078 = vunpack.c.l.b16 %v815
    %v1079 = vunpack.c.l.b16 %v816
    %v1080 = vunpack.c.l.b16 %v817
    %v1081 = vunpack.c.l.b16 %v818
    %v1082 = vunpack.c.l.b16 %v819
    %v1083 = vunpack.c.l.b16 %v820
    %v1084 = vunpack.c.l.b16 %v821
    %v1085 = vunpack.c.l.b16 %v822
    %v1086 = vunpack.c.l.b16 %v823
    %v1087 = vunpack.c.l.b16 %v824
    %v1088 = vunpack.c.l.b16 %v825
    %v1089 = vunpack.c.l.b16 %v826
    %v1090 = vunpack.c.l.b16 %v827
    %v1091 = vunpack.c.l.b16 %v828
    %v1092 = vunpack.c.l.b16 %v829
    %v1093 = vunpack.c.l.b16 %v830
    %v1094 = vunpack.c.l.b16 %v831
    %v1095 = vunpack.c.l.b16 %v832
    %v1096 = vunpack.c.l.b16 %v833
    %v1097 = vunpack.c.l.b16 %v834
    %v1098 = vunpack.c.l.b16 %v835
    %v1099 = vunpack.c.l.b16 %v836
    %v1100 = vunpack.c.l.b16 %v837
    %v1101 = vunpack.c.l.b16 %v838
    %v1102 = vunpack.c.l.b16 %v839
    %v1103 = vunpack.c.l.b16 %v840
    %v1104 = vunpack.c.l.b16 %v841
    %v1105 = vunpack.c.l.b16 %v842
    %v1106 = vunpack.c.l.b16 %v843
    %v1107 = vunpack.c.l.b16 %v844
    %v1108 = vunpack.c.l.b16 %v845
    %v1109 = vunpack.c.l.b16 %v846
    %v1110 = vunpack.c.l.b16 %v847
    %v1111 = vunpack.c.l.b16 %v848
    %v1112 = vunpack.c.l.b16 %v849
    %v1113 = vunpack.c.l.b16 %v850
    %v1114 = vunpack.c.l.b16 %v851
    %v1115 = vpack.c.b16 %v988, %v987
    %v1116 = vpack.c.b16 %v990, %v989
    %v1117 = vpack.c.b16 %v992, %v991
    %v1118 = vpack.c.b16 %v994, %v993
    %v1119 = vpack.c.b16 %v996, %v995
    %v1120 = vpack.c.b16 %v998, %v997
    %v1121 = vpack.c.b16 %v1000, %v999
    %v1122 = vpack.c.b16 %v1002, %v1001
    %v1123 = vpack.c.b16 %v1004, %v1003
    %v1124 = vpack.c.b16 %v1006, %v1005
    %v1125 = vpack.c.b16 %v1008, %v1007
    %v1126 = vpack.c.b16 %v1010, %v1009
    %v1127 = vpack.c.b16 %v1012, %v1011
    %v1128 = vpack.c.b16 %v1014, %v1013
    %v1129 = vpack.c.b16 %v1016, %v1015
    %v1130 = vpack.c.b16 %v1018, %v1017
    %v1131 = vpack.c.b16 %v1020, %v1019
    %v1132 = vpack.c.b16 %v1022, %v1021
    %v1133 = vpack.c.b16 %v1024, %v1023
    %v1134 = vpack.c.b16 %v1026, %v1025
    %v1135 = vpack.c.b16 %v1028, %v1027
    %v1136 = vpack.c.b16 %v1030, %v1029
    %v1137 = vpack.c.b16 %v1032, %v1031
    %v1138 = vpack.c.b16 %v1034, %v1033
    %v1139 = vpack.c.b16 %v1036, %v1035
    %v1140 = vpack.c.b16 %v1038, %v1037
    %v1141 = vpack.c.b16 %v1040, %v1039
    %v1142 = vpack.c.b16 %v1042, %v1041
    %v1143 = vpack.c.b16 %v1044, %v1043
    %v1144 = vpack.c.b16 %v1046, %v1045
    %v1145 = vpack.c.b16 %v1048, %v1047
    %v1146 = vpack.c.b16 %v1050, %v1049
    %v1147 = vpack.c.b16 %v1052, %v1051
    %v1148 = vpack.c.b16 %v1054, %v1053
    %v1149 = vpack.c.b16 %v1056, %v1055
    %v1150 = vpack.c.b16 %v1058, %v1057
    %v1151 = vpack.c.b16 %v1060, %v1059
    %v1152 = vpack.c.b16 %v1062, %v1061
    %v1153 = vpack.c.b16 %v1064, %v1063
    %v1154 = vpack.c.b16 %v1066, %v1065
    %v1155 = vpack.c.b16 %v1068, %v1067
    %v1156 = vpack.c.b16 %v1070, %v1069
    %v1157 = vpack.c.b16 %v1072, %v1071
    %v1158 = vpack.c.b16 %v1074, %v1073
    %v1159 = vpack.c.b16 %v1076, %v1075
    %v1160 = vpack.c.b16 %v1078, %v1077
    %v1161 = vpack.c.b16 %v1080, %v1079
    %v1162 = vpack.c.b16 %v1082, %v1081
    %v1163 = vpack.c.b16 %v1084, %v1083
    %v1164 = vpack.c.b16 %v1086, %v1085
    %v1165 = vpack.c.b16 %v1088, %v1087
    %v1166 = vpack.c.b16 %v1090, %v1089
    %v1167 = vpack.c.b16 %v1092, %v1091
    %v1168 = vpack.c.b16 %v1094, %v1093
    %v1169 = vpack.c.b16 %v1096, %v1095
    %v1170 = vpack.c.b16 %v1098, %v1097
    %v1171 = vpack.c.b16 %v1100, %v1099
    %v1172 = vpack.c.b16 %v1102, %v1101
    %v1173 = vpack.c.b16 %v1104, %v1103
    %v1174 = vpack.c.b16 %v1106, %v1105
    %v1175 = vpack.c.b16 %v1108, %v1107
    %v1176 = vpack.c.b16 %v1110, %v1109
    %v1177 = vpack.c.b16 %v1112, %v1111
    %v1178 = vpack.c.b16 %v1114, %v1113
    %1243 = vmatprep.subr.bf16.mxu0 0
    %1244 = vmatpush1.bf16.msra.mxu0 %v1115
    %1245 = vmatprep.subr.bf16.mxu0 0
    %1246 = vmatpush1.bf16.msra.mxu0 %v1116
    %1247 = vmatprep.subr.bf16.mxu0 0
    %1248 = vmatpush1.bf16.msra.mxu0 %v1117
    %1249 = vmatprep.subr.bf16.mxu0 0
    %1250 = vmatpush1.bf16.msra.mxu0 %v1118
    %1251 = vmatprep.subr.bf16.mxu0 0
    %1252 = vmatpush1.bf16.msra.mxu0 %v1119
    %1253 = vmatprep.subr.bf16.mxu0 0
    %1254 = vmatpush1.bf16.msra.mxu0 %v1120
    %1255 = vmatprep.subr.bf16.mxu0 0
    %1256 = vmatpush1.bf16.msra.mxu0 %v1121
    %1257 = vmatprep.subr.bf16.mxu0 0
    %1258 = vmatpush1.bf16.msra.mxu0 %v1122
    %1259 = vmatprep.subr.bf16.mxu0 0
    %1260 = vmatpush1.bf16.msra.mxu0 %v1123
    %1261 = vmatprep.subr.bf16.mxu0 0
    %1262 = vmatpush1.bf16.msra.mxu0 %v1124
    %1263 = vmatprep.subr.bf16.mxu0 0
    %1264 = vmatpush1.bf16.msra.mxu0 %v1125
    %1265 = vmatprep.subr.bf16.mxu0 0
    %1266 = vmatpush1.bf16.msra.mxu0 %v1126
    %1267 = vmatprep.subr.bf16.mxu0 0
    %1268 = vmatpush1.bf16.msra.mxu0 %v1127
    %1269 = vmatprep.subr.bf16.mxu0 0
    %1270 = vmatpush1.bf16.msra.mxu0 %v1128
    %1271 = vmatprep.subr.bf16.mxu0 0
    %1272 = vmatpush1.bf16.msra.mxu0 %v1129
    %1273 = vmatprep.subr.bf16.mxu0 0
    %1274 = vmatpush1.bf16.msra.mxu0 %v1130
    %1275 = vmatprep.mubr.bf16.mxu0 %v709
    %1276 = vmatmul.mubr.bf16.gmra.mrb[0].mxu0 %v708
    %v1277 = vpop.f32.mrb[0].mxu0
    %v1278 = vadd.f32 %v857, %v1277
    %v1279 = vpop.f32.mrb[0].mxu0
    %v1280 = vpop.f32.mrb[0].mxu0
    %v1281 = vadd.f32 %v857, %v1280
    %v1282 = vpop.f32.mrb[0].mxu0
    %1283 = vmatprep.mubr.bf16.mxu0 %v717
    %1284 = vmatmul.mubr.bf16.gmra.mrb[0].mxu0 %v716
    %v1285 = vpop.f32.mrb[0].mxu0
    %v1286 = vadd.f32 %v857, %v1285
    %v1287 = vpop.f32.mrb[0].mxu0
    %v1288 = vpop.f32.mrb[0].mxu0
    %v1289 = vadd.f32 %v857, %v1288
    %v1290 = vpop.f32.mrb[0].mxu0
    %1291 = vdwg.mxu0
    %1292 = vmatprep.subr.bf16.mxu0 0
    %1293 = vmatpush1.bf16.msra.mxu0 %v1131
    %1294 = vmatprep.subr.bf16.mxu0 0
    %1295 = vmatpush1.bf16.msra.mxu0 %v1132
    %1296 = vmatprep.subr.bf16.mxu0 0
    %1297 = vmatpush1.bf16.msra.mxu0 %v1133
    %1298 = vmatprep.subr.bf16.mxu0 0
    %1299 = vmatpush1.bf16.msra.mxu0 %v1134
    %1300 = vmatprep.subr.bf16.mxu0 0
    %1301 = vmatpush1.bf16.msra.mxu0 %v1135
    %1302 = vmatprep.subr.bf16.mxu0 0
    %1303 = vmatpush1.bf16.msra.mxu0 %v1136
    %1304 = vmatprep.subr.bf16.mxu0 0
    %1305 = vmatpush1.bf16.msra.mxu0 %v1137
    %1306 = vmatprep.subr.bf16.mxu0 0
    %1307 = vmatpush1.bf16.msra.mxu0 %v1138
    %1308 = vmatprep.subr.bf16.mxu0 0
    %1309 = vmatpush1.bf16.msra.mxu0 %v1139
    %1310 = vmatprep.subr.bf16.mxu0 0
    %1311 = vmatpush1.bf16.msra.mxu0 %v1140
    %1312 = vmatprep.subr.bf16.mxu0 0
    %1313 = vmatpush1.bf16.msra.mxu0 %v1141
    %1314 = vmatprep.subr.bf16.mxu0 0
    %1315 = vmatpush1.bf16.msra.mxu0 %v1142
    %1316 = vmatprep.subr.bf16.mxu0 0
    %1317 = vmatpush1.bf16.msra.mxu0 %v1143
    %1318 = vmatprep.subr.bf16.mxu0 0
    %1319 = vmatpush1.bf16.msra.mxu0 %v1144
    %1320 = vmatprep.subr.bf16.mxu0 0
    %1321 = vmatpush1.bf16.msra.mxu0 %v1145
    %1322 = vmatprep.subr.bf16.mxu0 0
    %1323 = vmatpush1.bf16.msra.mxu0 %v1146
    %1324 = vmatprep.mubr.bf16.mxu0 %v711
    %1325 = vmatmul.mubr.bf16.gmra.mrb[0].mxu0 %v710
    %v1326 = vpop.f32.mrb[0].mxu0
    %v1327 = vadd.f32 %v1278, %v1326
    %v1328 = vpop.f32.mrb[0].mxu0
    %v1329 = vpop.f32.mrb[0].mxu0
    %v1330 = vadd.f32 %v1281, %v1329
    %v1331 = vpop.f32.mrb[0].mxu0
    %1332 = vmatprep.mubr.bf16.mxu0 %v719
    %1333 = vmatmul.mubr.bf16.gmra.mrb[0].mxu0 %v718
    %v1334 = vpop.f32.mrb[0].mxu0
    %v1335 = vadd.f32 %v1286, %v1334
    %v1336 = vpop.f32.mrb[0].mxu0
    %v1337 = vpop.f32.mrb[0].mxu0
    %v1338 = vadd.f32 %v1289, %v1337
    %v1339 = vpop.f32.mrb[0].mxu0
    %1340 = vdwg.mxu0
    %1341 = vmatprep.subr.bf16.mxu0 0
    %1342 = vmatpush1.bf16.msra.mxu0 %v1147
    %1343 = vmatprep.subr.bf16.mxu0 0
    %1344 = vmatpush1.bf16.msra.mxu0 %v1148
    %1345 = vmatprep.subr.bf16.mxu0 0
    %1346 = vmatpush1.bf16.msra.mxu0 %v1149
    %1347 = vmatprep.subr.bf16.mxu0 0
    %1348 = vmatpush1.bf16.msra.mxu0 %v1150
    %1349 = vmatprep.subr.bf16.mxu0 0
    %1350 = vmatpush1.bf16.msra.mxu0 %v1151
    %1351 = vmatprep.subr.bf16.mxu0 0
    %1352 = vmatpush1.bf16.msra.mxu0 %v1152
    %1353 = vmatprep.subr.bf16.mxu0 0
    %1354 = vmatpush1.bf16.msra.mxu0 %v1153
    %1355 = vmatprep.subr.bf16.mxu0 0
    %1356 = vmatpush1.bf16.msra.mxu0 %v1154
    %1357 = vmatprep.subr.bf16.mxu0 0
    %1358 = vmatpush1.bf16.msra.mxu0 %v1155
    %1359 = vmatprep.subr.bf16.mxu0 0
    %1360 = vmatpush1.bf16.msra.mxu0 %v1156
    %1361 = vmatprep.subr.bf16.mxu0 0
    %1362 = vmatpush1.bf16.msra.mxu0 %v1157
    %1363 = vmatprep.subr.bf16.mxu0 0
    %1364 = vmatpush1.bf16.msra.mxu0 %v1158
    %1365 = vmatprep.subr.bf16.mxu0 0
    %1366 = vmatpush1.bf16.msra.mxu0 %v1159
    %1367 = vmatprep.subr.bf16.mxu0 0
    %1368 = vmatpush1.bf16.msra.mxu0 %v1160
    %1369 = vmatprep.subr.bf16.mxu0 0
    %1370 = vmatpush1.bf16.msra.mxu0 %v1161
    %1371 = vmatprep.subr.bf16.mxu0 0
    %1372 = vmatpush1.bf16.msra.mxu0 %v1162
    %1373 = vmatprep.mubr.bf16.mxu0 %v713
    %1374 = vmatmul.mubr.bf16.gmra.mrb[0].mxu0 %v712
    %v1375 = vpop.f32.mrb[0].mxu0
    %v1376 = vadd.f32 %v1327, %v1375
    %v1377 = vpop.f32.mrb[0].mxu0
    %v1378 = vpop.f32.mrb[0].mxu0
    %v1379 = vadd.f32 %v1330, %v1378
    %v1380 = vpop.f32.mrb[0].mxu0
    %1381 = vmatprep.mubr.bf16.mxu0 %v721
    %1382 = vmatmul.mubr.bf16.gmra.mrb[0].mxu0 %v720
    %v1383 = vpop.f32.mrb[0].mxu0
    %v1384 = vadd.f32 %v1335, %v1383
    %v1385 = vpop.f32.mrb[0].mxu0
    %v1386 = vpop.f32.mrb[0].mxu0
    %v1387 = vadd.f32 %v1338, %v1386
    %v1388 = vpop.f32.mrb[0].mxu0
    %1389 = vdwg.mxu0
    %1390 = vmatprep.subr.bf16.mxu0 0
    %1391 = vmatpush1.bf16.msra.mxu0 %v1163
    %1392 = vmatprep.subr.bf16.mxu0 0
    %1393 = vmatpush1.bf16.msra.mxu0 %v1164
    %1394 = vmatprep.subr.bf16.mxu0 0
    %1395 = vmatpush1.bf16.msra.mxu0 %v1165
    %1396 = vmatprep.subr.bf16.mxu0 0
    %1397 = vmatpush1.bf16.msra.mxu0 %v1166
    %1398 = vmatprep.subr.bf16.mxu0 0
    %1399 = vmatpush1.bf16.msra.mxu0 %v1167
    %1400 = vmatprep.subr.bf16.mxu0 0
    %1401 = vmatpush1.bf16.msra.mxu0 %v1168
    %1402 = vmatprep.subr.bf16.mxu0 0
    %1403 = vmatpush1.bf16.msra.mxu0 %v1169
    %1404 = vmatprep.subr.bf16.mxu0 0
    %1405 = vmatpush1.bf16.msra.mxu0 %v1170
    %1406 = vmatprep.subr.bf16.mxu0 0
    %1407 = vmatpush1.bf16.msra.mxu0 %v1171
    %1408 = vmatprep.subr.bf16.mxu0 0
    %1409 = vmatpush1.bf16.msra.mxu0 %v1172
    %1410 = vmatprep.subr.bf16.mxu0 0
    %1411 = vmatpush1.bf16.msra.mxu0 %v1173
    %1412 = vmatprep.subr.bf16.mxu0 0
    %1413 = vmatpush1.bf16.msra.mxu0 %v1174
    %1414 = vmatprep.subr.bf16.mxu0 0
    %1415 = vmatpush1.bf16.msra.mxu0 %v1175
    %1416 = vmatprep.subr.bf16.mxu0 0
    %1417 = vmatpush1.bf16.msra.mxu0 %v1176
    %1418 = vmatprep.subr.bf16.mxu0 0
    %1419 = vmatpush1.bf16.msra.mxu0 %v1177
    %1420 = vmatprep.subr.bf16.mxu0 0
    %1421 = vmatpush1.bf16.msra.mxu0 %v1178
    %1422 = vmatprep.mubr.bf16.mxu0 %v715
    %1423 = vmatmul.mubr.bf16.gmra.mrb[0].mxu0 %v714
    %v1424 = vpop.f32.mrb[0].mxu0
    %v1425 = vadd.f32 %v1376, %v1424
    %v1426 = vpop.f32.mrb[0].mxu0
    %v1427 = vpop.f32.mrb[0].mxu0
    %v1428 = vadd.f32 %v1379, %v1427
    %v1429 = vpop.f32.mrb[0].mxu0
    %1430 = vmatprep.mubr.bf16.mxu0 %v723
    %1431 = vmatmul.mubr.bf16.gmra.mrb[0].mxu0 %v722
    %v1432 = vpop.f32.mrb[0].mxu0
    %v1433 = vadd.f32 %v1384, %v1432
    %v1434 = vpop.f32.mrb[0].mxu0
    %v1435 = vpop.f32.mrb[0].mxu0
    %v1436 = vadd.f32 %v1387, %v1435
    %v1437 = vpop.f32.mrb[0].mxu0
    %1438 = vdwg.mxu0
    %v1439 = vmax.f32 %v1425, 0.0
    %v1440 = vmax.f32 %v1428, 0.0
    %v1441 = vmax.f32 %v1433, 0.0
    %v1442 = vmax.f32 %v1436, 0.0
    %1443 = vst [vmem:[#allocation2] sm:$0xff] %v1439
    %1444 = vst [vmem:[#allocation2 + $0x8] sm:$0xff] %v1440
    %1445 = vst [vmem:[#allocation2 + $0x10] sm:$0xff] %v1441
    %1446 = vst [vmem:[#allocation2 + $0x18] sm:$0xff] %v1442
    // Predicated region
    $region22: #{scene_embed2_fwd.44} parent=1 // pred_check
      _
    $region23: #{scene_embed2_fwd.44} parent=1 // pred_check_branch
      %1448 = sbr.rel (0) target = $region25
    $region24: #{scene_embed2_fwd.44} parent=1 // pred_region
      %s1450 = ssub.s32 512, 512
      %1451 = vsyncadd [#allocation3], %s1450
      %s1452 = sshll.u32 [#allocation2], 4
      %s1453 = int_to_ptr.vmem [resolvable:$true] %s1452
      %1458 = dma.vmem_to_hbm [thread:$0]  %s1453, 512, %s5, [#allocation3], 128, 128, 8
    $region25: #{scene_embed2_fwd.44} parent=1 // pred_fallthru
      _
    // Predicated region
    $region26: #{scene_embed2_fwd.44} parent=1 // pred_check
      _
    $region27: #{scene_embed2_fwd.44} parent=1 // pred_check_branch
      %1460 = sbr.rel (0) target = $region29
    $region28: #{scene_embed2_fwd.44} parent=1 // pred_region
      %1461 = dma.done [#allocation3], 512
    $region29: #{scene_embed2_fwd.44} parent=1 // pred_fallthru
      _
    %1462 = vsyncpa [#allocation3], 1

</llo_original>
